<compile_context>
chip_gen: v7x
topology: tpu7x:2x2x1
jax: 0.10.0
libtpu: 0.0.40
codegen_flags: <defaults>
</compile_context>

<pallas_src>
import math

import jax
import jax.numpy as jnp
import numpy as np
from jax.experimental import pallas as pl
from jax.experimental.pallas import tpu as pltpu


_TAPS_3x3 = tuple((i, j) for i in range(3) for j in range(3))   # t = i*3 + j


def _round_up8(n):
    return ((n + 7) // 8) * 8


def _conv_out(h):
    # Conv2d(kernel=3, stride=2, dilation=2, padding=2) output size
    return (h + 2 * 2 - 2 * (3 - 1) - 1) // 2 + 1


# ---------------------------------------------------------------------------
# Selection-matrix builders (host side, run once).
#
# Activations are stored transposed as (channels, pixels) with pixel
# p = h*W + w.  A conv layer is
#     out[co, q] = relu( sum_t  W_t[co, :] @ (X @ S_t)[:, q]  + b[co] )
# where S_t[p, q] = 1 iff output pixel q reads *real* input pixel p at tap t
# (stride / dilation / padding / transposed-conv zero-insertion are all folded
# into S, so padded or inserted-zero positions simply select nothing).
# NOTE: pixel counts are padded up to a multiple of 8; padded columns carry
# relu(bias) garbage between layers, which is safe ONLY because every
# downstream S has all-zero rows for those padded p.
# ---------------------------------------------------------------------------
def _build_conv_select(Hi, Wi, Ho, Wo):
    Pi, Po = _round_up8(Hi * Wi), _round_up8(Ho * Wo)
    s = np.zeros((9, Pi, Po), np.float32)
    for t, (i, j) in enumerate(_TAPS_3x3):
        for ho in range(Ho):
            hi = 2 * ho + 2 * i - 2          # stride=2, dilation=2, padding=2
            if not (0 <= hi < Hi):
                continue
            for wo in range(Wo):
                wi = 2 * wo + 2 * j - 2
                if 0 <= wi < Wi:
                    s[t, hi * Wi + wi, ho * Wo + wo] = 1.0
    return s


def _build_convT_select(Hi, Wi, Ho, Wo):
    Pi, Po = _round_up8(Hi * Wi), _round_up8(Ho * Wo)
    s = np.zeros((9, Pi, Po), np.float32)
    for t, (i, j) in enumerate(_TAPS_3x3):
        for ho in range(Ho):
            nh = ho + 1 - i                  # stride=2, padding=1: ho = 2*hi - 1 + i
            if nh % 2 != 0:
                continue
            hi = nh // 2
            if not (0 <= hi < Hi):
                continue
            for wo in range(Wo):
                nw = wo + 1 - j
                if nw % 2 != 0:
                    continue
                wi = nw // 2
                if 0 <= wi < Wi:
                    s[t, hi * Wi + wi, ho * Wo + wo] = 1.0
    return s


# ---------------------------------------------------------------------------
# Weight / bias packing (host side, runs once).
#
# Batched layout: activation row = n*C + c.  The im2col scratch holds
#     A[t*(N*Cin) + n*Cin + ci, q] = X[n*Cin + ci, p(t, q)]
# and the packed weight is block-diagonal over the batch:
#     W_big[n*Cout + co, t*(N*Cin) + n*Cin + ci] = W_t[co, ci]
# so a single matmul  W_big @ A  yields the next layer's (N*Cout, Po) layout.
# ---------------------------------------------------------------------------
def pack_params(params, H, W, N):
    spatial = [H]
    for _ in range(3):
        spatial.append(_conv_out(spatial[-1]))          # [16, 8, 4, 2]

    cfg = [
        # (name, kind, Hi, Ho, cin_pad)
        ("conv1", "conv", spatial[0], spatial[1], 8),
        ("conv2", "conv", spatial[1], spatial[2], 32),
        ("conv3", "conv", spatial[2], spatial[3], 32),
        ("up1", "convT", spatial[3], spatial[2], 32),
        ("up2", "convT", spatial[2], spatial[1], 32),
        ("up3", "convT", spatial[1], spatial[0], 32),
    ]

    packed = []
    for name, kind, Hi, Ho, cin_pad in cfg:
        w, b = params[name]
        w = np.asarray(w, np.float32)
        b = np.asarray(b, np.float32)
        if kind == "conv":
            cout, cin = w.shape[0], w.shape[1]
            sel = _build_conv_select(Hi, Hi, Ho, Ho)
            def tap_w(i, j, _w=w):
                return _w[:, :, i, j]                    # (Cout, Cin)
        else:
            cin, cout = w.shape[0], w.shape[1]
            sel = _build_convT_select(Hi, Hi, Ho, Ho)
            def tap_w(i, j, _w=w):
                return _w[:, :, i, j].T                  # (Cout, Cin) = w[ci, co].T

        nc = N * cin_pad
        w_big = np.zeros((N * cout, 9 * nc), np.float32)
        b_big = np.zeros((N * cout, 1), np.float32)
        for t, (i, j) in enumerate(_TAPS_3x3):
            wt = tap_w(i, j)
            for n in range(N):
                col0 = t * nc + n * cin_pad
                w_big[n * cout:(n + 1) * cout, col0:col0 + cin] = wt
        for n in range(N):
            b_big[n * cout:(n + 1) * cout, 0] = b

        packed += [jnp.asarray(sel, jnp.bfloat16),
                   jnp.asarray(w_big, jnp.bfloat16),
                   jnp.asarray(b_big, jnp.float32)]

    # up4: ConvTranspose2d(k, 1, 1) == 1x1 channel projection, no relu.
    # Output channel padded 1 -> 8 per image so the final store is lane-dense.
    w, b = params["up4"]
    w = np.asarray(w, np.float32)
    b = np.asarray(b, np.float32)
    k = w.shape[0]
    w7 = np.zeros((N * 8, N * k), np.float32)
    b7 = np.zeros((N * 8, 1), np.float32)
    for n in range(N):
        w7[n * 8, n * k:(n + 1) * k] = w[:, 0, 0, 0]
        b7[n * 8, 0] = b[0]
    packed += [jnp.asarray(w7, jnp.bfloat16), jnp.asarray(b7, jnp.float32)]
    return packed


# ---------------------------------------------------------------------------
# The single fused Pallas kernel (whole batch, one step, fully VMEM resident).
# ---------------------------------------------------------------------------
def _fcn_kernel(x_ref,
                s1, w1, b1, s2, w2, b2, s3, w3, b3,
                s4, w4, b4, s5, w5, b5, s6, w6, b6,
                w7, b7,
                out_ref, a_ref):
    def layer(h, s_ref, w_ref, b_ref):
        n_taps = s_ref.shape[0]
        po = s_ref.shape[2]
        rows = h.shape[0]                    # N * Cin_pad (16 or 64)
        kdim = w_ref.shape[1]                # 9 * N * Cin_pad (== n_taps*rows)
        # im2col stage: one exact 0/1 gather matmul per tap, stored bf16 into
        # its sublane-tile-aligned row band of the scratch.
        for t in range(n_taps):
            g = jnp.dot(h, s_ref[t], preferred_element_type=jnp.float32)
            a_ref[t * rows:(t + 1) * rows, :po] = g.astype(jnp.bfloat16)
        # single fused weight matmul: (N*Cout, 9*N*Cin) x (9*N*Cin, Po).
        acc = jnp.dot(w_ref[...], a_ref[:kdim, :po],
                      preferred_element_type=jnp.float32)
        acc = acc + b_ref[...]               # (N*Cout, 1) broadcasts over lanes
        return jnp.maximum(acc, 0.0).astype(jnp.bfloat16)

    h = x_ref[...]                           # (N*8, 256) bf16, channel-padded
    h = layer(h, s1, w1, b1)                 # conv1 + relu -> (N*32, 64)
    h = layer(h, s2, w2, b2)                 # conv2 + relu -> (N*32, 16)
    h = layer(h, s3, w3, b3)                 # conv3 + relu -> (N*32, 8)
    h = layer(h, s4, w4, b4)                 # up1   + relu -> (N*32, 16)
    h = layer(h, s5, w5, b5)                 # up2   + relu -> (N*32, 64)
    h = layer(h, s6, w6, b6)                 # up3   + relu -> (N*32, 256)
    # up4: 1x1 projection (block-diagonal over the batch), no relu, f32 out.
    out_ref[...] = jnp.dot(w7[...], h, preferred_element_type=jnp.float32) + b7[...]


def make_fcn_forward(packed, N, H, W, k=32):
    P0 = H * W
    x_shape = (N * 8, P0)
    out_shape2d = (N * 8, P0)

    def full_spec(shape):
        zeros = (0,) * len(shape)
        return pl.BlockSpec(shape, lambda *_: zeros)

    in_specs = [full_spec(x_shape)] + [full_spec(tuple(a.shape)) for a in packed]

    call = pl.pallas_call(
        _fcn_kernel,
        out_shape=jax.ShapeDtypeStruct(out_shape2d, jnp.float32),
        grid=(1,),
        in_specs=in_specs,
        out_specs=full_spec(out_shape2d),
        scratch_shapes=[pltpu.VMEM((9 * N * k, P0), jnp.bfloat16)],  # im2col
        compiler_params=pltpu.CompilerParams(
            dimension_semantics=("arbitrary",)),
    )

    @jax.jit
    def forward(x_nchw, *consts):
        # NCHW -> (N*8, P) bf16: batch on sublanes, pixels on lanes,
        # input channel padded 1 -> 8 per image.
        xt = x_nchw.reshape(N, 1, P0)
        xt = jnp.pad(xt, ((0, 0), (0, 7), (0, 0)))
        xt = xt.reshape(N * 8, P0).astype(jnp.bfloat16)
        out = call(xt, *consts)                           # (N*8, P0) f32
        return out.reshape(N, 8, P0)[:, 0, :].reshape(N, 1, H, W)

    return lambda x_nchw: forward(x_nchw, *packed)


# ---------------------------------------------------------------------------
# Deterministic parameter init (same layouts / init scheme as the nn.Module).
# ---------------------------------------------------------------------------
def init_params(key, k=32):
    def conv_init(key, cout, cin, kh, kw):
        fan_in = cin * kh * kw
        bound = 1.0 / math.sqrt(fan_in)
        kw_key, kb_key = jax.random.split(key)
        w = jax.random.uniform(kw_key, (cout, cin, kh, kw), jnp.float32, -bound, bound)
        b = jax.random.uniform(kb_key, (cout,), jnp.float32, -bound, bound)
        return w, b

    def convT_init(key, cin, cout, kh, kw):
        fan_in = cout * kh * kw
        bound = 1.0 / math.sqrt(fan_in)
        kw_key, kb_key = jax.random.split(key)
        w = jax.random.uniform(kw_key, (cin, cout, kh, kw), jnp.float32, -bound, bound)
        b = jax.random.uniform(kb_key, (cout,), jnp.float32, -bound, bound)
        return w, b

    keys = jax.random.split(key, 7)
    return {
        "conv1": conv_init(keys[0], k, 1, 3, 3),
        "conv2": conv_init(keys[1], k, k, 3, 3),
        "conv3": conv_init(keys[2], k, k, 3, 3),
        "up1": convT_init(keys[3], k, k, 3, 3),
        "up2": convT_init(keys[4], k, k, 3, 3),
        "up3": convT_init(keys[5], k, k, 3, 3),
        "up4": convT_init(keys[6], k, 1, 1, 1),
    }


# ---------------------------------------------------------------------------
# Pure-JAX f32 reference (im2col / zero-insert formulation) used only as an
# in-script correctness check.
# ---------------------------------------------------------------------------
def _conv2d_ref(x, w_oihw, bias, *, stride, dilation, padding, relu):
    N, H, W, Cin = x.shape
    Cout, _, kh, kw = w_oihw.shape
    Ho = (H + 2 * padding - dilation * (kh - 1) - 1) // stride + 1
    Wo = (W + 2 * padding - dilation * (kw - 1) - 1) // stride + 1
    xp = jnp.pad(x, ((0, 0), (padding, padding), (padding, padding), (0, 0)))
    cols = []
    for i in range(kh):
        for j in range(kw):
            hs, ws = i * dilation, j * dilation
            cols.append(xp[:, hs:hs + (Ho - 1) * stride + 1:stride,
                              ws:ws + (Wo - 1) * stride + 1:stride, :])
    a = jnp.concatenate(cols, axis=-1).reshape(N * Ho * Wo, kh * kw * Cin)
    bm = jnp.transpose(w_oihw, (2, 3, 1, 0)).reshape(kh * kw * Cin, Cout)
    out = a @ bm + bias
    if relu:
        out = jnp.maximum(out, 0.0)
    return out.reshape(N, Ho, Wo, Cout)


def _convT2d_ref(x, w_iohw, bias, *, stride, padding, output_padding, relu):
    N, H, W, Cin = x.shape
    _, Cout, kh, kw = w_iohw.shape
    if stride > 1:
        xd = jnp.zeros((N, (H - 1) * stride + 1, (W - 1) * stride + 1, Cin), x.dtype)
        xd = xd.at[:, ::stride, ::stride, :].set(x)
    else:
        xd = x
    pad_lo = kh - 1 - padding
    pad_hi = kh - 1 - padding + output_padding
    xp = jnp.pad(xd, ((0, 0), (pad_lo, pad_hi), (pad_lo, pad_hi), (0, 0)))
    w_eq = jnp.transpose(w_iohw[:, :, ::-1, ::-1], (1, 0, 2, 3))
    return _conv2d_ref(xp, w_eq, bias, stride=1, dilation=1, padding=0, relu=relu)


def fcn_reference(params, x_nchw):
    h = jnp.transpose(x_nchw, (0, 2, 3, 1))
    for name in ("conv1", "conv2", "conv3"):
        w, b = params[name]
        h = _conv2d_ref(h, w, b, stride=2, dilation=2, padding=2, relu=True)
    for name in ("up1", "up2", "up3"):
        w, b = params[name]
        h = _convT2d_ref(h, w, b, stride=2, padding=1, output_padding=1, relu=True)
    w, b = params["up4"]
    h = _convT2d_ref(h, w, b, stride=1, padding=0, output_padding=0, relu=False)
    return jnp.transpose(h, (0, 3, 1, 2))


if __name__ == "__main__":
    key = jax.random.PRNGKey(0)
    pkey, xkey = jax.random.split(key)
    params = init_params(pkey, k=32)

    N, H, W = 2, 16, 16               # 16 -> 8 -> 4 -> 2 -> 4 -> 8 -> 16
    x = jax.random.normal(xkey, (N, 1, H, W), jnp.float32)

    packed = pack_params(params, H, W, N)
    fcn_fwd = make_fcn_forward(packed, N, H, W, k=32)

    out = fcn_fwd(x)
    jax.block_until_ready(out)
    assert out.shape == x.shape

    # Correctness check against the pure-JAX f32 reference (tolerance covers
    # bf16 operand quantization inside the kernel).
    ref = fcn_reference(params, x)
    if not bool(jnp.allclose(out, ref, rtol=1e-1, atol=5e-2)):
        raise AssertionError("fused Pallas FCN does not match the f32 reference")

    print("KERNEL_OK")
</pallas_src>

<mosaic_0001>
module attributes {stable_mosaic.version = 11 : i64} {
  func.func @_fcn_kernel(%arg0: i32, %arg1: memref<16x256xbf16, #tpu.memory_space<vmem>>, %arg2: memref<9x256x64xbf16, #tpu.memory_space<vmem>>, %arg3: memref<64x144xbf16, #tpu.memory_space<vmem>>, %arg4: memref<64x1xf32, #tpu.memory_space<vmem>>, %arg5: memref<9x64x16xbf16, #tpu.memory_space<vmem>>, %arg6: memref<64x576xbf16, #tpu.memory_space<vmem>>, %arg7: memref<64x1xf32, #tpu.memory_space<vmem>>, %arg8: memref<9x16x8xbf16, #tpu.memory_space<vmem>>, %arg9: memref<64x576xbf16, #tpu.memory_space<vmem>>, %arg10: memref<64x1xf32, #tpu.memory_space<vmem>>, %arg11: memref<9x8x16xbf16, #tpu.memory_space<vmem>>, %arg12: memref<64x576xbf16, #tpu.memory_space<vmem>>, %arg13: memref<64x1xf32, #tpu.memory_space<vmem>>, %arg14: memref<9x16x64xbf16, #tpu.memory_space<vmem>>, %arg15: memref<64x576xbf16, #tpu.memory_space<vmem>>, %arg16: memref<64x1xf32, #tpu.memory_space<vmem>>, %arg17: memref<9x64x256xbf16, #tpu.memory_space<vmem>>, %arg18: memref<64x576xbf16, #tpu.memory_space<vmem>>, %arg19: memref<64x1xf32, #tpu.memory_space<vmem>>, %arg20: memref<16x64xbf16, #tpu.memory_space<vmem>>, %arg21: memref<16x1xf32, #tpu.memory_space<vmem>>, %arg22: memref<16x256xf32, #tpu.memory_space<vmem>>, %arg23: memref<576x256xbf16, #tpu.memory_space<vmem>>) attributes {dimension_semantics = [#tpu.dimension_semantics<arbitrary>], iteration_bounds = array<i64: 1>, scalar_prefetch = 0 : i64, scratch_operands = 1 : i64, tpu.core_type = #tpu.core_type<tc>, window_params = [{pipeline_mode = #tpu.pipeline_mode<synchronous>, transform_indices = @transform_0, window_bounds = array<i64: 16, 256>}, {pipeline_mode = #tpu.pipeline_mode<synchronous>, transform_indices = @transform_1, window_bounds = array<i64: 9, 256, 64>}, {pipeline_mode = #tpu.pipeline_mode<synchronous>, transform_indices = @transform_2, window_bounds = array<i64: 64, 144>}, {pipeline_mode = #tpu.pipeline_mode<synchronous>, transform_indices = @transform_3, window_bounds = array<i64: 64, 1>}, {pipeline_mode = #tpu.pipeline_mode<synchronous>, transform_indices = @transform_4, window_bounds = array<i64: 9, 64, 16>}, {pipeline_mode = #tpu.pipeline_mode<synchronous>, transform_indices = @transform_5, window_bounds = array<i64: 64, 576>}, {pipeline_mode = #tpu.pipeline_mode<synchronous>, transform_indices = @transform_6, window_bounds = array<i64: 64, 1>}, {pipeline_mode = #tpu.pipeline_mode<synchronous>, transform_indices = @transform_7, window_bounds = array<i64: 9, 16, 8>}, {pipeline_mode = #tpu.pipeline_mode<synchronous>, transform_indices = @transform_8, window_bounds = array<i64: 64, 576>}, {pipeline_mode = #tpu.pipeline_mode<synchronous>, transform_indices = @transform_9, window_bounds = array<i64: 64, 1>}, {pipeline_mode = #tpu.pipeline_mode<synchronous>, transform_indices = @transform_10, window_bounds = array<i64: 9, 8, 16>}, {pipeline_mode = #tpu.pipeline_mode<synchronous>, transform_indices = @transform_11, window_bounds = array<i64: 64, 576>}, {pipeline_mode = #tpu.pipeline_mode<synchronous>, transform_indices = @transform_12, window_bounds = array<i64: 64, 1>}, {pipeline_mode = #tpu.pipeline_mode<synchronous>, transform_indices = @transform_13, window_bounds = array<i64: 9, 16, 64>}, {pipeline_mode = #tpu.pipeline_mode<synchronous>, transform_indices = @transform_14, window_bounds = array<i64: 64, 576>}, {pipeline_mode = #tpu.pipeline_mode<synchronous>, transform_indices = @transform_15, window_bounds = array<i64: 64, 1>}, {pipeline_mode = #tpu.pipeline_mode<synchronous>, transform_indices = @transform_16, window_bounds = array<i64: 9, 64, 256>}, {pipeline_mode = #tpu.pipeline_mode<synchronous>, transform_indices = @transform_17, window_bounds = array<i64: 64, 576>}, {pipeline_mode = #tpu.pipeline_mode<synchronous>, transform_indices = @transform_18, window_bounds = array<i64: 64, 1>}, {pipeline_mode = #tpu.pipeline_mode<synchronous>, transform_indices = @transform_19, window_bounds = array<i64: 16, 64>}, {pipeline_mode = #tpu.pipeline_mode<synchronous>, transform_indices = @transform_20, window_bounds = array<i64: 16, 1>}, {pipeline_mode = #tpu.pipeline_mode<synchronous>, transform_indices = @transform_21, window_bounds = array<i64: 16, 256>}]} {
    %c0 = arith.constant 0 : index
    %c0_0 = arith.constant 0 : index
    %0 = vector.load %arg1[%c0, %c0_0] : memref<16x256xbf16, #tpu.memory_space<vmem>>, vector<16x256xbf16>
    %c0_1 = arith.constant 0 : index
    %c0_2 = arith.constant 0 : index
    %c0_3 = arith.constant 0 : index
    %1 = vector.load %arg2[%c0_1, %c0_2, %c0_3] : memref<9x256x64xbf16, #tpu.memory_space<vmem>>, vector<1x256x64xbf16>
    %2 = vector.shape_cast %1 : vector<1x256x64xbf16> to vector<256x64xbf16>
    %cst = arith.constant dense<0.000000e+00> : vector<16x64xf32>
    %3 = tpu.matmul %0, %2, %cst {dimension_numbers = #tpu.dot_dimension_numbers<[1], [0], [0], [1], [0, 0, 1, 1], [], []>} : vector<16x256xbf16>, vector<256x64xbf16>, vector<16x64xf32> -> vector<16x64xf32>
    %4 = arith.truncf %3 : vector<16x64xf32> to vector<16x64xbf16>
    %c0_4 = arith.constant 0 : index
    %c0_5 = arith.constant 0 : index
    %5 = vector.load %arg23[%c0_4, %c0_5] : memref<576x256xbf16, #tpu.memory_space<vmem>>, vector<16x64xbf16>
    tpu.vector_store %arg23[%c0_4, %c0_5], %4 {strides = array<i32>} : memref<576x256xbf16, #tpu.memory_space<vmem>>, vector<16x64xbf16>,
    %c1 = arith.constant 1 : index
    %c0_6 = arith.constant 0 : index
    %c0_7 = arith.constant 0 : index
    %6 = vector.load %arg2[%c1, %c0_6, %c0_7] : memref<9x256x64xbf16, #tpu.memory_space<vmem>>, vector<1x256x64xbf16>
    %7 = vector.shape_cast %6 : vector<1x256x64xbf16> to vector<256x64xbf16>
    %cst_8 = arith.constant dense<0.000000e+00> : vector<16x64xf32>
    %8 = tpu.matmul %0, %7, %cst_8 {dimension_numbers = #tpu.dot_dimension_numbers<[1], [0], [0], [1], [0, 0, 1, 1], [], []>} : vector<16x256xbf16>, vector<256x64xbf16>, vector<16x64xf32> -> vector<16x64xf32>
    %9 = arith.truncf %8 : vector<16x64xf32> to vector<16x64xbf16>
    %c16 = arith.constant 16 : index
    %c0_9 = arith.constant 0 : index
    %10 = vector.load %arg23[%c16, %c0_9] : memref<576x256xbf16, #tpu.memory_space<vmem>>, vector<16x64xbf16>
    tpu.vector_store %arg23[%c16, %c0_9], %9 {strides = array<i32>} : memref<576x256xbf16, #tpu.memory_space<vmem>>, vector<16x64xbf16>,
    %c2 = arith.constant 2 : index
    %c0_10 = arith.constant 0 : index
    %c0_11 = arith.constant 0 : index
    %11 = vector.load %arg2[%c2, %c0_10, %c0_11] : memref<9x256x64xbf16, #tpu.memory_space<vmem>>, vector<1x256x64xbf16>
    %12 = vector.shape_cast %11 : vector<1x256x64xbf16> to vector<256x64xbf16>
    %cst_12 = arith.constant dense<0.000000e+00> : vector<16x64xf32>
    %13 = tpu.matmul %0, %12, %cst_12 {dimension_numbers = #tpu.dot_dimension_numbers<[1], [0], [0], [1], [0, 0, 1, 1], [], []>} : vector<16x256xbf16>, vector<256x64xbf16>, vector<16x64xf32> -> vector<16x64xf32>
    %14 = arith.truncf %13 : vector<16x64xf32> to vector<16x64xbf16>
    %c32 = arith.constant 32 : index
    %c0_13 = arith.constant 0 : index
    %15 = vector.load %arg23[%c32, %c0_13] : memref<576x256xbf16, #tpu.memory_space<vmem>>, vector<16x64xbf16>
    tpu.vector_store %arg23[%c32, %c0_13], %14 {strides = array<i32>} : memref<576x256xbf16, #tpu.memory_space<vmem>>, vector<16x64xbf16>,
    %c3 = arith.constant 3 : index
    %c0_14 = arith.constant 0 : index
    %c0_15 = arith.constant 0 : index
    %16 = vector.load %arg2[%c3, %c0_14, %c0_15] : memref<9x256x64xbf16, #tpu.memory_space<vmem>>, vector<1x256x64xbf16>
    %17 = vector.shape_cast %16 : vector<1x256x64xbf16> to vector<256x64xbf16>
    %cst_16 = arith.constant dense<0.000000e+00> : vector<16x64xf32>
    %18 = tpu.matmul %0, %17, %cst_16 {dimension_numbers = #tpu.dot_dimension_numbers<[1], [0], [0], [1], [0, 0, 1, 1], [], []>} : vector<16x256xbf16>, vector<256x64xbf16>, vector<16x64xf32> -> vector<16x64xf32>
    %19 = arith.truncf %18 : vector<16x64xf32> to vector<16x64xbf16>
    %c48 = arith.constant 48 : index
    %c0_17 = arith.constant 0 : index
    %20 = vector.load %arg23[%c48, %c0_17] : memref<576x256xbf16, #tpu.memory_space<vmem>>, vector<16x64xbf16>
    tpu.vector_store %arg23[%c48, %c0_17], %19 {strides = array<i32>} : memref<576x256xbf16, #tpu.memory_space<vmem>>, vector<16x64xbf16>,
    %c4 = arith.constant 4 : index
    %c0_18 = arith.constant 0 : index
    %c0_19 = arith.constant 0 : index
    %21 = vector.load %arg2[%c4, %c0_18, %c0_19] : memref<9x256x64xbf16, #tpu.memory_space<vmem>>, vector<1x256x64xbf16>
    %22 = vector.shape_cast %21 : vector<1x256x64xbf16> to vector<256x64xbf16>
    %cst_20 = arith.constant dense<0.000000e+00> : vector<16x64xf32>
    %23 = tpu.matmul %0, %22, %cst_20 {dimension_numbers = #tpu.dot_dimension_numbers<[1], [0], [0], [1], [0, 0, 1, 1], [], []>} : vector<16x256xbf16>, vector<256x64xbf16>, vector<16x64xf32> -> vector<16x64xf32>
    %24 = arith.truncf %23 : vector<16x64xf32> to vector<16x64xbf16>
    %c64 = arith.constant 64 : index
    %c0_21 = arith.constant 0 : index
    %25 = vector.load %arg23[%c64, %c0_21] : memref<576x256xbf16, #tpu.memory_space<vmem>>, vector<16x64xbf16>
    tpu.vector_store %arg23[%c64, %c0_21], %24 {strides = array<i32>} : memref<576x256xbf16, #tpu.memory_space<vmem>>, vector<16x64xbf16>,
    %c5 = arith.constant 5 : index
    %c0_22 = arith.constant 0 : index
    %c0_23 = arith.constant 0 : index
    %26 = vector.load %arg2[%c5, %c0_22, %c0_23] : memref<9x256x64xbf16, #tpu.memory_space<vmem>>, vector<1x256x64xbf16>
    %27 = vector.shape_cast %26 : vector<1x256x64xbf16> to vector<256x64xbf16>
    %cst_24 = arith.constant dense<0.000000e+00> : vector<16x64xf32>
    %28 = tpu.matmul %0, %27, %cst_24 {dimension_numbers = #tpu.dot_dimension_numbers<[1], [0], [0], [1], [0, 0, 1, 1], [], []>} : vector<16x256xbf16>, vector<256x64xbf16>, vector<16x64xf32> -> vector<16x64xf32>
    %29 = arith.truncf %28 : vector<16x64xf32> to vector<16x64xbf16>
    %c80 = arith.constant 80 : index
    %c0_25 = arith.constant 0 : index
    %30 = vector.load %arg23[%c80, %c0_25] : memref<576x256xbf16, #tpu.memory_space<vmem>>, vector<16x64xbf16>
    tpu.vector_store %arg23[%c80, %c0_25], %29 {strides = array<i32>} : memref<576x256xbf16, #tpu.memory_space<vmem>>, vector<16x64xbf16>,
    %c6 = arith.constant 6 : index
    %c0_26 = arith.constant 0 : index
    %c0_27 = arith.constant 0 : index
    %31 = vector.load %arg2[%c6, %c0_26, %c0_27] : memref<9x256x64xbf16, #tpu.memory_space<vmem>>, vector<1x256x64xbf16>
    %32 = vector.shape_cast %31 : vector<1x256x64xbf16> to vector<256x64xbf16>
    %cst_28 = arith.constant dense<0.000000e+00> : vector<16x64xf32>
    %33 = tpu.matmul %0, %32, %cst_28 {dimension_numbers = #tpu.dot_dimension_numbers<[1], [0], [0], [1], [0, 0, 1, 1], [], []>} : vector<16x256xbf16>, vector<256x64xbf16>, vector<16x64xf32> -> vector<16x64xf32>
    %34 = arith.truncf %33 : vector<16x64xf32> to vector<16x64xbf16>
    %c96 = arith.constant 96 : index
    %c0_29 = arith.constant 0 : index
    %35 = vector.load %arg23[%c96, %c0_29] : memref<576x256xbf16, #tpu.memory_space<vmem>>, vector<16x64xbf16>
    tpu.vector_store %arg23[%c96, %c0_29], %34 {strides = array<i32>} : memref<576x256xbf16, #tpu.memory_space<vmem>>, vector<16x64xbf16>,
    %c7 = arith.constant 7 : index
    %c0_30 = arith.constant 0 : index
    %c0_31 = arith.constant 0 : index
    %36 = vector.load %arg2[%c7, %c0_30, %c0_31] : memref<9x256x64xbf16, #tpu.memory_space<vmem>>, vector<1x256x64xbf16>
    %37 = vector.shape_cast %36 : vector<1x256x64xbf16> to vector<256x64xbf16>
    %cst_32 = arith.constant dense<0.000000e+00> : vector<16x64xf32>
    %38 = tpu.matmul %0, %37, %cst_32 {dimension_numbers = #tpu.dot_dimension_numbers<[1], [0], [0], [1], [0, 0, 1, 1], [], []>} : vector<16x256xbf16>, vector<256x64xbf16>, vector<16x64xf32> -> vector<16x64xf32>
    %39 = arith.truncf %38 : vector<16x64xf32> to vector<16x64xbf16>
    %c112 = arith.constant 112 : index
    %c0_33 = arith.constant 0 : index
    %40 = vector.load %arg23[%c112, %c0_33] : memref<576x256xbf16, #tpu.memory_space<vmem>>, vector<16x64xbf16>
    tpu.vector_store %arg23[%c112, %c0_33], %39 {strides = array<i32>} : memref<576x256xbf16, #tpu.memory_space<vmem>>, vector<16x64xbf16>,
    %c8 = arith.constant 8 : index
    %c0_34 = arith.constant 0 : index
    %c0_35 = arith.constant 0 : index
    %41 = vector.load %arg2[%c8, %c0_34, %c0_35] : memref<9x256x64xbf16, #tpu.memory_space<vmem>>, vector<1x256x64xbf16>
    %42 = vector.shape_cast %41 : vector<1x256x64xbf16> to vector<256x64xbf16>
    %cst_36 = arith.constant dense<0.000000e+00> : vector<16x64xf32>
    %43 = tpu.matmul %0, %42, %cst_36 {dimension_numbers = #tpu.dot_dimension_numbers<[1], [0], [0], [1], [0, 0, 1, 1], [], []>} : vector<16x256xbf16>, vector<256x64xbf16>, vector<16x64xf32> -> vector<16x64xf32>
    %44 = arith.truncf %43 : vector<16x64xf32> to vector<16x64xbf16>
    %c128 = arith.constant 128 : index
    %c0_37 = arith.constant 0 : index
    %45 = vector.load %arg23[%c128, %c0_37] : memref<576x256xbf16, #tpu.memory_space<vmem>>, vector<16x64xbf16>
    tpu.vector_store %arg23[%c128, %c0_37], %44 {strides = array<i32>} : memref<576x256xbf16, #tpu.memory_space<vmem>>, vector<16x64xbf16>,
    %c0_38 = arith.constant 0 : index
    %c0_39 = arith.constant 0 : index
    %46 = vector.load %arg3[%c0_38, %c0_39] : memref<64x144xbf16, #tpu.memory_space<vmem>>, vector<64x144xbf16>
    %c0_40 = arith.constant 0 : index
    %c0_41 = arith.constant 0 : index
    %47 = vector.load %arg23[%c0_40, %c0_41] : memref<576x256xbf16, #tpu.memory_space<vmem>>, vector<144x64xbf16>
    %cst_42 = arith.constant dense<0.000000e+00> : vector<64x64xf32>
    %48 = tpu.matmul %46, %47, %cst_42 {dimension_numbers = #tpu.dot_dimension_numbers<[1], [0], [0], [1], [0, 0, 1, 1], [], []>} : vector<64x144xbf16>, vector<144x64xbf16>, vector<64x64xf32> -> vector<64x64xf32>
    %c0_43 = arith.constant 0 : index
    %c0_44 = arith.constant 0 : index
    %49 = vector.load %arg4[%c0_43, %c0_44] : memref<64x1xf32, #tpu.memory_space<vmem>>, vector<64x1xf32>
    %50 = vector.broadcast %49 : vector<64x1xf32> to vector<64x64xf32>
    %51 = arith.addf %48, %50 : vector<64x64xf32>
    %cst_45 = arith.constant 0.000000e+00 : f32
    %52 = vector.broadcast %cst_45 : f32 to vector<64x64xf32>
    %53 = arith.maximumf %51, %52 : vector<64x64xf32>
    %54 = arith.truncf %53 : vector<64x64xf32> to vector<64x64xbf16>
    %c0_46 = arith.constant 0 : index
    %c0_47 = arith.constant 0 : index
    %c0_48 = arith.constant 0 : index
    %55 = vector.load %arg5[%c0_46, %c0_47, %c0_48] : memref<9x64x16xbf16, #tpu.memory_space<vmem>>, vector<1x64x16xbf16>
    %56 = vector.shape_cast %55 : vector<1x64x16xbf16> to vector<64x16xbf16>
    %cst_49 = arith.constant dense<0.000000e+00> : vector<64x16xf32>
    %57 = tpu.matmul %54, %56, %cst_49 {dimension_numbers = #tpu.dot_dimension_numbers<[1], [0], [0], [1], [0, 0, 1, 1], [], []>} : vector<64x64xbf16>, vector<64x16xbf16>, vector<64x16xf32> -> vector<64x16xf32>
    %58 = arith.truncf %57 : vector<64x16xf32> to vector<64x16xbf16>
    %c0_50 = arith.constant 0 : index
    %c0_51 = arith.constant 0 : index
    %59 = vector.load %arg23[%c0_50, %c0_51] : memref<576x256xbf16, #tpu.memory_space<vmem>>, vector<64x16xbf16>
    tpu.vector_store %arg23[%c0_50, %c0_51], %58 {strides = array<i32>} : memref<576x256xbf16, #tpu.memory_space<vmem>>, vector<64x16xbf16>,
    %c1_52 = arith.constant 1 : index
    %c0_53 = arith.constant 0 : index
    %c0_54 = arith.constant 0 : index
    %60 = vector.load %arg5[%c1_52, %c0_53, %c0_54] : memref<9x64x16xbf16, #tpu.memory_space<vmem>>, vector<1x64x16xbf16>
    %61 = vector.shape_cast %60 : vector<1x64x16xbf16> to vector<64x16xbf16>
    %cst_55 = arith.constant dense<0.000000e+00> : vector<64x16xf32>
    %62 = tpu.matmul %54, %61, %cst_55 {dimension_numbers = #tpu.dot_dimension_numbers<[1], [0], [0], [1], [0, 0, 1, 1], [], []>} : vector<64x64xbf16>, vector<64x16xbf16>, vector<64x16xf32> -> vector<64x16xf32>
    %63 = arith.truncf %62 : vector<64x16xf32> to vector<64x16xbf16>
    %c64_56 = arith.constant 64 : index
    %c0_57 = arith.constant 0 : index
    %64 = vector.load %arg23[%c64_56, %c0_57] : memref<576x256xbf16, #tpu.memory_space<vmem>>, vector<64x16xbf16>
    tpu.vector_store %arg23[%c64_56, %c0_57], %63 {strides = array<i32>} : memref<576x256xbf16, #tpu.memory_space<vmem>>, vector<64x16xbf16>,
    %c2_58 = arith.constant 2 : index
    %c0_59 = arith.constant 0 : index
    %c0_60 = arith.constant 0 : index
    %65 = vector.load %arg5[%c2_58, %c0_59, %c0_60] : memref<9x64x16xbf16, #tpu.memory_space<vmem>>, vector<1x64x16xbf16>
    %66 = vector.shape_cast %65 : vector<1x64x16xbf16> to vector<64x16xbf16>
    %cst_61 = arith.constant dense<0.000000e+00> : vector<64x16xf32>
    %67 = tpu.matmul %54, %66, %cst_61 {dimension_numbers = #tpu.dot_dimension_numbers<[1], [0], [0], [1], [0, 0, 1, 1], [], []>} : vector<64x64xbf16>, vector<64x16xbf16>, vector<64x16xf32> -> vector<64x16xf32>
    %68 = arith.truncf %67 : vector<64x16xf32> to vector<64x16xbf16>
    %c128_62 = arith.constant 128 : index
    %c0_63 = arith.constant 0 : index
    %69 = vector.load %arg23[%c128_62, %c0_63] : memref<576x256xbf16, #tpu.memory_space<vmem>>, vector<64x16xbf16>
    tpu.vector_store %arg23[%c128_62, %c0_63], %68 {strides = array<i32>} : memref<576x256xbf16, #tpu.memory_space<vmem>>, vector<64x16xbf16>,
    %c3_64 = arith.constant 3 : index
    %c0_65 = arith.constant 0 : index
    %c0_66 = arith.constant 0 : index
    %70 = vector.load %arg5[%c3_64, %c0_65, %c0_66] : memref<9x64x16xbf16, #tpu.memory_space<vmem>>, vector<1x64x16xbf16>
    %71 = vector.shape_cast %70 : vector<1x64x16xbf16> to vector<64x16xbf16>
    %cst_67 = arith.constant dense<0.000000e+00> : vector<64x16xf32>
    %72 = tpu.matmul %54, %71, %cst_67 {dimension_numbers = #tpu.dot_dimension_numbers<[1], [0], [0], [1], [0, 0, 1, 1], [], []>} : vector<64x64xbf16>, vector<64x16xbf16>, vector<64x16xf32> -> vector<64x16xf32>
    %73 = arith.truncf %72 : vector<64x16xf32> to vector<64x16xbf16>
    %c192 = arith.constant 192 : index
    %c0_68 = arith.constant 0 : index
    %74 = vector.load %arg23[%c192, %c0_68] : memref<576x256xbf16, #tpu.memory_space<vmem>>, vector<64x16xbf16>
    tpu.vector_store %arg23[%c192, %c0_68], %73 {strides = array<i32>} : memref<576x256xbf16, #tpu.memory_space<vmem>>, vector<64x16xbf16>,
    %c4_69 = arith.constant 4 : index
    %c0_70 = arith.constant 0 : index
    %c0_71 = arith.constant 0 : index
    %75 = vector.load %arg5[%c4_69, %c0_70, %c0_71] : memref<9x64x16xbf16, #tpu.memory_space<vmem>>, vector<1x64x16xbf16>
    %76 = vector.shape_cast %75 : vector<1x64x16xbf16> to vector<64x16xbf16>
    %cst_72 = arith.constant dense<0.000000e+00> : vector<64x16xf32>
    %77 = tpu.matmul %54, %76, %cst_72 {dimension_numbers = #tpu.dot_dimension_numbers<[1], [0], [0], [1], [0, 0, 1, 1], [], []>} : vector<64x64xbf16>, vector<64x16xbf16>, vector<64x16xf32> -> vector<64x16xf32>
    %78 = arith.truncf %77 : vector<64x16xf32> to vector<64x16xbf16>
    %c256 = arith.constant 256 : index
    %c0_73 = arith.constant 0 : index
    %79 = vector.load %arg23[%c256, %c0_73] : memref<576x256xbf16, #tpu.memory_space<vmem>>, vector<64x16xbf16>
    tpu.vector_store %arg23[%c256, %c0_73], %78 {strides = array<i32>} : memref<576x256xbf16, #tpu.memory_space<vmem>>, vector<64x16xbf16>,
    %c5_74 = arith.constant 5 : index
    %c0_75 = arith.constant 0 : index
    %c0_76 = arith.constant 0 : index
    %80 = vector.load %arg5[%c5_74, %c0_75, %c0_76] : memref<9x64x16xbf16, #tpu.memory_space<vmem>>, vector<1x64x16xbf16>
    %81 = vector.shape_cast %80 : vector<1x64x16xbf16> to vector<64x16xbf16>
    %cst_77 = arith.constant dense<0.000000e+00> : vector<64x16xf32>
    %82 = tpu.matmul %54, %81, %cst_77 {dimension_numbers = #tpu.dot_dimension_numbers<[1], [0], [0], [1], [0, 0, 1, 1], [], []>} : vector<64x64xbf16>, vector<64x16xbf16>, vector<64x16xf32> -> vector<64x16xf32>
    %83 = arith.truncf %82 : vector<64x16xf32> to vector<64x16xbf16>
    %c320 = arith.constant 320 : index
    %c0_78 = arith.constant 0 : index
    %84 = vector.load %arg23[%c320, %c0_78] : memref<576x256xbf16, #tpu.memory_space<vmem>>, vector<64x16xbf16>
    tpu.vector_store %arg23[%c320, %c0_78], %83 {strides = array<i32>} : memref<576x256xbf16, #tpu.memory_space<vmem>>, vector<64x16xbf16>,
    %c6_79 = arith.constant 6 : index
    %c0_80 = arith.constant 0 : index
    %c0_81 = arith.constant 0 : index
    %85 = vector.load %arg5[%c6_79, %c0_80, %c0_81] : memref<9x64x16xbf16, #tpu.memory_space<vmem>>, vector<1x64x16xbf16>
    %86 = vector.shape_cast %85 : vector<1x64x16xbf16> to vector<64x16xbf16>
    %cst_82 = arith.constant dense<0.000000e+00> : vector<64x16xf32>
    %87 = tpu.matmul %54, %86, %cst_82 {dimension_numbers = #tpu.dot_dimension_numbers<[1], [0], [0], [1], [0, 0, 1, 1], [], []>} : vector<64x64xbf16>, vector<64x16xbf16>, vector<64x16xf32> -> vector<64x16xf32>
    %88 = arith.truncf %87 : vector<64x16xf32> to vector<64x16xbf16>
    %c384 = arith.constant 384 : index
    %c0_83 = arith.constant 0 : index
    %89 = vector.load %arg23[%c384, %c0_83] : memref<576x256xbf16, #tpu.memory_space<vmem>>, vector<64x16xbf16>
    tpu.vector_store %arg23[%c384, %c0_83], %88 {strides = array<i32>} : memref<576x256xbf16, #tpu.memory_space<vmem>>, vector<64x16xbf16>,
    %c7_84 = arith.constant 7 : index
    %c0_85 = arith.constant 0 : index
    %c0_86 = arith.constant 0 : index
    %90 = vector.load %arg5[%c7_84, %c0_85, %c0_86] : memref<9x64x16xbf16, #tpu.memory_space<vmem>>, vector<1x64x16xbf16>
    %91 = vector.shape_cast %90 : vector<1x64x16xbf16> to vector<64x16xbf16>
    %cst_87 = arith.constant dense<0.000000e+00> : vector<64x16xf32>
    %92 = tpu.matmul %54, %91, %cst_87 {dimension_numbers = #tpu.dot_dimension_numbers<[1], [0], [0], [1], [0, 0, 1, 1], [], []>} : vector<64x64xbf16>, vector<64x16xbf16>, vector<64x16xf32> -> vector<64x16xf32>
    %93 = arith.truncf %92 : vector<64x16xf32> to vector<64x16xbf16>
    %c448 = arith.constant 448 : index
    %c0_88 = arith.constant 0 : index
    %94 = vector.load %arg23[%c448, %c0_88] : memref<576x256xbf16, #tpu.memory_space<vmem>>, vector<64x16xbf16>
    tpu.vector_store %arg23[%c448, %c0_88], %93 {strides = array<i32>} : memref<576x256xbf16, #tpu.memory_space<vmem>>, vector<64x16xbf16>,
    %c8_89 = arith.constant 8 : index
    %c0_90 = arith.constant 0 : index
    %c0_91 = arith.constant 0 : index
    %95 = vector.load %arg5[%c8_89, %c0_90, %c0_91] : memref<9x64x16xbf16, #tpu.memory_space<vmem>>, vector<1x64x16xbf16>
    %96 = vector.shape_cast %95 : vector<1x64x16xbf16> to vector<64x16xbf16>
    %cst_92 = arith.constant dense<0.000000e+00> : vector<64x16xf32>
    %97 = tpu.matmul %54, %96, %cst_92 {dimension_numbers = #tpu.dot_dimension_numbers<[1], [0], [0], [1], [0, 0, 1, 1], [], []>} : vector<64x64xbf16>, vector<64x16xbf16>, vector<64x16xf32> -> vector<64x16xf32>
    %98 = arith.truncf %97 : vector<64x16xf32> to vector<64x16xbf16>
    %c512 = arith.constant 512 : index
    %c0_93 = arith.constant 0 : index
    %99 = vector.load %arg23[%c512, %c0_93] : memref<576x256xbf16, #tpu.memory_space<vmem>>, vector<64x16xbf16>
    tpu.vector_store %arg23[%c512, %c0_93], %98 {strides = array<i32>} : memref<576x256xbf16, #tpu.memory_space<vmem>>, vector<64x16xbf16>,
    %c0_94 = arith.constant 0 : index
    %c0_95 = arith.constant 0 : index
    %100 = vector.load %arg6[%c0_94, %c0_95] : memref<64x576xbf16, #tpu.memory_space<vmem>>, vector<64x576xbf16>
    %c0_96 = arith.constant 0 : index
    %c0_97 = arith.constant 0 : index
    %101 = vector.load %arg23[%c0_96, %c0_97] : memref<576x256xbf16, #tpu.memory_space<vmem>>, vector<576x16xbf16>
    %cst_98 = arith.constant dense<0.000000e+00> : vector<64x16xf32>
    %102 = tpu.matmul %100, %101, %cst_98 {dimension_numbers = #tpu.dot_dimension_numbers<[1], [0], [0], [1], [0, 0, 1, 1], [], []>} : vector<64x576xbf16>, vector<576x16xbf16>, vector<64x16xf32> -> vector<64x16xf32>
    %c0_99 = arith.constant 0 : index
    %c0_100 = arith.constant 0 : index
    %103 = vector.load %arg7[%c0_99, %c0_100] : memref<64x1xf32, #tpu.memory_space<vmem>>, vector<64x1xf32>
    %104 = vector.broadcast %103 : vector<64x1xf32> to vector<64x16xf32>
    %105 = arith.addf %102, %104 : vector<64x16xf32>
    %cst_101 = arith.constant 0.000000e+00 : f32
    %106 = vector.broadcast %cst_101 : f32 to vector<64x16xf32>
    %107 = arith.maximumf %105, %106 : vector<64x16xf32>
    %108 = arith.truncf %107 : vector<64x16xf32> to vector<64x16xbf16>
    %c0_102 = arith.constant 0 : index
    %c0_103 = arith.constant 0 : index
    %c0_104 = arith.constant 0 : index
    %109 = vector.load %arg8[%c0_102, %c0_103, %c0_104] : memref<9x16x8xbf16, #tpu.memory_space<vmem>>, vector<1x16x8xbf16>
    %110 = vector.shape_cast %109 : vector<1x16x8xbf16> to vector<16x8xbf16>
    %cst_105 = arith.constant dense<0.000000e+00> : vector<64x8xf32>
    %111 = tpu.matmul %108, %110, %cst_105 {dimension_numbers = #tpu.dot_dimension_numbers<[1], [0], [0], [1], [0, 0, 1, 1], [], []>} : vector<64x16xbf16>, vector<16x8xbf16>, vector<64x8xf32> -> vector<64x8xf32>
    %112 = arith.truncf %111 : vector<64x8xf32> to vector<64x8xbf16>
    %c0_106 = arith.constant 0 : index
    %c0_107 = arith.constant 0 : index
    %113 = vector.load %arg23[%c0_106, %c0_107] : memref<576x256xbf16, #tpu.memory_space<vmem>>, vector<64x8xbf16>
    tpu.vector_store %arg23[%c0_106, %c0_107], %112 {strides = array<i32>} : memref<576x256xbf16, #tpu.memory_space<vmem>>, vector<64x8xbf16>,
    %c1_108 = arith.constant 1 : index
    %c0_109 = arith.constant 0 : index
    %c0_110 = arith.constant 0 : index
    %114 = vector.load %arg8[%c1_108, %c0_109, %c0_110] : memref<9x16x8xbf16, #tpu.memory_space<vmem>>, vector<1x16x8xbf16>
    %115 = vector.shape_cast %114 : vector<1x16x8xbf16> to vector<16x8xbf16>
    %cst_111 = arith.constant dense<0.000000e+00> : vector<64x8xf32>
    %116 = tpu.matmul %108, %115, %cst_111 {dimension_numbers = #tpu.dot_dimension_numbers<[1], [0], [0], [1], [0, 0, 1, 1], [], []>} : vector<64x16xbf16>, vector<16x8xbf16>, vector<64x8xf32> -> vector<64x8xf32>
    %117 = arith.truncf %116 : vector<64x8xf32> to vector<64x8xbf16>
    %c64_112 = arith.constant 64 : index
    %c0_113 = arith.constant 0 : index
    %118 = vector.load %arg23[%c64_112, %c0_113] : memref<576x256xbf16, #tpu.memory_space<vmem>>, vector<64x8xbf16>
    tpu.vector_store %arg23[%c64_112, %c0_113], %117 {strides = array<i32>} : memref<576x256xbf16, #tpu.memory_space<vmem>>, vector<64x8xbf16>,
    %c2_114 = arith.constant 2 : index
    %c0_115 = arith.constant 0 : index
    %c0_116 = arith.constant 0 : index
    %119 = vector.load %arg8[%c2_114, %c0_115, %c0_116] : memref<9x16x8xbf16, #tpu.memory_space<vmem>>, vector<1x16x8xbf16>
    %120 = vector.shape_cast %119 : vector<1x16x8xbf16> to vector<16x8xbf16>
    %cst_117 = arith.constant dense<0.000000e+00> : vector<64x8xf32>
    %121 = tpu.matmul %108, %120, %cst_117 {dimension_numbers = #tpu.dot_dimension_numbers<[1], [0], [0], [1], [0, 0, 1, 1], [], []>} : vector<64x16xbf16>, vector<16x8xbf16>, vector<64x8xf32> -> vector<64x8xf32>
    %122 = arith.truncf %121 : vector<64x8xf32> to vector<64x8xbf16>
    %c128_118 = arith.constant 128 : index
    %c0_119 = arith.constant 0 : index
    %123 = vector.load %arg23[%c128_118, %c0_119] : memref<576x256xbf16, #tpu.memory_space<vmem>>, vector<64x8xbf16>
    tpu.vector_store %arg23[%c128_118, %c0_119], %122 {strides = array<i32>} : memref<576x256xbf16, #tpu.memory_space<vmem>>, vector<64x8xbf16>,
    %c3_120 = arith.constant 3 : index
    %c0_121 = arith.constant 0 : index
    %c0_122 = arith.constant 0 : index
    %124 = vector.load %arg8[%c3_120, %c0_121, %c0_122] : memref<9x16x8xbf16, #tpu.memory_space<vmem>>, vector<1x16x8xbf16>
    %125 = vector.shape_cast %124 : vector<1x16x8xbf16> to vector<16x8xbf16>
    %cst_123 = arith.constant dense<0.000000e+00> : vector<64x8xf32>
    %126 = tpu.matmul %108, %125, %cst_123 {dimension_numbers = #tpu.dot_dimension_numbers<[1], [0], [0], [1], [0, 0, 1, 1], [], []>} : vector<64x16xbf16>, vector<16x8xbf16>, vector<64x8xf32> -> vector<64x8xf32>
    %127 = arith.truncf %126 : vector<64x8xf32> to vector<64x8xbf16>
    %c192_124 = arith.constant 192 : index
    %c0_125 = arith.constant 0 : index
    %128 = vector.load %arg23[%c192_124, %c0_125] : memref<576x256xbf16, #tpu.memory_space<vmem>>, vector<64x8xbf16>
    tpu.vector_store %arg23[%c192_124, %c0_125], %127 {strides = array<i32>} : memref<576x256xbf16, #tpu.memory_space<vmem>>, vector<64x8xbf16>,
    %c4_126 = arith.constant 4 : index
    %c0_127 = arith.constant 0 : index
    %c0_128 = arith.constant 0 : index
    %129 = vector.load %arg8[%c4_126, %c0_127, %c0_128] : memref<9x16x8xbf16, #tpu.memory_space<vmem>>, vector<1x16x8xbf16>
    %130 = vector.shape_cast %129 : vector<1x16x8xbf16> to vector<16x8xbf16>
    %cst_129 = arith.constant dense<0.000000e+00> : vector<64x8xf32>
    %131 = tpu.matmul %108, %130, %cst_129 {dimension_numbers = #tpu.dot_dimension_numbers<[1], [0], [0], [1], [0, 0, 1, 1], [], []>} : vector<64x16xbf16>, vector<16x8xbf16>, vector<64x8xf32> -> vector<64x8xf32>
    %132 = arith.truncf %131 : vector<64x8xf32> to vector<64x8xbf16>
    %c256_130 = arith.constant 256 : index
    %c0_131 = arith.constant 0 : index
    %133 = vector.load %arg23[%c256_130, %c0_131] : memref<576x256xbf16, #tpu.memory_space<vmem>>, vector<64x8xbf16>
    tpu.vector_store %arg23[%c256_130, %c0_131], %132 {strides = array<i32>} : memref<576x256xbf16, #tpu.memory_space<vmem>>, vector<64x8xbf16>,
    %c5_132 = arith.constant 5 : index
    %c0_133 = arith.constant 0 : index
    %c0_134 = arith.constant 0 : index
    %134 = vector.load %arg8[%c5_132, %c0_133, %c0_134] : memref<9x16x8xbf16, #tpu.memory_space<vmem>>, vector<1x16x8xbf16>
    %135 = vector.shape_cast %134 : vector<1x16x8xbf16> to vector<16x8xbf16>
    %cst_135 = arith.constant dense<0.000000e+00> : vector<64x8xf32>
    %136 = tpu.matmul %108, %135, %cst_135 {dimension_numbers = #tpu.dot_dimension_numbers<[1], [0], [0], [1], [0, 0, 1, 1], [], []>} : vector<64x16xbf16>, vector<16x8xbf16>, vector<64x8xf32> -> vector<64x8xf32>
    %137 = arith.truncf %136 : vector<64x8xf32> to vector<64x8xbf16>
    %c320_136 = arith.constant 320 : index
    %c0_137 = arith.constant 0 : index
    %138 = vector.load %arg23[%c320_136, %c0_137] : memref<576x256xbf16, #tpu.memory_space<vmem>>, vector<64x8xbf16>
    tpu.vector_store %arg23[%c320_136, %c0_137], %137 {strides = array<i32>} : memref<576x256xbf16, #tpu.memory_space<vmem>>, vector<64x8xbf16>,
    %c6_138 = arith.constant 6 : index
    %c0_139 = arith.constant 0 : index
    %c0_140 = arith.constant 0 : index
    %139 = vector.load %arg8[%c6_138, %c0_139, %c0_140] : memref<9x16x8xbf16, #tpu.memory_space<vmem>>, vector<1x16x8xbf16>
    %140 = vector.shape_cast %139 : vector<1x16x8xbf16> to vector<16x8xbf16>
    %cst_141 = arith.constant dense<0.000000e+00> : vector<64x8xf32>
    %141 = tpu.matmul %108, %140, %cst_141 {dimension_numbers = #tpu.dot_dimension_numbers<[1], [0], [0], [1], [0, 0, 1, 1], [], []>} : vector<64x16xbf16>, vector<16x8xbf16>, vector<64x8xf32> -> vector<64x8xf32>
    %142 = arith.truncf %141 : vector<64x8xf32> to vector<64x8xbf16>
    %c384_142 = arith.constant 384 : index
    %c0_143 = arith.constant 0 : index
    %143 = vector.load %arg23[%c384_142, %c0_143] : memref<576x256xbf16, #tpu.memory_space<vmem>>, vector<64x8xbf16>
    tpu.vector_store %arg23[%c384_142, %c0_143], %142 {strides = array<i32>} : memref<576x256xbf16, #tpu.memory_space<vmem>>, vector<64x8xbf16>,
    %c7_144 = arith.constant 7 : index
    %c0_145 = arith.constant 0 : index
    %c0_146 = arith.constant 0 : index
    %144 = vector.load %arg8[%c7_144, %c0_145, %c0_146] : memref<9x16x8xbf16, #tpu.memory_space<vmem>>, vector<1x16x8xbf16>
    %145 = vector.shape_cast %144 : vector<1x16x8xbf16> to vector<16x8xbf16>
    %cst_147 = arith.constant dense<0.000000e+00> : vector<64x8xf32>
    %146 = tpu.matmul %108, %145, %cst_147 {dimension_numbers = #tpu.dot_dimension_numbers<[1], [0], [0], [1], [0, 0, 1, 1], [], []>} : vector<64x16xbf16>, vector<16x8xbf16>, vector<64x8xf32> -> vector<64x8xf32>
    %147 = arith.truncf %146 : vector<64x8xf32> to vector<64x8xbf16>
    %c448_148 = arith.constant 448 : index
    %c0_149 = arith.constant 0 : index
    %148 = vector.load %arg23[%c448_148, %c0_149] : memref<576x256xbf16, #tpu.memory_space<vmem>>, vector<64x8xbf16>
    tpu.vector_store %arg23[%c448_148, %c0_149], %147 {strides = array<i32>} : memref<576x256xbf16, #tpu.memory_space<vmem>>, vector<64x8xbf16>,
    %c8_150 = arith.constant 8 : index
    %c0_151 = arith.constant 0 : index
    %c0_152 = arith.constant 0 : index
    %149 = vector.load %arg8[%c8_150, %c0_151, %c0_152] : memref<9x16x8xbf16, #tpu.memory_space<vmem>>, vector<1x16x8xbf16>
    %150 = vector.shape_cast %149 : vector<1x16x8xbf16> to vector<16x8xbf16>
    %cst_153 = arith.constant dense<0.000000e+00> : vector<64x8xf32>
    %151 = tpu.matmul %108, %150, %cst_153 {dimension_numbers = #tpu.dot_dimension_numbers<[1], [0], [0], [1], [0, 0, 1, 1], [], []>} : vector<64x16xbf16>, vector<16x8xbf16>, vector<64x8xf32> -> vector<64x8xf32>
    %152 = arith.truncf %151 : vector<64x8xf32> to vector<64x8xbf16>
    %c512_154 = arith.constant 512 : index
    %c0_155 = arith.constant 0 : index
    %153 = vector.load %arg23[%c512_154, %c0_155] : memref<576x256xbf16, #tpu.memory_space<vmem>>, vector<64x8xbf16>
    tpu.vector_store %arg23[%c512_154, %c0_155], %152 {strides = array<i32>} : memref<576x256xbf16, #tpu.memory_space<vmem>>, vector<64x8xbf16>,
    %c0_156 = arith.constant 0 : index
    %c0_157 = arith.constant 0 : index
    %154 = vector.load %arg9[%c0_156, %c0_157] : memref<64x576xbf16, #tpu.memory_space<vmem>>, vector<64x576xbf16>
    %c0_158 = arith.constant 0 : index
    %c0_159 = arith.constant 0 : index
    %155 = vector.load %arg23[%c0_158, %c0_159] : memref<576x256xbf16, #tpu.memory_space<vmem>>, vector<576x8xbf16>
    %cst_160 = arith.constant dense<0.000000e+00> : vector<64x8xf32>
    %156 = tpu.matmul %154, %155, %cst_160 {dimension_numbers = #tpu.dot_dimension_numbers<[1], [0], [0], [1], [0, 0, 1, 1], [], []>} : vector<64x576xbf16>, vector<576x8xbf16>, vector<64x8xf32> -> vector<64x8xf32>
    %c0_161 = arith.constant 0 : index
    %c0_162 = arith.constant 0 : index
    %157 = vector.load %arg10[%c0_161, %c0_162] : memref<64x1xf32, #tpu.memory_space<vmem>>, vector<64x1xf32>
    %158 = vector.broadcast %157 : vector<64x1xf32> to vector<64x8xf32>
    %159 = arith.addf %156, %158 : vector<64x8xf32>
    %cst_163 = arith.constant 0.000000e+00 : f32
    %160 = vector.broadcast %cst_163 : f32 to vector<64x8xf32>
    %161 = arith.maximumf %159, %160 : vector<64x8xf32>
    %162 = arith.truncf %161 : vector<64x8xf32> to vector<64x8xbf16>
    %c0_164 = arith.constant 0 : index
    %c0_165 = arith.constant 0 : index
    %c0_166 = arith.constant 0 : index
    %163 = vector.load %arg11[%c0_164, %c0_165, %c0_166] : memref<9x8x16xbf16, #tpu.memory_space<vmem>>, vector<1x8x16xbf16>
    %164 = vector.shape_cast %163 : vector<1x8x16xbf16> to vector<8x16xbf16>
    %cst_167 = arith.constant dense<0.000000e+00> : vector<64x16xf32>
    %165 = tpu.matmul %162, %164, %cst_167 {dimension_numbers = #tpu.dot_dimension_numbers<[1], [0], [0], [1], [0, 0, 1, 1], [], []>} : vector<64x8xbf16>, vector<8x16xbf16>, vector<64x16xf32> -> vector<64x16xf32>
    %166 = arith.truncf %165 : vector<64x16xf32> to vector<64x16xbf16>
    %c0_168 = arith.constant 0 : index
    %c0_169 = arith.constant 0 : index
    %167 = vector.load %arg23[%c0_168, %c0_169] : memref<576x256xbf16, #tpu.memory_space<vmem>>, vector<64x16xbf16>
    tpu.vector_store %arg23[%c0_168, %c0_169], %166 {strides = array<i32>} : memref<576x256xbf16, #tpu.memory_space<vmem>>, vector<64x16xbf16>,
    %c1_170 = arith.constant 1 : index
    %c0_171 = arith.constant 0 : index
    %c0_172 = arith.constant 0 : index
    %168 = vector.load %arg11[%c1_170, %c0_171, %c0_172] : memref<9x8x16xbf16, #tpu.memory_space<vmem>>, vector<1x8x16xbf16>
    %169 = vector.shape_cast %168 : vector<1x8x16xbf16> to vector<8x16xbf16>
    %cst_173 = arith.constant dense<0.000000e+00> : vector<64x16xf32>
    %170 = tpu.matmul %162, %169, %cst_173 {dimension_numbers = #tpu.dot_dimension_numbers<[1], [0], [0], [1], [0, 0, 1, 1], [], []>} : vector<64x8xbf16>, vector<8x16xbf16>, vector<64x16xf32> -> vector<64x16xf32>
    %171 = arith.truncf %170 : vector<64x16xf32> to vector<64x16xbf16>
    %c64_174 = arith.constant 64 : index
    %c0_175 = arith.constant 0 : index
    %172 = vector.load %arg23[%c64_174, %c0_175] : memref<576x256xbf16, #tpu.memory_space<vmem>>, vector<64x16xbf16>
    tpu.vector_store %arg23[%c64_174, %c0_175], %171 {strides = array<i32>} : memref<576x256xbf16, #tpu.memory_space<vmem>>, vector<64x16xbf16>,
    %c2_176 = arith.constant 2 : index
    %c0_177 = arith.constant 0 : index
    %c0_178 = arith.constant 0 : index
    %173 = vector.load %arg11[%c2_176, %c0_177, %c0_178] : memref<9x8x16xbf16, #tpu.memory_space<vmem>>, vector<1x8x16xbf16>
    %174 = vector.shape_cast %173 : vector<1x8x16xbf16> to vector<8x16xbf16>
    %cst_179 = arith.constant dense<0.000000e+00> : vector<64x16xf32>
    %175 = tpu.matmul %162, %174, %cst_179 {dimension_numbers = #tpu.dot_dimension_numbers<[1], [0], [0], [1], [0, 0, 1, 1], [], []>} : vector<64x8xbf16>, vector<8x16xbf16>, vector<64x16xf32> -> vector<64x16xf32>
    %176 = arith.truncf %175 : vector<64x16xf32> to vector<64x16xbf16>
    %c128_180 = arith.constant 128 : index
    %c0_181 = arith.constant 0 : index
    %177 = vector.load %arg23[%c128_180, %c0_181] : memref<576x256xbf16, #tpu.memory_space<vmem>>, vector<64x16xbf16>
    tpu.vector_store %arg23[%c128_180, %c0_181], %176 {strides = array<i32>} : memref<576x256xbf16, #tpu.memory_space<vmem>>, vector<64x16xbf16>,
    %c3_182 = arith.constant 3 : index
    %c0_183 = arith.constant 0 : index
    %c0_184 = arith.constant 0 : index
    %178 = vector.load %arg11[%c3_182, %c0_183, %c0_184] : memref<9x8x16xbf16, #tpu.memory_space<vmem>>, vector<1x8x16xbf16>
    %179 = vector.shape_cast %178 : vector<1x8x16xbf16> to vector<8x16xbf16>
    %cst_185 = arith.constant dense<0.000000e+00> : vector<64x16xf32>
    %180 = tpu.matmul %162, %179, %cst_185 {dimension_numbers = #tpu.dot_dimension_numbers<[1], [0], [0], [1], [0, 0, 1, 1], [], []>} : vector<64x8xbf16>, vector<8x16xbf16>, vector<64x16xf32> -> vector<64x16xf32>
    %181 = arith.truncf %180 : vector<64x16xf32> to vector<64x16xbf16>
    %c192_186 = arith.constant 192 : index
    %c0_187 = arith.constant 0 : index
    %182 = vector.load %arg23[%c192_186, %c0_187] : memref<576x256xbf16, #tpu.memory_space<vmem>>, vector<64x16xbf16>
    tpu.vector_store %arg23[%c192_186, %c0_187], %181 {strides = array<i32>} : memref<576x256xbf16, #tpu.memory_space<vmem>>, vector<64x16xbf16>,
    %c4_188 = arith.constant 4 : index
    %c0_189 = arith.constant 0 : index
    %c0_190 = arith.constant 0 : index
    %183 = vector.load %arg11[%c4_188, %c0_189, %c0_190] : memref<9x8x16xbf16, #tpu.memory_space<vmem>>, vector<1x8x16xbf16>
    %184 = vector.shape_cast %183 : vector<1x8x16xbf16> to vector<8x16xbf16>
    %cst_191 = arith.constant dense<0.000000e+00> : vector<64x16xf32>
    %185 = tpu.matmul %162, %184, %cst_191 {dimension_numbers = #tpu.dot_dimension_numbers<[1], [0], [0], [1], [0, 0, 1, 1], [], []>} : vector<64x8xbf16>, vector<8x16xbf16>, vector<64x16xf32> -> vector<64x16xf32>
    %186 = arith.truncf %185 : vector<64x16xf32> to vector<64x16xbf16>
    %c256_192 = arith.constant 256 : index
    %c0_193 = arith.constant 0 : index
    %187 = vector.load %arg23[%c256_192, %c0_193] : memref<576x256xbf16, #tpu.memory_space<vmem>>, vector<64x16xbf16>
    tpu.vector_store %arg23[%c256_192, %c0_193], %186 {strides = array<i32>} : memref<576x256xbf16, #tpu.memory_space<vmem>>, vector<64x16xbf16>,
    %c5_194 = arith.constant 5 : index
    %c0_195 = arith.constant 0 : index
    %c0_196 = arith.constant 0 : index
    %188 = vector.load %arg11[%c5_194, %c0_195, %c0_196] : memref<9x8x16xbf16, #tpu.memory_space<vmem>>, vector<1x8x16xbf16>
    %189 = vector.shape_cast %188 : vector<1x8x16xbf16> to vector<8x16xbf16>
    %cst_197 = arith.constant dense<0.000000e+00> : vector<64x16xf32>
    %190 = tpu.matmul %162, %189, %cst_197 {dimension_numbers = #tpu.dot_dimension_numbers<[1], [0], [0], [1], [0, 0, 1, 1], [], []>} : vector<64x8xbf16>, vector<8x16xbf16>, vector<64x16xf32> -> vector<64x16xf32>
    %191 = arith.truncf %190 : vector<64x16xf32> to vector<64x16xbf16>
    %c320_198 = arith.constant 320 : index
    %c0_199 = arith.constant 0 : index
    %192 = vector.load %arg23[%c320_198, %c0_199] : memref<576x256xbf16, #tpu.memory_space<vmem>>, vector<64x16xbf16>
    tpu.vector_store %arg23[%c320_198, %c0_199], %191 {strides = array<i32>} : memref<576x256xbf16, #tpu.memory_space<vmem>>, vector<64x16xbf16>,
    %c6_200 = arith.constant 6 : index
    %c0_201 = arith.constant 0 : index
    %c0_202 = arith.constant 0 : index
    %193 = vector.load %arg11[%c6_200, %c0_201, %c0_202] : memref<9x8x16xbf16, #tpu.memory_space<vmem>>, vector<1x8x16xbf16>
    %194 = vector.shape_cast %193 : vector<1x8x16xbf16> to vector<8x16xbf16>
    %cst_203 = arith.constant dense<0.000000e+00> : vector<64x16xf32>
    %195 = tpu.matmul %162, %194, %cst_203 {dimension_numbers = #tpu.dot_dimension_numbers<[1], [0], [0], [1], [0, 0, 1, 1], [], []>} : vector<64x8xbf16>, vector<8x16xbf16>, vector<64x16xf32> -> vector<64x16xf32>
    %196 = arith.truncf %195 : vector<64x16xf32> to vector<64x16xbf16>
    %c384_204 = arith.constant 384 : index
    %c0_205 = arith.constant 0 : index
    %197 = vector.load %arg23[%c384_204, %c0_205] : memref<576x256xbf16, #tpu.memory_space<vmem>>, vector<64x16xbf16>
    tpu.vector_store %arg23[%c384_204, %c0_205], %196 {strides = array<i32>} : memref<576x256xbf16, #tpu.memory_space<vmem>>, vector<64x16xbf16>,
    %c7_206 = arith.constant 7 : index
    %c0_207 = arith.constant 0 : index
    %c0_208 = arith.constant 0 : index
    %198 = vector.load %arg11[%c7_206, %c0_207, %c0_208] : memref<9x8x16xbf16, #tpu.memory_space<vmem>>, vector<1x8x16xbf16>
    %199 = vector.shape_cast %198 : vector<1x8x16xbf16> to vector<8x16xbf16>
    %cst_209 = arith.constant dense<0.000000e+00> : vector<64x16xf32>
    %200 = tpu.matmul %162, %199, %cst_209 {dimension_numbers = #tpu.dot_dimension_numbers<[1], [0], [0], [1], [0, 0, 1, 1], [], []>} : vector<64x8xbf16>, vector<8x16xbf16>, vector<64x16xf32> -> vector<64x16xf32>
    %201 = arith.truncf %200 : vector<64x16xf32> to vector<64x16xbf16>
    %c448_210 = arith.constant 448 : index
    %c0_211 = arith.constant 0 : index
    %202 = vector.load %arg23[%c448_210, %c0_211] : memref<576x256xbf16, #tpu.memory_space<vmem>>, vector<64x16xbf16>
    tpu.vector_store %arg23[%c448_210, %c0_211], %201 {strides = array<i32>} : memref<576x256xbf16, #tpu.memory_space<vmem>>, vector<64x16xbf16>,
    %c8_212 = arith.constant 8 : index
    %c0_213 = arith.constant 0 : index
    %c0_214 = arith.constant 0 : index
    %203 = vector.load %arg11[%c8_212, %c0_213, %c0_214] : memref<9x8x16xbf16, #tpu.memory_space<vmem>>, vector<1x8x16xbf16>
    %204 = vector.shape_cast %203 : vector<1x8x16xbf16> to vector<8x16xbf16>
    %cst_215 = arith.constant dense<0.000000e+00> : vector<64x16xf32>
    %205 = tpu.matmul %162, %204, %cst_215 {dimension_numbers = #tpu.dot_dimension_numbers<[1], [0], [0], [1], [0, 0, 1, 1], [], []>} : vector<64x8xbf16>, vector<8x16xbf16>, vector<64x16xf32> -> vector<64x16xf32>
    %206 = arith.truncf %205 : vector<64x16xf32> to vector<64x16xbf16>
    %c512_216 = arith.constant 512 : index
    %c0_217 = arith.constant 0 : index
    %207 = vector.load %arg23[%c512_216, %c0_217] : memref<576x256xbf16, #tpu.memory_space<vmem>>, vector<64x16xbf16>
    tpu.vector_store %arg23[%c512_216, %c0_217], %206 {strides = array<i32>} : memref<576x256xbf16, #tpu.memory_space<vmem>>, vector<64x16xbf16>,
    %c0_218 = arith.constant 0 : index
    %c0_219 = arith.constant 0 : index
    %208 = vector.load %arg12[%c0_218, %c0_219] : memref<64x576xbf16, #tpu.memory_space<vmem>>, vector<64x576xbf16>
    %c0_220 = arith.constant 0 : index
    %c0_221 = arith.constant 0 : index
    %209 = vector.load %arg23[%c0_220, %c0_221] : memref<576x256xbf16, #tpu.memory_space<vmem>>, vector<576x16xbf16>
    %cst_222 = arith.constant dense<0.000000e+00> : vector<64x16xf32>
    %210 = tpu.matmul %208, %209, %cst_222 {dimension_numbers = #tpu.dot_dimension_numbers<[1], [0], [0], [1], [0, 0, 1, 1], [], []>} : vector<64x576xbf16>, vector<576x16xbf16>, vector<64x16xf32> -> vector<64x16xf32>
    %c0_223 = arith.constant 0 : index
    %c0_224 = arith.constant 0 : index
    %211 = vector.load %arg13[%c0_223, %c0_224] : memref<64x1xf32, #tpu.memory_space<vmem>>, vector<64x1xf32>
    %212 = vector.broadcast %211 : vector<64x1xf32> to vector<64x16xf32>
    %213 = arith.addf %210, %212 : vector<64x16xf32>
    %cst_225 = arith.constant 0.000000e+00 : f32
    %214 = vector.broadcast %cst_225 : f32 to vector<64x16xf32>
    %215 = arith.maximumf %213, %214 : vector<64x16xf32>
    %216 = arith.truncf %215 : vector<64x16xf32> to vector<64x16xbf16>
    %c0_226 = arith.constant 0 : index
    %c0_227 = arith.constant 0 : index
    %c0_228 = arith.constant 0 : index
    %217 = vector.load %arg14[%c0_226, %c0_227, %c0_228] : memref<9x16x64xbf16, #tpu.memory_space<vmem>>, vector<1x16x64xbf16>
    %218 = vector.shape_cast %217 : vector<1x16x64xbf16> to vector<16x64xbf16>
    %cst_229 = arith.constant dense<0.000000e+00> : vector<64x64xf32>
    %219 = tpu.matmul %216, %218, %cst_229 {dimension_numbers = #tpu.dot_dimension_numbers<[1], [0], [0], [1], [0, 0, 1, 1], [], []>} : vector<64x16xbf16>, vector<16x64xbf16>, vector<64x64xf32> -> vector<64x64xf32>
    %220 = arith.truncf %219 : vector<64x64xf32> to vector<64x64xbf16>
    %c0_230 = arith.constant 0 : index
    %c0_231 = arith.constant 0 : index
    %221 = vector.load %arg23[%c0_230, %c0_231] : memref<576x256xbf16, #tpu.memory_space<vmem>>, vector<64x64xbf16>
    tpu.vector_store %arg23[%c0_230, %c0_231], %220 {strides = array<i32>} : memref<576x256xbf16, #tpu.memory_space<vmem>>, vector<64x64xbf16>,
    %c1_232 = arith.constant 1 : index
    %c0_233 = arith.constant 0 : index
    %c0_234 = arith.constant 0 : index
    %222 = vector.load %arg14[%c1_232, %c0_233, %c0_234] : memref<9x16x64xbf16, #tpu.memory_space<vmem>>, vector<1x16x64xbf16>
    %223 = vector.shape_cast %222 : vector<1x16x64xbf16> to vector<16x64xbf16>
    %cst_235 = arith.constant dense<0.000000e+00> : vector<64x64xf32>
    %224 = tpu.matmul %216, %223, %cst_235 {dimension_numbers = #tpu.dot_dimension_numbers<[1], [0], [0], [1], [0, 0, 1, 1], [], []>} : vector<64x16xbf16>, vector<16x64xbf16>, vector<64x64xf32> -> vector<64x64xf32>
    %225 = arith.truncf %224 : vector<64x64xf32> to vector<64x64xbf16>
    %c64_236 = arith.constant 64 : index
    %c0_237 = arith.constant 0 : index
    %226 = vector.load %arg23[%c64_236, %c0_237] : memref<576x256xbf16, #tpu.memory_space<vmem>>, vector<64x64xbf16>
    tpu.vector_store %arg23[%c64_236, %c0_237], %225 {strides = array<i32>} : memref<576x256xbf16, #tpu.memory_space<vmem>>, vector<64x64xbf16>,
    %c2_238 = arith.constant 2 : index
    %c0_239 = arith.constant 0 : index
    %c0_240 = arith.constant 0 : index
    %227 = vector.load %arg14[%c2_238, %c0_239, %c0_240] : memref<9x16x64xbf16, #tpu.memory_space<vmem>>, vector<1x16x64xbf16>
    %228 = vector.shape_cast %227 : vector<1x16x64xbf16> to vector<16x64xbf16>
    %cst_241 = arith.constant dense<0.000000e+00> : vector<64x64xf32>
    %229 = tpu.matmul %216, %228, %cst_241 {dimension_numbers = #tpu.dot_dimension_numbers<[1], [0], [0], [1], [0, 0, 1, 1], [], []>} : vector<64x16xbf16>, vector<16x64xbf16>, vector<64x64xf32> -> vector<64x64xf32>
    %230 = arith.truncf %229 : vector<64x64xf32> to vector<64x64xbf16>
    %c128_242 = arith.constant 128 : index
    %c0_243 = arith.constant 0 : index
    %231 = vector.load %arg23[%c128_242, %c0_243] : memref<576x256xbf16, #tpu.memory_space<vmem>>, vector<64x64xbf16>
    tpu.vector_store %arg23[%c128_242, %c0_243], %230 {strides = array<i32>} : memref<576x256xbf16, #tpu.memory_space<vmem>>, vector<64x64xbf16>,
    %c3_244 = arith.constant 3 : index
    %c0_245 = arith.constant 0 : index
    %c0_246 = arith.constant 0 : index
    %232 = vector.load %arg14[%c3_244, %c0_245, %c0_246] : memref<9x16x64xbf16, #tpu.memory_space<vmem>>, vector<1x16x64xbf16>
    %233 = vector.shape_cast %232 : vector<1x16x64xbf16> to vector<16x64xbf16>
    %cst_247 = arith.constant dense<0.000000e+00> : vector<64x64xf32>
    %234 = tpu.matmul %216, %233, %cst_247 {dimension_numbers = #tpu.dot_dimension_numbers<[1], [0], [0], [1], [0, 0, 1, 1], [], []>} : vector<64x16xbf16>, vector<16x64xbf16>, vector<64x64xf32> -> vector<64x64xf32>
    %235 = arith.truncf %234 : vector<64x64xf32> to vector<64x64xbf16>
    %c192_248 = arith.constant 192 : index
    %c0_249 = arith.constant 0 : index
    %236 = vector.load %arg23[%c192_248, %c0_249] : memref<576x256xbf16, #tpu.memory_space<vmem>>, vector<64x64xbf16>
    tpu.vector_store %arg23[%c192_248, %c0_249], %235 {strides = array<i32>} : memref<576x256xbf16, #tpu.memory_space<vmem>>, vector<64x64xbf16>,
    %c4_250 = arith.constant 4 : index
    %c0_251 = arith.constant 0 : index
    %c0_252 = arith.constant 0 : index
    %237 = vector.load %arg14[%c4_250, %c0_251, %c0_252] : memref<9x16x64xbf16, #tpu.memory_space<vmem>>, vector<1x16x64xbf16>
    %238 = vector.shape_cast %237 : vector<1x16x64xbf16> to vector<16x64xbf16>
    %cst_253 = arith.constant dense<0.000000e+00> : vector<64x64xf32>
    %239 = tpu.matmul %216, %238, %cst_253 {dimension_numbers = #tpu.dot_dimension_numbers<[1], [0], [0], [1], [0, 0, 1, 1], [], []>} : vector<64x16xbf16>, vector<16x64xbf16>, vector<64x64xf32> -> vector<64x64xf32>
    %240 = arith.truncf %239 : vector<64x64xf32> to vector<64x64xbf16>
    %c256_254 = arith.constant 256 : index
    %c0_255 = arith.constant 0 : index
    %241 = vector.load %arg23[%c256_254, %c0_255] : memref<576x256xbf16, #tpu.memory_space<vmem>>, vector<64x64xbf16>
    tpu.vector_store %arg23[%c256_254, %c0_255], %240 {strides = array<i32>} : memref<576x256xbf16, #tpu.memory_space<vmem>>, vector<64x64xbf16>,
    %c5_256 = arith.constant 5 : index
    %c0_257 = arith.constant 0 : index
    %c0_258 = arith.constant 0 : index
    %242 = vector.load %arg14[%c5_256, %c0_257, %c0_258] : memref<9x16x64xbf16, #tpu.memory_space<vmem>>, vector<1x16x64xbf16>
    %243 = vector.shape_cast %242 : vector<1x16x64xbf16> to vector<16x64xbf16>
    %cst_259 = arith.constant dense<0.000000e+00> : vector<64x64xf32>
    %244 = tpu.matmul %216, %243, %cst_259 {dimension_numbers = #tpu.dot_dimension_numbers<[1], [0], [0], [1], [0, 0, 1, 1], [], []>} : vector<64x16xbf16>, vector<16x64xbf16>, vector<64x64xf32> -> vector<64x64xf32>
    %245 = arith.truncf %244 : vector<64x64xf32> to vector<64x64xbf16>
    %c320_260 = arith.constant 320 : index
    %c0_261 = arith.constant 0 : index
    %246 = vector.load %arg23[%c320_260, %c0_261] : memref<576x256xbf16, #tpu.memory_space<vmem>>, vector<64x64xbf16>
    tpu.vector_store %arg23[%c320_260, %c0_261], %245 {strides = array<i32>} : memref<576x256xbf16, #tpu.memory_space<vmem>>, vector<64x64xbf16>,
    %c6_262 = arith.constant 6 : index
    %c0_263 = arith.constant 0 : index
    %c0_264 = arith.constant 0 : index
    %247 = vector.load %arg14[%c6_262, %c0_263, %c0_264] : memref<9x16x64xbf16, #tpu.memory_space<vmem>>, vector<1x16x64xbf16>
    %248 = vector.shape_cast %247 : vector<1x16x64xbf16> to vector<16x64xbf16>
    %cst_265 = arith.constant dense<0.000000e+00> : vector<64x64xf32>
    %249 = tpu.matmul %216, %248, %cst_265 {dimension_numbers = #tpu.dot_dimension_numbers<[1], [0], [0], [1], [0, 0, 1, 1], [], []>} : vector<64x16xbf16>, vector<16x64xbf16>, vector<64x64xf32> -> vector<64x64xf32>
    %250 = arith.truncf %249 : vector<64x64xf32> to vector<64x64xbf16>
    %c384_266 = arith.constant 384 : index
    %c0_267 = arith.constant 0 : index
    %251 = vector.load %arg23[%c384_266, %c0_267] : memref<576x256xbf16, #tpu.memory_space<vmem>>, vector<64x64xbf16>
    tpu.vector_store %arg23[%c384_266, %c0_267], %250 {strides = array<i32>} : memref<576x256xbf16, #tpu.memory_space<vmem>>, vector<64x64xbf16>,
    %c7_268 = arith.constant 7 : index
    %c0_269 = arith.constant 0 : index
    %c0_270 = arith.constant 0 : index
    %252 = vector.load %arg14[%c7_268, %c0_269, %c0_270] : memref<9x16x64xbf16, #tpu.memory_space<vmem>>, vector<1x16x64xbf16>
    %253 = vector.shape_cast %252 : vector<1x16x64xbf16> to vector<16x64xbf16>
    %cst_271 = arith.constant dense<0.000000e+00> : vector<64x64xf32>
    %254 = tpu.matmul %216, %253, %cst_271 {dimension_numbers = #tpu.dot_dimension_numbers<[1], [0], [0], [1], [0, 0, 1, 1], [], []>} : vector<64x16xbf16>, vector<16x64xbf16>, vector<64x64xf32> -> vector<64x64xf32>
    %255 = arith.truncf %254 : vector<64x64xf32> to vector<64x64xbf16>
    %c448_272 = arith.constant 448 : index
    %c0_273 = arith.constant 0 : index
    %256 = vector.load %arg23[%c448_272, %c0_273] : memref<576x256xbf16, #tpu.memory_space<vmem>>, vector<64x64xbf16>
    tpu.vector_store %arg23[%c448_272, %c0_273], %255 {strides = array<i32>} : memref<576x256xbf16, #tpu.memory_space<vmem>>, vector<64x64xbf16>,
    %c8_274 = arith.constant 8 : index
    %c0_275 = arith.constant 0 : index
    %c0_276 = arith.constant 0 : index
    %257 = vector.load %arg14[%c8_274, %c0_275, %c0_276] : memref<9x16x64xbf16, #tpu.memory_space<vmem>>, vector<1x16x64xbf16>
    %258 = vector.shape_cast %257 : vector<1x16x64xbf16> to vector<16x64xbf16>
    %cst_277 = arith.constant dense<0.000000e+00> : vector<64x64xf32>
    %259 = tpu.matmul %216, %258, %cst_277 {dimension_numbers = #tpu.dot_dimension_numbers<[1], [0], [0], [1], [0, 0, 1, 1], [], []>} : vector<64x16xbf16>, vector<16x64xbf16>, vector<64x64xf32> -> vector<64x64xf32>
    %260 = arith.truncf %259 : vector<64x64xf32> to vector<64x64xbf16>
    %c512_278 = arith.constant 512 : index
    %c0_279 = arith.constant 0 : index
    %261 = vector.load %arg23[%c512_278, %c0_279] : memref<576x256xbf16, #tpu.memory_space<vmem>>, vector<64x64xbf16>
    tpu.vector_store %arg23[%c512_278, %c0_279], %260 {strides = array<i32>} : memref<576x256xbf16, #tpu.memory_space<vmem>>, vector<64x64xbf16>,
    %c0_280 = arith.constant 0 : index
    %c0_281 = arith.constant 0 : index
    %262 = vector.load %arg15[%c0_280, %c0_281] : memref<64x576xbf16, #tpu.memory_space<vmem>>, vector<64x576xbf16>
    %c0_282 = arith.constant 0 : index
    %c0_283 = arith.constant 0 : index
    %263 = vector.load %arg23[%c0_282, %c0_283] : memref<576x256xbf16, #tpu.memory_space<vmem>>, vector<576x64xbf16>
    %cst_284 = arith.constant dense<0.000000e+00> : vector<64x64xf32>
    %264 = tpu.matmul %262, %263, %cst_284 {dimension_numbers = #tpu.dot_dimension_numbers<[1], [0], [0], [1], [0, 0, 1, 1], [], []>} : vector<64x576xbf16>, vector<576x64xbf16>, vector<64x64xf32> -> vector<64x64xf32>
    %c0_285 = arith.constant 0 : index
    %c0_286 = arith.constant 0 : index
    %265 = vector.load %arg16[%c0_285, %c0_286] : memref<64x1xf32, #tpu.memory_space<vmem>>, vector<64x1xf32>
    %266 = vector.broadcast %265 : vector<64x1xf32> to vector<64x64xf32>
    %267 = arith.addf %264, %266 : vector<64x64xf32>
    %cst_287 = arith.constant 0.000000e+00 : f32
    %268 = vector.broadcast %cst_287 : f32 to vector<64x64xf32>
    %269 = arith.maximumf %267, %268 : vector<64x64xf32>
    %270 = arith.truncf %269 : vector<64x64xf32> to vector<64x64xbf16>
    %c0_288 = arith.constant 0 : index
    %c0_289 = arith.constant 0 : index
    %c0_290 = arith.constant 0 : index
    %271 = vector.load %arg17[%c0_288, %c0_289, %c0_290] : memref<9x64x256xbf16, #tpu.memory_space<vmem>>, vector<1x64x256xbf16>
    %272 = vector.shape_cast %271 : vector<1x64x256xbf16> to vector<64x256xbf16>
    %cst_291 = arith.constant dense<0.000000e+00> : vector<64x256xf32>
    %273 = tpu.matmul %270, %272, %cst_291 {dimension_numbers = #tpu.dot_dimension_numbers<[1], [0], [0], [1], [0, 0, 1, 1], [], []>} : vector<64x64xbf16>, vector<64x256xbf16>, vector<64x256xf32> -> vector<64x256xf32>
    %274 = arith.truncf %273 : vector<64x256xf32> to vector<64x256xbf16>
    %c0_292 = arith.constant 0 : index
    %c0_293 = arith.constant 0 : index
    %275 = vector.load %arg23[%c0_292, %c0_293] : memref<576x256xbf16, #tpu.memory_space<vmem>>, vector<64x256xbf16>
    tpu.vector_store %arg23[%c0_292, %c0_293], %274 {strides = array<i32>} : memref<576x256xbf16, #tpu.memory_space<vmem>>, vector<64x256xbf16>,
    %c1_294 = arith.constant 1 : index
    %c0_295 = arith.constant 0 : index
    %c0_296 = arith.constant 0 : index
    %276 = vector.load %arg17[%c1_294, %c0_295, %c0_296] : memref<9x64x256xbf16, #tpu.memory_space<vmem>>, vector<1x64x256xbf16>
    %277 = vector.shape_cast %276 : vector<1x64x256xbf16> to vector<64x256xbf16>
    %cst_297 = arith.constant dense<0.000000e+00> : vector<64x256xf32>
    %278 = tpu.matmul %270, %277, %cst_297 {dimension_numbers = #tpu.dot_dimension_numbers<[1], [0], [0], [1], [0, 0, 1, 1], [], []>} : vector<64x64xbf16>, vector<64x256xbf16>, vector<64x256xf32> -> vector<64x256xf32>
    %279 = arith.truncf %278 : vector<64x256xf32> to vector<64x256xbf16>
    %c64_298 = arith.constant 64 : index
    %c0_299 = arith.constant 0 : index
    %280 = vector.load %arg23[%c64_298, %c0_299] : memref<576x256xbf16, #tpu.memory_space<vmem>>, vector<64x256xbf16>
    tpu.vector_store %arg23[%c64_298, %c0_299], %279 {strides = array<i32>} : memref<576x256xbf16, #tpu.memory_space<vmem>>, vector<64x256xbf16>,
    %c2_300 = arith.constant 2 : index
    %c0_301 = arith.constant 0 : index
    %c0_302 = arith.constant 0 : index
    %281 = vector.load %arg17[%c2_300, %c0_301, %c0_302] : memref<9x64x256xbf16, #tpu.memory_space<vmem>>, vector<1x64x256xbf16>
    %282 = vector.shape_cast %281 : vector<1x64x256xbf16> to vector<64x256xbf16>
    %cst_303 = arith.constant dense<0.000000e+00> : vector<64x256xf32>
    %283 = tpu.matmul %270, %282, %cst_303 {dimension_numbers = #tpu.dot_dimension_numbers<[1], [0], [0], [1], [0, 0, 1, 1], [], []>} : vector<64x64xbf16>, vector<64x256xbf16>, vector<64x256xf32> -> vector<64x256xf32>
    %284 = arith.truncf %283 : vector<64x256xf32> to vector<64x256xbf16>
    %c128_304 = arith.constant 128 : index
    %c0_305 = arith.constant 0 : index
    %285 = vector.load %arg23[%c128_304, %c0_305] : memref<576x256xbf16, #tpu.memory_space<vmem>>, vector<64x256xbf16>
    tpu.vector_store %arg23[%c128_304, %c0_305], %284 {strides = array<i32>} : memref<576x256xbf16, #tpu.memory_space<vmem>>, vector<64x256xbf16>,
    %c3_306 = arith.constant 3 : index
    %c0_307 = arith.constant 0 : index
    %c0_308 = arith.constant 0 : index
    %286 = vector.load %arg17[%c3_306, %c0_307, %c0_308] : memref<9x64x256xbf16, #tpu.memory_space<vmem>>, vector<1x64x256xbf16>
    %287 = vector.shape_cast %286 : vector<1x64x256xbf16> to vector<64x256xbf16>
    %cst_309 = arith.constant dense<0.000000e+00> : vector<64x256xf32>
    %288 = tpu.matmul %270, %287, %cst_309 {dimension_numbers = #tpu.dot_dimension_numbers<[1], [0], [0], [1], [0, 0, 1, 1], [], []>} : vector<64x64xbf16>, vector<64x256xbf16>, vector<64x256xf32> -> vector<64x256xf32>
    %289 = arith.truncf %288 : vector<64x256xf32> to vector<64x256xbf16>
    %c192_310 = arith.constant 192 : index
    %c0_311 = arith.constant 0 : index
    %290 = vector.load %arg23[%c192_310, %c0_311] : memref<576x256xbf16, #tpu.memory_space<vmem>>, vector<64x256xbf16>
    tpu.vector_store %arg23[%c192_310, %c0_311], %289 {strides = array<i32>} : memref<576x256xbf16, #tpu.memory_space<vmem>>, vector<64x256xbf16>,
    %c4_312 = arith.constant 4 : index
    %c0_313 = arith.constant 0 : index
    %c0_314 = arith.constant 0 : index
    %291 = vector.load %arg17[%c4_312, %c0_313, %c0_314] : memref<9x64x256xbf16, #tpu.memory_space<vmem>>, vector<1x64x256xbf16>
    %292 = vector.shape_cast %291 : vector<1x64x256xbf16> to vector<64x256xbf16>
    %cst_315 = arith.constant dense<0.000000e+00> : vector<64x256xf32>
    %293 = tpu.matmul %270, %292, %cst_315 {dimension_numbers = #tpu.dot_dimension_numbers<[1], [0], [0], [1], [0, 0, 1, 1], [], []>} : vector<64x64xbf16>, vector<64x256xbf16>, vector<64x256xf32> -> vector<64x256xf32>
    %294 = arith.truncf %293 : vector<64x256xf32> to vector<64x256xbf16>
    %c256_316 = arith.constant 256 : index
    %c0_317 = arith.constant 0 : index
    %295 = vector.load %arg23[%c256_316, %c0_317] : memref<576x256xbf16, #tpu.memory_space<vmem>>, vector<64x256xbf16>
    tpu.vector_store %arg23[%c256_316, %c0_317], %294 {strides = array<i32>} : memref<576x256xbf16, #tpu.memory_space<vmem>>, vector<64x256xbf16>,
    %c5_318 = arith.constant 5 : index
    %c0_319 = arith.constant 0 : index
    %c0_320 = arith.constant 0 : index
    %296 = vector.load %arg17[%c5_318, %c0_319, %c0_320] : memref<9x64x256xbf16, #tpu.memory_space<vmem>>, vector<1x64x256xbf16>
    %297 = vector.shape_cast %296 : vector<1x64x256xbf16> to vector<64x256xbf16>
    %cst_321 = arith.constant dense<0.000000e+00> : vector<64x256xf32>
    %298 = tpu.matmul %270, %297, %cst_321 {dimension_numbers = #tpu.dot_dimension_numbers<[1], [0], [0], [1], [0, 0, 1, 1], [], []>} : vector<64x64xbf16>, vector<64x256xbf16>, vector<64x256xf32> -> vector<64x256xf32>
    %299 = arith.truncf %298 : vector<64x256xf32> to vector<64x256xbf16>
    %c320_322 = arith.constant 320 : index
    %c0_323 = arith.constant 0 : index
    %300 = vector.load %arg23[%c320_322, %c0_323] : memref<576x256xbf16, #tpu.memory_space<vmem>>, vector<64x256xbf16>
    tpu.vector_store %arg23[%c320_322, %c0_323], %299 {strides = array<i32>} : memref<576x256xbf16, #tpu.memory_space<vmem>>, vector<64x256xbf16>,
    %c6_324 = arith.constant 6 : index
    %c0_325 = arith.constant 0 : index
    %c0_326 = arith.constant 0 : index
    %301 = vector.load %arg17[%c6_324, %c0_325, %c0_326] : memref<9x64x256xbf16, #tpu.memory_space<vmem>>, vector<1x64x256xbf16>
    %302 = vector.shape_cast %301 : vector<1x64x256xbf16> to vector<64x256xbf16>
    %cst_327 = arith.constant dense<0.000000e+00> : vector<64x256xf32>
    %303 = tpu.matmul %270, %302, %cst_327 {dimension_numbers = #tpu.dot_dimension_numbers<[1], [0], [0], [1], [0, 0, 1, 1], [], []>} : vector<64x64xbf16>, vector<64x256xbf16>, vector<64x256xf32> -> vector<64x256xf32>
    %304 = arith.truncf %303 : vector<64x256xf32> to vector<64x256xbf16>
    %c384_328 = arith.constant 384 : index
    %c0_329 = arith.constant 0 : index
    %305 = vector.load %arg23[%c384_328, %c0_329] : memref<576x256xbf16, #tpu.memory_space<vmem>>, vector<64x256xbf16>
    tpu.vector_store %arg23[%c384_328, %c0_329], %304 {strides = array<i32>} : memref<576x256xbf16, #tpu.memory_space<vmem>>, vector<64x256xbf16>,
    %c7_330 = arith.constant 7 : index
    %c0_331 = arith.constant 0 : index
    %c0_332 = arith.constant 0 : index
    %306 = vector.load %arg17[%c7_330, %c0_331, %c0_332] : memref<9x64x256xbf16, #tpu.memory_space<vmem>>, vector<1x64x256xbf16>
    %307 = vector.shape_cast %306 : vector<1x64x256xbf16> to vector<64x256xbf16>
    %cst_333 = arith.constant dense<0.000000e+00> : vector<64x256xf32>
    %308 = tpu.matmul %270, %307, %cst_333 {dimension_numbers = #tpu.dot_dimension_numbers<[1], [0], [0], [1], [0, 0, 1, 1], [], []>} : vector<64x64xbf16>, vector<64x256xbf16>, vector<64x256xf32> -> vector<64x256xf32>
    %309 = arith.truncf %308 : vector<64x256xf32> to vector<64x256xbf16>
    %c448_334 = arith.constant 448 : index
    %c0_335 = arith.constant 0 : index
    %310 = vector.load %arg23[%c448_334, %c0_335] : memref<576x256xbf16, #tpu.memory_space<vmem>>, vector<64x256xbf16>
    tpu.vector_store %arg23[%c448_334, %c0_335], %309 {strides = array<i32>} : memref<576x256xbf16, #tpu.memory_space<vmem>>, vector<64x256xbf16>,
    %c8_336 = arith.constant 8 : index
    %c0_337 = arith.constant 0 : index
    %c0_338 = arith.constant 0 : index
    %311 = vector.load %arg17[%c8_336, %c0_337, %c0_338] : memref<9x64x256xbf16, #tpu.memory_space<vmem>>, vector<1x64x256xbf16>
    %312 = vector.shape_cast %311 : vector<1x64x256xbf16> to vector<64x256xbf16>
    %cst_339 = arith.constant dense<0.000000e+00> : vector<64x256xf32>
    %313 = tpu.matmul %270, %312, %cst_339 {dimension_numbers = #tpu.dot_dimension_numbers<[1], [0], [0], [1], [0, 0, 1, 1], [], []>} : vector<64x64xbf16>, vector<64x256xbf16>, vector<64x256xf32> -> vector<64x256xf32>
    %314 = arith.truncf %313 : vector<64x256xf32> to vector<64x256xbf16>
    %c512_340 = arith.constant 512 : index
    %c0_341 = arith.constant 0 : index
    %315 = vector.load %arg23[%c512_340, %c0_341] : memref<576x256xbf16, #tpu.memory_space<vmem>>, vector<64x256xbf16>
    tpu.vector_store %arg23[%c512_340, %c0_341], %314 {strides = array<i32>} : memref<576x256xbf16, #tpu.memory_space<vmem>>, vector<64x256xbf16>,
    %c0_342 = arith.constant 0 : index
    %c0_343 = arith.constant 0 : index
    %316 = vector.load %arg18[%c0_342, %c0_343] : memref<64x576xbf16, #tpu.memory_space<vmem>>, vector<64x576xbf16>
    %c0_344 = arith.constant 0 : index
    %c0_345 = arith.constant 0 : index
    %317 = vector.load %arg23[%c0_344, %c0_345] : memref<576x256xbf16, #tpu.memory_space<vmem>>, vector<576x256xbf16>
    %cst_346 = arith.constant dense<0.000000e+00> : vector<64x256xf32>
    %318 = tpu.matmul %316, %317, %cst_346 {dimension_numbers = #tpu.dot_dimension_numbers<[1], [0], [0], [1], [0, 0, 1, 1], [], []>} : vector<64x576xbf16>, vector<576x256xbf16>, vector<64x256xf32> -> vector<64x256xf32>
    %c0_347 = arith.constant 0 : index
    %c0_348 = arith.constant 0 : index
    %319 = vector.load %arg19[%c0_347, %c0_348] : memref<64x1xf32, #tpu.memory_space<vmem>>, vector<64x1xf32>
    %320 = vector.broadcast %319 : vector<64x1xf32> to vector<64x256xf32>
    %321 = arith.addf %318, %320 : vector<64x256xf32>
    %cst_349 = arith.constant 0.000000e+00 : f32
    %322 = vector.broadcast %cst_349 : f32 to vector<64x256xf32>
    %323 = arith.maximumf %321, %322 : vector<64x256xf32>
    %324 = arith.truncf %323 : vector<64x256xf32> to vector<64x256xbf16>
    %c0_350 = arith.constant 0 : index
    %c0_351 = arith.constant 0 : index
    %325 = vector.load %arg20[%c0_350, %c0_351] : memref<16x64xbf16, #tpu.memory_space<vmem>>, vector<16x64xbf16>
    %cst_352 = arith.constant dense<0.000000e+00> : vector<16x256xf32>
    %326 = tpu.matmul %325, %324, %cst_352 {dimension_numbers = #tpu.dot_dimension_numbers<[1], [0], [0], [1], [0, 0, 1, 1], [], []>} : vector<16x64xbf16>, vector<64x256xbf16>, vector<16x256xf32> -> vector<16x256xf32>
    %c0_353 = arith.constant 0 : index
    %c0_354 = arith.constant 0 : index
    %327 = vector.load %arg21[%c0_353, %c0_354] : memref<16x1xf32, #tpu.memory_space<vmem>>, vector<16x1xf32>
    %328 = vector.broadcast %327 : vector<16x1xf32> to vector<16x256xf32>
    %329 = arith.addf %326, %328 : vector<16x256xf32>
    %c0_355 = arith.constant 0 : index
    %c0_356 = arith.constant 0 : index
    %330 = vector.load %arg22[%c0_355, %c0_356] : memref<16x256xf32, #tpu.memory_space<vmem>>, vector<16x256xf32>
    tpu.vector_store %arg22[%c0_355, %c0_356], %329 {strides = array<i32>} : memref<16x256xf32, #tpu.memory_space<vmem>>, vector<16x256xf32>,
    return
  }
  func.func @transform_0(%arg0: i32) -> (i32, i32) {
    %c0_i32 = arith.constant 0 : i32
    %c0_i32_0 = arith.constant 0 : i32
    %c0_i32_1 = arith.constant 0 : i32
    return %c0_i32, %c0_i32_0 : i32, i32
  }
  func.func @transform_1(%arg0: i32) -> (i32, i32, i32) {
    %c0_i32 = arith.constant 0 : i32
    %c0_i32_0 = arith.constant 0 : i32
    %c0_i32_1 = arith.constant 0 : i32
    %c0_i32_2 = arith.constant 0 : i32
    return %c0_i32, %c0_i32_0, %c0_i32_1 : i32, i32, i32
  }
  func.func @transform_2(%arg0: i32) -> (i32, i32) {
    %c0_i32 = arith.constant 0 : i32
    %c0_i32_0 = arith.constant 0 : i32
    %c0_i32_1 = arith.constant 0 : i32
    return %c0_i32, %c0_i32_0 : i32, i32
  }
  func.func @transform_3(%arg0: i32) -> (i32, i32) {
    %c0_i32 = arith.constant 0 : i32
    %c0_i32_0 = arith.constant 0 : i32
    %c0_i32_1 = arith.constant 0 : i32
    return %c0_i32, %c0_i32_0 : i32, i32
  }
  func.func @transform_4(%arg0: i32) -> (i32, i32, i32) {
    %c0_i32 = arith.constant 0 : i32
    %c0_i32_0 = arith.constant 0 : i32
    %c0_i32_1 = arith.constant 0 : i32
    %c0_i32_2 = arith.constant 0 : i32
    return %c0_i32, %c0_i32_0, %c0_i32_1 : i32, i32, i32
  }
  func.func @transform_5(%arg0: i32) -> (i32, i32) {
    %c0_i32 = arith.constant 0 : i32
    %c0_i32_0 = arith.constant 0 : i32
    %c0_i32_1 = arith.constant 0 : i32
    return %c0_i32, %c0_i32_0 : i32, i32
  }
  func.func @transform_6(%arg0: i32) -> (i32, i32) {
    %c0_i32 = arith.constant 0 : i32
    %c0_i32_0 = arith.constant 0 : i32
    %c0_i32_1 = arith.constant 0 : i32
    return %c0_i32, %c0_i32_0 : i32, i32
  }
  func.func @transform_7(%arg0: i32) -> (i32, i32, i32) {
    %c0_i32 = arith.constant 0 : i32
    %c0_i32_0 = arith.constant 0 : i32
    %c0_i32_1 = arith.constant 0 : i32
    %c0_i32_2 = arith.constant 0 : i32
    return %c0_i32, %c0_i32_0, %c0_i32_1 : i32, i32, i32
  }
  func.func @transform_8(%arg0: i32) -> (i32, i32) {
    %c0_i32 = arith.constant 0 : i32
    %c0_i32_0 = arith.constant 0 : i32
    %c0_i32_1 = arith.constant 0 : i32
    return %c0_i32, %c0_i32_0 : i32, i32
  }
  func.func @transform_9(%arg0: i32) -> (i32, i32) {
    %c0_i32 = arith.constant 0 : i32
    %c0_i32_0 = arith.constant 0 : i32
    %c0_i32_1 = arith.constant 0 : i32
    return %c0_i32, %c0_i32_0 : i32, i32
  }
  func.func @transform_10(%arg0: i32) -> (i32, i32, i32) {
    %c0_i32 = arith.constant 0 : i32
    %c0_i32_0 = arith.constant 0 : i32
    %c0_i32_1 = arith.constant 0 : i32
    %c0_i32_2 = arith.constant 0 : i32
    return %c0_i32, %c0_i32_0, %c0_i32_1 : i32, i32, i32
  }
  func.func @transform_11(%arg0: i32) -> (i32, i32) {
    %c0_i32 = arith.constant 0 : i32
    %c0_i32_0 = arith.constant 0 : i32
    %c0_i32_1 = arith.constant 0 : i32
    return %c0_i32, %c0_i32_0 : i32, i32
  }
  func.func @transform_12(%arg0: i32) -> (i32, i32) {
    %c0_i32 = arith.constant 0 : i32
    %c0_i32_0 = arith.constant 0 : i32
    %c0_i32_1 = arith.constant 0 : i32
    return %c0_i32, %c0_i32_0 : i32, i32
  }
  func.func @transform_13(%arg0: i32) -> (i32, i32, i32) {
    %c0_i32 = arith.constant 0 : i32
    %c0_i32_0 = arith.constant 0 : i32
    %c0_i32_1 = arith.constant 0 : i32
    %c0_i32_2 = arith.constant 0 : i32
    return %c0_i32, %c0_i32_0, %c0_i32_1 : i32, i32, i32
  }
  func.func @transform_14(%arg0: i32) -> (i32, i32) {
    %c0_i32 = arith.constant 0 : i32
    %c0_i32_0 = arith.constant 0 : i32
    %c0_i32_1 = arith.constant 0 : i32
    return %c0_i32, %c0_i32_0 : i32, i32
  }
  func.func @transform_15(%arg0: i32) -> (i32, i32) {
    %c0_i32 = arith.constant 0 : i32
    %c0_i32_0 = arith.constant 0 : i32
    %c0_i32_1 = arith.constant 0 : i32
    return %c0_i32, %c0_i32_0 : i32, i32
  }
  func.func @transform_16(%arg0: i32) -> (i32, i32, i32) {
    %c0_i32 = arith.constant 0 : i32
    %c0_i32_0 = arith.constant 0 : i32
    %c0_i32_1 = arith.constant 0 : i32
    %c0_i32_2 = arith.constant 0 : i32
    return %c0_i32, %c0_i32_0, %c0_i32_1 : i32, i32, i32
  }
  func.func @transform_17(%arg0: i32) -> (i32, i32) {
    %c0_i32 = arith.constant 0 : i32
    %c0_i32_0 = arith.constant 0 : i32
    %c0_i32_1 = arith.constant 0 : i32
    return %c0_i32, %c0_i32_0 : i32, i32
  }
  func.func @transform_18(%arg0: i32) -> (i32, i32) {
    %c0_i32 = arith.constant 0 : i32
    %c0_i32_0 = arith.constant 0 : i32
    %c0_i32_1 = arith.constant 0 : i32
    return %c0_i32, %c0_i32_0 : i32, i32
  }
  func.func @transform_19(%arg0: i32) -> (i32, i32) {
    %c0_i32 = arith.constant 0 : i32
    %c0_i32_0 = arith.constant 0 : i32
    %c0_i32_1 = arith.constant 0 : i32
    return %c0_i32, %c0_i32_0 : i32, i32
  }
  func.func @transform_20(%arg0: i32) -> (i32, i32) {
    %c0_i32 = arith.constant 0 : i32
    %c0_i32_0 = arith.constant 0 : i32
    %c0_i32_1 = arith.constant 0 : i32
    return %c0_i32, %c0_i32_0 : i32, i32
  }
  func.func @transform_21(%arg0: i32) -> (i32, i32) {
    %c0_i32 = arith.constant 0 : i32
    %c0_i32_0 = arith.constant 0 : i32
    %c0_i32_1 = arith.constant 0 : i32
    return %c0_i32, %c0_i32_0 : i32, i32
  }
}

</mosaic_0001>

<llo_original>
// kernel: squeeze.1
$region0: #{squeeze.1}
  %s0 = inlined_call_operand.vmem [shape: f32[2,256], index: 0, kind: input, shape index: {}]
  %s1 = inlined_call_operand.hbm [shape: f32[2,1,16,16], index: 1, kind: output, shape index: {}]
  $region1: #{squeeze.1} parent=0
    #allocation0 [shape = 'u8[16384]{0}', space=vmem, size = 0x4000, scoped, tag = 'operand span for operand 1']
    #allocation1 [shape = 's32[1]{0}', space=sflag, size = 0x4, scoped, tag = 'scoped memory for squeeze.1']
    #allocation2 [shape = 'u8[8192]{0}', space=vmem, size = 0x2000, scoped, tag = 'scoped mem for input reshape']
    %2 = vsyncpa [#allocation1], 0
    %s4 = sshllo.u32 0, 2
    %s5 = scalar_lea.vmem %s0, 2
    %v6 = vld [vmem:[%s5] sm:%s4]
    %s7 = scalar_lea.vmem [#allocation2], 8
    %8 = vst [vmem:[%s7] sm:%s4] %v6
    %v9 = vld [vmem:[%s0] sm:%s4]
    %10 = vst [vmem:[#allocation2] sm:%s4] %v9
    %v11 = vld [vmem:[#allocation2] sm:$0x3]
    %vm12 = vcmask 130048
    %13 = vst.msk [vmem:[#allocation0] ss:$16 sm:$0x3] %vm12, %v11
    %s14 = scalar_lea.vmem [#allocation2], 8
    %v15 = vld [vmem:[%s14] sm:$0x3]
    %vm16 = vcmask 130048
    %s17 = scalar_lea.vmem [#allocation0], 8
    %18 = vst.msk [vmem:[%s17] ss:$16 sm:$0x3] %vm16, %v15
    %v19 = vld.sshfl [vmem:[#allocation2] sm:$0xff pattern:$0x99999180]
    %20 = vrot.lane.b32.xlu0 %v19, 112
    %v21 = vpop.permute.xlu0 %20
    %vm22 = vcmask 130048
    %s23 = scalar_lea.vmem [#allocation0], 1
    %24 = vst.msk [vmem:[%s23] ss:$8 sm:$0xf] %vm22, %v21
    %v25 = vld.sshfl [vmem:[#allocation2] sm:$0xff pattern:$0x99999180]
    %26 = vrot.lane.b32.xlu0 %v25, 96
    %v27 = vpop.permute.xlu0 %26
    %vm28 = vcmask 130048
    %s29 = scalar_lea.vmem [#allocation0], 2
    %30 = vst.msk [vmem:[%s29] ss:$8 sm:$0xf] %vm28, %v27
    %v31 = vld.sshfl [vmem:[#allocation2] sm:$0xff pattern:$0x99999180]
    %32 = vrot.lane.b32.xlu0 %v31, 80
    %v33 = vpop.permute.xlu0 %32
    %vm34 = vcmask 130048
    %s35 = scalar_lea.vmem [#allocation0], 3
    %36 = vst.msk [vmem:[%s35] ss:$8 sm:$0xf] %vm34, %v33
    %v37 = vld.sshfl [vmem:[#allocation2] sm:$0xff pattern:$0x99999180]
    %38 = vrot.lane.b32.xlu0 %v37, 64
    %v39 = vpop.permute.xlu0 %38
    %vm40 = vcmask 130048
    %s41 = scalar_lea.vmem [#allocation0], 4
    %42 = vst.msk [vmem:[%s41] ss:$8 sm:$0xf] %vm40, %v39
    %v43 = vld.sshfl [vmem:[#allocation2] sm:$0xff pattern:$0x99999180]
    %44 = vrot.lane.b32.xlu0 %v43, 48
    %v45 = vpop.permute.xlu0 %44
    %vm46 = vcmask 130048
    %s47 = scalar_lea.vmem [#allocation0], 5
    %48 = vst.msk [vmem:[%s47] ss:$8 sm:$0xf] %vm46, %v45
    %v49 = vld.sshfl [vmem:[#allocation2] sm:$0xff pattern:$0x99999180]
    %50 = vrot.lane.b32.xlu0 %v49, 32
    %v51 = vpop.permute.xlu0 %50
    %vm52 = vcmask 130048
    %s53 = scalar_lea.vmem [#allocation0], 6
    %54 = vst.msk [vmem:[%s53] ss:$8 sm:$0xf] %vm52, %v51
    %v55 = vld.sshfl [vmem:[#allocation2] sm:$0xff pattern:$0x99999180]
    %56 = vrot.lane.b32.xlu0 %v55, 16
    %v57 = vpop.permute.xlu0 %56
    %vm58 = vcmask 130048
    %s59 = scalar_lea.vmem [#allocation0], 7
    %60 = vst.msk [vmem:[%s59] ss:$8 sm:$0xf] %vm58, %v57
    %s62 = ssub.s32 512, 512
    %63 = vsyncadd [#allocation1], %s62
    %s65 = sshll.u32 [#allocation0], 4
    %s66 = int_to_ptr.vmem [resolvable:$true] %s65
    %68 = dma.vmem_to_hbm [thread:$0]  %s66, 512, %s1, [#allocation1]
    %69 = dma.done [#allocation1], 512
    %70 = vsyncpa [#allocation1], 1

// kernel: forward.1
$region0: #{forward.1}
  #allocation0 [shape = 'u32[]', space=smem, size = 0x4, offset = 0x4, fixed_abs, tag = 'smem constant byte address 0x4 - core index']
  #allocation1 [shape = 'u32[144,128]{1,0:T(1,128)}', space=vmem, size = 0x12000, scoped, tag = 'internal scratch']
  #allocation2 [shape = 'bf16[576,256]{1,0:T(16,128)(2,1)}', space=vmem, size = 0x48000, scoped, tag = 'scratch operand']
  %s0 = inlined_call_operand.vmem [shape: bf16[16,256], index: 0, kind: input, shape index: {}]
  %s1 = inlined_call_operand.vmem [shape: bf16[9,256,64], index: 1, kind: input, shape index: {}]
  %s2 = inlined_call_operand.vmem [shape: bf16[64,144], index: 2, kind: input, shape index: {}]
  %s3 = inlined_call_operand.vmem [shape: f32[64,1], index: 3, kind: input, shape index: {}]
  %s4 = inlined_call_operand.vmem [shape: bf16[9,64,16], index: 4, kind: input, shape index: {}]
  %s5 = inlined_call_operand.vmem [shape: bf16[64,576], index: 5, kind: input, shape index: {}]
  %s6 = inlined_call_operand.vmem [shape: f32[64,1], index: 6, kind: input, shape index: {}]
  %s7 = inlined_call_operand.vmem [shape: bf16[9,16,8], index: 7, kind: input, shape index: {}]
  %s8 = inlined_call_operand.vmem [shape: bf16[64,576], index: 8, kind: input, shape index: {}]
  %s9 = inlined_call_operand.vmem [shape: f32[64,1], index: 9, kind: input, shape index: {}]
  %s10 = inlined_call_operand.vmem [shape: bf16[9,8,16], index: 10, kind: input, shape index: {}]
  %s11 = inlined_call_operand.vmem [shape: bf16[64,576], index: 11, kind: input, shape index: {}]
  %s12 = inlined_call_operand.vmem [shape: f32[64,1], index: 12, kind: input, shape index: {}]
  %s13 = inlined_call_operand.vmem [shape: bf16[9,16,64], index: 13, kind: input, shape index: {}]
  %s14 = inlined_call_operand.vmem [shape: bf16[64,576], index: 14, kind: input, shape index: {}]
  %s15 = inlined_call_operand.vmem [shape: f32[64,1], index: 15, kind: input, shape index: {}]
  %s16 = inlined_call_operand.vmem [shape: bf16[9,64,256], index: 16, kind: input, shape index: {}]
  %s17 = inlined_call_operand.vmem [shape: bf16[64,576], index: 17, kind: input, shape index: {}]
  %s18 = inlined_call_operand.vmem [shape: f32[64,1], index: 18, kind: input, shape index: {}]
  %s19 = inlined_call_operand.vmem [shape: bf16[16,64], index: 19, kind: input, shape index: {}]
  %s20 = inlined_call_operand.vmem [shape: f32[16,1], index: 20, kind: input, shape index: {}]
  %s21 = inlined_call_operand.vmem [shape: f32[16,256], index: 21, kind: output, shape index: {}]
  %s22 = sld [smem:[#allocation0]]
  $region94: #{forward.1} parent=0
    _
  %s24 = ssub.s32 1, %s22
  %s25 = scalar_select 0, %s24, %s22
  // Predicated region
  $region2: #{forward.1} parent=0 // pred_check
    _
  $region3: #{forward.1} parent=0 // pred_check_branch
    %27 = sbr.rel (0) target = $region5
  $region4: #{forward.1} parent=0 // pred_region
    _
  $region5: #{forward.1} parent=0 // pred_fallthru
    _
  // Predicated region
  $region6: #{forward.1} parent=0 // pred_check
    _
  $region7: #{forward.1} parent=0 // pred_check_branch
    %29 = sbr.rel (0) target = $region9
  $region8: #{forward.1} parent=0 // pred_region
    _
  $region9: #{forward.1} parent=0 // pred_fallthru
    _
  // Predicated region
  $region10: #{forward.1} parent=0 // pred_check
    _
  $region11: #{forward.1} parent=0 // pred_check_branch
    %31 = sbr.rel (0) target = $region13
  $region12: #{forward.1} parent=0 // pred_region
    _
  $region13: #{forward.1} parent=0 // pred_fallthru
    _
  // Predicated region
  $region14: #{forward.1} parent=0 // pred_check
    _
  $region15: #{forward.1} parent=0 // pred_check_branch
    %33 = sbr.rel (0) target = $region17
  $region16: #{forward.1} parent=0 // pred_region
    _
  $region17: #{forward.1} parent=0 // pred_fallthru
    _
  // Predicated region
  $region18: #{forward.1} parent=0 // pred_check
    _
  $region19: #{forward.1} parent=0 // pred_check_branch
    %35 = sbr.rel (0) target = $region21
  $region20: #{forward.1} parent=0 // pred_region
    _
  $region21: #{forward.1} parent=0 // pred_fallthru
    _
  // Predicated region
  $region22: #{forward.1} parent=0 // pred_check
    _
  $region23: #{forward.1} parent=0 // pred_check_branch
    %37 = sbr.rel (0) target = $region25
  $region24: #{forward.1} parent=0 // pred_region
    _
  $region25: #{forward.1} parent=0 // pred_fallthru
    _
  // Predicated region
  $region26: #{forward.1} parent=0 // pred_check
    _
  $region27: #{forward.1} parent=0 // pred_check_branch
    %39 = sbr.rel (0) target = $region29
  $region28: #{forward.1} parent=0 // pred_region
    _
  $region29: #{forward.1} parent=0 // pred_fallthru
    _
  // Predicated region
  $region30: #{forward.1} parent=0 // pred_check
    _
  $region31: #{forward.1} parent=0 // pred_check_branch
    %41 = sbr.rel (0) target = $region33
  $region32: #{forward.1} parent=0 // pred_region
    _
  $region33: #{forward.1} parent=0 // pred_fallthru
    _
  // Predicated region
  $region34: #{forward.1} parent=0 // pred_check
    _
  $region35: #{forward.1} parent=0 // pred_check_branch
    %43 = sbr.rel (0) target = $region37
  $region36: #{forward.1} parent=0 // pred_region
    _
  $region37: #{forward.1} parent=0 // pred_fallthru
    _
  // Predicated region
  $region38: #{forward.1} parent=0 // pred_check
    _
  $region39: #{forward.1} parent=0 // pred_check_branch
    %45 = sbr.rel (0) target = $region41
  $region40: #{forward.1} parent=0 // pred_region
    _
  $region41: #{forward.1} parent=0 // pred_fallthru
    _
  // Predicated region
  $region42: #{forward.1} parent=0 // pred_check
    _
  $region43: #{forward.1} parent=0 // pred_check_branch
    %47 = sbr.rel (0) target = $region45
  $region44: #{forward.1} parent=0 // pred_region
    _
  $region45: #{forward.1} parent=0 // pred_fallthru
    _
  // Predicated region
  $region46: #{forward.1} parent=0 // pred_check
    _
  $region47: #{forward.1} parent=0 // pred_check_branch
    %49 = sbr.rel (0) target = $region49
  $region48: #{forward.1} parent=0 // pred_region
    _
  $region49: #{forward.1} parent=0 // pred_fallthru
    _
  // Predicated region
  $region50: #{forward.1} parent=0 // pred_check
    _
  $region51: #{forward.1} parent=0 // pred_check_branch
    %51 = sbr.rel (0) target = $region53
  $region52: #{forward.1} parent=0 // pred_region
    _
  $region53: #{forward.1} parent=0 // pred_fallthru
    _
  // Predicated region
  $region54: #{forward.1} parent=0 // pred_check
    _
  $region55: #{forward.1} parent=0 // pred_check_branch
    %53 = sbr.rel (0) target = $region57
  $region56: #{forward.1} parent=0 // pred_region
    _
  $region57: #{forward.1} parent=0 // pred_fallthru
    _
  // Predicated region
  $region58: #{forward.1} parent=0 // pred_check
    _
  $region59: #{forward.1} parent=0 // pred_check_branch
    %55 = sbr.rel (0) target = $region61
  $region60: #{forward.1} parent=0 // pred_region
    _
  $region61: #{forward.1} parent=0 // pred_fallthru
    _
  // Predicated region
  $region62: #{forward.1} parent=0 // pred_check
    _
  $region63: #{forward.1} parent=0 // pred_check_branch
    %57 = sbr.rel (0) target = $region65
  $region64: #{forward.1} parent=0 // pred_region
    _
  $region65: #{forward.1} parent=0 // pred_fallthru
    _
  // Predicated region
  $region66: #{forward.1} parent=0 // pred_check
    _
  $region67: #{forward.1} parent=0 // pred_check_branch
    %59 = sbr.rel (0) target = $region69
  $region68: #{forward.1} parent=0 // pred_region
    _
  $region69: #{forward.1} parent=0 // pred_fallthru
    _
  // Predicated region
  $region70: #{forward.1} parent=0 // pred_check
    _
  $region71: #{forward.1} parent=0 // pred_check_branch
    %61 = sbr.rel (0) target = $region73
  $region72: #{forward.1} parent=0 // pred_region
    _
  $region73: #{forward.1} parent=0 // pred_fallthru
    _
  // Predicated region
  $region74: #{forward.1} parent=0 // pred_check
    _
  $region75: #{forward.1} parent=0 // pred_check_branch
    %63 = sbr.rel (0) target = $region77
  $region76: #{forward.1} parent=0 // pred_region
    _
  $region77: #{forward.1} parent=0 // pred_fallthru
    _
  // Predicated region
  $region78: #{forward.1} parent=0 // pred_check
    _
  $region79: #{forward.1} parent=0 // pred_check_branch
    %65 = sbr.rel (0) target = $region81
  $region80: #{forward.1} parent=0 // pred_region
    _
  $region81: #{forward.1} parent=0 // pred_fallthru
    _
  // Predicated region
  $region82: #{forward.1} parent=0 // pred_check
    _
  $region83: #{forward.1} parent=0 // pred_check_branch
    %67 = sbr.rel (0) target = $region85
  $region84: #{forward.1} parent=0 // pred_region
    _
  $region85: #{forward.1} parent=0 // pred_fallthru
    _
  %v69 = vld [vmem:[%s0] sm:$0xff]
  %v70 = vld [vmem:[%s0 + $0x8] sm:$0xff]
  %v71 = vld [vmem:[%s1] sm:$0xf]
  %v72 = vld [vmem:[%s1 + $0x4] sm:$0xf]
  %v73 = vld [vmem:[%s1 + $0x8] sm:$0xf]
  %v74 = vld [vmem:[%s1 + $0xc] sm:$0xf]
  %v75 = vld [vmem:[%s1 + $0x10] sm:$0xf]
  %v76 = vld [vmem:[%s1 + $0x14] sm:$0xf]
  %v77 = vld [vmem:[%s1 + $0x18] sm:$0xf]
  %v78 = vld [vmem:[%s1 + $0x1c] sm:$0xf]
  %v79 = vld [vmem:[%s1 + $0x20] sm:$0xf]
  %v80 = vld [vmem:[%s1 + $0x24] sm:$0xf]
  %v81 = vld [vmem:[%s1 + $0x28] sm:$0xf]
  %v82 = vld [vmem:[%s1 + $0x2c] sm:$0xf]
  %v83 = vld [vmem:[%s1 + $0x30] sm:$0xf]
  %v84 = vld [vmem:[%s1 + $0x34] sm:$0xf]
  %v85 = vld [vmem:[%s1 + $0x38] sm:$0xf]
  %v86 = vld [vmem:[%s1 + $0x3c] sm:$0xf]
  %v87 = vld [vmem:[%s1 + $0x40] sm:$0xf]
  %v88 = vld [vmem:[%s1 + $0x44] sm:$0xf]
  %v89 = vld [vmem:[%s1 + $0x48] sm:$0xf]
  %v90 = vld [vmem:[%s1 + $0x4c] sm:$0xf]
  %v91 = vld [vmem:[%s1 + $0x50] sm:$0xf]
  %v92 = vld [vmem:[%s1 + $0x54] sm:$0xf]
  %v93 = vld [vmem:[%s1 + $0x58] sm:$0xf]
  %v94 = vld [vmem:[%s1 + $0x5c] sm:$0xf]
  %v95 = vld [vmem:[%s1 + $0x60] sm:$0xf]
  %v96 = vld [vmem:[%s1 + $0x64] sm:$0xf]
  %v97 = vld [vmem:[%s1 + $0x68] sm:$0xf]
  %v98 = vld [vmem:[%s1 + $0x6c] sm:$0xf]
  %v99 = vld [vmem:[%s1 + $0x70] sm:$0xf]
  %v100 = vld [vmem:[%s1 + $0x74] sm:$0xf]
  %v101 = vld [vmem:[%s1 + $0x78] sm:$0xf]
  %v102 = vld [vmem:[%s1 + $0x7c] sm:$0xf]
  %v105 = vunpack.c.l.b16 %v69
  %v106 = vunpack.c.h.b16 %v69
  %v107 = vunpack.c.l.b16 %v70
  %v108 = vunpack.c.h.b16 %v70
  %v109 = vpack.c.b16 %v107, %v105
  %v110 = vpack.c.b16 %v108, %v106
  %v145 = vunpack.c.l.b16 %v71
  %v146 = vunpack.c.l.b16 %v72
  %v147 = vunpack.c.l.b16 %v73
  %v148 = vunpack.c.l.b16 %v74
  %v149 = vunpack.c.l.b16 %v75
  %v150 = vunpack.c.l.b16 %v76
  %v151 = vunpack.c.l.b16 %v77
  %v152 = vunpack.c.l.b16 %v78
  %v153 = vunpack.c.l.b16 %v79
  %v154 = vunpack.c.l.b16 %v80
  %v155 = vunpack.c.l.b16 %v81
  %v156 = vunpack.c.l.b16 %v82
  %v157 = vunpack.c.l.b16 %v83
  %v158 = vunpack.c.l.b16 %v84
  %v159 = vunpack.c.l.b16 %v85
  %v160 = vunpack.c.l.b16 %v86
  %v161 = vunpack.c.l.b16 %v87
  %v162 = vunpack.c.l.b16 %v88
  %v163 = vunpack.c.l.b16 %v89
  %v164 = vunpack.c.l.b16 %v90
  %v165 = vunpack.c.l.b16 %v91
  %v166 = vunpack.c.l.b16 %v92
  %v167 = vunpack.c.l.b16 %v93
  %v168 = vunpack.c.l.b16 %v94
  %v169 = vunpack.c.l.b16 %v95
  %v170 = vunpack.c.l.b16 %v96
  %v171 = vunpack.c.l.b16 %v97
  %v172 = vunpack.c.l.b16 %v98
  %v173 = vunpack.c.l.b16 %v99
  %v174 = vunpack.c.l.b16 %v100
  %v175 = vunpack.c.l.b16 %v101
  %v176 = vunpack.c.l.b16 %v102
  %v177 = vpack.c.b16 %v146, %v145
  %v178 = vpack.c.b16 %v148, %v147
  %v179 = vpack.c.b16 %v150, %v149
  %v180 = vpack.c.b16 %v152, %v151
  %v181 = vpack.c.b16 %v154, %v153
  %v182 = vpack.c.b16 %v156, %v155
  %v183 = vpack.c.b16 %v158, %v157
  %v184 = vpack.c.b16 %v160, %v159
  %v185 = vpack.c.b16 %v162, %v161
  %v186 = vpack.c.b16 %v164, %v163
  %v187 = vpack.c.b16 %v166, %v165
  %v188 = vpack.c.b16 %v168, %v167
  %v189 = vpack.c.b16 %v170, %v169
  %v190 = vpack.c.b16 %v172, %v171
  %v191 = vpack.c.b16 %v174, %v173
  %v192 = vpack.c.b16 %v176, %v175
  %209 = vmatprep.subr.bf16.mxu0 0
  %210 = vmatpush1.bf16.msra.mxu0 %v177
  %211 = vmatprep.subr.bf16.mxu0 0
  %212 = vmatpush1.bf16.msra.mxu0 %v178
  %213 = vmatprep.subr.bf16.mxu0 0
  %214 = vmatpush1.bf16.msra.mxu0 %v179
  %215 = vmatprep.subr.bf16.mxu0 0
  %216 = vmatpush1.bf16.msra.mxu0 %v180
  %217 = vmatprep.subr.bf16.mxu0 0
  %218 = vmatpush1.bf16.msra.mxu0 %v181
  %219 = vmatprep.subr.bf16.mxu0 0
  %220 = vmatpush1.bf16.msra.mxu0 %v182
  %221 = vmatprep.subr.bf16.mxu0 0
  %222 = vmatpush1.bf16.msra.mxu0 %v183
  %223 = vmatprep.subr.bf16.mxu0 0
  %224 = vmatpush1.bf16.msra.mxu0 %v184
  %225 = vmatprep.subr.bf16.mxu0 0
  %226 = vmatpush1.bf16.msra.mxu0 %v185
  %227 = vmatprep.subr.bf16.mxu0 0
  %228 = vmatpush1.bf16.msra.mxu0 %v186
  %229 = vmatprep.subr.bf16.mxu0 0
  %230 = vmatpush1.bf16.msra.mxu0 %v187
  %231 = vmatprep.subr.bf16.mxu0 0
  %232 = vmatpush1.bf16.msra.mxu0 %v188
  %233 = vmatprep.subr.bf16.mxu0 0
  %234 = vmatpush1.bf16.msra.mxu0 %v189
  %235 = vmatprep.subr.bf16.mxu0 0
  %236 = vmatpush1.bf16.msra.mxu0 %v190
  %237 = vmatprep.subr.bf16.mxu0 0
  %238 = vmatpush1.bf16.msra.mxu0 %v191
  %239 = vmatprep.subr.bf16.mxu0 0
  %240 = vmatpush1.bf16.msra.mxu0 %v192
  %241 = vmatprep.mubr.bf16.mxu0 %v110
  %242 = vmatmul.mubr.bf16.gmra.mrb[0].mxu0 %v109
  %v243 = vpop.f32.mrb[0].mxu0
  %v244 = vadd.f32 0.0, %v243
  %v245 = vpop.f32.mrb[0].mxu0
  %v246 = vpop.f32.mrb[0].mxu0
  %v247 = vadd.f32 0.0, %v246
  %v248 = vpop.f32.mrb[0].mxu0
  %249 = vdwg.mxu0
  %v250 = vpack.c.bf16 %v247, %v244
  %vm251 = vcmask 523264
  %252 = vst.msk [vmem:[#allocation2] sm:$0xff] %vm251, %v250
  %s253 = scalar_lea.vmem %s1, 128
  %v254 = vld [vmem:[%s253] sm:$0xf]
  %v255 = vld [vmem:[%s253 + $0x4] sm:$0xf]
  %v256 = vld [vmem:[%s253 + $0x8] sm:$0xf]
  %v257 = vld [vmem:[%s253 + $0xc] sm:$0xf]
  %v258 = vld [vmem:[%s253 + $0x10] sm:$0xf]
  %v259 = vld [vmem:[%s253 + $0x14] sm:$0xf]
  %v260 = vld [vmem:[%s253 + $0x18] sm:$0xf]
  %v261 = vld [vmem:[%s253 + $0x1c] sm:$0xf]
  %v262 = vld [vmem:[%s253 + $0x20] sm:$0xf]
  %v263 = vld [vmem:[%s253 + $0x24] sm:$0xf]
  %v264 = vld [vmem:[%s253 + $0x28] sm:$0xf]
  %v265 = vld [vmem:[%s253 + $0x2c] sm:$0xf]
  %v266 = vld [vmem:[%s253 + $0x30] sm:$0xf]
  %v267 = vld [vmem:[%s253 + $0x34] sm:$0xf]
  %v268 = vld [vmem:[%s253 + $0x38] sm:$0xf]
  %v269 = vld [vmem:[%s253 + $0x3c] sm:$0xf]
  %v270 = vld [vmem:[%s253 + $0x40] sm:$0xf]
  %v271 = vld [vmem:[%s253 + $0x44] sm:$0xf]
  %v272 = vld [vmem:[%s253 + $0x48] sm:$0xf]
  %v273 = vld [vmem:[%s253 + $0x4c] sm:$0xf]
  %v274 = vld [vmem:[%s253 + $0x50] sm:$0xf]
  %v275 = vld [vmem:[%s253 + $0x54] sm:$0xf]
  %v276 = vld [vmem:[%s253 + $0x58] sm:$0xf]
  %v277 = vld [vmem:[%s253 + $0x5c] sm:$0xf]
  %v278 = vld [vmem:[%s253 + $0x60] sm:$0xf]
  %v279 = vld [vmem:[%s253 + $0x64] sm:$0xf]
  %v280 = vld [vmem:[%s253 + $0x68] sm:$0xf]
  %v281 = vld [vmem:[%s253 + $0x6c] sm:$0xf]
  %v282 = vld [vmem:[%s253 + $0x70] sm:$0xf]
  %v283 = vld [vmem:[%s253 + $0x74] sm:$0xf]
  %v284 = vld [vmem:[%s253 + $0x78] sm:$0xf]
  %v285 = vld [vmem:[%s253 + $0x7c] sm:$0xf]
  %v318 = vunpack.c.l.b16 %v254
  %v319 = vunpack.c.l.b16 %v255
  %v320 = vunpack.c.l.b16 %v256
  %v321 = vunpack.c.l.b16 %v257
  %v322 = vunpack.c.l.b16 %v258
  %v323 = vunpack.c.l.b16 %v259
  %v324 = vunpack.c.l.b16 %v260
  %v325 = vunpack.c.l.b16 %v261
  %v326 = vunpack.c.l.b16 %v262
  %v327 = vunpack.c.l.b16 %v263
  %v328 = vunpack.c.l.b16 %v264
  %v329 = vunpack.c.l.b16 %v265
  %v330 = vunpack.c.l.b16 %v266
  %v331 = vunpack.c.l.b16 %v267
  %v332 = vunpack.c.l.b16 %v268
  %v333 = vunpack.c.l.b16 %v269
  %v334 = vunpack.c.l.b16 %v270
  %v335 = vunpack.c.l.b16 %v271
  %v336 = vunpack.c.l.b16 %v272
  %v337 = vunpack.c.l.b16 %v273
  %v338 = vunpack.c.l.b16 %v274
  %v339 = vunpack.c.l.b16 %v275
  %v340 = vunpack.c.l.b16 %v276
  %v341 = vunpack.c.l.b16 %v277
  %v342 = vunpack.c.l.b16 %v278
  %v343 = vunpack.c.l.b16 %v279
  %v344 = vunpack.c.l.b16 %v280
  %v345 = vunpack.c.l.b16 %v281
  %v346 = vunpack.c.l.b16 %v282
  %v347 = vunpack.c.l.b16 %v283
  %v348 = vunpack.c.l.b16 %v284
  %v349 = vunpack.c.l.b16 %v285
  %v350 = vpack.c.b16 %v319, %v318
  %v351 = vpack.c.b16 %v321, %v320
  %v352 = vpack.c.b16 %v323, %v322
  %v353 = vpack.c.b16 %v325, %v324
  %v354 = vpack.c.b16 %v327, %v326
  %v355 = vpack.c.b16 %v329, %v328
  %v356 = vpack.c.b16 %v331, %v330
  %v357 = vpack.c.b16 %v333, %v332
  %v358 = vpack.c.b16 %v335, %v334
  %v359 = vpack.c.b16 %v337, %v336
  %v360 = vpack.c.b16 %v339, %v338
  %v361 = vpack.c.b16 %v341, %v340
  %v362 = vpack.c.b16 %v343, %v342
  %v363 = vpack.c.b16 %v345, %v344
  %v364 = vpack.c.b16 %v347, %v346
  %v365 = vpack.c.b16 %v349, %v348
  %382 = vmatprep.subr.bf16.mxu0 0
  %383 = vmatpush1.bf16.msra.mxu0 %v350
  %384 = vmatprep.subr.bf16.mxu0 0
  %385 = vmatpush1.bf16.msra.mxu0 %v351
  %386 = vmatprep.subr.bf16.mxu0 0
  %387 = vmatpush1.bf16.msra.mxu0 %v352
  %388 = vmatprep.subr.bf16.mxu0 0
  %389 = vmatpush1.bf16.msra.mxu0 %v353
  %390 = vmatprep.subr.bf16.mxu0 0
  %391 = vmatpush1.bf16.msra.mxu0 %v354
  %392 = vmatprep.subr.bf16.mxu0 0
  %393 = vmatpush1.bf16.msra.mxu0 %v355
  %394 = vmatprep.subr.bf16.mxu0 0
  %395 = vmatpush1.bf16.msra.mxu0 %v356
  %396 = vmatprep.subr.bf16.mxu0 0
  %397 = vmatpush1.bf16.msra.mxu0 %v357
  %398 = vmatprep.subr.bf16.mxu0 0
  %399 = vmatpush1.bf16.msra.mxu0 %v358
  %400 = vmatprep.subr.bf16.mxu0 0
  %401 = vmatpush1.bf16.msra.mxu0 %v359
  %402 = vmatprep.subr.bf16.mxu0 0
  %403 = vmatpush1.bf16.msra.mxu0 %v360
  %404 = vmatprep.subr.bf16.mxu0 0
  %405 = vmatpush1.bf16.msra.mxu0 %v361
  %406 = vmatprep.subr.bf16.mxu0 0
  %407 = vmatpush1.bf16.msra.mxu0 %v362
  %408 = vmatprep.subr.bf16.mxu0 0
  %409 = vmatpush1.bf16.msra.mxu0 %v363
  %410 = vmatprep.subr.bf16.mxu0 0
  %411 = vmatpush1.bf16.msra.mxu0 %v364
  %412 = vmatprep.subr.bf16.mxu0 0
  %413 = vmatpush1.bf16.msra.mxu0 %v365
  %414 = vmatprep.mubr.bf16.mxu0 %v110
  %415 = vmatmul.mubr.bf16.gmra.mrb[0].mxu0 %v109
  %v416 = vpop.f32.mrb[0].mxu0
  %v417 = vadd.f32 0.0, %v416
  %v418 = vpop.f32.mrb[0].mxu0
  %v419 = vpop.f32.mrb[0].mxu0
  %v420 = vadd.f32 0.0, %v419
  %v421 = vpop.f32.mrb[0].mxu0
  %422 = vdwg.mxu0
  %v423 = vpack.c.bf16 %v420, %v417
  %424 = vst.msk [vmem:[#allocation2 + $0x10] sm:$0xff] %vm251, %v423
  %s425 = scalar_lea.vmem %s1, 256
  %v426 = vld [vmem:[%s425] sm:$0xf]
  %v427 = vld [vmem:[%s425 + $0x4] sm:$0xf]
  %v428 = vld [vmem:[%s425 + $0x8] sm:$0xf]
  %v429 = vld [vmem:[%s425 + $0xc] sm:$0xf]
  %v430 = vld [vmem:[%s425 + $0x10] sm:$0xf]
  %v431 = vld [vmem:[%s425 + $0x14] sm:$0xf]
  %v432 = vld [vmem:[%s425 + $0x18] sm:$0xf]
  %v433 = vld [vmem:[%s425 + $0x1c] sm:$0xf]
  %v434 = vld [vmem:[%s425 + $0x20] sm:$0xf]
  %v435 = vld [vmem:[%s425 + $0x24] sm:$0xf]
  %v436 = vld [vmem:[%s425 + $0x28] sm:$0xf]
  %v437 = vld [vmem:[%s425 + $0x2c] sm:$0xf]
  %v438 = vld [vmem:[%s425 + $0x30] sm:$0xf]
  %v439 = vld [vmem:[%s425 + $0x34] sm:$0xf]
  %v440 = vld [vmem:[%s425 + $0x38] sm:$0xf]
  %v441 = vld [vmem:[%s425 + $0x3c] sm:$0xf]
  %v442 = vld [vmem:[%s425 + $0x40] sm:$0xf]
  %v443 = vld [vmem:[%s425 + $0x44] sm:$0xf]
  %v444 = vld [vmem:[%s425 + $0x48] sm:$0xf]
  %v445 = vld [vmem:[%s425 + $0x4c] sm:$0xf]
  %v446 = vld [vmem:[%s425 + $0x50] sm:$0xf]
  %v447 = vld [vmem:[%s425 + $0x54] sm:$0xf]
  %v448 = vld [vmem:[%s425 + $0x58] sm:$0xf]
  %v449 = vld [vmem:[%s425 + $0x5c] sm:$0xf]
  %v450 = vld [vmem:[%s425 + $0x60] sm:$0xf]
  %v451 = vld [vmem:[%s425 + $0x64] sm:$0xf]
  %v452 = vld [vmem:[%s425 + $0x68] sm:$0xf]
  %v453 = vld [vmem:[%s425 + $0x6c] sm:$0xf]
  %v454 = vld [vmem:[%s425 + $0x70] sm:$0xf]
  %v455 = vld [vmem:[%s425 + $0x74] sm:$0xf]
  %v456 = vld [vmem:[%s425 + $0x78] sm:$0xf]
  %v457 = vld [vmem:[%s425 + $0x7c] sm:$0xf]
  %v490 = vunpack.c.l.b16 %v426
  %v491 = vunpack.c.l.b16 %v427
  %v492 = vunpack.c.l.b16 %v428
  %v493 = vunpack.c.l.b16 %v429
  %v494 = vunpack.c.l.b16 %v430
  %v495 = vunpack.c.l.b16 %v431
  %v496 = vunpack.c.l.b16 %v432
  %v497 = vunpack.c.l.b16 %v433
  %v498 = vunpack.c.l.b16 %v434
  %v499 = vunpack.c.l.b16 %v435
  %v500 = vunpack.c.l.b16 %v436
  %v501 = vunpack.c.l.b16 %v437
  %v502 = vunpack.c.l.b16 %v438
  %v503 = vunpack.c.l.b16 %v439
  %v504 = vunpack.c.l.b16 %v440
  %v505 = vunpack.c.l.b16 %v441
  %v506 = vunpack.c.l.b16 %v442
  %v507 = vunpack.c.l.b16 %v443
  %v508 = vunpack.c.l.b16 %v444
  %v509 = vunpack.c.l.b16 %v445
  %v510 = vunpack.c.l.b16 %v446
  %v511 = vunpack.c.l.b16 %v447
  %v512 = vunpack.c.l.b16 %v448
  %v513 = vunpack.c.l.b16 %v449
  %v514 = vunpack.c.l.b16 %v450
  %v515 = vunpack.c.l.b16 %v451
  %v516 = vunpack.c.l.b16 %v452
  %v517 = vunpack.c.l.b16 %v453
  %v518 = vunpack.c.l.b16 %v454
  %v519 = vunpack.c.l.b16 %v455
  %v520 = vunpack.c.l.b16 %v456
  %v521 = vunpack.c.l.b16 %v457
  %v522 = vpack.c.b16 %v491, %v490
  %v523 = vpack.c.b16 %v493, %v492
  %v524 = vpack.c.b16 %v495, %v494
  %v525 = vpack.c.b16 %v497, %v496
  %v526 = vpack.c.b16 %v499, %v498
  %v527 = vpack.c.b16 %v501, %v500
  %v528 = vpack.c.b16 %v503, %v502
  %v529 = vpack.c.b16 %v505, %v504
  %v530 = vpack.c.b16 %v507, %v506
  %v531 = vpack.c.b16 %v509, %v508
  %v532 = vpack.c.b16 %v511, %v510
  %v533 = vpack.c.b16 %v513, %v512
  %v534 = vpack.c.b16 %v515, %v514
  %v535 = vpack.c.b16 %v517, %v516
  %v536 = vpack.c.b16 %v519, %v518
  %v537 = vpack.c.b16 %v521, %v520
  %554 = vmatprep.subr.bf16.mxu0 0
  %555 = vmatpush1.bf16.msra.mxu0 %v522
  %556 = vmatprep.subr.bf16.mxu0 0
  %557 = vmatpush1.bf16.msra.mxu0 %v523
  %558 = vmatprep.subr.bf16.mxu0 0
  %559 = vmatpush1.bf16.msra.mxu0 %v524
  %560 = vmatprep.subr.bf16.mxu0 0
  %561 = vmatpush1.bf16.msra.mxu0 %v525
  %562 = vmatprep.subr.bf16.mxu0 0
  %563 = vmatpush1.bf16.msra.mxu0 %v526
  %564 = vmatprep.subr.bf16.mxu0 0
  %565 = vmatpush1.bf16.msra.mxu0 %v527
  %566 = vmatprep.subr.bf16.mxu0 0
  %567 = vmatpush1.bf16.msra.mxu0 %v528
  %568 = vmatprep.subr.bf16.mxu0 0
  %569 = vmatpush1.bf16.msra.mxu0 %v529
  %570 = vmatprep.subr.bf16.mxu0 0
  %571 = vmatpush1.bf16.msra.mxu0 %v530
  %572 = vmatprep.subr.bf16.mxu0 0
  %573 = vmatpush1.bf16.msra.mxu0 %v531
  %574 = vmatprep.subr.bf16.mxu0 0
  %575 = vmatpush1.bf16.msra.mxu0 %v532
  %576 = vmatprep.subr.bf16.mxu0 0
  %577 = vmatpush1.bf16.msra.mxu0 %v533
  %578 = vmatprep.subr.bf16.mxu0 0
  %579 = vmatpush1.bf16.msra.mxu0 %v534
  %580 = vmatprep.subr.bf16.mxu0 0
  %581 = vmatpush1.bf16.msra.mxu0 %v535
  %582 = vmatprep.subr.bf16.mxu0 0
  %583 = vmatpush1.bf16.msra.mxu0 %v536
  %584 = vmatprep.subr.bf16.mxu0 0
  %585 = vmatpush1.bf16.msra.mxu0 %v537
  %586 = vmatprep.mubr.bf16.mxu0 %v110
  %587 = vmatmul.mubr.bf16.gmra.mrb[0].mxu0 %v109
  %v588 = vpop.f32.mrb[0].mxu0
  %v589 = vadd.f32 0.0, %v588
  %v590 = vpop.f32.mrb[0].mxu0
  %v591 = vpop.f32.mrb[0].mxu0
  %v592 = vadd.f32 0.0, %v591
  %v593 = vpop.f32.mrb[0].mxu0
  %594 = vdwg.mxu0
  %v595 = vpack.c.bf16 %v592, %v589
  %596 = vst.msk [vmem:[#allocation2 + $0x20] sm:$0xff] %vm251, %v595
  %s597 = scalar_lea.vmem %s1, 384
  %v598 = vld [vmem:[%s597] sm:$0xf]
  %v599 = vld [vmem:[%s597 + $0x4] sm:$0xf]
  %v600 = vld [vmem:[%s597 + $0x8] sm:$0xf]
  %v601 = vld [vmem:[%s597 + $0xc] sm:$0xf]
  %v602 = vld [vmem:[%s597 + $0x10] sm:$0xf]
  %v603 = vld [vmem:[%s597 + $0x14] sm:$0xf]
  %v604 = vld [vmem:[%s597 + $0x18] sm:$0xf]
  %v605 = vld [vmem:[%s597 + $0x1c] sm:$0xf]
  %v606 = vld [vmem:[%s597 + $0x20] sm:$0xf]
  %v607 = vld [vmem:[%s597 + $0x24] sm:$0xf]
  %v608 = vld [vmem:[%s597 + $0x28] sm:$0xf]
  %v609 = vld [vmem:[%s597 + $0x2c] sm:$0xf]
  %v610 = vld [vmem:[%s597 + $0x30] sm:$0xf]
  %v611 = vld [vmem:[%s597 + $0x34] sm:$0xf]
  %v612 = vld [vmem:[%s597 + $0x38] sm:$0xf]
  %v613 = vld [vmem:[%s597 + $0x3c] sm:$0xf]
  %v614 = vld [vmem:[%s597 + $0x40] sm:$0xf]
  %v615 = vld [vmem:[%s597 + $0x44] sm:$0xf]
  %v616 = vld [vmem:[%s597 + $0x48] sm:$0xf]
  %v617 = vld [vmem:[%s597 + $0x4c] sm:$0xf]
  %v618 = vld [vmem:[%s597 + $0x50] sm:$0xf]
  %v619 = vld [vmem:[%s597 + $0x54] sm:$0xf]
  %v620 = vld [vmem:[%s597 + $0x58] sm:$0xf]
  %v621 = vld [vmem:[%s597 + $0x5c] sm:$0xf]
  %v622 = vld [vmem:[%s597 + $0x60] sm:$0xf]
  %v623 = vld [vmem:[%s597 + $0x64] sm:$0xf]
  %v624 = vld [vmem:[%s597 + $0x68] sm:$0xf]
  %v625 = vld [vmem:[%s597 + $0x6c] sm:$0xf]
  %v626 = vld [vmem:[%s597 + $0x70] sm:$0xf]
  %v627 = vld [vmem:[%s597 + $0x74] sm:$0xf]
  %v628 = vld [vmem:[%s597 + $0x78] sm:$0xf]
  %v629 = vld [vmem:[%s597 + $0x7c] sm:$0xf]
  %v662 = vunpack.c.l.b16 %v598
  %v663 = vunpack.c.l.b16 %v599
  %v664 = vunpack.c.l.b16 %v600
  %v665 = vunpack.c.l.b16 %v601
  %v666 = vunpack.c.l.b16 %v602
  %v667 = vunpack.c.l.b16 %v603
  %v668 = vunpack.c.l.b16 %v604
  %v669 = vunpack.c.l.b16 %v605
  %v670 = vunpack.c.l.b16 %v606
  %v671 = vunpack.c.l.b16 %v607
  %v672 = vunpack.c.l.b16 %v608
  %v673 = vunpack.c.l.b16 %v609
  %v674 = vunpack.c.l.b16 %v610
  %v675 = vunpack.c.l.b16 %v611
  %v676 = vunpack.c.l.b16 %v612
  %v677 = vunpack.c.l.b16 %v613
  %v678 = vunpack.c.l.b16 %v614
  %v679 = vunpack.c.l.b16 %v615
  %v680 = vunpack.c.l.b16 %v616
  %v681 = vunpack.c.l.b16 %v617
  %v682 = vunpack.c.l.b16 %v618
  %v683 = vunpack.c.l.b16 %v619
  %v684 = vunpack.c.l.b16 %v620
  %v685 = vunpack.c.l.b16 %v621
  %v686 = vunpack.c.l.b16 %v622
  %v687 = vunpack.c.l.b16 %v623
  %v688 = vunpack.c.l.b16 %v624
  %v689 = vunpack.c.l.b16 %v625
  %v690 = vunpack.c.l.b16 %v626
  %v691 = vunpack.c.l.b16 %v627
  %v692 = vunpack.c.l.b16 %v628
  %v693 = vunpack.c.l.b16 %v629
  %v694 = vpack.c.b16 %v663, %v662
  %v695 = vpack.c.b16 %v665, %v664
  %v696 = vpack.c.b16 %v667, %v666
  %v697 = vpack.c.b16 %v669, %v668
  %v698 = vpack.c.b16 %v671, %v670
  %v699 = vpack.c.b16 %v673, %v672
  %v700 = vpack.c.b16 %v675, %v674
  %v701 = vpack.c.b16 %v677, %v676
  %v702 = vpack.c.b16 %v679, %v678
  %v703 = vpack.c.b16 %v681, %v680
  %v704 = vpack.c.b16 %v683, %v682
  %v705 = vpack.c.b16 %v685, %v684
  %v706 = vpack.c.b16 %v687, %v686
  %v707 = vpack.c.b16 %v689, %v688
  %v708 = vpack.c.b16 %v691, %v690
  %v709 = vpack.c.b16 %v693, %v692
  %726 = vmatprep.subr.bf16.mxu0 0
  %727 = vmatpush1.bf16.msra.mxu0 %v694
  %728 = vmatprep.subr.bf16.mxu0 0
  %729 = vmatpush1.bf16.msra.mxu0 %v695
  %730 = vmatprep.subr.bf16.mxu0 0
  %731 = vmatpush1.bf16.msra.mxu0 %v696
  %732 = vmatprep.subr.bf16.mxu0 0
  %733 = vmatpush1.bf16.msra.mxu0 %v697
  %734 = vmatprep.subr.bf16.mxu0 0
  %735 = vmatpush1.bf16.msra.mxu0 %v698
  %736 = vmatprep.subr.bf16.mxu0 0
  %737 = vmatpush1.bf16.msra.mxu0 %v699
  %738 = vmatprep.subr.bf16.mxu0 0
  %739 = vmatpush1.bf16.msra.mxu0 %v700
  %740 = vmatprep.subr.bf16.mxu0 0
  %741 = vmatpush1.bf16.msra.mxu0 %v701
  %742 = vmatprep.subr.bf16.mxu0 0
  %743 = vmatpush1.bf16.msra.mxu0 %v702
  %744 = vmatprep.subr.bf16.mxu0 0
  %745 = vmatpush1.bf16.msra.mxu0 %v703
  %746 = vmatprep.subr.bf16.mxu0 0
  %747 = vmatpush1.bf16.msra.mxu0 %v704
  %748 = vmatprep.subr.bf16.mxu0 0
  %749 = vmatpush1.bf16.msra.mxu0 %v705
  %750 = vmatprep.subr.bf16.mxu0 0
  %751 = vmatpush1.bf16.msra.mxu0 %v706
  %752 = vmatprep.subr.bf16.mxu0 0
  %753 = vmatpush1.bf16.msra.mxu0 %v707
  %754 = vmatprep.subr.bf16.mxu0 0
  %755 = vmatpush1.bf16.msra.mxu0 %v708
  %756 = vmatprep.subr.bf16.mxu0 0
  %757 = vmatpush1.bf16.msra.mxu0 %v709
  %758 = vmatprep.mubr.bf16.mxu0 %v110
  %759 = vmatmul.mubr.bf16.gmra.mrb[0].mxu0 %v109
  %v760 = vpop.f32.mrb[0].mxu0
  %v761 = vadd.f32 0.0, %v760
  %v762 = vpop.f32.mrb[0].mxu0
  %v763 = vpop.f32.mrb[0].mxu0
  %v764 = vadd.f32 0.0, %v763
  %v765 = vpop.f32.mrb[0].mxu0
  %766 = vdwg.mxu0
  %v767 = vpack.c.bf16 %v764, %v761
  %768 = vst.msk [vmem:[#allocation2 + $0x30] sm:$0xff] %vm251, %v767
  %s769 = scalar_lea.vmem %s1, 512
  %v770 = vld [vmem:[%s769] sm:$0xf]
  %v771 = vld [vmem:[%s769 + $0x4] sm:$0xf]
  %v772 = vld [vmem:[%s769 + $0x8] sm:$0xf]
  %v773 = vld [vmem:[%s769 + $0xc] sm:$0xf]
  %v774 = vld [vmem:[%s769 + $0x10] sm:$0xf]
  %v775 = vld [vmem:[%s769 + $0x14] sm:$0xf]
  %v776 = vld [vmem:[%s769 + $0x18] sm:$0xf]
  %v777 = vld [vmem:[%s769 + $0x1c] sm:$0xf]
  %v778 = vld [vmem:[%s769 + $0x20] sm:$0xf]
  %v779 = vld [vmem:[%s769 + $0x24] sm:$0xf]
  %v780 = vld [vmem:[%s769 + $0x28] sm:$0xf]
  %v781 = vld [vmem:[%s769 + $0x2c] sm:$0xf]
  %v782 = vld [vmem:[%s769 + $0x30] sm:$0xf]
  %v783 = vld [vmem:[%s769 + $0x34] sm:$0xf]
  %v784 = vld [vmem:[%s769 + $0x38] sm:$0xf]
  %v785 = vld [vmem:[%s769 + $0x3c] sm:$0xf]
  %v786 = vld [vmem:[%s769 + $0x40] sm:$0xf]
  %v787 = vld [vmem:[%s769 + $0x44] sm:$0xf]
  %v788 = vld [vmem:[%s769 + $0x48] sm:$0xf]
  %v789 = vld [vmem:[%s769 + $0x4c] sm:$0xf]
  %v790 = vld [vmem:[%s769 + $0x50] sm:$0xf]
  %v791 = vld [vmem:[%s769 + $0x54] sm:$0xf]
  %v792 = vld [vmem:[%s769 + $0x58] sm:$0xf]
  %v793 = vld [vmem:[%s769 + $0x5c] sm:$0xf]
  %v794 = vld [vmem:[%s769 + $0x60] sm:$0xf]
  %v795 = vld [vmem:[%s769 + $0x64] sm:$0xf]
  %v796 = vld [vmem:[%s769 + $0x68] sm:$0xf]
  %v797 = vld [vmem:[%s769 + $0x6c] sm:$0xf]
  %v798 = vld [vmem:[%s769 + $0x70] sm:$0xf]
  %v799 = vld [vmem:[%s769 + $0x74] sm:$0xf]
  %v800 = vld [vmem:[%s769 + $0x78] sm:$0xf]
  %v801 = vld [vmem:[%s769 + $0x7c] sm:$0xf]
  %v834 = vunpack.c.l.b16 %v770
  %v835 = vunpack.c.l.b16 %v771
  %v836 = vunpack.c.l.b16 %v772
  %v837 = vunpack.c.l.b16 %v773
  %v838 = vunpack.c.l.b16 %v774
  %v839 = vunpack.c.l.b16 %v775
  %v840 = vunpack.c.l.b16 %v776
  %v841 = vunpack.c.l.b16 %v777
  %v842 = vunpack.c.l.b16 %v778
  %v843 = vunpack.c.l.b16 %v779
  %v844 = vunpack.c.l.b16 %v780
  %v845 = vunpack.c.l.b16 %v781
  %v846 = vunpack.c.l.b16 %v782
  %v847 = vunpack.c.l.b16 %v783
  %v848 = vunpack.c.l.b16 %v784
  %v849 = vunpack.c.l.b16 %v785
  %v850 = vunpack.c.l.b16 %v786
  %v851 = vunpack.c.l.b16 %v787
  %v852 = vunpack.c.l.b16 %v788
  %v853 = vunpack.c.l.b16 %v789
  %v854 = vunpack.c.l.b16 %v790
  %v855 = vunpack.c.l.b16 %v791
  %v856 = vunpack.c.l.b16 %v792
  %v857 = vunpack.c.l.b16 %v793
  %v858 = vunpack.c.l.b16 %v794
  %v859 = vunpack.c.l.b16 %v795
  %v860 = vunpack.c.l.b16 %v796
  %v861 = vunpack.c.l.b16 %v797
  %v862 = vunpack.c.l.b16 %v798
  %v863 = vunpack.c.l.b16 %v799
  %v864 = vunpack.c.l.b16 %v800
  %v865 = vunpack.c.l.b16 %v801
  %v866 = vpack.c.b16 %v835, %v834
  %v867 = vpack.c.b16 %v837, %v836
  %v868 = vpack.c.b16 %v839, %v838
  %v869 = vpack.c.b16 %v841, %v840
  %v870 = vpack.c.b16 %v843, %v842
  %v871 = vpack.c.b16 %v845, %v844
  %v872 = vpack.c.b16 %v847, %v846
  %v873 = vpack.c.b16 %v849, %v848
  %v874 = vpack.c.b16 %v851, %v850
  %v875 = vpack.c.b16 %v853, %v852
  %v876 = vpack.c.b16 %v855, %v854
  %v877 = vpack.c.b16 %v857, %v856
  %v878 = vpack.c.b16 %v859, %v858
  %v879 = vpack.c.b16 %v861, %v860
  %v880 = vpack.c.b16 %v863, %v862
  %v881 = vpack.c.b16 %v865, %v864
  %898 = vmatprep.subr.bf16.mxu0 0
  %899 = vmatpush1.bf16.msra.mxu0 %v866
  %900 = vmatprep.subr.bf16.mxu0 0
  %901 = vmatpush1.bf16.msra.mxu0 %v867
  %902 = vmatprep.subr.bf16.mxu0 0
  %903 = vmatpush1.bf16.msra.mxu0 %v868
  %904 = vmatprep.subr.bf16.mxu0 0
  %905 = vmatpush1.bf16.msra.mxu0 %v869
  %906 = vmatprep.subr.bf16.mxu0 0
  %907 = vmatpush1.bf16.msra.mxu0 %v870
  %908 = vmatprep.subr.bf16.mxu0 0
  %909 = vmatpush1.bf16.msra.mxu0 %v871
  %910 = vmatprep.subr.bf16.mxu0 0
  %911 = vmatpush1.bf16.msra.mxu0 %v872
  %912 = vmatprep.subr.bf16.mxu0 0
  %913 = vmatpush1.bf16.msra.mxu0 %v873
  %914 = vmatprep.subr.bf16.mxu0 0
  %915 = vmatpush1.bf16.msra.mxu0 %v874
  %916 = vmatprep.subr.bf16.mxu0 0
  %917 = vmatpush1.bf16.msra.mxu0 %v875
  %918 = vmatprep.subr.bf16.mxu0 0
  %919 = vmatpush1.bf16.msra.mxu0 %v876
  %920 = vmatprep.subr.bf16.mxu0 0
  %921 = vmatpush1.bf16.msra.mxu0 %v877
  %922 = vmatprep.subr.bf16.mxu0 0
  %923 = vmatpush1.bf16.msra.mxu0 %v878
  %924 = vmatprep.subr.bf16.mxu0 0
  %925 = vmatpush1.bf16.msra.mxu0 %v879
  %926 = vmatprep.subr.bf16.mxu0 0
  %927 = vmatpush1.bf16.msra.mxu0 %v880
  %928 = vmatprep.subr.bf16.mxu0 0
  %929 = vmatpush1.bf16.msra.mxu0 %v881
  %930 = vmatprep.mubr.bf16.mxu0 %v110
  %931 = vmatmul.mubr.bf16.gmra.mrb[0].mxu0 %v109
  %v932 = vpop.f32.mrb[0].mxu0
  %v933 = vadd.f32 0.0, %v932
  %v934 = vpop.f32.mrb[0].mxu0
  %v935 = vpop.f32.mrb[0].mxu0
  %v936 = vadd.f32 0.0, %v935
  %v937 = vpop.f32.mrb[0].mxu0
  %938 = vdwg.mxu0
  %v939 = vpack.c.bf16 %v936, %v933
  %940 = vst.msk [vmem:[#allocation2 + $0x40] sm:$0xff] %vm251, %v939
  %s941 = scalar_lea.vmem %s1, 640
  %v942 = vld [vmem:[%s941] sm:$0xf]
  %v943 = vld [vmem:[%s941 + $0x4] sm:$0xf]
  %v944 = vld [vmem:[%s941 + $0x8] sm:$0xf]
  %v945 = vld [vmem:[%s941 + $0xc] sm:$0xf]
  %v946 = vld [vmem:[%s941 + $0x10] sm:$0xf]
  %v947 = vld [vmem:[%s941 + $0x14] sm:$0xf]
  %v948 = vld [vmem:[%s941 + $0x18] sm:$0xf]
  %v949 = vld [vmem:[%s941 + $0x1c] sm:$0xf]
  %v950 = vld [vmem:[%s941 + $0x20] sm:$0xf]
  %v951 = vld [vmem:[%s941 + $0x24] sm:$0xf]
  %v952 = vld [vmem:[%s941 + $0x28] sm:$0xf]
  %v953 = vld [vmem:[%s941 + $0x2c] sm:$0xf]
  %v954 = vld [vmem:[%s941 + $0x30] sm:$0xf]
  %v955 = vld [vmem:[%s941 + $0x34] sm:$0xf]
  %v956 = vld [vmem:[%s941 + $0x38] sm:$0xf]
  %v957 = vld [vmem:[%s941 + $0x3c] sm:$0xf]
  %v958 = vld [vmem:[%s941 + $0x40] sm:$0xf]
  %v959 = vld [vmem:[%s941 + $0x44] sm:$0xf]
  %v960 = vld [vmem:[%s941 + $0x48] sm:$0xf]
  %v961 = vld [vmem:[%s941 + $0x4c] sm:$0xf]
  %v962 = vld [vmem:[%s941 + $0x50] sm:$0xf]
  %v963 = vld [vmem:[%s941 + $0x54] sm:$0xf]
  %v964 = vld [vmem:[%s941 + $0x58] sm:$0xf]
  %v965 = vld [vmem:[%s941 + $0x5c] sm:$0xf]
  %v966 = vld [vmem:[%s941 + $0x60] sm:$0xf]
  %v967 = vld [vmem:[%s941 + $0x64] sm:$0xf]
  %v968 = vld [vmem:[%s941 + $0x68] sm:$0xf]
  %v969 = vld [vmem:[%s941 + $0x6c] sm:$0xf]
  %v970 = vld [vmem:[%s941 + $0x70] sm:$0xf]
  %v971 = vld [vmem:[%s941 + $0x74] sm:$0xf]
  %v972 = vld [vmem:[%s941 + $0x78] sm:$0xf]
  %v973 = vld [vmem:[%s941 + $0x7c] sm:$0xf]
  %v1006 = vunpack.c.l.b16 %v942
  %v1007 = vunpack.c.l.b16 %v943
  %v1008 = vunpack.c.l.b16 %v944
  %v1009 = vunpack.c.l.b16 %v945
  %v1010 = vunpack.c.l.b16 %v946
  %v1011 = vunpack.c.l.b16 %v947
  %v1012 = vunpack.c.l.b16 %v948
  %v1013 = vunpack.c.l.b16 %v949
  %v1014 = vunpack.c.l.b16 %v950
  %v1015 = vunpack.c.l.b16 %v951
  %v1016 = vunpack.c.l.b16 %v952
  %v1017 = vunpack.c.l.b16 %v953
  %v1018 = vunpack.c.l.b16 %v954
  %v1019 = vunpack.c.l.b16 %v955
  %v1020 = vunpack.c.l.b16 %v956
  %v1021 = vunpack.c.l.b16 %v957
  %v1022 = vunpack.c.l.b16 %v958
  %v1023 = vunpack.c.l.b16 %v959
  %v1024 = vunpack.c.l.b16 %v960
  %v1025 = vunpack.c.l.b16 %v961
  %v1026 = vunpack.c.l.b16 %v962
  %v1027 = vunpack.c.l.b16 %v963
  %v1028 = vunpack.c.l.b16 %v964
  %v1029 = vunpack.c.l.b16 %v965
  %v1030 = vunpack.c.l.b16 %v966
  %v1031 = vunpack.c.l.b16 %v967
  %v1032 = vunpack.c.l.b16 %v968
  %v1033 = vunpack.c.l.b16 %v969
  %v1034 = vunpack.c.l.b16 %v970
  %v1035 = vunpack.c.l.b16 %v971
  %v1036 = vunpack.c.l.b16 %v972
  %v1037 = vunpack.c.l.b16 %v973
  %v1038 = vpack.c.b16 %v1007, %v1006
  %v1039 = vpack.c.b16 %v1009, %v1008
  %v1040 = vpack.c.b16 %v1011, %v1010
  %v1041 = vpack.c.b16 %v1013, %v1012
  %v1042 = vpack.c.b16 %v1015, %v1014
  %v1043 = vpack.c.b16 %v1017, %v1016
  %v1044 = vpack.c.b16 %v1019, %v1018
  %v1045 = vpack.c.b16 %v1021, %v1020
  %v1046 = vpack.c.b16 %v1023, %v1022
  %v1047 = vpack.c.b16 %v1025, %v1024
  %v1048 = vpack.c.b16 %v1027, %v1026
  %v1049 = vpack.c.b16 %v1029, %v1028
  %v1050 = vpack.c.b16 %v1031, %v1030
  %v1051 = vpack.c.b16 %v1033, %v1032
  %v1052 = vpack.c.b16 %v1035, %v1034
  %v1053 = vpack.c.b16 %v1037, %v1036
  %1070 = vmatprep.subr.bf16.mxu0 0
  %1071 = vmatpush1.bf16.msra.mxu0 %v1038
  %1072 = vmatprep.subr.bf16.mxu0 0
  %1073 = vmatpush1.bf16.msra.mxu0 %v1039
  %1074 = vmatprep.subr.bf16.mxu0 0
  %1075 = vmatpush1.bf16.msra.mxu0 %v1040
  %1076 = vmatprep.subr.bf16.mxu0 0
  %1077 = vmatpush1.bf16.msra.mxu0 %v1041
  %1078 = vmatprep.subr.bf16.mxu0 0
  %1079 = vmatpush1.bf16.msra.mxu0 %v1042
  %1080 = vmatprep.subr.bf16.mxu0 0
  %1081 = vmatpush1.bf16.msra.mxu0 %v1043
  %1082 = vmatprep.subr.bf16.mxu0 0
  %1083 = vmatpush1.bf16.msra.mxu0 %v1044
  %1084 = vmatprep.subr.bf16.mxu0 0
  %1085 = vmatpush1.bf16.msra.mxu0 %v1045
  %1086 = vmatprep.subr.bf16.mxu0 0
  %1087 = vmatpush1.bf16.msra.mxu0 %v1046
  %1088 = vmatprep.subr.bf16.mxu0 0
  %1089 = vmatpush1.bf16.msra.mxu0 %v1047
  %1090 = vmatprep.subr.bf16.mxu0 0
  %1091 = vmatpush1.bf16.msra.mxu0 %v1048
  %1092 = vmatprep.subr.bf16.mxu0 0
  %1093 = vmatpush1.bf16.msra.mxu0 %v1049
  %1094 = vmatprep.subr.bf16.mxu0 0
  %1095 = vmatpush1.bf16.msra.mxu0 %v1050
  %1096 = vmatprep.subr.bf16.mxu0 0
  %1097 = vmatpush1.bf16.msra.mxu0 %v1051
  %1098 = vmatprep.subr.bf16.mxu0 0
  %1099 = vmatpush1.bf16.msra.mxu0 %v1052
  %1100 = vmatprep.subr.bf16.mxu0 0
  %1101 = vmatpush1.bf16.msra.mxu0 %v1053
  %1102 = vmatprep.mubr.bf16.mxu0 %v110
  %1103 = vmatmul.mubr.bf16.gmra.mrb[0].mxu0 %v109
  %v1104 = vpop.f32.mrb[0].mxu0
  %v1105 = vadd.f32 0.0, %v1104
  %v1106 = vpop.f32.mrb[0].mxu0
  %v1107 = vpop.f32.mrb[0].mxu0
  %v1108 = vadd.f32 0.0, %v1107
  %v1109 = vpop.f32.mrb[0].mxu0
  %1110 = vdwg.mxu0
  %v1111 = vpack.c.bf16 %v1108, %v1105
  %1112 = vst.msk [vmem:[#allocation2 + $0x50] sm:$0xff] %vm251, %v1111
  %s1113 = scalar_lea.vmem %s1, 768
  %v1114 = vld [vmem:[%s1113] sm:$0xf]
  %v1115 = vld [vmem:[%s1113 + $0x4] sm:$0xf]
  %v1116 = vld [vmem:[%s1113 + $0x8] sm:$0xf]
  %v1117 = vld [vmem:[%s1113 + $0xc] sm:$0xf]
  %v1118 = vld [vmem:[%s1113 + $0x10] sm:$0xf]
  %v1119 = vld [vmem:[%s1113 + $0x14] sm:$0xf]
  %v1120 = vld [vmem:[%s1113 + $0x18] sm:$0xf]
  %v1121 = vld [vmem:[%s1113 + $0x1c] sm:$0xf]
  %v1122 = vld [vmem:[%s1113 + $0x20] sm:$0xf]
  %v1123 = vld [vmem:[%s1113 + $0x24] sm:$0xf]
  %v1124 = vld [vmem:[%s1113 + $0x28] sm:$0xf]
  %v1125 = vld [vmem:[%s1113 + $0x2c] sm:$0xf]
  %v1126 = vld [vmem:[%s1113 + $0x30] sm:$0xf]
  %v1127 = vld [vmem:[%s1113 + $0x34] sm:$0xf]
  %v1128 = vld [vmem:[%s1113 + $0x38] sm:$0xf]
  %v1129 = vld [vmem:[%s1113 + $0x3c] sm:$0xf]
  %v1130 = vld [vmem:[%s1113 + $0x40] sm:$0xf]
  %v1131 = vld [vmem:[%s1113 + $0x44] sm:$0xf]
  %v1132 = vld [vmem:[%s1113 + $0x48] sm:$0xf]
  %v1133 = vld [vmem:[%s1113 + $0x4c] sm:$0xf]
  %v1134 = vld [vmem:[%s1113 + $0x50] sm:$0xf]
  %v1135 = vld [vmem:[%s1113 + $0x54] sm:$0xf]
  %v1136 = vld [vmem:[%s1113 + $0x58] sm:$0xf]
  %v1137 = vld [vmem:[%s1113 + $0x5c] sm:$0xf]
  %v1138 = vld [vmem:[%s1113 + $0x60] sm:$0xf]
  %v1139 = vld [vmem:[%s1113 + $0x64] sm:$0xf]
  %v1140 = vld [vmem:[%s1113 + $0x68] sm:$0xf]
  %v1141 = vld [vmem:[%s1113 + $0x6c] sm:$0xf]
  %v1142 = vld [vmem:[%s1113 + $0x70] sm:$0xf]
  %v1143 = vld [vmem:[%s1113 + $0x74] sm:$0xf]
  %v1144 = vld [vmem:[%s1113 + $0x78] sm:$0xf]
  %v1145 = vld [vmem:[%s1113 + $0x7c] sm:$0xf]
  %v1178 = vunpack.c.l.b16 %v1114
  %v1179 = vunpack.c.l.b16 %v1115
  %v1180 = vunpack.c.l.b16 %v1116
  %v1181 = vunpack.c.l.b16 %v1117
  %v1182 = vunpack.c.l.b16 %v1118
  %v1183 = vunpack.c.l.b16 %v1119
  %v1184 = vunpack.c.l.b16 %v1120
  %v1185 = vunpack.c.l.b16 %v1121
  %v1186 = vunpack.c.l.b16 %v1122
  %v1187 = vunpack.c.l.b16 %v1123
  %v1188 = vunpack.c.l.b16 %v1124
  %v1189 = vunpack.c.l.b16 %v1125
  %v1190 = vunpack.c.l.b16 %v1126
  %v1191 = vunpack.c.l.b16 %v1127
  %v1192 = vunpack.c.l.b16 %v1128
  %v1193 = vunpack.c.l.b16 %v1129
  %v1194 = vunpack.c.l.b16 %v1130
  %v1195 = vunpack.c.l.b16 %v1131
  %v1196 = vunpack.c.l.b16 %v1132
  %v1197 = vunpack.c.l.b16 %v1133
  %v1198 = vunpack.c.l.b16 %v1134
  %v1199 = vunpack.c.l.b16 %v1135
  %v1200 = vunpack.c.l.b16 %v1136
  %v1201 = vunpack.c.l.b16 %v1137
  %v1202 = vunpack.c.l.b16 %v1138
  %v1203 = vunpack.c.l.b16 %v1139
  %v1204 = vunpack.c.l.b16 %v1140
  %v1205 = vunpack.c.l.b16 %v1141
  %v1206 = vunpack.c.l.b16 %v1142
  %v1207 = vunpack.c.l.b16 %v1143
  %v1208 = vunpack.c.l.b16 %v1144
  %v1209 = vunpack.c.l.b16 %v1145
  %v1210 = vpack.c.b16 %v1179, %v1178
  %v1211 = vpack.c.b16 %v1181, %v1180
  %v1212 = vpack.c.b16 %v1183, %v1182
  %v1213 = vpack.c.b16 %v1185, %v1184
  %v1214 = vpack.c.b16 %v1187, %v1186
  %v1215 = vpack.c.b16 %v1189, %v1188
  %v1216 = vpack.c.b16 %v1191, %v1190
  %v1217 = vpack.c.b16 %v1193, %v1192
  %v1218 = vpack.c.b16 %v1195, %v1194
  %v1219 = vpack.c.b16 %v1197, %v1196
  %v1220 = vpack.c.b16 %v1199, %v1198
  %v1221 = vpack.c.b16 %v1201, %v1200
  %v1222 = vpack.c.b16 %v1203, %v1202
  %v1223 = vpack.c.b16 %v1205, %v1204
  %v1224 = vpack.c.b16 %v1207, %v1206
  %v1225 = vpack.c.b16 %v1209, %v1208
  %1242 = vmatprep.subr.bf16.mxu0 0
  %1243 = vmatpush1.bf16.msra.mxu0 %v1210
  %1244 = vmatprep.subr.bf16.mxu0 0
  %1245 = vmatpush1.bf16.msra.mxu0 %v1211
  %1246 = vmatprep.subr.bf16.mxu0 0
  %1247 = vmatpush1.bf16.msra.mxu0 %v1212
  %1248 = vmatprep.subr.bf16.mxu0 0
  %1249 = vmatpush1.bf16.msra.mxu0 %v1213
  %1250 = vmatprep.subr.bf16.mxu0 0
  %1251 = vmatpush1.bf16.msra.mxu0 %v1214
  %1252 = vmatprep.subr.bf16.mxu0 0
  %1253 = vmatpush1.bf16.msra.mxu0 %v1215
  %1254 = vmatprep.subr.bf16.mxu0 0
  %1255 = vmatpush1.bf16.msra.mxu0 %v1216
  %1256 = vmatprep.subr.bf16.mxu0 0
  %1257 = vmatpush1.bf16.msra.mxu0 %v1217
  %1258 = vmatprep.subr.bf16.mxu0 0
  %1259 = vmatpush1.bf16.msra.mxu0 %v1218
  %1260 = vmatprep.subr.bf16.mxu0 0
  %1261 = vmatpush1.bf16.msra.mxu0 %v1219
  %1262 = vmatprep.subr.bf16.mxu0 0
  %1263 = vmatpush1.bf16.msra.mxu0 %v1220
  %1264 = vmatprep.subr.bf16.mxu0 0
  %1265 = vmatpush1.bf16.msra.mxu0 %v1221
  %1266 = vmatprep.subr.bf16.mxu0 0
  %1267 = vmatpush1.bf16.msra.mxu0 %v1222
  %1268 = vmatprep.subr.bf16.mxu0 0
  %1269 = vmatpush1.bf16.msra.mxu0 %v1223
  %1270 = vmatprep.subr.bf16.mxu0 0
  %1271 = vmatpush1.bf16.msra.mxu0 %v1224
  %1272 = vmatprep.subr.bf16.mxu0 0
  %1273 = vmatpush1.bf16.msra.mxu0 %v1225
  %1274 = vmatprep.mubr.bf16.mxu0 %v110
  %1275 = vmatmul.mubr.bf16.gmra.mrb[0].mxu0 %v109
  %v1276 = vpop.f32.mrb[0].mxu0
  %v1277 = vadd.f32 0.0, %v1276
  %v1278 = vpop.f32.mrb[0].mxu0
  %v1279 = vpop.f32.mrb[0].mxu0
  %v1280 = vadd.f32 0.0, %v1279
  %v1281 = vpop.f32.mrb[0].mxu0
  %1282 = vdwg.mxu0
  %v1283 = vpack.c.bf16 %v1280, %v1277
  %1284 = vst.msk [vmem:[#allocation2 + $0x60] sm:$0xff] %vm251, %v1283
  %s1285 = scalar_lea.vmem %s1, 896
  %v1286 = vld [vmem:[%s1285] sm:$0xf]
  %v1287 = vld [vmem:[%s1285 + $0x4] sm:$0xf]
  %v1288 = vld [vmem:[%s1285 + $0x8] sm:$0xf]
  %v1289 = vld [vmem:[%s1285 + $0xc] sm:$0xf]
  %v1290 = vld [vmem:[%s1285 + $0x10] sm:$0xf]
  %v1291 = vld [vmem:[%s1285 + $0x14] sm:$0xf]
  %v1292 = vld [vmem:[%s1285 + $0x18] sm:$0xf]
  %v1293 = vld [vmem:[%s1285 + $0x1c] sm:$0xf]
  %v1294 = vld [vmem:[%s1285 + $0x20] sm:$0xf]
  %v1295 = vld [vmem:[%s1285 + $0x24] sm:$0xf]
  %v1296 = vld [vmem:[%s1285 + $0x28] sm:$0xf]
  %v1297 = vld [vmem:[%s1285 + $0x2c] sm:$0xf]
  %v1298 = vld [vmem:[%s1285 + $0x30] sm:$0xf]
  %v1299 = vld [vmem:[%s1285 + $0x34] sm:$0xf]
  %v1300 = vld [vmem:[%s1285 + $0x38] sm:$0xf]
  %v1301 = vld [vmem:[%s1285 + $0x3c] sm:$0xf]
  %v1302 = vld [vmem:[%s1285 + $0x40] sm:$0xf]
  %v1303 = vld [vmem:[%s1285 + $0x44] sm:$0xf]
  %v1304 = vld [vmem:[%s1285 + $0x48] sm:$0xf]
  %v1305 = vld [vmem:[%s1285 + $0x4c] sm:$0xf]
  %v1306 = vld [vmem:[%s1285 + $0x50] sm:$0xf]
  %v1307 = vld [vmem:[%s1285 + $0x54] sm:$0xf]
  %v1308 = vld [vmem:[%s1285 + $0x58] sm:$0xf]
  %v1309 = vld [vmem:[%s1285 + $0x5c] sm:$0xf]
  %v1310 = vld [vmem:[%s1285 + $0x60] sm:$0xf]
  %v1311 = vld [vmem:[%s1285 + $0x64] sm:$0xf]
  %v1312 = vld [vmem:[%s1285 + $0x68] sm:$0xf]
  %v1313 = vld [vmem:[%s1285 + $0x6c] sm:$0xf]
  %v1314 = vld [vmem:[%s1285 + $0x70] sm:$0xf]
  %v1315 = vld [vmem:[%s1285 + $0x74] sm:$0xf]
  %v1316 = vld [vmem:[%s1285 + $0x78] sm:$0xf]
  %v1317 = vld [vmem:[%s1285 + $0x7c] sm:$0xf]
  %v1350 = vunpack.c.l.b16 %v1286
  %v1351 = vunpack.c.l.b16 %v1287
  %v1352 = vunpack.c.l.b16 %v1288
  %v1353 = vunpack.c.l.b16 %v1289
  %v1354 = vunpack.c.l.b16 %v1290
  %v1355 = vunpack.c.l.b16 %v1291
  %v1356 = vunpack.c.l.b16 %v1292
  %v1357 = vunpack.c.l.b16 %v1293
  %v1358 = vunpack.c.l.b16 %v1294
  %v1359 = vunpack.c.l.b16 %v1295
  %v1360 = vunpack.c.l.b16 %v1296
  %v1361 = vunpack.c.l.b16 %v1297
  %v1362 = vunpack.c.l.b16 %v1298
  %v1363 = vunpack.c.l.b16 %v1299
  %v1364 = vunpack.c.l.b16 %v1300
  %v1365 = vunpack.c.l.b16 %v1301
  %v1366 = vunpack.c.l.b16 %v1302
  %v1367 = vunpack.c.l.b16 %v1303
  %v1368 = vunpack.c.l.b16 %v1304
  %v1369 = vunpack.c.l.b16 %v1305
  %v1370 = vunpack.c.l.b16 %v1306
  %v1371 = vunpack.c.l.b16 %v1307
  %v1372 = vunpack.c.l.b16 %v1308
  %v1373 = vunpack.c.l.b16 %v1309
  %v1374 = vunpack.c.l.b16 %v1310
  %v1375 = vunpack.c.l.b16 %v1311
  %v1376 = vunpack.c.l.b16 %v1312
  %v1377 = vunpack.c.l.b16 %v1313
  %v1378 = vunpack.c.l.b16 %v1314
  %v1379 = vunpack.c.l.b16 %v1315
  %v1380 = vunpack.c.l.b16 %v1316
  %v1381 = vunpack.c.l.b16 %v1317
  %v1382 = vpack.c.b16 %v1351, %v1350
  %v1383 = vpack.c.b16 %v1353, %v1352
  %v1384 = vpack.c.b16 %v1355, %v1354
  %v1385 = vpack.c.b16 %v1357, %v1356
  %v1386 = vpack.c.b16 %v1359, %v1358
  %v1387 = vpack.c.b16 %v1361, %v1360
  %v1388 = vpack.c.b16 %v1363, %v1362
  %v1389 = vpack.c.b16 %v1365, %v1364
  %v1390 = vpack.c.b16 %v1367, %v1366
  %v1391 = vpack.c.b16 %v1369, %v1368
  %v1392 = vpack.c.b16 %v1371, %v1370
  %v1393 = vpack.c.b16 %v1373, %v1372
  %v1394 = vpack.c.b16 %v1375, %v1374
  %v1395 = vpack.c.b16 %v1377, %v1376
  %v1396 = vpack.c.b16 %v1379, %v1378
  %v1397 = vpack.c.b16 %v1381, %v1380
  %1414 = vmatprep.subr.bf16.mxu0 0
  %1415 = vmatpush1.bf16.msra.mxu0 %v1382
  %1416 = vmatprep.subr.bf16.mxu0 0
  %1417 = vmatpush1.bf16.msra.mxu0 %v1383
  %1418 = vmatprep.subr.bf16.mxu0 0
  %1419 = vmatpush1.bf16.msra.mxu0 %v1384
  %1420 = vmatprep.subr.bf16.mxu0 0
  %1421 = vmatpush1.bf16.msra.mxu0 %v1385
  %1422 = vmatprep.subr.bf16.mxu0 0
  %1423 = vmatpush1.bf16.msra.mxu0 %v1386
  %1424 = vmatprep.subr.bf16.mxu0 0
  %1425 = vmatpush1.bf16.msra.mxu0 %v1387
  %1426 = vmatprep.subr.bf16.mxu0 0
  %1427 = vmatpush1.bf16.msra.mxu0 %v1388
  %1428 = vmatprep.subr.bf16.mxu0 0
  %1429 = vmatpush1.bf16.msra.mxu0 %v1389
  %1430 = vmatprep.subr.bf16.mxu0 0
  %1431 = vmatpush1.bf16.msra.mxu0 %v1390
  %1432 = vmatprep.subr.bf16.mxu0 0
  %1433 = vmatpush1.bf16.msra.mxu0 %v1391
  %1434 = vmatprep.subr.bf16.mxu0 0
  %1435 = vmatpush1.bf16.msra.mxu0 %v1392
  %1436 = vmatprep.subr.bf16.mxu0 0
  %1437 = vmatpush1.bf16.msra.mxu0 %v1393
  %1438 = vmatprep.subr.bf16.mxu0 0
  %1439 = vmatpush1.bf16.msra.mxu0 %v1394
  %1440 = vmatprep.subr.bf16.mxu0 0
  %1441 = vmatpush1.bf16.msra.mxu0 %v1395
  %1442 = vmatprep.subr.bf16.mxu0 0
  %1443 = vmatpush1.bf16.msra.mxu0 %v1396
  %1444 = vmatprep.subr.bf16.mxu0 0
  %1445 = vmatpush1.bf16.msra.mxu0 %v1397
  %1446 = vmatprep.mubr.bf16.mxu0 %v110
  %1447 = vmatmul.mubr.bf16.gmra.mrb[0].mxu0 %v109
  %v1448 = vpop.f32.mrb[0].mxu0
  %v1449 = vadd.f32 0.0, %v1448
  %v1450 = vpop.f32.mrb[0].mxu0
  %v1451 = vpop.f32.mrb[0].mxu0
  %v1452 = vadd.f32 0.0, %v1451
  %v1453 = vpop.f32.mrb[0].mxu0
  %1454 = vdwg.mxu0
  %v1455 = vpack.c.bf16 %v1452, %v1449
  %1456 = vst.msk [vmem:[#allocation2 + $0x70] sm:$0xff] %vm251, %v1455
  %s1457 = scalar_lea.vmem %s1, 1024
  %v1458 = vld [vmem:[%s1457] sm:$0xf]
  %v1459 = vld [vmem:[%s1457 + $0x4] sm:$0xf]
  %v1460 = vld [vmem:[%s1457 + $0x8] sm:$0xf]
  %v1461 = vld [vmem:[%s1457 + $0xc] sm:$0xf]
  %v1462 = vld [vmem:[%s1457 + $0x10] sm:$0xf]
  %v1463 = vld [vmem:[%s1457 + $0x14] sm:$0xf]
  %v1464 = vld [vmem:[%s1457 + $0x18] sm:$0xf]
  %v1465 = vld [vmem:[%s1457 + $0x1c] sm:$0xf]
  %v1466 = vld [vmem:[%s1457 + $0x20] sm:$0xf]
  %v1467 = vld [vmem:[%s1457 + $0x24] sm:$0xf]
  %v1468 = vld [vmem:[%s1457 + $0x28] sm:$0xf]
  %v1469 = vld [vmem:[%s1457 + $0x2c] sm:$0xf]
  %v1470 = vld [vmem:[%s1457 + $0x30] sm:$0xf]
  %v1471 = vld [vmem:[%s1457 + $0x34] sm:$0xf]
  %v1472 = vld [vmem:[%s1457 + $0x38] sm:$0xf]
  %v1473 = vld [vmem:[%s1457 + $0x3c] sm:$0xf]
  %v1474 = vld [vmem:[%s1457 + $0x40] sm:$0xf]
  %v1475 = vld [vmem:[%s1457 + $0x44] sm:$0xf]
  %v1476 = vld [vmem:[%s1457 + $0x48] sm:$0xf]
  %v1477 = vld [vmem:[%s1457 + $0x4c] sm:$0xf]
  %v1478 = vld [vmem:[%s1457 + $0x50] sm:$0xf]
  %v1479 = vld [vmem:[%s1457 + $0x54] sm:$0xf]
  %v1480 = vld [vmem:[%s1457 + $0x58] sm:$0xf]
  %v1481 = vld [vmem:[%s1457 + $0x5c] sm:$0xf]
  %v1482 = vld [vmem:[%s1457 + $0x60] sm:$0xf]
  %v1483 = vld [vmem:[%s1457 + $0x64] sm:$0xf]
  %v1484 = vld [vmem:[%s1457 + $0x68] sm:$0xf]
  %v1485 = vld [vmem:[%s1457 + $0x6c] sm:$0xf]
  %v1486 = vld [vmem:[%s1457 + $0x70] sm:$0xf]
  %v1487 = vld [vmem:[%s1457 + $0x74] sm:$0xf]
  %v1488 = vld [vmem:[%s1457 + $0x78] sm:$0xf]
  %v1489 = vld [vmem:[%s1457 + $0x7c] sm:$0xf]
  %v1522 = vunpack.c.l.b16 %v1458
  %v1523 = vunpack.c.l.b16 %v1459
  %v1524 = vunpack.c.l.b16 %v1460
  %v1525 = vunpack.c.l.b16 %v1461
  %v1526 = vunpack.c.l.b16 %v1462
  %v1527 = vunpack.c.l.b16 %v1463
  %v1528 = vunpack.c.l.b16 %v1464
  %v1529 = vunpack.c.l.b16 %v1465
  %v1530 = vunpack.c.l.b16 %v1466
  %v1531 = vunpack.c.l.b16 %v1467
  %v1532 = vunpack.c.l.b16 %v1468
  %v1533 = vunpack.c.l.b16 %v1469
  %v1534 = vunpack.c.l.b16 %v1470
  %v1535 = vunpack.c.l.b16 %v1471
  %v1536 = vunpack.c.l.b16 %v1472
  %v1537 = vunpack.c.l.b16 %v1473
  %v1538 = vunpack.c.l.b16 %v1474
  %v1539 = vunpack.c.l.b16 %v1475
  %v1540 = vunpack.c.l.b16 %v1476
  %v1541 = vunpack.c.l.b16 %v1477
  %v1542 = vunpack.c.l.b16 %v1478
  %v1543 = vunpack.c.l.b16 %v1479
  %v1544 = vunpack.c.l.b16 %v1480
  %v1545 = vunpack.c.l.b16 %v1481
  %v1546 = vunpack.c.l.b16 %v1482
  %v1547 = vunpack.c.l.b16 %v1483
  %v1548 = vunpack.c.l.b16 %v1484
  %v1549 = vunpack.c.l.b16 %v1485
  %v1550 = vunpack.c.l.b16 %v1486
  %v1551 = vunpack.c.l.b16 %v1487
  %v1552 = vunpack.c.l.b16 %v1488
  %v1553 = vunpack.c.l.b16 %v1489
  %v1554 = vpack.c.b16 %v1523, %v1522
  %v1555 = vpack.c.b16 %v1525, %v1524
  %v1556 = vpack.c.b16 %v1527, %v1526
  %v1557 = vpack.c.b16 %v1529, %v1528
  %v1558 = vpack.c.b16 %v1531, %v1530
  %v1559 = vpack.c.b16 %v1533, %v1532
  %v1560 = vpack.c.b16 %v1535, %v1534
  %v1561 = vpack.c.b16 %v1537, %v1536
  %v1562 = vpack.c.b16 %v1539, %v1538
  %v1563 = vpack.c.b16 %v1541, %v1540
  %v1564 = vpack.c.b16 %v1543, %v1542
  %v1565 = vpack.c.b16 %v1545, %v1544
  %v1566 = vpack.c.b16 %v1547, %v1546
  %v1567 = vpack.c.b16 %v1549, %v1548
  %v1568 = vpack.c.b16 %v1551, %v1550
  %v1569 = vpack.c.b16 %v1553, %v1552
  %1586 = vmatprep.subr.bf16.mxu0 0
  %1587 = vmatpush1.bf16.msra.mxu0 %v1554
  %1588 = vmatprep.subr.bf16.mxu0 0
  %1589 = vmatpush1.bf16.msra.mxu0 %v1555
  %1590 = vmatprep.subr.bf16.mxu0 0
  %1591 = vmatpush1.bf16.msra.mxu0 %v1556
  %1592 = vmatprep.subr.bf16.mxu0 0
  %1593 = vmatpush1.bf16.msra.mxu0 %v1557
  %1594 = vmatprep.subr.bf16.mxu0 0
  %1595 = vmatpush1.bf16.msra.mxu0 %v1558
  %1596 = vmatprep.subr.bf16.mxu0 0
  %1597 = vmatpush1.bf16.msra.mxu0 %v1559
  %1598 = vmatprep.subr.bf16.mxu0 0
  %1599 = vmatpush1.bf16.msra.mxu0 %v1560
  %1600 = vmatprep.subr.bf16.mxu0 0
  %1601 = vmatpush1.bf16.msra.mxu0 %v1561
  %1602 = vmatprep.subr.bf16.mxu0 0
  %1603 = vmatpush1.bf16.msra.mxu0 %v1562
  %1604 = vmatprep.subr.bf16.mxu0 0
  %1605 = vmatpush1.bf16.msra.mxu0 %v1563
  %1606 = vmatprep.subr.bf16.mxu0 0
  %1607 = vmatpush1.bf16.msra.mxu0 %v1564
  %1608 = vmatprep.subr.bf16.mxu0 0
  %1609 = vmatpush1.bf16.msra.mxu0 %v1565
  %1610 = vmatprep.subr.bf16.mxu0 0
  %1611 = vmatpush1.bf16.msra.mxu0 %v1566
  %1612 = vmatprep.subr.bf16.mxu0 0
  %1613 = vmatpush1.bf16.msra.mxu0 %v1567
  %1614 = vmatprep.subr.bf16.mxu0 0
  %1615 = vmatpush1.bf16.msra.mxu0 %v1568
  %1616 = vmatprep.subr.bf16.mxu0 0
  %1617 = vmatpush1.bf16.msra.mxu0 %v1569
  %1618 = vmatprep.mubr.bf16.mxu0 %v110
  %1619 = vmatmul.mubr.bf16.gmra.mrb[0].mxu0 %v109
  %v1620 = vpop.f32.mrb[0].mxu0
  %v1621 = vadd.f32 0.0, %v1620
  %v1622 = vpop.f32.mrb[0].mxu0
  %v1623 = vpop.f32.mrb[0].mxu0
  %v1624 = vadd.f32 0.0, %v1623
  %v1625 = vpop.f32.mrb[0].mxu0
  %1626 = vdwg.mxu0
  %v1627 = vpack.c.bf16 %v1624, %v1621
  %1628 = vst.msk [vmem:[#allocation2 + $0x80] sm:$0xff] %vm251, %v1627
  %v1629 = vld [vmem:[%s2] sm:$0xff]
  %v1630 = vld [vmem:[%s2 + $0x8] sm:$0xff]
  %v1631 = vld [vmem:[%s2 + $0x10] sm:$0xff]
  %v1632 = vld [vmem:[%s2 + $0x18] sm:$0xff]
  %v1633 = vld [vmem:[%s2 + $0x20] sm:$0xff]
  %v1634 = vld [vmem:[%s2 + $0x28] sm:$0xff]
  %v1635 = vld [vmem:[%s2 + $0x30] sm:$0xff]
  %v1636 = vld [vmem:[%s2 + $0x38] sm:$0xff]
  %v1637 = vld [vmem:[#allocation2] sm:$0xff]
  %v1638 = vld [vmem:[#allocation2 + $0x10] sm:$0xff]
  %v1639 = vld [vmem:[#allocation2 + $0x20] sm:$0xff]
  %v1640 = vld [vmem:[#allocation2 + $0x30] sm:$0xff]
  %v1641 = vld [vmem:[#allocation2 + $0x40] sm:$0xff]
  %v1642 = vld [vmem:[#allocation2 + $0x50] sm:$0xff]
  %v1643 = vld [vmem:[#allocation2 + $0x60] sm:$0xff]
  %v1644 = vld [vmem:[#allocation2 + $0x70] sm:$0xff]
  %v1645 = vld [vmem:[#allocation2 + $0x80] sm:$0xff]
  %v1646 = vld [vmem:[%s3] sm:$0xff]
  %v1647 = vld [vmem:[%s3 + $0x8] sm:$0xff]
  %v1648 = vld [vmem:[%s3 + $0x10] sm:$0xff]
  %v1649 = vld [vmem:[%s3 + $0x18] sm:$0xff]
  %v1650 = vld [vmem:[%s3 + $0x20] sm:$0xff]
  %v1651 = vld [vmem:[%s3 + $0x28] sm:$0xff]
  %v1652 = vld [vmem:[%s3 + $0x30] sm:$0xff]
  %v1653 = vld [vmem:[%s3 + $0x38] sm:$0xff]
  %1655 = vset.pattern.permute.xlu0 0
  %1656 = vperm.xlu0 %1655, %v1646
  %v1657 = vpop.permute.xlu0 %1656
  %1660 = vset.pattern.permute.xlu0 0
  %1661 = vperm.xlu0 %1660, %v1647
  %v1662 = vpop.permute.xlu0 %1661
  %1665 = vset.pattern.permute.xlu0 0
  %1666 = vperm.xlu0 %1665, %v1648
  %v1667 = vpop.permute.xlu0 %1666
  %1670 = vset.pattern.permute.xlu0 0
  %1671 = vperm.xlu0 %1670, %v1649
  %v1672 = vpop.permute.xlu0 %1671
  %1675 = vset.pattern.permute.xlu0 0
  %1676 = vperm.xlu0 %1675, %v1650
  %v1677 = vpop.permute.xlu0 %1676
  %1680 = vset.pattern.permute.xlu0 0
  %1681 = vperm.xlu0 %1680, %v1651
  %v1682 = vpop.permute.xlu0 %1681
  %1685 = vset.pattern.permute.xlu0 0
  %1686 = vperm.xlu0 %1685, %v1652
  %v1687 = vpop.permute.xlu0 %1686
  %1690 = vset.pattern.permute.xlu0 0
  %1691 = vperm.xlu0 %1690, %v1653
  %v1692 = vpop.permute.xlu0 %1691
  %v1702 = vunpack.c.l.b16 %v1629
  %v1703 = vunpack.c.h.b16 %v1629
  %v1704 = vunpack.c.l.b16 %v1630
  %v1705 = vunpack.c.h.b16 %v1630
  %v1706 = vunpack.c.l.b16 %v1631
  %v1707 = vunpack.c.h.b16 %v1631
  %v1708 = vunpack.c.l.b16 %v1632
  %v1709 = vunpack.c.h.b16 %v1632
  %v1710 = vunpack.c.l.b16 %v1633
  %v1711 = vunpack.c.h.b16 %v1633
  %v1712 = vunpack.c.l.b16 %v1634
  %v1713 = vunpack.c.h.b16 %v1634
  %v1714 = vunpack.c.l.b16 %v1635
  %v1715 = vunpack.c.h.b16 %v1635
  %v1716 = vunpack.c.l.b16 %v1636
  %v1717 = vunpack.c.h.b16 %v1636
  %v1718 = vpack.c.b16 %v1704, %v1702
  %v1719 = vpack.c.b16 %v1705, %v1703
  %v1720 = vpack.c.b16 %v1708, %v1706
  %v1721 = vpack.c.b16 %v1709, %v1707
  %v1722 = vpack.c.b16 %v1712, %v1710
  %v1723 = vpack.c.b16 %v1713, %v1711
  %v1724 = vpack.c.b16 %v1716, %v1714
  %v1725 = vpack.c.b16 %v1717, %v1715
  %vm1730 = vcmask 130048
  %v1732 = vsel %vm1730, %v1719, 0
  %v1735 = vsel %vm1730, %v1721, 0
  %v1738 = vsel %vm1730, %v1723, 0
  %v1741 = vsel %vm1730, %v1725, 0
  %1743 = vmatprep.subr.bf16.mxu0 0
  %1744 = vmatpush1.bf16.msra.mxu0 %v1637
  %1745 = vmatprep.subr.bf16.mxu0 0
  %1746 = vmatpush1.bf16.msra.mxu0 %v1638
  %1747 = vmatprep.subr.bf16.mxu0 0
  %1748 = vmatpush1.bf16.msra.mxu0 %v1639
  %1749 = vmatprep.subr.bf16.mxu0 0
  %1750 = vmatpush1.bf16.msra.mxu0 %v1640
  %1751 = vmatprep.subr.bf16.mxu0 0
  %1752 = vmatpush1.bf16.msra.mxu0 %v1641
  %1753 = vmatprep.subr.bf16.mxu0 0
  %1754 = vmatpush1.bf16.msra.mxu0 %v1642
  %1755 = vmatprep.subr.bf16.mxu0 0
  %1756 = vmatpush1.bf16.msra.mxu0 %v1643
  %1757 = vmatprep.subr.bf16.mxu0 0
  %1758 = vmatpush1.bf16.msra.mxu0 %v1644
  %1759 = vmatprep.subr.bf16.mxu0 0
  %1760 = vmatpush1.bf16.msra.mxu0 %v1645
  %1761 = vmatprep.subr.bf16.mxu0 0
  %1762 = vmatpush1.bf16.msra.mxu0 0
  %1763 = vmatprep.subr.bf16.mxu0 0
  %1764 = vmatpush1.bf16.msra.mxu0 0
  %1765 = vmatprep.subr.bf16.mxu0 0
  %1766 = vmatpush1.bf16.msra.mxu0 0
  %1767 = vmatprep.subr.bf16.mxu0 0
  %1768 = vmatpush1.bf16.msra.mxu0 0
  %1769 = vmatprep.subr.bf16.mxu0 0
  %1770 = vmatpush1.bf16.msra.mxu0 0
  %1771 = vmatprep.subr.bf16.mxu0 0
  %1772 = vmatpush1.bf16.msra.mxu0 0
  %1773 = vmatprep.subr.bf16.mxu0 0
  %1774 = vmatpush1.bf16.msra.mxu0 0
  %1775 = vmatprep.mubr.bf16.mxu0 %v1732
  %1776 = vmatmul.mubr.bf16.gmra.mrb[0].mxu0 %v1718
  %v1777 = vpop.f32.mrb[0].mxu0
  %v1778 = vadd.f32 %v1657, %v1777
  %v1779 = vpop.f32.mrb[0].mxu0
  %v1780 = vpop.f32.mrb[0].mxu0
  %v1781 = vadd.f32 %v1662, %v1780
  %v1782 = vpop.f32.mrb[0].mxu0
  %1783 = vmatprep.mubr.bf16.mxu0 %v1735
  %1784 = vmatmul.mubr.bf16.gmra.mrb[0].mxu0 %v1720
  %v1785 = vpop.f32.mrb[0].mxu0
  %v1786 = vadd.f32 %v1667, %v1785
  %v1787 = vpop.f32.mrb[0].mxu0
  %v1788 = vpop.f32.mrb[0].mxu0
  %v1789 = vadd.f32 %v1672, %v1788
  %v1790 = vpop.f32.mrb[0].mxu0
  %1791 = vmatprep.mubr.bf16.mxu0 %v1738
  %1792 = vmatmul.mubr.bf16.gmra.mrb[0].mxu0 %v1722
  %v1793 = vpop.f32.mrb[0].mxu0
  %v1794 = vadd.f32 %v1677, %v1793
  %v1795 = vpop.f32.mrb[0].mxu0
  %v1796 = vpop.f32.mrb[0].mxu0
  %v1797 = vadd.f32 %v1682, %v1796
  %v1798 = vpop.f32.mrb[0].mxu0
  %1799 = vmatprep.mubr.bf16.mxu0 %v1741
  %1800 = vmatmul.mubr.bf16.gmra.mrb[0].mxu0 %v1724
  %v1801 = vpop.f32.mrb[0].mxu0
  %v1802 = vadd.f32 %v1687, %v1801
  %v1803 = vpop.f32.mrb[0].mxu0
  %v1804 = vpop.f32.mrb[0].mxu0
  %v1805 = vadd.f32 %v1692, %v1804
  %v1806 = vpop.f32.mrb[0].mxu0
  %1807 = vdwg.mxu0
  %v1808 = vmax.f32 %v1778, 0.0
  %v1809 = vmax.f32 %v1781, 0.0
  %v1810 = vmax.f32 %v1786, 0.0
  %v1811 = vmax.f32 %v1789, 0.0
  %v1812 = vmax.f32 %v1794, 0.0
  %v1813 = vmax.f32 %v1797, 0.0
  %v1814 = vmax.f32 %v1802, 0.0
  %v1815 = vmax.f32 %v1805, 0.0
  %v1816 = vpack.c.bf16 %v1809, %v1808
  %v1817 = vpack.c.bf16 %v1811, %v1810
  %v1818 = vpack.c.bf16 %v1813, %v1812
  %v1819 = vpack.c.bf16 %v1815, %v1814
  %v1820 = vld [vmem:[%s4] sm:$0xf]
  %v1821 = vld [vmem:[%s4 + $0x4] sm:$0xf]
  %v1822 = vld [vmem:[%s4 + $0x8] sm:$0xf]
  %v1823 = vld [vmem:[%s4 + $0xc] sm:$0xf]
  %v1824 = vld [vmem:[%s4 + $0x10] sm:$0xf]
  %v1825 = vld [vmem:[%s4 + $0x14] sm:$0xf]
  %v1826 = vld [vmem:[%s4 + $0x18] sm:$0xf]
  %v1827 = vld [vmem:[%s4 + $0x1c] sm:$0xf]
  %v1836 = vunpack.c.l.b16 %v1820
  %v1837 = vunpack.c.l.b16 %v1821
  %v1838 = vunpack.c.l.b16 %v1822
  %v1839 = vunpack.c.l.b16 %v1823
  %v1840 = vunpack.c.l.b16 %v1824
  %v1841 = vunpack.c.l.b16 %v1825
  %v1842 = vunpack.c.l.b16 %v1826
  %v1843 = vunpack.c.l.b16 %v1827
  %v1844 = vpack.c.b16 %v1837, %v1836
  %v1845 = vpack.c.b16 %v1839, %v1838
  %v1846 = vpack.c.b16 %v1841, %v1840
  %v1847 = vpack.c.b16 %v1843, %v1842
  %v1853 = vsel %vm251, %v1816, 0
  %v1856 = vsel %vm251, %v1817, 0
  %v1859 = vsel %vm251, %v1818, 0
  %v1862 = vsel %vm251, %v1819, 0
  %1864 = vmatprep.subr.bf16.mxu0 0
  %1865 = vmatpush1.bf16.msra.mxu0 %v1844
  %1866 = vmatprep.subr.bf16.mxu0 0
  %1867 = vmatpush1.bf16.msra.mxu0 %v1845
  %1868 = vmatprep.subr.bf16.mxu0 0
  %1869 = vmatpush1.bf16.msra.mxu0 %v1846
  %1870 = vmatprep.subr.bf16.mxu0 0
  %1871 = vmatpush1.bf16.msra.mxu0 %v1847
  %1872 = vmatprep.subr.bf16.mxu0 0
  %1873 = vmatpush1.bf16.msra.mxu0 0
  %1874 = vmatprep.subr.bf16.mxu0 0
  %1875 = vmatpush1.bf16.msra.mxu0 0
  %1876 = vmatprep.subr.bf16.mxu0 0
  %1877 = vmatpush1.bf16.msra.mxu0 0
  %1878 = vmatprep.subr.bf16.mxu0 0
  %1879 = vmatpush1.bf16.msra.mxu0 0
  %1880 = vmatprep.subr.bf16.mxu0 0
  %1881 = vmatpush1.bf16.msra.mxu0 0
  %1882 = vmatprep.subr.bf16.mxu0 0
  %1883 = vmatpush1.bf16.msra.mxu0 0
  %1884 = vmatprep.subr.bf16.mxu0 0
  %1885 = vmatpush1.bf16.msra.mxu0 0
  %1886 = vmatprep.subr.bf16.mxu0 0
  %1887 = vmatpush1.bf16.msra.mxu0 0
  %1888 = vmatprep.subr.bf16.mxu0 0
  %1889 = vmatpush1.bf16.msra.mxu0 0
  %1890 = vmatprep.subr.bf16.mxu0 0
  %1891 = vmatpush1.bf16.msra.mxu0 0
  %1892 = vmatprep.subr.bf16.mxu0 0
  %1893 = vmatpush1.bf16.msra.mxu0 0
  %1894 = vmatprep.subr.bf16.mxu0 0
  %1895 = vmatpush1.bf16.msra.mxu0 0
  %1896 = vmatprep.mubr.bf16.mxu0 0
  %1897 = vmatmul.mubr.bf16.gmra.mrb[0].mxu0 %v1853
  %v1898 = vpop.f32.mrb[0].mxu0
  %v1899 = vadd.f32 0.0, %v1898
  %v1900 = vpop.f32.mrb[0].mxu0
  %v1901 = vpop.f32.mrb[0].mxu0
  %v1902 = vadd.f32 0.0, %v1901
  %v1903 = vpop.f32.mrb[0].mxu0
  %1904 = vmatprep.mubr.bf16.mxu0 0
  %1905 = vmatmul.mubr.bf16.gmra.mrb[0].mxu0 %v1856
  %v1906 = vpop.f32.mrb[0].mxu0
  %v1907 = vadd.f32 0.0, %v1906
  %v1908 = vpop.f32.mrb[0].mxu0
  %v1909 = vpop.f32.mrb[0].mxu0
  %v1910 = vadd.f32 0.0, %v1909
  %v1911 = vpop.f32.mrb[0].mxu0
  %1912 = vmatprep.mubr.bf16.mxu0 0
  %1913 = vmatmul.mubr.bf16.gmra.mrb[0].mxu0 %v1859
  %v1914 = vpop.f32.mrb[0].mxu0
  %v1915 = vadd.f32 0.0, %v1914
  %v1916 = vpop.f32.mrb[0].mxu0
  %v1917 = vpop.f32.mrb[0].mxu0
  %v1918 = vadd.f32 0.0, %v1917
  %v1919 = vpop.f32.mrb[0].mxu0
  %1920 = vmatprep.mubr.bf16.mxu0 0
  %1921 = vmatmul.mubr.bf16.gmra.mrb[0].mxu0 %v1862
  %v1922 = vpop.f32.mrb[0].mxu0
  %v1923 = vadd.f32 0.0, %v1922
  %v1924 = vpop.f32.mrb[0].mxu0
  %v1925 = vpop.f32.mrb[0].mxu0
  %v1926 = vadd.f32 0.0, %v1925
  %v1927 = vpop.f32.mrb[0].mxu0
  %1928 = vdwg.mxu0
  %v1929 = vpack.c.bf16 %v1902, %v1899
  %v1930 = vpack.c.bf16 %v1910, %v1907
  %v1931 = vpack.c.bf16 %v1918, %v1915
  %v1932 = vpack.c.bf16 %v1926, %v1923
  %1933 = vst.msk [vmem:[#allocation2] sm:$0xff] %vm1730, %v1929
  %1934 = vst.msk [vmem:[#allocation2 + $0x10] sm:$0xff] %vm1730, %v1930
  %1935 = vst.msk [vmem:[#allocation2 + $0x20] sm:$0xff] %vm1730, %v1931
  %1936 = vst.msk [vmem:[#allocation2 + $0x30] sm:$0xff] %vm1730, %v1932
  %s1937 = scalar_lea.vmem %s4, 32
  %v1938 = vld [vmem:[%s1937] sm:$0xf]
  %v1939 = vld [vmem:[%s1937 + $0x4] sm:$0xf]
  %v1940 = vld [vmem:[%s1937 + $0x8] sm:$0xf]
  %v1941 = vld [vmem:[%s1937 + $0xc] sm:$0xf]
  %v1942 = vld [vmem:[%s1937 + $0x10] sm:$0xf]
  %v1943 = vld [vmem:[%s1937 + $0x14] sm:$0xf]
  %v1944 = vld [vmem:[%s1937 + $0x18] sm:$0xf]
  %v1945 = vld [vmem:[%s1937 + $0x1c] sm:$0xf]
  %v1954 = vunpack.c.l.b16 %v1938
  %v1955 = vunpack.c.l.b16 %v1939
  %v1956 = vunpack.c.l.b16 %v1940
  %v1957 = vunpack.c.l.b16 %v1941
  %v1958 = vunpack.c.l.b16 %v1942
  %v1959 = vunpack.c.l.b16 %v1943
  %v1960 = vunpack.c.l.b16 %v1944
  %v1961 = vunpack.c.l.b16 %v1945
  %v1962 = vpack.c.b16 %v1955, %v1954
  %v1963 = vpack.c.b16 %v1957, %v1956
  %v1964 = vpack.c.b16 %v1959, %v1958
  %v1965 = vpack.c.b16 %v1961, %v1960
  %1970 = vmatprep.subr.bf16.mxu0 0
  %1971 = vmatpush1.bf16.msra.mxu0 %v1962
  %1972 = vmatprep.subr.bf16.mxu0 0
  %1973 = vmatpush1.bf16.msra.mxu0 %v1963
  %1974 = vmatprep.subr.bf16.mxu0 0
  %1975 = vmatpush1.bf16.msra.mxu0 %v1964
  %1976 = vmatprep.subr.bf16.mxu0 0
  %1977 = vmatpush1.bf16.msra.mxu0 %v1965
  %1978 = vmatprep.subr.bf16.mxu0 0
  %1979 = vmatpush1.bf16.msra.mxu0 0
  %1980 = vmatprep.subr.bf16.mxu0 0
  %1981 = vmatpush1.bf16.msra.mxu0 0
  %1982 = vmatprep.subr.bf16.mxu0 0
  %1983 = vmatpush1.bf16.msra.mxu0 0
  %1984 = vmatprep.subr.bf16.mxu0 0
  %1985 = vmatpush1.bf16.msra.mxu0 0
  %1986 = vmatprep.subr.bf16.mxu0 0
  %1987 = vmatpush1.bf16.msra.mxu0 0
  %1988 = vmatprep.subr.bf16.mxu0 0
  %1989 = vmatpush1.bf16.msra.mxu0 0
  %1990 = vmatprep.subr.bf16.mxu0 0
  %1991 = vmatpush1.bf16.msra.mxu0 0
  %1992 = vmatprep.subr.bf16.mxu0 0
  %1993 = vmatpush1.bf16.msra.mxu0 0
  %1994 = vmatprep.subr.bf16.mxu0 0
  %1995 = vmatpush1.bf16.msra.mxu0 0
  %1996 = vmatprep.subr.bf16.mxu0 0
  %1997 = vmatpush1.bf16.msra.mxu0 0
  %1998 = vmatprep.subr.bf16.mxu0 0
  %1999 = vmatpush1.bf16.msra.mxu0 0
  %2000 = vmatprep.subr.bf16.mxu0 0
  %2001 = vmatpush1.bf16.msra.mxu0 0
  %2002 = vmatprep.mubr.bf16.mxu0 0
  %2003 = vmatmul.mubr.bf16.gmra.mrb[0].mxu0 %v1853
  %v2004 = vpop.f32.mrb[0].mxu0
  %v2005 = vadd.f32 0.0, %v2004
  %v2006 = vpop.f32.mrb[0].mxu0
  %v2007 = vpop.f32.mrb[0].mxu0
  %v2008 = vadd.f32 0.0, %v2007
  %v2009 = vpop.f32.mrb[0].mxu0
  %2010 = vmatprep.mubr.bf16.mxu0 0
  %2011 = vmatmul.mubr.bf16.gmra.mrb[0].mxu0 %v1856
  %v2012 = vpop.f32.mrb[0].mxu0
  %v2013 = vadd.f32 0.0, %v2012
  %v2014 = vpop.f32.mrb[0].mxu0
  %v2015 = vpop.f32.mrb[0].mxu0
  %v2016 = vadd.f32 0.0, %v2015
  %v2017 = vpop.f32.mrb[0].mxu0
  %2018 = vmatprep.mubr.bf16.mxu0 0
  %2019 = vmatmul.mubr.bf16.gmra.mrb[0].mxu0 %v1859
  %v2020 = vpop.f32.mrb[0].mxu0
  %v2021 = vadd.f32 0.0, %v2020
  %v2022 = vpop.f32.mrb[0].mxu0
  %v2023 = vpop.f32.mrb[0].mxu0
  %v2024 = vadd.f32 0.0, %v2023
  %v2025 = vpop.f32.mrb[0].mxu0
  %2026 = vmatprep.mubr.bf16.mxu0 0
  %2027 = vmatmul.mubr.bf16.gmra.mrb[0].mxu0 %v1862
  %v2028 = vpop.f32.mrb[0].mxu0
  %v2029 = vadd.f32 0.0, %v2028
  %v2030 = vpop.f32.mrb[0].mxu0
  %v2031 = vpop.f32.mrb[0].mxu0
  %v2032 = vadd.f32 0.0, %v2031
  %v2033 = vpop.f32.mrb[0].mxu0
  %2034 = vdwg.mxu0
  %v2035 = vpack.c.bf16 %v2008, %v2005
  %v2036 = vpack.c.bf16 %v2016, %v2013
  %v2037 = vpack.c.bf16 %v2024, %v2021
  %v2038 = vpack.c.bf16 %v2032, %v2029
  %2039 = vst.msk [vmem:[#allocation2 + $0x40] sm:$0xff] %vm1730, %v2035
  %2040 = vst.msk [vmem:[#allocation2 + $0x50] sm:$0xff] %vm1730, %v2036
  %2041 = vst.msk [vmem:[#allocation2 + $0x60] sm:$0xff] %vm1730, %v2037
  %2042 = vst.msk [vmem:[#allocation2 + $0x70] sm:$0xff] %vm1730, %v2038
  %s2043 = scalar_lea.vmem %s4, 64
  %v2044 = vld [vmem:[%s2043] sm:$0xf]
  %v2045 = vld [vmem:[%s2043 + $0x4] sm:$0xf]
  %v2046 = vld [vmem:[%s2043 + $0x8] sm:$0xf]
  %v2047 = vld [vmem:[%s2043 + $0xc] sm:$0xf]
  %v2048 = vld [vmem:[%s2043 + $0x10] sm:$0xf]
  %v2049 = vld [vmem:[%s2043 + $0x14] sm:$0xf]
  %v2050 = vld [vmem:[%s2043 + $0x18] sm:$0xf]
  %v2051 = vld [vmem:[%s2043 + $0x1c] sm:$0xf]
  %v2060 = vunpack.c.l.b16 %v2044
  %v2061 = vunpack.c.l.b16 %v2045
  %v2062 = vunpack.c.l.b16 %v2046
  %v2063 = vunpack.c.l.b16 %v2047
  %v2064 = vunpack.c.l.b16 %v2048
  %v2065 = vunpack.c.l.b16 %v2049
  %v2066 = vunpack.c.l.b16 %v2050
  %v2067 = vunpack.c.l.b16 %v2051
  %v2068 = vpack.c.b16 %v2061, %v2060
  %v2069 = vpack.c.b16 %v2063, %v2062
  %v2070 = vpack.c.b16 %v2065, %v2064
  %v2071 = vpack.c.b16 %v2067, %v2066
  %2076 = vmatprep.subr.bf16.mxu0 0
  %2077 = vmatpush1.bf16.msra.mxu0 %v2068
  %2078 = vmatprep.subr.bf16.mxu0 0
  %2079 = vmatpush1.bf16.msra.mxu0 %v2069
  %2080 = vmatprep.subr.bf16.mxu0 0
  %2081 = vmatpush1.bf16.msra.mxu0 %v2070
  %2082 = vmatprep.subr.bf16.mxu0 0
  %2083 = vmatpush1.bf16.msra.mxu0 %v2071
  %2084 = vmatprep.subr.bf16.mxu0 0
  %2085 = vmatpush1.bf16.msra.mxu0 0
  %2086 = vmatprep.subr.bf16.mxu0 0
  %2087 = vmatpush1.bf16.msra.mxu0 0
  %2088 = vmatprep.subr.bf16.mxu0 0
  %2089 = vmatpush1.bf16.msra.mxu0 0
  %2090 = vmatprep.subr.bf16.mxu0 0
  %2091 = vmatpush1.bf16.msra.mxu0 0
  %2092 = vmatprep.subr.bf16.mxu0 0
  %2093 = vmatpush1.bf16.msra.mxu0 0
  %2094 = vmatprep.subr.bf16.mxu0 0
  %2095 = vmatpush1.bf16.msra.mxu0 0
  %2096 = vmatprep.subr.bf16.mxu0 0
  %2097 = vmatpush1.bf16.msra.mxu0 0
  %2098 = vmatprep.subr.bf16.mxu0 0
  %2099 = vmatpush1.bf16.msra.mxu0 0
  %2100 = vmatprep.subr.bf16.mxu0 0
  %2101 = vmatpush1.bf16.msra.mxu0 0
  %2102 = vmatprep.subr.bf16.mxu0 0
  %2103 = vmatpush1.bf16.msra.mxu0 0
  %2104 = vmatprep.subr.bf16.mxu0 0
  %2105 = vmatpush1.bf16.msra.mxu0 0
  %2106 = vmatprep.subr.bf16.mxu0 0
  %2107 = vmatpush1.bf16.msra.mxu0 0
  %2108 = vmatprep.mubr.bf16.mxu0 0
  %2109 = vmatmul.mubr.bf16.gmra.mrb[0].mxu0 %v1853
  %v2110 = vpop.f32.mrb[0].mxu0
  %v2111 = vadd.f32 0.0, %v2110
  %v2112 = vpop.f32.mrb[0].mxu0
  %v2113 = vpop.f32.mrb[0].mxu0
  %v2114 = vadd.f32 0.0, %v2113
  %v2115 = vpop.f32.mrb[0].mxu0
  %2116 = vmatprep.mubr.bf16.mxu0 0
  %2117 = vmatmul.mubr.bf16.gmra.mrb[0].mxu0 %v1856
  %v2118 = vpop.f32.mrb[0].mxu0
  %v2119 = vadd.f32 0.0, %v2118
  %v2120 = vpop.f32.mrb[0].mxu0
  %v2121 = vpop.f32.mrb[0].mxu0
  %v2122 = vadd.f32 0.0, %v2121
  %v2123 = vpop.f32.mrb[0].mxu0
  %2124 = vmatprep.mubr.bf16.mxu0 0
  %2125 = vmatmul.mubr.bf16.gmra.mrb[0].mxu0 %v1859
  %v2126 = vpop.f32.mrb[0].mxu0
  %v2127 = vadd.f32 0.0, %v2126
  %v2128 = vpop.f32.mrb[0].mxu0
  %v2129 = vpop.f32.mrb[0].mxu0
  %v2130 = vadd.f32 0.0, %v2129
  %v2131 = vpop.f32.mrb[0].mxu0
  %2132 = vmatprep.mubr.bf16.mxu0 0
  %2133 = vmatmul.mubr.bf16.gmra.mrb[0].mxu0 %v1862
  %v2134 = vpop.f32.mrb[0].mxu0
  %v2135 = vadd.f32 0.0, %v2134
  %v2136 = vpop.f32.mrb[0].mxu0
  %v2137 = vpop.f32.mrb[0].mxu0
  %v2138 = vadd.f32 0.0, %v2137
  %v2139 = vpop.f32.mrb[0].mxu0
  %2140 = vdwg.mxu0
  %v2141 = vpack.c.bf16 %v2114, %v2111
  %v2142 = vpack.c.bf16 %v2122, %v2119
  %v2143 = vpack.c.bf16 %v2130, %v2127
  %v2144 = vpack.c.bf16 %v2138, %v2135
  %2145 = vst.msk [vmem:[#allocation2 + $0x80] sm:$0xff] %vm1730, %v2141
  %2146 = vst.msk [vmem:[#allocation2 + $0x90] sm:$0xff] %vm1730, %v2142
  %2147 = vst.msk [vmem:[#allocation2 + $0xa0] sm:$0xff] %vm1730, %v2143
  %2148 = vst.msk [vmem:[#allocation2 + $0xb0] sm:$0xff] %vm1730, %v2144
  %s2149 = scalar_lea.vmem %s4, 96
  %v2150 = vld [vmem:[%s2149] sm:$0xf]
  %v2151 = vld [vmem:[%s2149 + $0x4] sm:$0xf]
  %v2152 = vld [vmem:[%s2149 + $0x8] sm:$0xf]
  %v2153 = vld [vmem:[%s2149 + $0xc] sm:$0xf]
  %v2154 = vld [vmem:[%s2149 + $0x10] sm:$0xf]
  %v2155 = vld [vmem:[%s2149 + $0x14] sm:$0xf]
  %v2156 = vld [vmem:[%s2149 + $0x18] sm:$0xf]
  %v2157 = vld [vmem:[%s2149 + $0x1c] sm:$0xf]
  %v2166 = vunpack.c.l.b16 %v2150
  %v2167 = vunpack.c.l.b16 %v2151
  %v2168 = vunpack.c.l.b16 %v2152
  %v2169 = vunpack.c.l.b16 %v2153
  %v2170 = vunpack.c.l.b16 %v2154
  %v2171 = vunpack.c.l.b16 %v2155
  %v2172 = vunpack.c.l.b16 %v2156
  %v2173 = vunpack.c.l.b16 %v2157
  %v2174 = vpack.c.b16 %v2167, %v2166
  %v2175 = vpack.c.b16 %v2169, %v2168
  %v2176 = vpack.c.b16 %v2171, %v2170
  %v2177 = vpack.c.b16 %v2173, %v2172
  %2182 = vmatprep.subr.bf16.mxu0 0
  %2183 = vmatpush1.bf16.msra.mxu0 %v2174
  %2184 = vmatprep.subr.bf16.mxu0 0
  %2185 = vmatpush1.bf16.msra.mxu0 %v2175
  %2186 = vmatprep.subr.bf16.mxu0 0
  %2187 = vmatpush1.bf16.msra.mxu0 %v2176
  %2188 = vmatprep.subr.bf16.mxu0 0
  %2189 = vmatpush1.bf16.msra.mxu0 %v2177
  %2190 = vmatprep.subr.bf16.mxu0 0
  %2191 = vmatpush1.bf16.msra.mxu0 0
  %2192 = vmatprep.subr.bf16.mxu0 0
  %2193 = vmatpush1.bf16.msra.mxu0 0
  %2194 = vmatprep.subr.bf16.mxu0 0
  %2195 = vmatpush1.bf16.msra.mxu0 0
  %2196 = vmatprep.subr.bf16.mxu0 0
  %2197 = vmatpush1.bf16.msra.mxu0 0
  %2198 = vmatprep.subr.bf16.mxu0 0
  %2199 = vmatpush1.bf16.msra.mxu0 0
  %2200 = vmatprep.subr.bf16.mxu0 0
  %2201 = vmatpush1.bf16.msra.mxu0 0
  %2202 = vmatprep.subr.bf16.mxu0 0
  %2203 = vmatpush1.bf16.msra.mxu0 0
  %2204 = vmatprep.subr.bf16.mxu0 0
  %2205 = vmatpush1.bf16.msra.mxu0 0
  %2206 = vmatprep.subr.bf16.mxu0 0
  %2207 = vmatpush1.bf16.msra.mxu0 0
  %2208 = vmatprep.subr.bf16.mxu0 0
  %2209 = vmatpush1.bf16.msra.mxu0 0
  %2210 = vmatprep.subr.bf16.mxu0 0
  %2211 = vmatpush1.bf16.msra.mxu0 0
  %2212 = vmatprep.subr.bf16.mxu0 0
  %2213 = vmatpush1.bf16.msra.mxu0 0
  %2214 = vmatprep.mubr.bf16.mxu0 0
  %2215 = vmatmul.mubr.bf16.gmra.mrb[0].mxu0 %v1853
  %v2216 = vpop.f32.mrb[0].mxu0
  %v2217 = vadd.f32 0.0, %v2216
  %v2218 = vpop.f32.mrb[0].mxu0
  %v2219 = vpop.f32.mrb[0].mxu0
  %v2220 = vadd.f32 0.0, %v2219
  %v2221 = vpop.f32.mrb[0].mxu0
  %2222 = vmatprep.mubr.bf16.mxu0 0
  %2223 = vmatmul.mubr.bf16.gmra.mrb[0].mxu0 %v1856
  %v2224 = vpop.f32.mrb[0].mxu0
  %v2225 = vadd.f32 0.0, %v2224
  %v2226 = vpop.f32.mrb[0].mxu0
  %v2227 = vpop.f32.mrb[0].mxu0
  %v2228 = vadd.f32 0.0, %v2227
  %v2229 = vpop.f32.mrb[0].mxu0
  %2230 = vmatprep.mubr.bf16.mxu0 0
  %2231 = vmatmul.mubr.bf16.gmra.mrb[0].mxu0 %v1859
  %v2232 = vpop.f32.mrb[0].mxu0
  %v2233 = vadd.f32 0.0, %v2232
  %v2234 = vpop.f32.mrb[0].mxu0
  %v2235 = vpop.f32.mrb[0].mxu0
  %v2236 = vadd.f32 0.0, %v2235
  %v2237 = vpop.f32.mrb[0].mxu0
  %2238 = vmatprep.mubr.bf16.mxu0 0
  %2239 = vmatmul.mubr.bf16.gmra.mrb[0].mxu0 %v1862
  %v2240 = vpop.f32.mrb[0].mxu0
  %v2241 = vadd.f32 0.0, %v2240
  %v2242 = vpop.f32.mrb[0].mxu0
  %v2243 = vpop.f32.mrb[0].mxu0
  %v2244 = vadd.f32 0.0, %v2243
  %v2245 = vpop.f32.mrb[0].mxu0
  %2246 = vdwg.mxu0
  %v2247 = vpack.c.bf16 %v2220, %v2217
  %v2248 = vpack.c.bf16 %v2228, %v2225
  %v2249 = vpack.c.bf16 %v2236, %v2233
  %v2250 = vpack.c.bf16 %v2244, %v2241
  %2251 = vst.msk [vmem:[#allocation2 + $0xc0] sm:$0xff] %vm1730, %v2247
  %2252 = vst.msk [vmem:[#allocation2 + $0xd0] sm:$0xff] %vm1730, %v2248
  %2253 = vst.msk [vmem:[#allocation2 + $0xe0] sm:$0xff] %vm1730, %v2249
  %2254 = vst.msk [vmem:[#allocation2 + $0xf0] sm:$0xff] %vm1730, %v2250
  %s2255 = scalar_lea.vmem %s4, 128
  %v2256 = vld [vmem:[%s2255] sm:$0xf]
  %v2257 = vld [vmem:[%s2255 + $0x4] sm:$0xf]
  %v2258 = vld [vmem:[%s2255 + $0x8] sm:$0xf]
  %v2259 = vld [vmem:[%s2255 + $0xc] sm:$0xf]
  %v2260 = vld [vmem:[%s2255 + $0x10] sm:$0xf]
  %v2261 = vld [vmem:[%s2255 + $0x14] sm:$0xf]
  %v2262 = vld [vmem:[%s2255 + $0x18] sm:$0xf]
  %v2263 = vld [vmem:[%s2255 + $0x1c] sm:$0xf]
  %v2272 = vunpack.c.l.b16 %v2256
  %v2273 = vunpack.c.l.b16 %v2257
  %v2274 = vunpack.c.l.b16 %v2258
  %v2275 = vunpack.c.l.b16 %v2259
  %v2276 = vunpack.c.l.b16 %v2260
  %v2277 = vunpack.c.l.b16 %v2261
  %v2278 = vunpack.c.l.b16 %v2262
  %v2279 = vunpack.c.l.b16 %v2263
  %v2280 = vpack.c.b16 %v2273, %v2272
  %v2281 = vpack.c.b16 %v2275, %v2274
  %v2282 = vpack.c.b16 %v2277, %v2276
  %v2283 = vpack.c.b16 %v2279, %v2278
  %2288 = vmatprep.subr.bf16.mxu0 0
  %2289 = vmatpush1.bf16.msra.mxu0 %v2280
  %2290 = vmatprep.subr.bf16.mxu0 0
  %2291 = vmatpush1.bf16.msra.mxu0 %v2281
  %2292 = vmatprep.subr.bf16.mxu0 0
  %2293 = vmatpush1.bf16.msra.mxu0 %v2282
  %2294 = vmatprep.subr.bf16.mxu0 0
  %2295 = vmatpush1.bf16.msra.mxu0 %v2283
  %2296 = vmatprep.subr.bf16.mxu0 0
  %2297 = vmatpush1.bf16.msra.mxu0 0
  %2298 = vmatprep.subr.bf16.mxu0 0
  %2299 = vmatpush1.bf16.msra.mxu0 0
  %2300 = vmatprep.subr.bf16.mxu0 0
  %2301 = vmatpush1.bf16.msra.mxu0 0
  %2302 = vmatprep.subr.bf16.mxu0 0
  %2303 = vmatpush1.bf16.msra.mxu0 0
  %2304 = vmatprep.subr.bf16.mxu0 0
  %2305 = vmatpush1.bf16.msra.mxu0 0
  %2306 = vmatprep.subr.bf16.mxu0 0
  %2307 = vmatpush1.bf16.msra.mxu0 0
  %2308 = vmatprep.subr.bf16.mxu0 0
  %2309 = vmatpush1.bf16.msra.mxu0 0
  %2310 = vmatprep.subr.bf16.mxu0 0
  %2311 = vmatpush1.bf16.msra.mxu0 0
  %2312 = vmatprep.subr.bf16.mxu0 0
  %2313 = vmatpush1.bf16.msra.mxu0 0
  %2314 = vmatprep.subr.bf16.mxu0 0
  %2315 = vmatpush1.bf16.msra.mxu0 0
  %2316 = vmatprep.subr.bf16.mxu0 0
  %2317 = vmatpush1.bf16.msra.mxu0 0
  %2318 = vmatprep.subr.bf16.mxu0 0
  %2319 = vmatpush1.bf16.msra.mxu0 0
  %2320 = vmatprep.mubr.bf16.mxu0 0
  %2321 = vmatmul.mubr.bf16.gmra.mrb[0].mxu0 %v1853
  %v2322 = vpop.f32.mrb[0].mxu0
  %v2323 = vadd.f32 0.0, %v2322
  %v2324 = vpop.f32.mrb[0].mxu0
  %v2325 = vpop.f32.mrb[0].mxu0
  %v2326 = vadd.f32 0.0, %v2325
  %v2327 = vpop.f32.mrb[0].mxu0
  %2328 = vmatprep.mubr.bf16.mxu0 0
  %2329 = vmatmul.mubr.bf16.gmra.mrb[0].mxu0 %v1856
  %v2330 = vpop.f32.mrb[0].mxu0
  %v2331 = vadd.f32 0.0, %v2330
  %v2332 = vpop.f32.mrb[0].mxu0
  %v2333 = vpop.f32.mrb[0].mxu0
  %v2334 = vadd.f32 0.0, %v2333
  %v2335 = vpop.f32.mrb[0].mxu0
  %2336 = vmatprep.mubr.bf16.mxu0 0
  %2337 = vmatmul.mubr.bf16.gmra.mrb[0].mxu0 %v1859
  %v2338 = vpop.f32.mrb[0].mxu0
  %v2339 = vadd.f32 0.0, %v2338
  %v2340 = vpop.f32.mrb[0].mxu0
  %v2341 = vpop.f32.mrb[0].mxu0
  %v2342 = vadd.f32 0.0, %v2341
  %v2343 = vpop.f32.mrb[0].mxu0
  %2344 = vmatprep.mubr.bf16.mxu0 0
  %2345 = vmatmul.mubr.bf16.gmra.mrb[0].mxu0 %v1862
  %v2346 = vpop.f32.mrb[0].mxu0
  %v2347 = vadd.f32 0.0, %v2346
  %v2348 = vpop.f32.mrb[0].mxu0
  %v2349 = vpop.f32.mrb[0].mxu0
  %v2350 = vadd.f32 0.0, %v2349
  %v2351 = vpop.f32.mrb[0].mxu0
  %2352 = vdwg.mxu0
  %v2353 = vpack.c.bf16 %v2326, %v2323
  %v2354 = vpack.c.bf16 %v2334, %v2331
  %v2355 = vpack.c.bf16 %v2342, %v2339
  %v2356 = vpack.c.bf16 %v2350, %v2347
  %2357 = vst.msk [vmem:[#allocation2 + $0x100] sm:$0xff] %vm1730, %v2353
  %2358 = vst.msk [vmem:[#allocation2 + $0x110] sm:$0xff] %vm1730, %v2354
  %2359 = vst.msk [vmem:[#allocation2 + $0x120] sm:$0xff] %vm1730, %v2355
  %2360 = vst.msk [vmem:[#allocation2 + $0x130] sm:$0xff] %vm1730, %v2356
  %s2361 = scalar_lea.vmem %s4, 160
  %v2362 = vld [vmem:[%s2361] sm:$0xf]
  %v2363 = vld [vmem:[%s2361 + $0x4] sm:$0xf]
  %v2364 = vld [vmem:[%s2361 + $0x8] sm:$0xf]
  %v2365 = vld [vmem:[%s2361 + $0xc] sm:$0xf]
  %v2366 = vld [vmem:[%s2361 + $0x10] sm:$0xf]
  %v2367 = vld [vmem:[%s2361 + $0x14] sm:$0xf]
  %v2368 = vld [vmem:[%s2361 + $0x18] sm:$0xf]
  %v2369 = vld [vmem:[%s2361 + $0x1c] sm:$0xf]
  %v2378 = vunpack.c.l.b16 %v2362
  %v2379 = vunpack.c.l.b16 %v2363
  %v2380 = vunpack.c.l.b16 %v2364
  %v2381 = vunpack.c.l.b16 %v2365
  %v2382 = vunpack.c.l.b16 %v2366
  %v2383 = vunpack.c.l.b16 %v2367
  %v2384 = vunpack.c.l.b16 %v2368
  %v2385 = vunpack.c.l.b16 %v2369
  %v2386 = vpack.c.b16 %v2379, %v2378
  %v2387 = vpack.c.b16 %v2381, %v2380
  %v2388 = vpack.c.b16 %v2383, %v2382
  %v2389 = vpack.c.b16 %v2385, %v2384
  %2394 = vmatprep.subr.bf16.mxu0 0
  %2395 = vmatpush1.bf16.msra.mxu0 %v2386
  %2396 = vmatprep.subr.bf16.mxu0 0
  %2397 = vmatpush1.bf16.msra.mxu0 %v2387
  %2398 = vmatprep.subr.bf16.mxu0 0
  %2399 = vmatpush1.bf16.msra.mxu0 %v2388
  %2400 = vmatprep.subr.bf16.mxu0 0
  %2401 = vmatpush1.bf16.msra.mxu0 %v2389
  %2402 = vmatprep.subr.bf16.mxu0 0
  %2403 = vmatpush1.bf16.msra.mxu0 0
  %2404 = vmatprep.subr.bf16.mxu0 0
  %2405 = vmatpush1.bf16.msra.mxu0 0
  %2406 = vmatprep.subr.bf16.mxu0 0
  %2407 = vmatpush1.bf16.msra.mxu0 0
  %2408 = vmatprep.subr.bf16.mxu0 0
  %2409 = vmatpush1.bf16.msra.mxu0 0
  %2410 = vmatprep.subr.bf16.mxu0 0
  %2411 = vmatpush1.bf16.msra.mxu0 0
  %2412 = vmatprep.subr.bf16.mxu0 0
  %2413 = vmatpush1.bf16.msra.mxu0 0
  %2414 = vmatprep.subr.bf16.mxu0 0
  %2415 = vmatpush1.bf16.msra.mxu0 0
  %2416 = vmatprep.subr.bf16.mxu0 0
  %2417 = vmatpush1.bf16.msra.mxu0 0
  %2418 = vmatprep.subr.bf16.mxu0 0
  %2419 = vmatpush1.bf16.msra.mxu0 0
  %2420 = vmatprep.subr.bf16.mxu0 0
  %2421 = vmatpush1.bf16.msra.mxu0 0
  %2422 = vmatprep.subr.bf16.mxu0 0
  %2423 = vmatpush1.bf16.msra.mxu0 0
  %2424 = vmatprep.subr.bf16.mxu0 0
  %2425 = vmatpush1.bf16.msra.mxu0 0
  %2426 = vmatprep.mubr.bf16.mxu0 0
  %2427 = vmatmul.mubr.bf16.gmra.mrb[0].mxu0 %v1853
  %v2428 = vpop.f32.mrb[0].mxu0
  %v2429 = vadd.f32 0.0, %v2428
  %v2430 = vpop.f32.mrb[0].mxu0
  %v2431 = vpop.f32.mrb[0].mxu0
  %v2432 = vadd.f32 0.0, %v2431
  %v2433 = vpop.f32.mrb[0].mxu0
  %2434 = vmatprep.mubr.bf16.mxu0 0
  %2435 = vmatmul.mubr.bf16.gmra.mrb[0].mxu0 %v1856
  %v2436 = vpop.f32.mrb[0].mxu0
  %v2437 = vadd.f32 0.0, %v2436
  %v2438 = vpop.f32.mrb[0].mxu0
  %v2439 = vpop.f32.mrb[0].mxu0
  %v2440 = vadd.f32 0.0, %v2439
  %v2441 = vpop.f32.mrb[0].mxu0
  %2442 = vmatprep.mubr.bf16.mxu0 0
  %2443 = vmatmul.mubr.bf16.gmra.mrb[0].mxu0 %v1859
  %v2444 = vpop.f32.mrb[0].mxu0
  %v2445 = vadd.f32 0.0, %v2444
  %v2446 = vpop.f32.mrb[0].mxu0
  %v2447 = vpop.f32.mrb[0].mxu0
  %v2448 = vadd.f32 0.0, %v2447
  %v2449 = vpop.f32.mrb[0].mxu0
  %2450 = vmatprep.mubr.bf16.mxu0 0
  %2451 = vmatmul.mubr.bf16.gmra.mrb[0].mxu0 %v1862
  %v2452 = vpop.f32.mrb[0].mxu0
  %v2453 = vadd.f32 0.0, %v2452
  %v2454 = vpop.f32.mrb[0].mxu0
  %v2455 = vpop.f32.mrb[0].mxu0
  %v2456 = vadd.f32 0.0, %v2455
  %v2457 = vpop.f32.mrb[0].mxu0
  %2458 = vdwg.mxu0
  %v2459 = vpack.c.bf16 %v2432, %v2429
  %v2460 = vpack.c.bf16 %v2440, %v2437
  %v2461 = vpack.c.bf16 %v2448, %v2445
  %v2462 = vpack.c.bf16 %v2456, %v2453
  %2463 = vst.msk [vmem:[#allocation2 + $0x140] sm:$0xff] %vm1730, %v2459
  %2464 = vst.msk [vmem:[#allocation2 + $0x150] sm:$0xff] %vm1730, %v2460
  %2465 = vst.msk [vmem:[#allocation2 + $0x160] sm:$0xff] %vm1730, %v2461
  %2466 = vst.msk [vmem:[#allocation2 + $0x170] sm:$0xff] %vm1730, %v2462
  %s2467 = scalar_lea.vmem %s4, 192
  %v2468 = vld [vmem:[%s2467] sm:$0xf]
  %v2469 = vld [vmem:[%s2467 + $0x4] sm:$0xf]
  %v2470 = vld [vmem:[%s2467 + $0x8] sm:$0xf]
  %v2471 = vld [vmem:[%s2467 + $0xc] sm:$0xf]
  %v2472 = vld [vmem:[%s2467 + $0x10] sm:$0xf]
  %v2473 = vld [vmem:[%s2467 + $0x14] sm:$0xf]
  %v2474 = vld [vmem:[%s2467 + $0x18] sm:$0xf]
  %v2475 = vld [vmem:[%s2467 + $0x1c] sm:$0xf]
  %v2484 = vunpack.c.l.b16 %v2468
  %v2485 = vunpack.c.l.b16 %v2469
  %v2486 = vunpack.c.l.b16 %v2470
  %v2487 = vunpack.c.l.b16 %v2471
  %v2488 = vunpack.c.l.b16 %v2472
  %v2489 = vunpack.c.l.b16 %v2473
  %v2490 = vunpack.c.l.b16 %v2474
  %v2491 = vunpack.c.l.b16 %v2475
  %v2492 = vpack.c.b16 %v2485, %v2484
  %v2493 = vpack.c.b16 %v2487, %v2486
  %v2494 = vpack.c.b16 %v2489, %v2488
  %v2495 = vpack.c.b16 %v2491, %v2490
  %2500 = vmatprep.subr.bf16.mxu0 0
  %2501 = vmatpush1.bf16.msra.mxu0 %v2492
  %2502 = vmatprep.subr.bf16.mxu0 0
  %2503 = vmatpush1.bf16.msra.mxu0 %v2493
  %2504 = vmatprep.subr.bf16.mxu0 0
  %2505 = vmatpush1.bf16.msra.mxu0 %v2494
  %2506 = vmatprep.subr.bf16.mxu0 0
  %2507 = vmatpush1.bf16.msra.mxu0 %v2495
  %2508 = vmatprep.subr.bf16.mxu0 0
  %2509 = vmatpush1.bf16.msra.mxu0 0
  %2510 = vmatprep.subr.bf16.mxu0 0
  %2511 = vmatpush1.bf16.msra.mxu0 0
  %2512 = vmatprep.subr.bf16.mxu0 0
  %2513 = vmatpush1.bf16.msra.mxu0 0
  %2514 = vmatprep.subr.bf16.mxu0 0
  %2515 = vmatpush1.bf16.msra.mxu0 0
  %2516 = vmatprep.subr.bf16.mxu0 0
  %2517 = vmatpush1.bf16.msra.mxu0 0
  %2518 = vmatprep.subr.bf16.mxu0 0
  %2519 = vmatpush1.bf16.msra.mxu0 0
  %2520 = vmatprep.subr.bf16.mxu0 0
  %2521 = vmatpush1.bf16.msra.mxu0 0
  %2522 = vmatprep.subr.bf16.mxu0 0
  %2523 = vmatpush1.bf16.msra.mxu0 0
  %2524 = vmatprep.subr.bf16.mxu0 0
  %2525 = vmatpush1.bf16.msra.mxu0 0
  %2526 = vmatprep.subr.bf16.mxu0 0
  %2527 = vmatpush1.bf16.msra.mxu0 0
  %2528 = vmatprep.subr.bf16.mxu0 0
  %2529 = vmatpush1.bf16.msra.mxu0 0
  %2530 = vmatprep.subr.bf16.mxu0 0
  %2531 = vmatpush1.bf16.msra.mxu0 0
  %2532 = vmatprep.mubr.bf16.mxu0 0
  %2533 = vmatmul.mubr.bf16.gmra.mrb[0].mxu0 %v1853
  %v2534 = vpop.f32.mrb[0].mxu0
  %v2535 = vadd.f32 0.0, %v2534
  %v2536 = vpop.f32.mrb[0].mxu0
  %v2537 = vpop.f32.mrb[0].mxu0
  %v2538 = vadd.f32 0.0, %v2537
  %v2539 = vpop.f32.mrb[0].mxu0
  %2540 = vmatprep.mubr.bf16.mxu0 0
  %2541 = vmatmul.mubr.bf16.gmra.mrb[0].mxu0 %v1856
  %v2542 = vpop.f32.mrb[0].mxu0
  %v2543 = vadd.f32 0.0, %v2542
  %v2544 = vpop.f32.mrb[0].mxu0
  %v2545 = vpop.f32.mrb[0].mxu0
  %v2546 = vadd.f32 0.0, %v2545
  %v2547 = vpop.f32.mrb[0].mxu0
  %2548 = vmatprep.mubr.bf16.mxu0 0
  %2549 = vmatmul.mubr.bf16.gmra.mrb[0].mxu0 %v1859
  %v2550 = vpop.f32.mrb[0].mxu0
  %v2551 = vadd.f32 0.0, %v2550
  %v2552 = vpop.f32.mrb[0].mxu0
  %v2553 = vpop.f32.mrb[0].mxu0
  %v2554 = vadd.f32 0.0, %v2553
  %v2555 = vpop.f32.mrb[0].mxu0
  %2556 = vmatprep.mubr.bf16.mxu0 0
  %2557 = vmatmul.mubr.bf16.gmra.mrb[0].mxu0 %v1862
  %v2558 = vpop.f32.mrb[0].mxu0
  %v2559 = vadd.f32 0.0, %v2558
  %v2560 = vpop.f32.mrb[0].mxu0
  %v2561 = vpop.f32.mrb[0].mxu0
  %v2562 = vadd.f32 0.0, %v2561
  %v2563 = vpop.f32.mrb[0].mxu0
  %2564 = vdwg.mxu0
  %v2565 = vpack.c.bf16 %v2538, %v2535
  %v2566 = vpack.c.bf16 %v2546, %v2543
  %v2567 = vpack.c.bf16 %v2554, %v2551
  %v2568 = vpack.c.bf16 %v2562, %v2559
  %2569 = vst.msk [vmem:[#allocation2 + $0x180] sm:$0xff] %vm1730, %v2565
  %2570 = vst.msk [vmem:[#allocation2 + $0x190] sm:$0xff] %vm1730, %v2566
  %2571 = vst.msk [vmem:[#allocation2 + $0x1a0] sm:$0xff] %vm1730, %v2567
  %2572 = vst.msk [vmem:[#allocation2 + $0x1b0] sm:$0xff] %vm1730, %v2568
  %s2573 = scalar_lea.vmem %s4, 224
  %v2574 = vld [vmem:[%s2573] sm:$0xf]
  %v2575 = vld [vmem:[%s2573 + $0x4] sm:$0xf]
  %v2576 = vld [vmem:[%s2573 + $0x8] sm:$0xf]
  %v2577 = vld [vmem:[%s2573 + $0xc] sm:$0xf]
  %v2578 = vld [vmem:[%s2573 + $0x10] sm:$0xf]
  %v2579 = vld [vmem:[%s2573 + $0x14] sm:$0xf]
  %v2580 = vld [vmem:[%s2573 + $0x18] sm:$0xf]
  %v2581 = vld [vmem:[%s2573 + $0x1c] sm:$0xf]
  %v2590 = vunpack.c.l.b16 %v2574
  %v2591 = vunpack.c.l.b16 %v2575
  %v2592 = vunpack.c.l.b16 %v2576
  %v2593 = vunpack.c.l.b16 %v2577
  %v2594 = vunpack.c.l.b16 %v2578
  %v2595 = vunpack.c.l.b16 %v2579
  %v2596 = vunpack.c.l.b16 %v2580
  %v2597 = vunpack.c.l.b16 %v2581
  %v2598 = vpack.c.b16 %v2591, %v2590
  %v2599 = vpack.c.b16 %v2593, %v2592
  %v2600 = vpack.c.b16 %v2595, %v2594
  %v2601 = vpack.c.b16 %v2597, %v2596
  %2606 = vmatprep.subr.bf16.mxu0 0
  %2607 = vmatpush1.bf16.msra.mxu0 %v2598
  %2608 = vmatprep.subr.bf16.mxu0 0
  %2609 = vmatpush1.bf16.msra.mxu0 %v2599
  %2610 = vmatprep.subr.bf16.mxu0 0
  %2611 = vmatpush1.bf16.msra.mxu0 %v2600
  %2612 = vmatprep.subr.bf16.mxu0 0
  %2613 = vmatpush1.bf16.msra.mxu0 %v2601
  %2614 = vmatprep.subr.bf16.mxu0 0
  %2615 = vmatpush1.bf16.msra.mxu0 0
  %2616 = vmatprep.subr.bf16.mxu0 0
  %2617 = vmatpush1.bf16.msra.mxu0 0
  %2618 = vmatprep.subr.bf16.mxu0 0
  %2619 = vmatpush1.bf16.msra.mxu0 0
  %2620 = vmatprep.subr.bf16.mxu0 0
  %2621 = vmatpush1.bf16.msra.mxu0 0
  %2622 = vmatprep.subr.bf16.mxu0 0
  %2623 = vmatpush1.bf16.msra.mxu0 0
  %2624 = vmatprep.subr.bf16.mxu0 0
  %2625 = vmatpush1.bf16.msra.mxu0 0
  %2626 = vmatprep.subr.bf16.mxu0 0
  %2627 = vmatpush1.bf16.msra.mxu0 0
  %2628 = vmatprep.subr.bf16.mxu0 0
  %2629 = vmatpush1.bf16.msra.mxu0 0
  %2630 = vmatprep.subr.bf16.mxu0 0
  %2631 = vmatpush1.bf16.msra.mxu0 0
  %2632 = vmatprep.subr.bf16.mxu0 0
  %2633 = vmatpush1.bf16.msra.mxu0 0
  %2634 = vmatprep.subr.bf16.mxu0 0
  %2635 = vmatpush1.bf16.msra.mxu0 0
  %2636 = vmatprep.subr.bf16.mxu0 0
  %2637 = vmatpush1.bf16.msra.mxu0 0
  %2638 = vmatprep.mubr.bf16.mxu0 0
  %2639 = vmatmul.mubr.bf16.gmra.mrb[0].mxu0 %v1853
  %v2640 = vpop.f32.mrb[0].mxu0
  %v2641 = vadd.f32 0.0, %v2640
  %v2642 = vpop.f32.mrb[0].mxu0
  %v2643 = vpop.f32.mrb[0].mxu0
  %v2644 = vadd.f32 0.0, %v2643
  %v2645 = vpop.f32.mrb[0].mxu0
  %2646 = vmatprep.mubr.bf16.mxu0 0
  %2647 = vmatmul.mubr.bf16.gmra.mrb[0].mxu0 %v1856
  %v2648 = vpop.f32.mrb[0].mxu0
  %v2649 = vadd.f32 0.0, %v2648
  %v2650 = vpop.f32.mrb[0].mxu0
  %v2651 = vpop.f32.mrb[0].mxu0
  %v2652 = vadd.f32 0.0, %v2651
  %v2653 = vpop.f32.mrb[0].mxu0
  %2654 = vmatprep.mubr.bf16.mxu0 0
  %2655 = vmatmul.mubr.bf16.gmra.mrb[0].mxu0 %v1859
  %v2656 = vpop.f32.mrb[0].mxu0
  %v2657 = vadd.f32 0.0, %v2656
  %v2658 = vpop.f32.mrb[0].mxu0
  %v2659 = vpop.f32.mrb[0].mxu0
  %v2660 = vadd.f32 0.0, %v2659
  %v2661 = vpop.f32.mrb[0].mxu0
  %2662 = vmatprep.mubr.bf16.mxu0 0
  %2663 = vmatmul.mubr.bf16.gmra.mrb[0].mxu0 %v1862
  %v2664 = vpop.f32.mrb[0].mxu0
  %v2665 = vadd.f32 0.0, %v2664
  %v2666 = vpop.f32.mrb[0].mxu0
  %v2667 = vpop.f32.mrb[0].mxu0
  %v2668 = vadd.f32 0.0, %v2667
  %v2669 = vpop.f32.mrb[0].mxu0
  %2670 = vdwg.mxu0
  %v2671 = vpack.c.bf16 %v2644, %v2641
  %v2672 = vpack.c.bf16 %v2652, %v2649
  %v2673 = vpack.c.bf16 %v2660, %v2657
  %v2674 = vpack.c.bf16 %v2668, %v2665
  %2675 = vst.msk [vmem:[#allocation2 + $0x1c0] sm:$0xff] %vm1730, %v2671
  %2676 = vst.msk [vmem:[#allocation2 + $0x1d0] sm:$0xff] %vm1730, %v2672
  %2677 = vst.msk [vmem:[#allocation2 + $0x1e0] sm:$0xff] %vm1730, %v2673
  %2678 = vst.msk [vmem:[#allocation2 + $0x1f0] sm:$0xff] %vm1730, %v2674
  %s2679 = scalar_lea.vmem %s4, 256
  %v2680 = vld [vmem:[%s2679] sm:$0xf]
  %v2681 = vld [vmem:[%s2679 + $0x4] sm:$0xf]
  %v2682 = vld [vmem:[%s2679 + $0x8] sm:$0xf]
  %v2683 = vld [vmem:[%s2679 + $0xc] sm:$0xf]
  %v2684 = vld [vmem:[%s2679 + $0x10] sm:$0xf]
  %v2685 = vld [vmem:[%s2679 + $0x14] sm:$0xf]
  %v2686 = vld [vmem:[%s2679 + $0x18] sm:$0xf]
  %v2687 = vld [vmem:[%s2679 + $0x1c] sm:$0xf]
  %v2696 = vunpack.c.l.b16 %v2680
  %v2697 = vunpack.c.l.b16 %v2681
  %v2698 = vunpack.c.l.b16 %v2682
  %v2699 = vunpack.c.l.b16 %v2683
  %v2700 = vunpack.c.l.b16 %v2684
  %v2701 = vunpack.c.l.b16 %v2685
  %v2702 = vunpack.c.l.b16 %v2686
  %v2703 = vunpack.c.l.b16 %v2687
  %v2704 = vpack.c.b16 %v2697, %v2696
  %v2705 = vpack.c.b16 %v2699, %v2698
  %v2706 = vpack.c.b16 %v2701, %v2700
  %v2707 = vpack.c.b16 %v2703, %v2702
  %2712 = vmatprep.subr.bf16.mxu0 0
  %2713 = vmatpush1.bf16.msra.mxu0 %v2704
  %2714 = vmatprep.subr.bf16.mxu0 0
  %2715 = vmatpush1.bf16.msra.mxu0 %v2705
  %2716 = vmatprep.subr.bf16.mxu0 0
  %2717 = vmatpush1.bf16.msra.mxu0 %v2706
  %2718 = vmatprep.subr.bf16.mxu0 0
  %2719 = vmatpush1.bf16.msra.mxu0 %v2707
  %2720 = vmatprep.subr.bf16.mxu0 0
  %2721 = vmatpush1.bf16.msra.mxu0 0
  %2722 = vmatprep.subr.bf16.mxu0 0
  %2723 = vmatpush1.bf16.msra.mxu0 0
  %2724 = vmatprep.subr.bf16.mxu0 0
  %2725 = vmatpush1.bf16.msra.mxu0 0
  %2726 = vmatprep.subr.bf16.mxu0 0
  %2727 = vmatpush1.bf16.msra.mxu0 0
  %2728 = vmatprep.subr.bf16.mxu0 0
  %2729 = vmatpush1.bf16.msra.mxu0 0
  %2730 = vmatprep.subr.bf16.mxu0 0
  %2731 = vmatpush1.bf16.msra.mxu0 0
  %2732 = vmatprep.subr.bf16.mxu0 0
  %2733 = vmatpush1.bf16.msra.mxu0 0
  %2734 = vmatprep.subr.bf16.mxu0 0
  %2735 = vmatpush1.bf16.msra.mxu0 0
  %2736 = vmatprep.subr.bf16.mxu0 0
  %2737 = vmatpush1.bf16.msra.mxu0 0
  %2738 = vmatprep.subr.bf16.mxu0 0
  %2739 = vmatpush1.bf16.msra.mxu0 0
  %2740 = vmatprep.subr.bf16.mxu0 0
  %2741 = vmatpush1.bf16.msra.mxu0 0
  %2742 = vmatprep.subr.bf16.mxu0 0
  %2743 = vmatpush1.bf16.msra.mxu0 0
  %2744 = vmatprep.mubr.bf16.mxu0 0
  %2745 = vmatmul.mubr.bf16.gmra.mrb[0].mxu0 %v1853
  %v2746 = vpop.f32.mrb[0].mxu0
  %v2747 = vadd.f32 0.0, %v2746
  %v2748 = vpop.f32.mrb[0].mxu0
  %v2749 = vpop.f32.mrb[0].mxu0
  %v2750 = vadd.f32 0.0, %v2749
  %v2751 = vpop.f32.mrb[0].mxu0
  %2752 = vmatprep.mubr.bf16.mxu0 0
  %2753 = vmatmul.mubr.bf16.gmra.mrb[0].mxu0 %v1856
  %v2754 = vpop.f32.mrb[0].mxu0
  %v2755 = vadd.f32 0.0, %v2754
  %v2756 = vpop.f32.mrb[0].mxu0
  %v2757 = vpop.f32.mrb[0].mxu0
  %v2758 = vadd.f32 0.0, %v2757
  %v2759 = vpop.f32.mrb[0].mxu0
  %2760 = vmatprep.mubr.bf16.mxu0 0
  %2761 = vmatmul.mubr.bf16.gmra.mrb[0].mxu0 %v1859
  %v2762 = vpop.f32.mrb[0].mxu0
  %v2763 = vadd.f32 0.0, %v2762
  %v2764 = vpop.f32.mrb[0].mxu0
  %v2765 = vpop.f32.mrb[0].mxu0
  %v2766 = vadd.f32 0.0, %v2765
  %v2767 = vpop.f32.mrb[0].mxu0
  %2768 = vmatprep.mubr.bf16.mxu0 0
  %2769 = vmatmul.mubr.bf16.gmra.mrb[0].mxu0 %v1862
  %v2770 = vpop.f32.mrb[0].mxu0
  %v2771 = vadd.f32 0.0, %v2770
  %v2772 = vpop.f32.mrb[0].mxu0
  %v2773 = vpop.f32.mrb[0].mxu0
  %v2774 = vadd.f32 0.0, %v2773
  %v2775 = vpop.f32.mrb[0].mxu0
  %2776 = vdwg.mxu0
  %v2777 = vpack.c.bf16 %v2750, %v2747
  %v2778 = vpack.c.bf16 %v2758, %v2755
  %v2779 = vpack.c.bf16 %v2766, %v2763
  %v2780 = vpack.c.bf16 %v2774, %v2771
  %2781 = vst.msk [vmem:[#allocation2 + $0x200] sm:$0xff] %vm1730, %v2777
  %2782 = vst.msk [vmem:[#allocation2 + $0x210] sm:$0xff] %vm1730, %v2778
  %2783 = vst.msk [vmem:[#allocation2 + $0x220] sm:$0xff] %vm1730, %v2779
  %2784 = vst.msk [vmem:[#allocation2 + $0x230] sm:$0xff] %vm1730, %v2780
  %v2785 = vld [vmem:[%s5] sm:$0xff]
  %v2786 = vld [vmem:[%s5 + $0x8] sm:$0xff]
  %v2787 = vld [vmem:[%s5 + $0x10] sm:$0xf]
  %v2788 = vld [vmem:[%s5 + $0x14] sm:$0xff]
  %v2789 = vld [vmem:[%s5 + $0x1c] sm:$0xff]
  %v2790 = vld [vmem:[%s5 + $0x24] sm:$0xf]
  %v2791 = vld [vmem:[%s5 + $0x28] sm:$0xff]
  %v2792 = vld [vmem:[%s5 + $0x30] sm:$0xff]
  %v2793 = vld [vmem:[%s5 + $0x38] sm:$0xf]
  %v2794 = vld [vmem:[%s5 + $0x3c] sm:$0xff]
  %v2795 = vld [vmem:[%s5 + $0x44] sm:$0xff]
  %v2796 = vld [vmem:[%s5 + $0x4c] sm:$0xf]
  %v2797 = vld [vmem:[%s5 + $0x50] sm:$0xff]
  %v2798 = vld [vmem:[%s5 + $0x58] sm:$0xff]
  %v2799 = vld [vmem:[%s5 + $0x60] sm:$0xf]
  %v2800 = vld [vmem:[%s5 + $0x64] sm:$0xff]
  %v2801 = vld [vmem:[%s5 + $0x6c] sm:$0xff]
  %v2802 = vld [vmem:[%s5 + $0x74] sm:$0xf]
  %v2803 = vld [vmem:[%s5 + $0x78] sm:$0xff]
  %v2804 = vld [vmem:[%s5 + $0x80] sm:$0xff]
  %v2805 = vld [vmem:[%s5 + $0x88] sm:$0xf]
  %v2806 = vld [vmem:[%s5 + $0x8c] sm:$0xff]
  %v2807 = vld [vmem:[%s5 + $0x94] sm:$0xff]
  %v2808 = vld [vmem:[%s5 + $0x9c] sm:$0xf]
  %v2809 = vld [vmem:[#allocation2] sm:$0xff]
  %v2810 = vld [vmem:[#allocation2 + $0x10] sm:$0xff]
  %v2811 = vld [vmem:[#allocation2 + $0x20] sm:$0xff]
  %v2812 = vld [vmem:[#allocation2 + $0x30] sm:$0xff]
  %v2813 = vld [vmem:[#allocation2 + $0x40] sm:$0xff]
  %v2814 = vld [vmem:[#allocation2 + $0x50] sm:$0xff]
  %v2815 = vld [vmem:[#allocation2 + $0x60] sm:$0xff]
  %v2816 = vld [vmem:[#allocation2 + $0x70] sm:$0xff]
  %v2817 = vld [vmem:[#allocation2 + $0x80] sm:$0xff]
  %v2818 = vld [vmem:[#allocation2 + $0x90] sm:$0xff]
  %v2819 = vld [vmem:[#allocation2 + $0xa0] sm:$0xff]
  %v2820 = vld [vmem:[#allocation2 + $0xb0] sm:$0xff]
  %v2821 = vld [vmem:[#allocation2 + $0xc0] sm:$0xff]
  %v2822 = vld [vmem:[#allocation2 + $0xd0] sm:$0xff]
  %v2823 = vld [vmem:[#allocation2 + $0xe0] sm:$0xff]
  %v2824 = vld [vmem:[#allocation2 + $0xf0] sm:$0xff]
  %v2825 = vld [vmem:[#allocation2 + $0x100] sm:$0xff]
  %v2826 = vld [vmem:[#allocation2 + $0x110] sm:$0xff]
  %v2827 = vld [vmem:[#allocation2 + $0x120] sm:$0xff]
  %v2828 = vld [vmem:[#allocation2 + $0x130] sm:$0xff]
  %v2829 = vld [vmem:[#allocation2 + $0x140] sm:$0xff]
  %v2830 = vld [vmem:[#allocation2 + $0x150] sm:$0xff]
  %v2831 = vld [vmem:[#allocation2 + $0x160] sm:$0xff]
  %v2832 = vld [vmem:[#allocation2 + $0x170] sm:$0xff]
  %v2833 = vld [vmem:[#allocation2 + $0x180] sm:$0xff]
  %v2834 = vld [vmem:[#allocation2 + $0x190] sm:$0xff]
  %v2835 = vld [vmem:[#allocation2 + $0x1a0] sm:$0xff]
  %v2836 = vld [vmem:[#allocation2 + $0x1b0] sm:$0xff]
  %v2837 = vld [vmem:[#allocation2 + $0x1c0] sm:$0xff]
  %v2838 = vld [vmem:[#allocation2 + $0x1d0] sm:$0xff]
  %v2839 = vld [vmem:[#allocation2 + $0x1e0] sm:$0xff]
  %v2840 = vld [vmem:[#allocation2 + $0x1f0] sm:$0xff]
  %v2841 = vld [vmem:[#allocation2 + $0x200] sm:$0xff]
  %v2842 = vld [vmem:[#allocation2 + $0x210] sm:$0xff]
  %v2843 = vld [vmem:[#allocation2 + $0x220] sm:$0xff]
  %v2844 = vld [vmem:[#allocation2 + $0x230] sm:$0xff]
  %v2845 = vld [vmem:[%s6] sm:$0xff]
  %v2846 = vld [vmem:[%s6 + $0x8] sm:$0xff]
  %v2847 = vld [vmem:[%s6 + $0x10] sm:$0xff]
  %v2848 = vld [vmem:[%s6 + $0x18] sm:$0xff]
  %v2849 = vld [vmem:[%s6 + $0x20] sm:$0xff]
  %v2850 = vld [vmem:[%s6 + $0x28] sm:$0xff]
  %v2851 = vld [vmem:[%s6 + $0x30] sm:$0xff]
  %v2852 = vld [vmem:[%s6 + $0x38] sm:$0xff]
  %2854 = vset.pattern.permute.xlu0 0
  %2855 = vperm.xlu0 %2854, %v2845
  %v2856 = vpop.permute.xlu0 %2855
  %2859 = vset.pattern.permute.xlu0 0
  %2860 = vperm.xlu0 %2859, %v2846
  %v2861 = vpop.permute.xlu0 %2860
  %2864 = vset.pattern.permute.xlu0 0
  %2865 = vperm.xlu0 %2864, %v2847
  %v2866 = vpop.permute.xlu0 %2865
  %2869 = vset.pattern.permute.xlu0 0
  %2870 = vperm.xlu0 %2869, %v2848
  %v2871 = vpop.permute.xlu0 %2870
  %2874 = vset.pattern.permute.xlu0 0
  %2875 = vperm.xlu0 %2874, %v2849
  %v2876 = vpop.permute.xlu0 %2875
  %2879 = vset.pattern.permute.xlu0 0
  %2880 = vperm.xlu0 %2879, %v2850
  %v2881 = vpop.permute.xlu0 %2880
  %2884 = vset.pattern.permute.xlu0 0
  %2885 = vperm.xlu0 %2884, %v2851
  %v2886 = vpop.permute.xlu0 %2885
  %2889 = vset.pattern.permute.xlu0 0
  %2890 = vperm.xlu0 %2889, %v2852
  %v2891 = vpop.permute.xlu0 %2890
  %v2917 = vunpack.c.l.b16 %v2785
  %v2918 = vunpack.c.h.b16 %v2785
  %v2919 = vunpack.c.l.b16 %v2786
  %v2920 = vunpack.c.h.b16 %v2786
  %v2921 = vunpack.c.l.b16 %v2787
  %v2922 = vunpack.c.l.b16 %v2788
  %v2923 = vunpack.c.h.b16 %v2788
  %v2924 = vunpack.c.l.b16 %v2789
  %v2925 = vunpack.c.h.b16 %v2789
  %v2926 = vunpack.c.l.b16 %v2790
  %v2927 = vunpack.c.l.b16 %v2791
  %v2928 = vunpack.c.h.b16 %v2791
  %v2929 = vunpack.c.l.b16 %v2792
  %v2930 = vunpack.c.h.b16 %v2792
  %v2931 = vunpack.c.l.b16 %v2793
  %v2932 = vunpack.c.l.b16 %v2794
  %v2933 = vunpack.c.h.b16 %v2794
  %v2934 = vunpack.c.l.b16 %v2795
  %v2935 = vunpack.c.h.b16 %v2795
  %v2936 = vunpack.c.l.b16 %v2796
  %v2937 = vunpack.c.l.b16 %v2797
  %v2938 = vunpack.c.h.b16 %v2797
  %v2939 = vunpack.c.l.b16 %v2798
  %v2940 = vunpack.c.h.b16 %v2798
  %v2941 = vunpack.c.l.b16 %v2799
  %v2942 = vunpack.c.l.b16 %v2800
  %v2943 = vunpack.c.h.b16 %v2800
  %v2944 = vunpack.c.l.b16 %v2801
  %v2945 = vunpack.c.h.b16 %v2801
  %v2946 = vunpack.c.l.b16 %v2802
  %v2947 = vunpack.c.l.b16 %v2803
  %v2948 = vunpack.c.h.b16 %v2803
  %v2949 = vunpack.c.l.b16 %v2804
  %v2950 = vunpack.c.h.b16 %v2804
  %v2951 = vunpack.c.l.b16 %v2805
  %v2952 = vunpack.c.l.b16 %v2806
  %v2953 = vunpack.c.h.b16 %v2806
  %v2954 = vunpack.c.l.b16 %v2807
  %v2955 = vunpack.c.h.b16 %v2807
  %v2956 = vunpack.c.l.b16 %v2808
  %v2957 = vpack.c.b16 %v2922, %v2917
  %v2958 = vpack.c.b16 %v2923, %v2918
  %v2959 = vpack.c.b16 %v2924, %v2919
  %v2960 = vpack.c.b16 %v2925, %v2920
  %v2961 = vpack.c.b16 %v2926, %v2921
  %v2962 = vpack.c.b16 %v2932, %v2927
  %v2963 = vpack.c.b16 %v2933, %v2928
  %v2964 = vpack.c.b16 %v2934, %v2929
  %v2965 = vpack.c.b16 %v2935, %v2930
  %v2966 = vpack.c.b16 %v2936, %v2931
  %v2967 = vpack.c.b16 %v2942, %v2937
  %v2968 = vpack.c.b16 %v2943, %v2938
  %v2969 = vpack.c.b16 %v2944, %v2939
  %v2970 = vpack.c.b16 %v2945, %v2940
  %v2971 = vpack.c.b16 %v2946, %v2941
  %v2972 = vpack.c.b16 %v2952, %v2947
  %v2973 = vpack.c.b16 %v2953, %v2948
  %v2974 = vpack.c.b16 %v2954, %v2949
  %v2975 = vpack.c.b16 %v2955, %v2950
  %v2976 = vpack.c.b16 %v2956, %v2951
  %v2994 = vsel %vm251, %v2961, 0
  %v2997 = vsel %vm251, %v2966, 0
  %v3000 = vsel %vm251, %v2971, 0
  %v3003 = vsel %vm251, %v2976, 0
  %3005 = vmatprep.subr.bf16.mxu0 0
  %3006 = vmatpush1.bf16.msra.mxu0 %v2809
  %3007 = vmatprep.subr.bf16.mxu0 0
  %3008 = vmatpush1.bf16.msra.mxu0 %v2810
  %3009 = vmatprep.subr.bf16.mxu0 0
  %3010 = vmatpush1.bf16.msra.mxu0 %v2811
  %3011 = vmatprep.subr.bf16.mxu0 0
  %3012 = vmatpush1.bf16.msra.mxu0 %v2812
  %3013 = vmatprep.subr.bf16.mxu0 0
  %3014 = vmatpush1.bf16.msra.mxu0 %v2813
  %3015 = vmatprep.subr.bf16.mxu0 0
  %3016 = vmatpush1.bf16.msra.mxu0 %v2814
  %3017 = vmatprep.subr.bf16.mxu0 0
  %3018 = vmatpush1.bf16.msra.mxu0 %v2815
  %3019 = vmatprep.subr.bf16.mxu0 0
  %3020 = vmatpush1.bf16.msra.mxu0 %v2816
  %3021 = vmatprep.subr.bf16.mxu0 0
  %3022 = vmatpush1.bf16.msra.mxu0 %v2817
  %3023 = vmatprep.subr.bf16.mxu0 0
  %3024 = vmatpush1.bf16.msra.mxu0 %v2818
  %3025 = vmatprep.subr.bf16.mxu0 0
  %3026 = vmatpush1.bf16.msra.mxu0 %v2819
  %3027 = vmatprep.subr.bf16.mxu0 0
  %3028 = vmatpush1.bf16.msra.mxu0 %v2820
  %3029 = vmatprep.subr.bf16.mxu0 0
  %3030 = vmatpush1.bf16.msra.mxu0 %v2821
  %3031 = vmatprep.subr.bf16.mxu0 0
  %3032 = vmatpush1.bf16.msra.mxu0 %v2822
  %3033 = vmatprep.subr.bf16.mxu0 0
  %3034 = vmatpush1.bf16.msra.mxu0 %v2823
  %3035 = vmatprep.subr.bf16.mxu0 0
  %3036 = vmatpush1.bf16.msra.mxu0 %v2824
  %3037 = vmatprep.mubr.bf16.mxu0 %v2958
  %3038 = vmatmul.mubr.bf16.gmra.mrb[0].mxu0 %v2957
  %v3039 = vpop.f32.mrb[0].mxu0
  %v3040 = vadd.f32 %v2856, %v3039
  %v3041 = vpop.f32.mrb[0].mxu0
  %v3042 = vpop.f32.mrb[0].mxu0
  %v3043 = vadd.f32 %v2861, %v3042
  %v3044 = vpop.f32.mrb[0].mxu0
  %3045 = vmatprep.mubr.bf16.mxu0 %v2963
  %3046 = vmatmul.mubr.bf16.gmra.mrb[0].mxu0 %v2962
  %v3047 = vpop.f32.mrb[0].mxu0
  %v3048 = vadd.f32 %v2866, %v3047
  %v3049 = vpop.f32.mrb[0].mxu0
  %v3050 = vpop.f32.mrb[0].mxu0
  %v3051 = vadd.f32 %v2871, %v3050
  %v3052 = vpop.f32.mrb[0].mxu0
  %3053 = vmatprep.mubr.bf16.mxu0 %v2968
  %3054 = vmatmul.mubr.bf16.gmra.mrb[0].mxu0 %v2967
  %v3055 = vpop.f32.mrb[0].mxu0
  %v3056 = vadd.f32 %v2876, %v3055
  %v3057 = vpop.f32.mrb[0].mxu0
  %v3058 = vpop.f32.mrb[0].mxu0
  %v3059 = vadd.f32 %v2881, %v3058
  %v3060 = vpop.f32.mrb[0].mxu0
  %3061 = vmatprep.mubr.bf16.mxu0 %v2973
  %3062 = vmatmul.mubr.bf16.gmra.mrb[0].mxu0 %v2972
  %v3063 = vpop.f32.mrb[0].mxu0
  %v3064 = vadd.f32 %v2886, %v3063
  %v3065 = vpop.f32.mrb[0].mxu0
  %v3066 = vpop.f32.mrb[0].mxu0
  %v3067 = vadd.f32 %v2891, %v3066
  %v3068 = vpop.f32.mrb[0].mxu0
  %3069 = vdwg.mxu0
  %3070 = vmatprep.subr.bf16.mxu0 0
  %3071 = vmatpush1.bf16.msra.mxu0 %v2825
  %3072 = vmatprep.subr.bf16.mxu0 0
  %3073 = vmatpush1.bf16.msra.mxu0 %v2826
  %3074 = vmatprep.subr.bf16.mxu0 0
  %3075 = vmatpush1.bf16.msra.mxu0 %v2827
  %3076 = vmatprep.subr.bf16.mxu0 0
  %3077 = vmatpush1.bf16.msra.mxu0 %v2828
  %3078 = vmatprep.subr.bf16.mxu0 0
  %3079 = vmatpush1.bf16.msra.mxu0 %v2829
  %3080 = vmatprep.subr.bf16.mxu0 0
  %3081 = vmatpush1.bf16.msra.mxu0 %v2830
  %3082 = vmatprep.subr.bf16.mxu0 0
  %3083 = vmatpush1.bf16.msra.mxu0 %v2831
  %3084 = vmatprep.subr.bf16.mxu0 0
  %3085 = vmatpush1.bf16.msra.mxu0 %v2832
  %3086 = vmatprep.subr.bf16.mxu0 0
  %3087 = vmatpush1.bf16.msra.mxu0 %v2833
  %3088 = vmatprep.subr.bf16.mxu0 0
  %3089 = vmatpush1.bf16.msra.mxu0 %v2834
  %3090 = vmatprep.subr.bf16.mxu0 0
  %3091 = vmatpush1.bf16.msra.mxu0 %v2835
  %3092 = vmatprep.subr.bf16.mxu0 0
  %3093 = vmatpush1.bf16.msra.mxu0 %v2836
  %3094 = vmatprep.subr.bf16.mxu0 0
  %3095 = vmatpush1.bf16.msra.mxu0 %v2837
  %3096 = vmatprep.subr.bf16.mxu0 0
  %3097 = vmatpush1.bf16.msra.mxu0 %v2838
  %3098 = vmatprep.subr.bf16.mxu0 0
  %3099 = vmatpush1.bf16.msra.mxu0 %v2839
  %3100 = vmatprep.subr.bf16.mxu0 0
  %3101 = vmatpush1.bf16.msra.mxu0 %v2840
  %3102 = vmatprep.mubr.bf16.mxu0 %v2960
  %3103 = vmatmul.mubr.bf16.gmra.mrb[0].mxu0 %v2959
  %v3104 = vpop.f32.mrb[0].mxu0
  %v3105 = vadd.f32 %v3040, %v3104
  %v3106 = vpop.f32.mrb[0].mxu0
  %v3107 = vpop.f32.mrb[0].mxu0
  %v3108 = vadd.f32 %v3043, %v3107
  %v3109 = vpop.f32.mrb[0].mxu0
  %3110 = vmatprep.mubr.bf16.mxu0 %v2965
  %3111 = vmatmul.mubr.bf16.gmra.mrb[0].mxu0 %v2964
  %v3112 = vpop.f32.mrb[0].mxu0
  %v3113 = vadd.f32 %v3048, %v3112
  %v3114 = vpop.f32.mrb[0].mxu0
  %v3115 = vpop.f32.mrb[0].mxu0
  %v3116 = vadd.f32 %v3051, %v3115
  %v3117 = vpop.f32.mrb[0].mxu0
  %3118 = vmatprep.mubr.bf16.mxu0 %v2970
  %3119 = vmatmul.mubr.bf16.gmra.mrb[0].mxu0 %v2969
  %v3120 = vpop.f32.mrb[0].mxu0
  %v3121 = vadd.f32 %v3056, %v3120
  %v3122 = vpop.f32.mrb[0].mxu0
  %v3123 = vpop.f32.mrb[0].mxu0
  %v3124 = vadd.f32 %v3059, %v3123
  %v3125 = vpop.f32.mrb[0].mxu0
  %3126 = vmatprep.mubr.bf16.mxu0 %v2975
  %3127 = vmatmul.mubr.bf16.gmra.mrb[0].mxu0 %v2974
  %v3128 = vpop.f32.mrb[0].mxu0
  %v3129 = vadd.f32 %v3064, %v3128
  %v3130 = vpop.f32.mrb[0].mxu0
  %v3131 = vpop.f32.mrb[0].mxu0
  %v3132 = vadd.f32 %v3067, %v3131
  %v3133 = vpop.f32.mrb[0].mxu0
  %3134 = vdwg.mxu0
  %3135 = vmatprep.subr.bf16.mxu0 0
  %3136 = vmatpush1.bf16.msra.mxu0 %v2841
  %3137 = vmatprep.subr.bf16.mxu0 0
  %3138 = vmatpush1.bf16.msra.mxu0 %v2842
  %3139 = vmatprep.subr.bf16.mxu0 0
  %3140 = vmatpush1.bf16.msra.mxu0 %v2843
  %3141 = vmatprep.subr.bf16.mxu0 0
  %3142 = vmatpush1.bf16.msra.mxu0 %v2844
  %3143 = vmatprep.subr.bf16.mxu0 0
  %3144 = vmatpush1.bf16.msra.mxu0 0
  %3145 = vmatprep.subr.bf16.mxu0 0
  %3146 = vmatpush1.bf16.msra.mxu0 0
  %3147 = vmatprep.subr.bf16.mxu0 0
  %3148 = vmatpush1.bf16.msra.mxu0 0
  %3149 = vmatprep.subr.bf16.mxu0 0
  %3150 = vmatpush1.bf16.msra.mxu0 0
  %3151 = vmatprep.subr.bf16.mxu0 0
  %3152 = vmatpush1.bf16.msra.mxu0 0
  %3153 = vmatprep.subr.bf16.mxu0 0
  %3154 = vmatpush1.bf16.msra.mxu0 0
  %3155 = vmatprep.subr.bf16.mxu0 0
  %3156 = vmatpush1.bf16.msra.mxu0 0
  %3157 = vmatprep.subr.bf16.mxu0 0
  %3158 = vmatpush1.bf16.msra.mxu0 0
  %3159 = vmatprep.subr.bf16.mxu0 0
  %3160 = vmatpush1.bf16.msra.mxu0 0
  %3161 = vmatprep.subr.bf16.mxu0 0
  %3162 = vmatpush1.bf16.msra.mxu0 0
  %3163 = vmatprep.subr.bf16.mxu0 0
  %3164 = vmatpush1.bf16.msra.mxu0 0
  %3165 = vmatprep.subr.bf16.mxu0 0
  %3166 = vmatpush1.bf16.msra.mxu0 0
  %3167 = vmatprep.mubr.bf16.mxu0 0
  %3168 = vmatmul.mubr.bf16.gmra.mrb[0].mxu0 %v2994
  %v3169 = vpop.f32.mrb[0].mxu0
  %v3170 = vadd.f32 %v3105, %v3169
  %v3171 = vpop.f32.mrb[0].mxu0
  %v3172 = vpop.f32.mrb[0].mxu0
  %v3173 = vadd.f32 %v3108, %v3172
  %v3174 = vpop.f32.mrb[0].mxu0
  %3175 = vmatprep.mubr.bf16.mxu0 0
  %3176 = vmatmul.mubr.bf16.gmra.mrb[0].mxu0 %v2997
  %v3177 = vpop.f32.mrb[0].mxu0
  %v3178 = vadd.f32 %v3113, %v3177
  %v3179 = vpop.f32.mrb[0].mxu0
  %v3180 = vpop.f32.mrb[0].mxu0
  %v3181 = vadd.f32 %v3116, %v3180
  %v3182 = vpop.f32.mrb[0].mxu0
  %3183 = vmatprep.mubr.bf16.mxu0 0
  %3184 = vmatmul.mubr.bf16.gmra.mrb[0].mxu0 %v3000
  %v3185 = vpop.f32.mrb[0].mxu0
  %v3186 = vadd.f32 %v3121, %v3185
  %v3187 = vpop.f32.mrb[0].mxu0
  %v3188 = vpop.f32.mrb[0].mxu0
  %v3189 = vadd.f32 %v3124, %v3188
  %v3190 = vpop.f32.mrb[0].mxu0
  %3191 = vmatprep.mubr.bf16.mxu0 0
  %3192 = vmatmul.mubr.bf16.gmra.mrb[0].mxu0 %v3003
  %v3193 = vpop.f32.mrb[0].mxu0
  %v3194 = vadd.f32 %v3129, %v3193
  %v3195 = vpop.f32.mrb[0].mxu0
  %v3196 = vpop.f32.mrb[0].mxu0
  %v3197 = vadd.f32 %v3132, %v3196
  %v3198 = vpop.f32.mrb[0].mxu0
  %3199 = vdwg.mxu0
  %v3200 = vmax.f32 %v3170, 0.0
  %v3201 = vmax.f32 %v3173, 0.0
  %v3202 = vmax.f32 %v3178, 0.0
  %v3203 = vmax.f32 %v3181, 0.0
  %v3204 = vmax.f32 %v3186, 0.0
  %v3205 = vmax.f32 %v3189, 0.0
  %v3206 = vmax.f32 %v3194, 0.0
  %v3207 = vmax.f32 %v3197, 0.0
  %v3208 = vpack.c.bf16 %v3201, %v3200
  %v3209 = vpack.c.bf16 %v3203, %v3202
  %v3210 = vpack.c.bf16 %v3205, %v3204
  %v3211 = vpack.c.bf16 %v3207, %v3206
  %v3212 = vld [vmem:[%s7] sm:$0xf]
  %v3213 = vld [vmem:[%s7 + $0x4] sm:$0xf]
  %v3216 = vunpack.c.l.b16 %v3212
  %v3217 = vunpack.c.l.b16 %v3213
  %v3218 = vpack.c.b16 %v3217, %v3216
  %v3221 = vsel %vm1730, %v3208, 0
  %v3224 = vsel %vm1730, %v3209, 0
  %v3227 = vsel %vm1730, %v3210, 0
  %v3230 = vsel %vm1730, %v3211, 0
  %3232 = vmatprep.subr.bf16.mxu0 0
  %3233 = vmatpush1.bf16.msra.mxu0 %v3218
  %3234 = vmatprep.subr.bf16.mxu0 0
  %3235 = vmatpush1.bf16.msra.mxu0 0
  %3236 = vmatprep.subr.bf16.mxu0 0
  %3237 = vmatpush1.bf16.msra.mxu0 0
  %3238 = vmatprep.subr.bf16.mxu0 0
  %3239 = vmatpush1.bf16.msra.mxu0 0
  %3240 = vmatprep.subr.bf16.mxu0 0
  %3241 = vmatpush1.bf16.msra.mxu0 0
  %3242 = vmatprep.subr.bf16.mxu0 0
  %3243 = vmatpush1.bf16.msra.mxu0 0
  %3244 = vmatprep.subr.bf16.mxu0 0
  %3245 = vmatpush1.bf16.msra.mxu0 0
  %3246 = vmatprep.subr.bf16.mxu0 0
  %3247 = vmatpush1.bf16.msra.mxu0 0
  %3248 = vmatprep.subr.bf16.mxu0 0
  %3249 = vmatpush1.bf16.msra.mxu0 0
  %3250 = vmatprep.subr.bf16.mxu0 0
  %3251 = vmatpush1.bf16.msra.mxu0 0
  %3252 = vmatprep.subr.bf16.mxu0 0
  %3253 = vmatpush1.bf16.msra.mxu0 0
  %3254 = vmatprep.subr.bf16.mxu0 0
  %3255 = vmatpush1.bf16.msra.mxu0 0
  %3256 = vmatprep.subr.bf16.mxu0 0
  %3257 = vmatpush1.bf16.msra.mxu0 0
  %3258 = vmatprep.subr.bf16.mxu0 0
  %3259 = vmatpush1.bf16.msra.mxu0 0
  %3260 = vmatprep.subr.bf16.mxu0 0
  %3261 = vmatpush1.bf16.msra.mxu0 0
  %3262 = vmatprep.subr.bf16.mxu0 0
  %3263 = vmatpush1.bf16.msra.mxu0 0
  %3264 = vmatprep.mubr.bf16.mxu0 0
  %3265 = vmatmul.mubr.bf16.gmra.mrb[0].mxu0 %v3221
  %v3266 = vpop.f32.mrb[0].mxu0
  %v3267 = vadd.f32 0.0, %v3266
  %v3268 = vpop.f32.mrb[0].mxu0
  %v3269 = vpop.f32.mrb[0].mxu0
  %v3270 = vadd.f32 0.0, %v3269
  %v3271 = vpop.f32.mrb[0].mxu0
  %3272 = vmatprep.mubr.bf16.mxu0 0
  %3273 = vmatmul.mubr.bf16.gmra.mrb[0].mxu0 %v3224
  %v3274 = vpop.f32.mrb[0].mxu0
  %v3275 = vadd.f32 0.0, %v3274
  %v3276 = vpop.f32.mrb[0].mxu0
  %v3277 = vpop.f32.mrb[0].mxu0
  %v3278 = vadd.f32 0.0, %v3277
  %v3279 = vpop.f32.mrb[0].mxu0
  %3280 = vmatprep.mubr.bf16.mxu0 0
  %3281 = vmatmul.mubr.bf16.gmra.mrb[0].mxu0 %v3227
  %v3282 = vpop.f32.mrb[0].mxu0
  %v3283 = vadd.f32 0.0, %v3282
  %v3284 = vpop.f32.mrb[0].mxu0
  %v3285 = vpop.f32.mrb[0].mxu0
  %v3286 = vadd.f32 0.0, %v3285
  %v3287 = vpop.f32.mrb[0].mxu0
  %3288 = vmatprep.mubr.bf16.mxu0 0
  %3289 = vmatmul.mubr.bf16.gmra.mrb[0].mxu0 %v3230
  %v3290 = vpop.f32.mrb[0].mxu0
  %v3291 = vadd.f32 0.0, %v3290
  %v3292 = vpop.f32.mrb[0].mxu0
  %v3293 = vpop.f32.mrb[0].mxu0
  %v3294 = vadd.f32 0.0, %v3293
  %v3295 = vpop.f32.mrb[0].mxu0
  %3296 = vdwg.mxu0
  %v3297 = vpack.c.bf16 %v3270, %v3267
  %v3298 = vpack.c.bf16 %v3278, %v3275
  %v3299 = vpack.c.bf16 %v3286, %v3283
  %v3300 = vpack.c.bf16 %v3294, %v3291
  %vm3301 = vcmask 64512
  %3302 = vst.msk [vmem:[#allocation2] sm:$0xff] %vm3301, %v3297
  %3303 = vst.msk [vmem:[#allocation2 + $0x10] sm:$0xff] %vm3301, %v3298
  %3304 = vst.msk [vmem:[#allocation2 + $0x20] sm:$0xff] %vm3301, %v3299
  %3305 = vst.msk [vmem:[#allocation2 + $0x30] sm:$0xff] %vm3301, %v3300
  %s3306 = scalar_lea.vmem %s7, 8
  %v3307 = vld [vmem:[%s3306] sm:$0xf]
  %v3308 = vld [vmem:[%s3306 + $0x4] sm:$0xf]
  %v3311 = vunpack.c.l.b16 %v3307
  %v3312 = vunpack.c.l.b16 %v3308
  %v3313 = vpack.c.b16 %v3312, %v3311
  %3315 = vmatprep.subr.bf16.mxu0 0
  %3316 = vmatpush1.bf16.msra.mxu0 %v3313
  %3317 = vmatprep.subr.bf16.mxu0 0
  %3318 = vmatpush1.bf16.msra.mxu0 0
  %3319 = vmatprep.subr.bf16.mxu0 0
  %3320 = vmatpush1.bf16.msra.mxu0 0
  %3321 = vmatprep.subr.bf16.mxu0 0
  %3322 = vmatpush1.bf16.msra.mxu0 0
  %3323 = vmatprep.subr.bf16.mxu0 0
  %3324 = vmatpush1.bf16.msra.mxu0 0
  %3325 = vmatprep.subr.bf16.mxu0 0
  %3326 = vmatpush1.bf16.msra.mxu0 0
  %3327 = vmatprep.subr.bf16.mxu0 0
  %3328 = vmatpush1.bf16.msra.mxu0 0
  %3329 = vmatprep.subr.bf16.mxu0 0
  %3330 = vmatpush1.bf16.msra.mxu0 0
  %3331 = vmatprep.subr.bf16.mxu0 0
  %3332 = vmatpush1.bf16.msra.mxu0 0
  %3333 = vmatprep.subr.bf16.mxu0 0
  %3334 = vmatpush1.bf16.msra.mxu0 0
  %3335 = vmatprep.subr.bf16.mxu0 0
  %3336 = vmatpush1.bf16.msra.mxu0 0
  %3337 = vmatprep.subr.bf16.mxu0 0
  %3338 = vmatpush1.bf16.msra.mxu0 0
  %3339 = vmatprep.subr.bf16.mxu0 0
  %3340 = vmatpush1.bf16.msra.mxu0 0
  %3341 = vmatprep.subr.bf16.mxu0 0
  %3342 = vmatpush1.bf16.msra.mxu0 0
  %3343 = vmatprep.subr.bf16.mxu0 0
  %3344 = vmatpush1.bf16.msra.mxu0 0
  %3345 = vmatprep.subr.bf16.mxu0 0
  %3346 = vmatpush1.bf16.msra.mxu0 0
  %3347 = vmatprep.mubr.bf16.mxu0 0
  %3348 = vmatmul.mubr.bf16.gmra.mrb[0].mxu0 %v3221
  %v3349 = vpop.f32.mrb[0].mxu0
  %v3350 = vadd.f32 0.0, %v3349
  %v3351 = vpop.f32.mrb[0].mxu0
  %v3352 = vpop.f32.mrb[0].mxu0
  %v3353 = vadd.f32 0.0, %v3352
  %v3354 = vpop.f32.mrb[0].mxu0
  %3355 = vmatprep.mubr.bf16.mxu0 0
  %3356 = vmatmul.mubr.bf16.gmra.mrb[0].mxu0 %v3224
  %v3357 = vpop.f32.mrb[0].mxu0
  %v3358 = vadd.f32 0.0, %v3357
  %v3359 = vpop.f32.mrb[0].mxu0
  %v3360 = vpop.f32.mrb[0].mxu0
  %v3361 = vadd.f32 0.0, %v3360
  %v3362 = vpop.f32.mrb[0].mxu0
  %3363 = vmatprep.mubr.bf16.mxu0 0
  %3364 = vmatmul.mubr.bf16.gmra.mrb[0].mxu0 %v3227
  %v3365 = vpop.f32.mrb[0].mxu0
  %v3366 = vadd.f32 0.0, %v3365
  %v3367 = vpop.f32.mrb[0].mxu0
  %v3368 = vpop.f32.mrb[0].mxu0
  %v3369 = vadd.f32 0.0, %v3368
  %v3370 = vpop.f32.mrb[0].mxu0
  %3371 = vmatprep.mubr.bf16.mxu0 0
  %3372 = vmatmul.mubr.bf16.gmra.mrb[0].mxu0 %v3230
  %v3373 = vpop.f32.mrb[0].mxu0
  %v3374 = vadd.f32 0.0, %v3373
  %v3375 = vpop.f32.mrb[0].mxu0
  %v3376 = vpop.f32.mrb[0].mxu0
  %v3377 = vadd.f32 0.0, %v3376
  %v3378 = vpop.f32.mrb[0].mxu0
  %3379 = vdwg.mxu0
  %v3380 = vpack.c.bf16 %v3353, %v3350
  %v3381 = vpack.c.bf16 %v3361, %v3358
  %v3382 = vpack.c.bf16 %v3369, %v3366
  %v3383 = vpack.c.bf16 %v3377, %v3374
  %3384 = vst.msk [vmem:[#allocation2 + $0x40] sm:$0xff] %vm3301, %v3380
  %3385 = vst.msk [vmem:[#allocation2 + $0x50] sm:$0xff] %vm3301, %v3381
  %3386 = vst.msk [vmem:[#allocation2 + $0x60] sm:$0xff] %vm3301, %v3382
  %3387 = vst.msk [vmem:[#allocation2 + $0x70] sm:$0xff] %vm3301, %v3383
  %s3388 = scalar_lea.vmem %s7, 16
  %v3389 = vld [vmem:[%s3388] sm:$0xf]
  %v3390 = vld [vmem:[%s3388 + $0x4] sm:$0xf]
  %v3393 = vunpack.c.l.b16 %v3389
  %v3394 = vunpack.c.l.b16 %v3390
  %v3395 = vpack.c.b16 %v3394, %v3393
  %3397 = vmatprep.subr.bf16.mxu0 0
  %3398 = vmatpush1.bf16.msra.mxu0 %v3395
  %3399 = vmatprep.subr.bf16.mxu0 0
  %3400 = vmatpush1.bf16.msra.mxu0 0
  %3401 = vmatprep.subr.bf16.mxu0 0
  %3402 = vmatpush1.bf16.msra.mxu0 0
  %3403 = vmatprep.subr.bf16.mxu0 0
  %3404 = vmatpush1.bf16.msra.mxu0 0
  %3405 = vmatprep.subr.bf16.mxu0 0
  %3406 = vmatpush1.bf16.msra.mxu0 0
  %3407 = vmatprep.subr.bf16.mxu0 0
  %3408 = vmatpush1.bf16.msra.mxu0 0
  %3409 = vmatprep.subr.bf16.mxu0 0
  %3410 = vmatpush1.bf16.msra.mxu0 0
  %3411 = vmatprep.subr.bf16.mxu0 0
  %3412 = vmatpush1.bf16.msra.mxu0 0
  %3413 = vmatprep.subr.bf16.mxu0 0
  %3414 = vmatpush1.bf16.msra.mxu0 0
  %3415 = vmatprep.subr.bf16.mxu0 0
  %3416 = vmatpush1.bf16.msra.mxu0 0
  %3417 = vmatprep.subr.bf16.mxu0 0
  %3418 = vmatpush1.bf16.msra.mxu0 0
  %3419 = vmatprep.subr.bf16.mxu0 0
  %3420 = vmatpush1.bf16.msra.mxu0 0
  %3421 = vmatprep.subr.bf16.mxu0 0
  %3422 = vmatpush1.bf16.msra.mxu0 0
  %3423 = vmatprep.subr.bf16.mxu0 0
  %3424 = vmatpush1.bf16.msra.mxu0 0
  %3425 = vmatprep.subr.bf16.mxu0 0
  %3426 = vmatpush1.bf16.msra.mxu0 0
  %3427 = vmatprep.subr.bf16.mxu0 0
  %3428 = vmatpush1.bf16.msra.mxu0 0
  %3429 = vmatprep.mubr.bf16.mxu0 0
  %3430 = vmatmul.mubr.bf16.gmra.mrb[0].mxu0 %v3221
  %v3431 = vpop.f32.mrb[0].mxu0
  %v3432 = vadd.f32 0.0, %v3431
  %v3433 = vpop.f32.mrb[0].mxu0
  %v3434 = vpop.f32.mrb[0].mxu0
  %v3435 = vadd.f32 0.0, %v3434
  %v3436 = vpop.f32.mrb[0].mxu0
  %3437 = vmatprep.mubr.bf16.mxu0 0
  %3438 = vmatmul.mubr.bf16.gmra.mrb[0].mxu0 %v3224
  %v3439 = vpop.f32.mrb[0].mxu0
  %v3440 = vadd.f32 0.0, %v3439
  %v3441 = vpop.f32.mrb[0].mxu0
  %v3442 = vpop.f32.mrb[0].mxu0
  %v3443 = vadd.f32 0.0, %v3442
  %v3444 = vpop.f32.mrb[0].mxu0
  %3445 = vmatprep.mubr.bf16.mxu0 0
  %3446 = vmatmul.mubr.bf16.gmra.mrb[0].mxu0 %v3227
  %v3447 = vpop.f32.mrb[0].mxu0
  %v3448 = vadd.f32 0.0, %v3447
  %v3449 = vpop.f32.mrb[0].mxu0
  %v3450 = vpop.f32.mrb[0].mxu0
  %v3451 = vadd.f32 0.0, %v3450
  %v3452 = vpop.f32.mrb[0].mxu0
  %3453 = vmatprep.mubr.bf16.mxu0 0
  %3454 = vmatmul.mubr.bf16.gmra.mrb[0].mxu0 %v3230
  %v3455 = vpop.f32.mrb[0].mxu0
  %v3456 = vadd.f32 0.0, %v3455
  %v3457 = vpop.f32.mrb[0].mxu0
  %v3458 = vpop.f32.mrb[0].mxu0
  %v3459 = vadd.f32 0.0, %v3458
  %v3460 = vpop.f32.mrb[0].mxu0
  %3461 = vdwg.mxu0
  %v3462 = vpack.c.bf16 %v3435, %v3432
  %v3463 = vpack.c.bf16 %v3443, %v3440
  %v3464 = vpack.c.bf16 %v3451, %v3448
  %v3465 = vpack.c.bf16 %v3459, %v3456
  %3466 = vst.msk [vmem:[#allocation2 + $0x80] sm:$0xff] %vm3301, %v3462
  %3467 = vst.msk [vmem:[#allocation2 + $0x90] sm:$0xff] %vm3301, %v3463
  %3468 = vst.msk [vmem:[#allocation2 + $0xa0] sm:$0xff] %vm3301, %v3464
  %3469 = vst.msk [vmem:[#allocation2 + $0xb0] sm:$0xff] %vm3301, %v3465
  %s3470 = scalar_lea.vmem %s7, 24
  %v3471 = vld [vmem:[%s3470] sm:$0xf]
  %v3472 = vld [vmem:[%s3470 + $0x4] sm:$0xf]
  %v3475 = vunpack.c.l.b16 %v3471
  %v3476 = vunpack.c.l.b16 %v3472
  %v3477 = vpack.c.b16 %v3476, %v3475
  %3479 = vmatprep.subr.bf16.mxu0 0
  %3480 = vmatpush1.bf16.msra.mxu0 %v3477
  %3481 = vmatprep.subr.bf16.mxu0 0
  %3482 = vmatpush1.bf16.msra.mxu0 0
  %3483 = vmatprep.subr.bf16.mxu0 0
  %3484 = vmatpush1.bf16.msra.mxu0 0
  %3485 = vmatprep.subr.bf16.mxu0 0
  %3486 = vmatpush1.bf16.msra.mxu0 0
  %3487 = vmatprep.subr.bf16.mxu0 0
  %3488 = vmatpush1.bf16.msra.mxu0 0
  %3489 = vmatprep.subr.bf16.mxu0 0
  %3490 = vmatpush1.bf16.msra.mxu0 0
  %3491 = vmatprep.subr.bf16.mxu0 0
  %3492 = vmatpush1.bf16.msra.mxu0 0
  %3493 = vmatprep.subr.bf16.mxu0 0
  %3494 = vmatpush1.bf16.msra.mxu0 0
  %3495 = vmatprep.subr.bf16.mxu0 0
  %3496 = vmatpush1.bf16.msra.mxu0 0
  %3497 = vmatprep.subr.bf16.mxu0 0
  %3498 = vmatpush1.bf16.msra.mxu0 0
  %3499 = vmatprep.subr.bf16.mxu0 0
  %3500 = vmatpush1.bf16.msra.mxu0 0
  %3501 = vmatprep.subr.bf16.mxu0 0
  %3502 = vmatpush1.bf16.msra.mxu0 0
  %3503 = vmatprep.subr.bf16.mxu0 0
  %3504 = vmatpush1.bf16.msra.mxu0 0
  %3505 = vmatprep.subr.bf16.mxu0 0
  %3506 = vmatpush1.bf16.msra.mxu0 0
  %3507 = vmatprep.subr.bf16.mxu0 0
  %3508 = vmatpush1.bf16.msra.mxu0 0
  %3509 = vmatprep.subr.bf16.mxu0 0
  %3510 = vmatpush1.bf16.msra.mxu0 0
  %3511 = vmatprep.mubr.bf16.mxu0 0
  %3512 = vmatmul.mubr.bf16.gmra.mrb[0].mxu0 %v3221
  %v3513 = vpop.f32.mrb[0].mxu0
  %v3514 = vadd.f32 0.0, %v3513
  %v3515 = vpop.f32.mrb[0].mxu0
  %v3516 = vpop.f32.mrb[0].mxu0
  %v3517 = vadd.f32 0.0, %v3516
  %v3518 = vpop.f32.mrb[0].mxu0
  %3519 = vmatprep.mubr.bf16.mxu0 0
  %3520 = vmatmul.mubr.bf16.gmra.mrb[0].mxu0 %v3224
  %v3521 = vpop.f32.mrb[0].mxu0
  %v3522 = vadd.f32 0.0, %v3521
  %v3523 = vpop.f32.mrb[0].mxu0
  %v3524 = vpop.f32.mrb[0].mxu0
  %v3525 = vadd.f32 0.0, %v3524
  %v3526 = vpop.f32.mrb[0].mxu0
  %3527 = vmatprep.mubr.bf16.mxu0 0
  %3528 = vmatmul.mubr.bf16.gmra.mrb[0].mxu0 %v3227
  %v3529 = vpop.f32.mrb[0].mxu0
  %v3530 = vadd.f32 0.0, %v3529
  %v3531 = vpop.f32.mrb[0].mxu0
  %v3532 = vpop.f32.mrb[0].mxu0
  %v3533 = vadd.f32 0.0, %v3532
  %v3534 = vpop.f32.mrb[0].mxu0
  %3535 = vmatprep.mubr.bf16.mxu0 0
  %3536 = vmatmul.mubr.bf16.gmra.mrb[0].mxu0 %v3230
  %v3537 = vpop.f32.mrb[0].mxu0
  %v3538 = vadd.f32 0.0, %v3537
  %v3539 = vpop.f32.mrb[0].mxu0
  %v3540 = vpop.f32.mrb[0].mxu0
  %v3541 = vadd.f32 0.0, %v3540
  %v3542 = vpop.f32.mrb[0].mxu0
  %3543 = vdwg.mxu0
  %v3544 = vpack.c.bf16 %v3517, %v3514
  %v3545 = vpack.c.bf16 %v3525, %v3522
  %v3546 = vpack.c.bf16 %v3533, %v3530
  %v3547 = vpack.c.bf16 %v3541, %v3538
  %3548 = vst.msk [vmem:[#allocation2 + $0xc0] sm:$0xff] %vm3301, %v3544
  %3549 = vst.msk [vmem:[#allocation2 + $0xd0] sm:$0xff] %vm3301, %v3545
  %3550 = vst.msk [vmem:[#allocation2 + $0xe0] sm:$0xff] %vm3301, %v3546
  %3551 = vst.msk [vmem:[#allocation2 + $0xf0] sm:$0xff] %vm3301, %v3547
  %s3552 = scalar_lea.vmem %s7, 32
  %v3553 = vld [vmem:[%s3552] sm:$0xf]
  %v3554 = vld [vmem:[%s3552 + $0x4] sm:$0xf]
  %v3557 = vunpack.c.l.b16 %v3553
  %v3558 = vunpack.c.l.b16 %v3554
  %v3559 = vpack.c.b16 %v3558, %v3557
  %3561 = vmatprep.subr.bf16.mxu0 0
  %3562 = vmatpush1.bf16.msra.mxu0 %v3559
  %3563 = vmatprep.subr.bf16.mxu0 0
  %3564 = vmatpush1.bf16.msra.mxu0 0
  %3565 = vmatprep.subr.bf16.mxu0 0
  %3566 = vmatpush1.bf16.msra.mxu0 0
  %3567 = vmatprep.subr.bf16.mxu0 0
  %3568 = vmatpush1.bf16.msra.mxu0 0
  %3569 = vmatprep.subr.bf16.mxu0 0
  %3570 = vmatpush1.bf16.msra.mxu0 0
  %3571 = vmatprep.subr.bf16.mxu0 0
  %3572 = vmatpush1.bf16.msra.mxu0 0
  %3573 = vmatprep.subr.bf16.mxu0 0
  %3574 = vmatpush1.bf16.msra.mxu0 0
  %3575 = vmatprep.subr.bf16.mxu0 0
  %3576 = vmatpush1.bf16.msra.mxu0 0
  %3577 = vmatprep.subr.bf16.mxu0 0
  %3578 = vmatpush1.bf16.msra.mxu0 0
  %3579 = vmatprep.subr.bf16.mxu0 0
  %3580 = vmatpush1.bf16.msra.mxu0 0
  %3581 = vmatprep.subr.bf16.mxu0 0
  %3582 = vmatpush1.bf16.msra.mxu0 0
  %3583 = vmatprep.subr.bf16.mxu0 0
  %3584 = vmatpush1.bf16.msra.mxu0 0
  %3585 = vmatprep.subr.bf16.mxu0 0
  %3586 = vmatpush1.bf16.msra.mxu0 0
  %3587 = vmatprep.subr.bf16.mxu0 0
  %3588 = vmatpush1.bf16.msra.mxu0 0
  %3589 = vmatprep.subr.bf16.mxu0 0
  %3590 = vmatpush1.bf16.msra.mxu0 0
  %3591 = vmatprep.subr.bf16.mxu0 0
  %3592 = vmatpush1.bf16.msra.mxu0 0
  %3593 = vmatprep.mubr.bf16.mxu0 0
  %3594 = vmatmul.mubr.bf16.gmra.mrb[0].mxu0 %v3221
  %v3595 = vpop.f32.mrb[0].mxu0
  %v3596 = vadd.f32 0.0, %v3595
  %v3597 = vpop.f32.mrb[0].mxu0
  %v3598 = vpop.f32.mrb[0].mxu0
  %v3599 = vadd.f32 0.0, %v3598
  %v3600 = vpop.f32.mrb[0].mxu0
  %3601 = vmatprep.mubr.bf16.mxu0 0
  %3602 = vmatmul.mubr.bf16.gmra.mrb[0].mxu0 %v3224
  %v3603 = vpop.f32.mrb[0].mxu0
  %v3604 = vadd.f32 0.0, %v3603
  %v3605 = vpop.f32.mrb[0].mxu0
  %v3606 = vpop.f32.mrb[0].mxu0
  %v3607 = vadd.f32 0.0, %v3606
  %v3608 = vpop.f32.mrb[0].mxu0
  %3609 = vmatprep.mubr.bf16.mxu0 0
  %3610 = vmatmul.mubr.bf16.gmra.mrb[0].mxu0 %v3227
  %v3611 = vpop.f32.mrb[0].mxu0
  %v3612 = vadd.f32 0.0, %v3611
  %v3613 = vpop.f32.mrb[0].mxu0
  %v3614 = vpop.f32.mrb[0].mxu0
  %v3615 = vadd.f32 0.0, %v3614
  %v3616 = vpop.f32.mrb[0].mxu0
  %3617 = vmatprep.mubr.bf16.mxu0 0
  %3618 = vmatmul.mubr.bf16.gmra.mrb[0].mxu0 %v3230
  %v3619 = vpop.f32.mrb[0].mxu0
  %v3620 = vadd.f32 0.0, %v3619
  %v3621 = vpop.f32.mrb[0].mxu0
  %v3622 = vpop.f32.mrb[0].mxu0
  %v3623 = vadd.f32 0.0, %v3622
  %v3624 = vpop.f32.mrb[0].mxu0
  %3625 = vdwg.mxu0
  %v3626 = vpack.c.bf16 %v3599, %v3596
  %v3627 = vpack.c.bf16 %v3607, %v3604
  %v3628 = vpack.c.bf16 %v3615, %v3612
  %v3629 = vpack.c.bf16 %v3623, %v3620
  %3630 = vst.msk [vmem:[#allocation2 + $0x100] sm:$0xff] %vm3301, %v3626
  %3631 = vst.msk [vmem:[#allocation2 + $0x110] sm:$0xff] %vm3301, %v3627
  %3632 = vst.msk [vmem:[#allocation2 + $0x120] sm:$0xff] %vm3301, %v3628
  %3633 = vst.msk [vmem:[#allocation2 + $0x130] sm:$0xff] %vm3301, %v3629
  %s3634 = scalar_lea.vmem %s7, 40
  %v3635 = vld [vmem:[%s3634] sm:$0xf]
  %v3636 = vld [vmem:[%s3634 + $0x4] sm:$0xf]
  %v3639 = vunpack.c.l.b16 %v3635
  %v3640 = vunpack.c.l.b16 %v3636
  %v3641 = vpack.c.b16 %v3640, %v3639
  %3643 = vmatprep.subr.bf16.mxu0 0
  %3644 = vmatpush1.bf16.msra.mxu0 %v3641
  %3645 = vmatprep.subr.bf16.mxu0 0
  %3646 = vmatpush1.bf16.msra.mxu0 0
  %3647 = vmatprep.subr.bf16.mxu0 0
  %3648 = vmatpush1.bf16.msra.mxu0 0
  %3649 = vmatprep.subr.bf16.mxu0 0
  %3650 = vmatpush1.bf16.msra.mxu0 0
  %3651 = vmatprep.subr.bf16.mxu0 0
  %3652 = vmatpush1.bf16.msra.mxu0 0
  %3653 = vmatprep.subr.bf16.mxu0 0
  %3654 = vmatpush1.bf16.msra.mxu0 0
  %3655 = vmatprep.subr.bf16.mxu0 0
  %3656 = vmatpush1.bf16.msra.mxu0 0
  %3657 = vmatprep.subr.bf16.mxu0 0
  %3658 = vmatpush1.bf16.msra.mxu0 0
  %3659 = vmatprep.subr.bf16.mxu0 0
  %3660 = vmatpush1.bf16.msra.mxu0 0
  %3661 = vmatprep.subr.bf16.mxu0 0
  %3662 = vmatpush1.bf16.msra.mxu0 0
  %3663 = vmatprep.subr.bf16.mxu0 0
  %3664 = vmatpush1.bf16.msra.mxu0 0
  %3665 = vmatprep.subr.bf16.mxu0 0
  %3666 = vmatpush1.bf16.msra.mxu0 0
  %3667 = vmatprep.subr.bf16.mxu0 0
  %3668 = vmatpush1.bf16.msra.mxu0 0
  %3669 = vmatprep.subr.bf16.mxu0 0
  %3670 = vmatpush1.bf16.msra.mxu0 0
  %3671 = vmatprep.subr.bf16.mxu0 0
  %3672 = vmatpush1.bf16.msra.mxu0 0
  %3673 = vmatprep.subr.bf16.mxu0 0
  %3674 = vmatpush1.bf16.msra.mxu0 0
  %3675 = vmatprep.mubr.bf16.mxu0 0
  %3676 = vmatmul.mubr.bf16.gmra.mrb[0].mxu0 %v3221
  %v3677 = vpop.f32.mrb[0].mxu0
  %v3678 = vadd.f32 0.0, %v3677
  %v3679 = vpop.f32.mrb[0].mxu0
  %v3680 = vpop.f32.mrb[0].mxu0
  %v3681 = vadd.f32 0.0, %v3680
  %v3682 = vpop.f32.mrb[0].mxu0
  %3683 = vmatprep.mubr.bf16.mxu0 0
  %3684 = vmatmul.mubr.bf16.gmra.mrb[0].mxu0 %v3224
  %v3685 = vpop.f32.mrb[0].mxu0
  %v3686 = vadd.f32 0.0, %v3685
  %v3687 = vpop.f32.mrb[0].mxu0
  %v3688 = vpop.f32.mrb[0].mxu0
  %v3689 = vadd.f32 0.0, %v3688
  %v3690 = vpop.f32.mrb[0].mxu0
  %3691 = vmatprep.mubr.bf16.mxu0 0
  %3692 = vmatmul.mubr.bf16.gmra.mrb[0].mxu0 %v3227
  %v3693 = vpop.f32.mrb[0].mxu0
  %v3694 = vadd.f32 0.0, %v3693
  %v3695 = vpop.f32.mrb[0].mxu0
  %v3696 = vpop.f32.mrb[0].mxu0
  %v3697 = vadd.f32 0.0, %v3696
  %v3698 = vpop.f32.mrb[0].mxu0
  %3699 = vmatprep.mubr.bf16.mxu0 0
  %3700 = vmatmul.mubr.bf16.gmra.mrb[0].mxu0 %v3230
  %v3701 = vpop.f32.mrb[0].mxu0
  %v3702 = vadd.f32 0.0, %v3701
  %v3703 = vpop.f32.mrb[0].mxu0
  %v3704 = vpop.f32.mrb[0].mxu0
  %v3705 = vadd.f32 0.0, %v3704
  %v3706 = vpop.f32.mrb[0].mxu0
  %3707 = vdwg.mxu0
  %v3708 = vpack.c.bf16 %v3681, %v3678
  %v3709 = vpack.c.bf16 %v3689, %v3686
  %v3710 = vpack.c.bf16 %v3697, %v3694
  %v3711 = vpack.c.bf16 %v3705, %v3702
  %3712 = vst.msk [vmem:[#allocation2 + $0x140] sm:$0xff] %vm3301, %v3708
  %3713 = vst.msk [vmem:[#allocation2 + $0x150] sm:$0xff] %vm3301, %v3709
  %3714 = vst.msk [vmem:[#allocation2 + $0x160] sm:$0xff] %vm3301, %v3710
  %3715 = vst.msk [vmem:[#allocation2 + $0x170] sm:$0xff] %vm3301, %v3711
  %s3716 = scalar_lea.vmem %s7, 48
  %v3717 = vld [vmem:[%s3716] sm:$0xf]
  %v3718 = vld [vmem:[%s3716 + $0x4] sm:$0xf]
  %v3721 = vunpack.c.l.b16 %v3717
  %v3722 = vunpack.c.l.b16 %v3718
  %v3723 = vpack.c.b16 %v3722, %v3721
  %3725 = vmatprep.subr.bf16.mxu0 0
  %3726 = vmatpush1.bf16.msra.mxu0 %v3723
  %3727 = vmatprep.subr.bf16.mxu0 0
  %3728 = vmatpush1.bf16.msra.mxu0 0
  %3729 = vmatprep.subr.bf16.mxu0 0
  %3730 = vmatpush1.bf16.msra.mxu0 0
  %3731 = vmatprep.subr.bf16.mxu0 0
  %3732 = vmatpush1.bf16.msra.mxu0 0
  %3733 = vmatprep.subr.bf16.mxu0 0
  %3734 = vmatpush1.bf16.msra.mxu0 0
  %3735 = vmatprep.subr.bf16.mxu0 0
  %3736 = vmatpush1.bf16.msra.mxu0 0
  %3737 = vmatprep.subr.bf16.mxu0 0
  %3738 = vmatpush1.bf16.msra.mxu0 0
  %3739 = vmatprep.subr.bf16.mxu0 0
  %3740 = vmatpush1.bf16.msra.mxu0 0
  %3741 = vmatprep.subr.bf16.mxu0 0
  %3742 = vmatpush1.bf16.msra.mxu0 0
  %3743 = vmatprep.subr.bf16.mxu0 0
  %3744 = vmatpush1.bf16.msra.mxu0 0
  %3745 = vmatprep.subr.bf16.mxu0 0
  %3746 = vmatpush1.bf16.msra.mxu0 0
  %3747 = vmatprep.subr.bf16.mxu0 0
  %3748 = vmatpush1.bf16.msra.mxu0 0
  %3749 = vmatprep.subr.bf16.mxu0 0
  %3750 = vmatpush1.bf16.msra.mxu0 0
  %3751 = vmatprep.subr.bf16.mxu0 0
  %3752 = vmatpush1.bf16.msra.mxu0 0
  %3753 = vmatprep.subr.bf16.mxu0 0
  %3754 = vmatpush1.bf16.msra.mxu0 0
  %3755 = vmatprep.subr.bf16.mxu0 0
  %3756 = vmatpush1.bf16.msra.mxu0 0
  %3757 = vmatprep.mubr.bf16.mxu0 0
  %3758 = vmatmul.mubr.bf16.gmra.mrb[0].mxu0 %v3221
  %v3759 = vpop.f32.mrb[0].mxu0
  %v3760 = vadd.f32 0.0, %v3759
  %v3761 = vpop.f32.mrb[0].mxu0
  %v3762 = vpop.f32.mrb[0].mxu0
  %v3763 = vadd.f32 0.0, %v3762
  %v3764 = vpop.f32.mrb[0].mxu0
  %3765 = vmatprep.mubr.bf16.mxu0 0
  %3766 = vmatmul.mubr.bf16.gmra.mrb[0].mxu0 %v3224
  %v3767 = vpop.f32.mrb[0].mxu0
  %v3768 = vadd.f32 0.0, %v3767
  %v3769 = vpop.f32.mrb[0].mxu0
  %v3770 = vpop.f32.mrb[0].mxu0
  %v3771 = vadd.f32 0.0, %v3770
  %v3772 = vpop.f32.mrb[0].mxu0
  %3773 = vmatprep.mubr.bf16.mxu0 0
  %3774 = vmatmul.mubr.bf16.gmra.mrb[0].mxu0 %v3227
  %v3775 = vpop.f32.mrb[0].mxu0
  %v3776 = vadd.f32 0.0, %v3775
  %v3777 = vpop.f32.mrb[0].mxu0
  %v3778 = vpop.f32.mrb[0].mxu0
  %v3779 = vadd.f32 0.0, %v3778
  %v3780 = vpop.f32.mrb[0].mxu0
  %3781 = vmatprep.mubr.bf16.mxu0 0
  %3782 = vmatmul.mubr.bf16.gmra.mrb[0].mxu0 %v3230
  %v3783 = vpop.f32.mrb[0].mxu0
  %v3784 = vadd.f32 0.0, %v3783
  %v3785 = vpop.f32.mrb[0].mxu0
  %v3786 = vpop.f32.mrb[0].mxu0
  %v3787 = vadd.f32 0.0, %v3786
  %v3788 = vpop.f32.mrb[0].mxu0
  %3789 = vdwg.mxu0
  %v3790 = vpack.c.bf16 %v3763, %v3760
  %v3791 = vpack.c.bf16 %v3771, %v3768
  %v3792 = vpack.c.bf16 %v3779, %v3776
  %v3793 = vpack.c.bf16 %v3787, %v3784
  %3794 = vst.msk [vmem:[#allocation2 + $0x180] sm:$0xff] %vm3301, %v3790
  %3795 = vst.msk [vmem:[#allocation2 + $0x190] sm:$0xff] %vm3301, %v3791
  %3796 = vst.msk [vmem:[#allocation2 + $0x1a0] sm:$0xff] %vm3301, %v3792
  %3797 = vst.msk [vmem:[#allocation2 + $0x1b0] sm:$0xff] %vm3301, %v3793
  %s3798 = scalar_lea.vmem %s7, 56
  %v3799 = vld [vmem:[%s3798] sm:$0xf]
  %v3800 = vld [vmem:[%s3798 + $0x4] sm:$0xf]
  %v3803 = vunpack.c.l.b16 %v3799
  %v3804 = vunpack.c.l.b16 %v3800
  %v3805 = vpack.c.b16 %v3804, %v3803
  %3807 = vmatprep.subr.bf16.mxu0 0
  %3808 = vmatpush1.bf16.msra.mxu0 %v3805
  %3809 = vmatprep.subr.bf16.mxu0 0
  %3810 = vmatpush1.bf16.msra.mxu0 0
  %3811 = vmatprep.subr.bf16.mxu0 0
  %3812 = vmatpush1.bf16.msra.mxu0 0
  %3813 = vmatprep.subr.bf16.mxu0 0
  %3814 = vmatpush1.bf16.msra.mxu0 0
  %3815 = vmatprep.subr.bf16.mxu0 0
  %3816 = vmatpush1.bf16.msra.mxu0 0
  %3817 = vmatprep.subr.bf16.mxu0 0
  %3818 = vmatpush1.bf16.msra.mxu0 0
  %3819 = vmatprep.subr.bf16.mxu0 0
  %3820 = vmatpush1.bf16.msra.mxu0 0
  %3821 = vmatprep.subr.bf16.mxu0 0
  %3822 = vmatpush1.bf16.msra.mxu0 0
  %3823 = vmatprep.subr.bf16.mxu0 0
  %3824 = vmatpush1.bf16.msra.mxu0 0
  %3825 = vmatprep.subr.bf16.mxu0 0
  %3826 = vmatpush1.bf16.msra.mxu0 0
  %3827 = vmatprep.subr.bf16.mxu0 0
  %3828 = vmatpush1.bf16.msra.mxu0 0
  %3829 = vmatprep.subr.bf16.mxu0 0
  %3830 = vmatpush1.bf16.msra.mxu0 0
  %3831 = vmatprep.subr.bf16.mxu0 0
  %3832 = vmatpush1.bf16.msra.mxu0 0
  %3833 = vmatprep.subr.bf16.mxu0 0
  %3834 = vmatpush1.bf16.msra.mxu0 0
  %3835 = vmatprep.subr.bf16.mxu0 0
  %3836 = vmatpush1.bf16.msra.mxu0 0
  %3837 = vmatprep.subr.bf16.mxu0 0
  %3838 = vmatpush1.bf16.msra.mxu0 0
  %3839 = vmatprep.mubr.bf16.mxu0 0
  %3840 = vmatmul.mubr.bf16.gmra.mrb[0].mxu0 %v3221
  %v3841 = vpop.f32.mrb[0].mxu0
  %v3842 = vadd.f32 0.0, %v3841
  %v3843 = vpop.f32.mrb[0].mxu0
  %v3844 = vpop.f32.mrb[0].mxu0
  %v3845 = vadd.f32 0.0, %v3844
  %v3846 = vpop.f32.mrb[0].mxu0
  %3847 = vmatprep.mubr.bf16.mxu0 0
  %3848 = vmatmul.mubr.bf16.gmra.mrb[0].mxu0 %v3224
  %v3849 = vpop.f32.mrb[0].mxu0
  %v3850 = vadd.f32 0.0, %v3849
  %v3851 = vpop.f32.mrb[0].mxu0
  %v3852 = vpop.f32.mrb[0].mxu0
  %v3853 = vadd.f32 0.0, %v3852
  %v3854 = vpop.f32.mrb[0].mxu0
  %3855 = vmatprep.mubr.bf16.mxu0 0
  %3856 = vmatmul.mubr.bf16.gmra.mrb[0].mxu0 %v3227
  %v3857 = vpop.f32.mrb[0].mxu0
  %v3858 = vadd.f32 0.0, %v3857
  %v3859 = vpop.f32.mrb[0].mxu0
  %v3860 = vpop.f32.mrb[0].mxu0
  %v3861 = vadd.f32 0.0, %v3860
  %v3862 = vpop.f32.mrb[0].mxu0
  %3863 = vmatprep.mubr.bf16.mxu0 0
  %3864 = vmatmul.mubr.bf16.gmra.mrb[0].mxu0 %v3230
  %v3865 = vpop.f32.mrb[0].mxu0
  %v3866 = vadd.f32 0.0, %v3865
  %v3867 = vpop.f32.mrb[0].mxu0
  %v3868 = vpop.f32.mrb[0].mxu0
  %v3869 = vadd.f32 0.0, %v3868
  %v3870 = vpop.f32.mrb[0].mxu0
  %3871 = vdwg.mxu0
  %v3872 = vpack.c.bf16 %v3845, %v3842
  %v3873 = vpack.c.bf16 %v3853, %v3850
  %v3874 = vpack.c.bf16 %v3861, %v3858
  %v3875 = vpack.c.bf16 %v3869, %v3866
  %3876 = vst.msk [vmem:[#allocation2 + $0x1c0] sm:$0xff] %vm3301, %v3872
  %3877 = vst.msk [vmem:[#allocation2 + $0x1d0] sm:$0xff] %vm3301, %v3873
  %3878 = vst.msk [vmem:[#allocation2 + $0x1e0] sm:$0xff] %vm3301, %v3874
  %3879 = vst.msk [vmem:[#allocation2 + $0x1f0] sm:$0xff] %vm3301, %v3875
  %s3880 = scalar_lea.vmem %s7, 64
  %v3881 = vld [vmem:[%s3880] sm:$0xf]
  %v3882 = vld [vmem:[%s3880 + $0x4] sm:$0xf]
  %v3885 = vunpack.c.l.b16 %v3881
  %v3886 = vunpack.c.l.b16 %v3882
  %v3887 = vpack.c.b16 %v3886, %v3885
  %3889 = vmatprep.subr.bf16.mxu0 0
  %3890 = vmatpush1.bf16.msra.mxu0 %v3887
  %3891 = vmatprep.subr.bf16.mxu0 0
  %3892 = vmatpush1.bf16.msra.mxu0 0
  %3893 = vmatprep.subr.bf16.mxu0 0
  %3894 = vmatpush1.bf16.msra.mxu0 0
  %3895 = vmatprep.subr.bf16.mxu0 0
  %3896 = vmatpush1.bf16.msra.mxu0 0
  %3897 = vmatprep.subr.bf16.mxu0 0
  %3898 = vmatpush1.bf16.msra.mxu0 0
  %3899 = vmatprep.subr.bf16.mxu0 0
  %3900 = vmatpush1.bf16.msra.mxu0 0
  %3901 = vmatprep.subr.bf16.mxu0 0
  %3902 = vmatpush1.bf16.msra.mxu0 0
  %3903 = vmatprep.subr.bf16.mxu0 0
  %3904 = vmatpush1.bf16.msra.mxu0 0
  %3905 = vmatprep.subr.bf16.mxu0 0
  %3906 = vmatpush1.bf16.msra.mxu0 0
  %3907 = vmatprep.subr.bf16.mxu0 0
  %3908 = vmatpush1.bf16.msra.mxu0 0
  %3909 = vmatprep.subr.bf16.mxu0 0
  %3910 = vmatpush1.bf16.msra.mxu0 0
  %3911 = vmatprep.subr.bf16.mxu0 0
  %3912 = vmatpush1.bf16.msra.mxu0 0
  %3913 = vmatprep.subr.bf16.mxu0 0
  %3914 = vmatpush1.bf16.msra.mxu0 0
  %3915 = vmatprep.subr.bf16.mxu0 0
  %3916 = vmatpush1.bf16.msra.mxu0 0
  %3917 = vmatprep.subr.bf16.mxu0 0
  %3918 = vmatpush1.bf16.msra.mxu0 0
  %3919 = vmatprep.subr.bf16.mxu0 0
  %3920 = vmatpush1.bf16.msra.mxu0 0
  %3921 = vmatprep.mubr.bf16.mxu0 0
  %3922 = vmatmul.mubr.bf16.gmra.mrb[0].mxu0 %v3221
  %v3923 = vpop.f32.mrb[0].mxu0
  %v3924 = vadd.f32 0.0, %v3923
  %v3925 = vpop.f32.mrb[0].mxu0
  %v3926 = vpop.f32.mrb[0].mxu0
  %v3927 = vadd.f32 0.0, %v3926
  %v3928 = vpop.f32.mrb[0].mxu0
  %3929 = vmatprep.mubr.bf16.mxu0 0
  %3930 = vmatmul.mubr.bf16.gmra.mrb[0].mxu0 %v3224
  %v3931 = vpop.f32.mrb[0].mxu0
  %v3932 = vadd.f32 0.0, %v3931
  %v3933 = vpop.f32.mrb[0].mxu0
  %v3934 = vpop.f32.mrb[0].mxu0
  %v3935 = vadd.f32 0.0, %v3934
  %v3936 = vpop.f32.mrb[0].mxu0
  %3937 = vmatprep.mubr.bf16.mxu0 0
  %3938 = vmatmul.mubr.bf16.gmra.mrb[0].mxu0 %v3227
  %v3939 = vpop.f32.mrb[0].mxu0
  %v3940 = vadd.f32 0.0, %v3939
  %v3941 = vpop.f32.mrb[0].mxu0
  %v3942 = vpop.f32.mrb[0].mxu0
  %v3943 = vadd.f32 0.0, %v3942
  %v3944 = vpop.f32.mrb[0].mxu0
  %3945 = vmatprep.mubr.bf16.mxu0 0
  %3946 = vmatmul.mubr.bf16.gmra.mrb[0].mxu0 %v3230
  %v3947 = vpop.f32.mrb[0].mxu0
  %v3948 = vadd.f32 0.0, %v3947
  %v3949 = vpop.f32.mrb[0].mxu0
  %v3950 = vpop.f32.mrb[0].mxu0
  %v3951 = vadd.f32 0.0, %v3950
  %v3952 = vpop.f32.mrb[0].mxu0
  %3953 = vdwg.mxu0
  %v3954 = vpack.c.bf16 %v3927, %v3924
  %v3955 = vpack.c.bf16 %v3935, %v3932
  %v3956 = vpack.c.bf16 %v3943, %v3940
  %v3957 = vpack.c.bf16 %v3951, %v3948
  %3958 = vst.msk [vmem:[#allocation2 + $0x200] sm:$0xff] %vm3301, %v3954
  %3959 = vst.msk [vmem:[#allocation2 + $0x210] sm:$0xff] %vm3301, %v3955
  %3960 = vst.msk [vmem:[#allocation2 + $0x220] sm:$0xff] %vm3301, %v3956
  %3961 = vst.msk [vmem:[#allocation2 + $0x230] sm:$0xff] %vm3301, %v3957
  %v3962 = vld [vmem:[%s8] sm:$0xff]
  %v3963 = vld [vmem:[%s8 + $0x8] sm:$0xff]
  %v3964 = vld [vmem:[%s8 + $0x10] sm:$0xf]
  %v3965 = vld [vmem:[%s8 + $0x14] sm:$0xff]
  %v3966 = vld [vmem:[%s8 + $0x1c] sm:$0xff]
  %v3967 = vld [vmem:[%s8 + $0x24] sm:$0xf]
  %v3968 = vld [vmem:[%s8 + $0x28] sm:$0xff]
  %v3969 = vld [vmem:[%s8 + $0x30] sm:$0xff]
  %v3970 = vld [vmem:[%s8 + $0x38] sm:$0xf]
  %v3971 = vld [vmem:[%s8 + $0x3c] sm:$0xff]
  %v3972 = vld [vmem:[%s8 + $0x44] sm:$0xff]
  %v3973 = vld [vmem:[%s8 + $0x4c] sm:$0xf]
  %v3974 = vld [vmem:[%s8 + $0x50] sm:$0xff]
  %v3975 = vld [vmem:[%s8 + $0x58] sm:$0xff]
  %v3976 = vld [vmem:[%s8 + $0x60] sm:$0xf]
  %v3977 = vld [vmem:[%s8 + $0x64] sm:$0xff]
  %v3978 = vld [vmem:[%s8 + $0x6c] sm:$0xff]
  %v3979 = vld [vmem:[%s8 + $0x74] sm:$0xf]
  %v3980 = vld [vmem:[%s8 + $0x78] sm:$0xff]
  %v3981 = vld [vmem:[%s8 + $0x80] sm:$0xff]
  %v3982 = vld [vmem:[%s8 + $0x88] sm:$0xf]
  %v3983 = vld [vmem:[%s8 + $0x8c] sm:$0xff]
  %v3984 = vld [vmem:[%s8 + $0x94] sm:$0xff]
  %v3985 = vld [vmem:[%s8 + $0x9c] sm:$0xf]
  %v3986 = vld [vmem:[#allocation2] sm:$0xff]
  %v3987 = vld [vmem:[#allocation2 + $0x10] sm:$0xff]
  %v3988 = vld [vmem:[#allocation2 + $0x20] sm:$0xff]
  %v3989 = vld [vmem:[#allocation2 + $0x30] sm:$0xff]
  %v3990 = vld [vmem:[#allocation2 + $0x40] sm:$0xff]
  %v3991 = vld [vmem:[#allocation2 + $0x50] sm:$0xff]
  %v3992 = vld [vmem:[#allocation2 + $0x60] sm:$0xff]
  %v3993 = vld [vmem:[#allocation2 + $0x70] sm:$0xff]
  %v3994 = vld [vmem:[#allocation2 + $0x80] sm:$0xff]
  %v3995 = vld [vmem:[#allocation2 + $0x90] sm:$0xff]
  %v3996 = vld [vmem:[#allocation2 + $0xa0] sm:$0xff]
  %v3997 = vld [vmem:[#allocation2 + $0xb0] sm:$0xff]
  %v3998 = vld [vmem:[#allocation2 + $0xc0] sm:$0xff]
  %v3999 = vld [vmem:[#allocation2 + $0xd0] sm:$0xff]
  %v4000 = vld [vmem:[#allocation2 + $0xe0] sm:$0xff]
  %v4001 = vld [vmem:[#allocation2 + $0xf0] sm:$0xff]
  %v4002 = vld [vmem:[#allocation2 + $0x100] sm:$0xff]
  %v4003 = vld [vmem:[#allocation2 + $0x110] sm:$0xff]
  %v4004 = vld [vmem:[#allocation2 + $0x120] sm:$0xff]
  %v4005 = vld [vmem:[#allocation2 + $0x130] sm:$0xff]
  %v4006 = vld [vmem:[#allocation2 + $0x140] sm:$0xff]
  %v4007 = vld [vmem:[#allocation2 + $0x150] sm:$0xff]
  %v4008 = vld [vmem:[#allocation2 + $0x160] sm:$0xff]
  %v4009 = vld [vmem:[#allocation2 + $0x170] sm:$0xff]
  %v4010 = vld [vmem:[#allocation2 + $0x180] sm:$0xff]
  %v4011 = vld [vmem:[#allocation2 + $0x190] sm:$0xff]
  %v4012 = vld [vmem:[#allocation2 + $0x1a0] sm:$0xff]
  %v4013 = vld [vmem:[#allocation2 + $0x1b0] sm:$0xff]
  %v4014 = vld [vmem:[#allocation2 + $0x1c0] sm:$0xff]
  %v4015 = vld [vmem:[#allocation2 + $0x1d0] sm:$0xff]
  %v4016 = vld [vmem:[#allocation2 + $0x1e0] sm:$0xff]
  %v4017 = vld [vmem:[#allocation2 + $0x1f0] sm:$0xff]
  %v4018 = vld [vmem:[#allocation2 + $0x200] sm:$0xff]
  %v4019 = vld [vmem:[#allocation2 + $0x210] sm:$0xff]
  %v4020 = vld [vmem:[#allocation2 + $0x220] sm:$0xff]
  %v4021 = vld [vmem:[#allocation2 + $0x230] sm:$0xff]
  %v4022 = vld [vmem:[%s9] sm:$0xff]
  %v4023 = vld [vmem:[%s9 + $0x8] sm:$0xff]
  %v4024 = vld [vmem:[%s9 + $0x10] sm:$0xff]
  %v4025 = vld [vmem:[%s9 + $0x18] sm:$0xff]
  %v4026 = vld [vmem:[%s9 + $0x20] sm:$0xff]
  %v4027 = vld [vmem:[%s9 + $0x28] sm:$0xff]
  %v4028 = vld [vmem:[%s9 + $0x30] sm:$0xff]
  %v4029 = vld [vmem:[%s9 + $0x38] sm:$0xff]
  %4031 = vset.pattern.permute.xlu0 0
  %4032 = vperm.xlu0 %4031, %v4022
  %v4033 = vpop.permute.xlu0 %4032
  %4036 = vset.pattern.permute.xlu0 0
  %4037 = vperm.xlu0 %4036, %v4023
  %v4038 = vpop.permute.xlu0 %4037
  %4041 = vset.pattern.permute.xlu0 0
  %4042 = vperm.xlu0 %4041, %v4024
  %v4043 = vpop.permute.xlu0 %4042
  %4046 = vset.pattern.permute.xlu0 0
  %4047 = vperm.xlu0 %4046, %v4025
  %v4048 = vpop.permute.xlu0 %4047
  %4051 = vset.pattern.permute.xlu0 0
  %4052 = vperm.xlu0 %4051, %v4026
  %v4053 = vpop.permute.xlu0 %4052
  %4056 = vset.pattern.permute.xlu0 0
  %4057 = vperm.xlu0 %4056, %v4027
  %v4058 = vpop.permute.xlu0 %4057
  %4061 = vset.pattern.permute.xlu0 0
  %4062 = vperm.xlu0 %4061, %v4028
  %v4063 = vpop.permute.xlu0 %4062
  %4066 = vset.pattern.permute.xlu0 0
  %4067 = vperm.xlu0 %4066, %v4029
  %v4068 = vpop.permute.xlu0 %4067
  %v4094 = vunpack.c.l.b16 %v3962
  %v4095 = vunpack.c.h.b16 %v3962
  %v4096 = vunpack.c.l.b16 %v3963
  %v4097 = vunpack.c.h.b16 %v3963
  %v4098 = vunpack.c.l.b16 %v3964
  %v4099 = vunpack.c.l.b16 %v3965
  %v4100 = vunpack.c.h.b16 %v3965
  %v4101 = vunpack.c.l.b16 %v3966
  %v4102 = vunpack.c.h.b16 %v3966
  %v4103 = vunpack.c.l.b16 %v3967
  %v4104 = vunpack.c.l.b16 %v3968
  %v4105 = vunpack.c.h.b16 %v3968
  %v4106 = vunpack.c.l.b16 %v3969
  %v4107 = vunpack.c.h.b16 %v3969
  %v4108 = vunpack.c.l.b16 %v3970
  %v4109 = vunpack.c.l.b16 %v3971
  %v4110 = vunpack.c.h.b16 %v3971
  %v4111 = vunpack.c.l.b16 %v3972
  %v4112 = vunpack.c.h.b16 %v3972
  %v4113 = vunpack.c.l.b16 %v3973
  %v4114 = vunpack.c.l.b16 %v3974
  %v4115 = vunpack.c.h.b16 %v3974
  %v4116 = vunpack.c.l.b16 %v3975
  %v4117 = vunpack.c.h.b16 %v3975
  %v4118 = vunpack.c.l.b16 %v3976
  %v4119 = vunpack.c.l.b16 %v3977
  %v4120 = vunpack.c.h.b16 %v3977
  %v4121 = vunpack.c.l.b16 %v3978
  %v4122 = vunpack.c.h.b16 %v3978
  %v4123 = vunpack.c.l.b16 %v3979
  %v4124 = vunpack.c.l.b16 %v3980
  %v4125 = vunpack.c.h.b16 %v3980
  %v4126 = vunpack.c.l.b16 %v3981
  %v4127 = vunpack.c.h.b16 %v3981
  %v4128 = vunpack.c.l.b16 %v3982
  %v4129 = vunpack.c.l.b16 %v3983
  %v4130 = vunpack.c.h.b16 %v3983
  %v4131 = vunpack.c.l.b16 %v3984
  %v4132 = vunpack.c.h.b16 %v3984
  %v4133 = vunpack.c.l.b16 %v3985
  %v4134 = vpack.c.b16 %v4099, %v4094
  %v4135 = vpack.c.b16 %v4100, %v4095
  %v4136 = vpack.c.b16 %v4101, %v4096
  %v4137 = vpack.c.b16 %v4102, %v4097
  %v4138 = vpack.c.b16 %v4103, %v4098
  %v4139 = vpack.c.b16 %v4109, %v4104
  %v4140 = vpack.c.b16 %v4110, %v4105
  %v4141 = vpack.c.b16 %v4111, %v4106
  %v4142 = vpack.c.b16 %v4112, %v4107
  %v4143 = vpack.c.b16 %v4113, %v4108
  %v4144 = vpack.c.b16 %v4119, %v4114
  %v4145 = vpack.c.b16 %v4120, %v4115
  %v4146 = vpack.c.b16 %v4121, %v4116
  %v4147 = vpack.c.b16 %v4122, %v4117
  %v4148 = vpack.c.b16 %v4123, %v4118
  %v4149 = vpack.c.b16 %v4129, %v4124
  %v4150 = vpack.c.b16 %v4130, %v4125
  %v4151 = vpack.c.b16 %v4131, %v4126
  %v4152 = vpack.c.b16 %v4132, %v4127
  %v4153 = vpack.c.b16 %v4133, %v4128
  %v4171 = vsel %vm251, %v4138, 0
  %v4174 = vsel %vm251, %v4143, 0
  %v4177 = vsel %vm251, %v4148, 0
  %v4180 = vsel %vm251, %v4153, 0
  %4182 = vmatprep.subr.bf16.mxu0 0
  %4183 = vmatpush1.bf16.msra.mxu0 %v3986
  %4184 = vmatprep.subr.bf16.mxu0 0
  %4185 = vmatpush1.bf16.msra.mxu0 %v3987
  %4186 = vmatprep.subr.bf16.mxu0 0
  %4187 = vmatpush1.bf16.msra.mxu0 %v3988
  %4188 = vmatprep.subr.bf16.mxu0 0
  %4189 = vmatpush1.bf16.msra.mxu0 %v3989
  %4190 = vmatprep.subr.bf16.mxu0 0
  %4191 = vmatpush1.bf16.msra.mxu0 %v3990
  %4192 = vmatprep.subr.bf16.mxu0 0
  %4193 = vmatpush1.bf16.msra.mxu0 %v3991
  %4194 = vmatprep.subr.bf16.mxu0 0
  %4195 = vmatpush1.bf16.msra.mxu0 %v3992
  %4196 = vmatprep.subr.bf16.mxu0 0
  %4197 = vmatpush1.bf16.msra.mxu0 %v3993
  %4198 = vmatprep.subr.bf16.mxu0 0
  %4199 = vmatpush1.bf16.msra.mxu0 %v3994
  %4200 = vmatprep.subr.bf16.mxu0 0
  %4201 = vmatpush1.bf16.msra.mxu0 %v3995
  %4202 = vmatprep.subr.bf16.mxu0 0
  %4203 = vmatpush1.bf16.msra.mxu0 %v3996
  %4204 = vmatprep.subr.bf16.mxu0 0
  %4205 = vmatpush1.bf16.msra.mxu0 %v3997
  %4206 = vmatprep.subr.bf16.mxu0 0
  %4207 = vmatpush1.bf16.msra.mxu0 %v3998
  %4208 = vmatprep.subr.bf16.mxu0 0
  %4209 = vmatpush1.bf16.msra.mxu0 %v3999
  %4210 = vmatprep.subr.bf16.mxu0 0
  %4211 = vmatpush1.bf16.msra.mxu0 %v4000
  %4212 = vmatprep.subr.bf16.mxu0 0
  %4213 = vmatpush1.bf16.msra.mxu0 %v4001
  %4214 = vmatprep.mubr.bf16.mxu0 %v4135
  %4215 = vmatmul.mubr.bf16.gmra.mrb[0].mxu0 %v4134
  %v4216 = vpop.f32.mrb[0].mxu0
  %v4217 = vadd.f32 %v4033, %v4216
  %v4218 = vpop.f32.mrb[0].mxu0
  %v4219 = vpop.f32.mrb[0].mxu0
  %v4220 = vadd.f32 %v4038, %v4219
  %v4221 = vpop.f32.mrb[0].mxu0
  %4222 = vmatprep.mubr.bf16.mxu0 %v4140
  %4223 = vmatmul.mubr.bf16.gmra.mrb[0].mxu0 %v4139
  %v4224 = vpop.f32.mrb[0].mxu0
  %v4225 = vadd.f32 %v4043, %v4224
  %v4226 = vpop.f32.mrb[0].mxu0
  %v4227 = vpop.f32.mrb[0].mxu0
  %v4228 = vadd.f32 %v4048, %v4227
  %v4229 = vpop.f32.mrb[0].mxu0
  %4230 = vmatprep.mubr.bf16.mxu0 %v4145
  %4231 = vmatmul.mubr.bf16.gmra.mrb[0].mxu0 %v4144
  %v4232 = vpop.f32.mrb[0].mxu0
  %v4233 = vadd.f32 %v4053, %v4232
  %v4234 = vpop.f32.mrb[0].mxu0
  %v4235 = vpop.f32.mrb[0].mxu0
  %v4236 = vadd.f32 %v4058, %v4235
  %v4237 = vpop.f32.mrb[0].mxu0
  %4238 = vmatprep.mubr.bf16.mxu0 %v4150
  %4239 = vmatmul.mubr.bf16.gmra.mrb[0].mxu0 %v4149
  %v4240 = vpop.f32.mrb[0].mxu0
  %v4241 = vadd.f32 %v4063, %v4240
  %v4242 = vpop.f32.mrb[0].mxu0
  %v4243 = vpop.f32.mrb[0].mxu0
  %v4244 = vadd.f32 %v4068, %v4243
  %v4245 = vpop.f32.mrb[0].mxu0
  %4246 = vdwg.mxu0
  %4247 = vmatprep.subr.bf16.mxu0 0
  %4248 = vmatpush1.bf16.msra.mxu0 %v4002
  %4249 = vmatprep.subr.bf16.mxu0 0
  %4250 = vmatpush1.bf16.msra.mxu0 %v4003
  %4251 = vmatprep.subr.bf16.mxu0 0
  %4252 = vmatpush1.bf16.msra.mxu0 %v4004
  %4253 = vmatprep.subr.bf16.mxu0 0
  %4254 = vmatpush1.bf16.msra.mxu0 %v4005
  %4255 = vmatprep.subr.bf16.mxu0 0
  %4256 = vmatpush1.bf16.msra.mxu0 %v4006
  %4257 = vmatprep.subr.bf16.mxu0 0
  %4258 = vmatpush1.bf16.msra.mxu0 %v4007
  %4259 = vmatprep.subr.bf16.mxu0 0
  %4260 = vmatpush1.bf16.msra.mxu0 %v4008
  %4261 = vmatprep.subr.bf16.mxu0 0
  %4262 = vmatpush1.bf16.msra.mxu0 %v4009
  %4263 = vmatprep.subr.bf16.mxu0 0
  %4264 = vmatpush1.bf16.msra.mxu0 %v4010
  %4265 = vmatprep.subr.bf16.mxu0 0
  %4266 = vmatpush1.bf16.msra.mxu0 %v4011
  %4267 = vmatprep.subr.bf16.mxu0 0
  %4268 = vmatpush1.bf16.msra.mxu0 %v4012
  %4269 = vmatprep.subr.bf16.mxu0 0
  %4270 = vmatpush1.bf16.msra.mxu0 %v4013
  %4271 = vmatprep.subr.bf16.mxu0 0
  %4272 = vmatpush1.bf16.msra.mxu0 %v4014
  %4273 = vmatprep.subr.bf16.mxu0 0
  %4274 = vmatpush1.bf16.msra.mxu0 %v4015
  %4275 = vmatprep.subr.bf16.mxu0 0
  %4276 = vmatpush1.bf16.msra.mxu0 %v4016
  %4277 = vmatprep.subr.bf16.mxu0 0
  %4278 = vmatpush1.bf16.msra.mxu0 %v4017
  %4279 = vmatprep.mubr.bf16.mxu0 %v4137
  %4280 = vmatmul.mubr.bf16.gmra.mrb[0].mxu0 %v4136
  %v4281 = vpop.f32.mrb[0].mxu0
  %v4282 = vadd.f32 %v4217, %v4281
  %v4283 = vpop.f32.mrb[0].mxu0
  %v4284 = vpop.f32.mrb[0].mxu0
  %v4285 = vadd.f32 %v4220, %v4284
  %v4286 = vpop.f32.mrb[0].mxu0
  %4287 = vmatprep.mubr.bf16.mxu0 %v4142
  %4288 = vmatmul.mubr.bf16.gmra.mrb[0].mxu0 %v4141
  %v4289 = vpop.f32.mrb[0].mxu0
  %v4290 = vadd.f32 %v4225, %v4289
  %v4291 = vpop.f32.mrb[0].mxu0
  %v4292 = vpop.f32.mrb[0].mxu0
  %v4293 = vadd.f32 %v4228, %v4292
  %v4294 = vpop.f32.mrb[0].mxu0
  %4295 = vmatprep.mubr.bf16.mxu0 %v4147
  %4296 = vmatmul.mubr.bf16.gmra.mrb[0].mxu0 %v4146
  %v4297 = vpop.f32.mrb[0].mxu0
  %v4298 = vadd.f32 %v4233, %v4297
  %v4299 = vpop.f32.mrb[0].mxu0
  %v4300 = vpop.f32.mrb[0].mxu0
  %v4301 = vadd.f32 %v4236, %v4300
  %v4302 = vpop.f32.mrb[0].mxu0
  %4303 = vmatprep.mubr.bf16.mxu0 %v4152
  %4304 = vmatmul.mubr.bf16.gmra.mrb[0].mxu0 %v4151
  %v4305 = vpop.f32.mrb[0].mxu0
  %v4306 = vadd.f32 %v4241, %v4305
  %v4307 = vpop.f32.mrb[0].mxu0
  %v4308 = vpop.f32.mrb[0].mxu0
  %v4309 = vadd.f32 %v4244, %v4308
  %v4310 = vpop.f32.mrb[0].mxu0
  %4311 = vdwg.mxu0
  %4312 = vmatprep.subr.bf16.mxu0 0
  %4313 = vmatpush1.bf16.msra.mxu0 %v4018
  %4314 = vmatprep.subr.bf16.mxu0 0
  %4315 = vmatpush1.bf16.msra.mxu0 %v4019
  %4316 = vmatprep.subr.bf16.mxu0 0
  %4317 = vmatpush1.bf16.msra.mxu0 %v4020
  %4318 = vmatprep.subr.bf16.mxu0 0
  %4319 = vmatpush1.bf16.msra.mxu0 %v4021
  %4320 = vmatprep.subr.bf16.mxu0 0
  %4321 = vmatpush1.bf16.msra.mxu0 0
  %4322 = vmatprep.subr.bf16.mxu0 0
  %4323 = vmatpush1.bf16.msra.mxu0 0
  %4324 = vmatprep.subr.bf16.mxu0 0
  %4325 = vmatpush1.bf16.msra.mxu0 0
  %4326 = vmatprep.subr.bf16.mxu0 0
  %4327 = vmatpush1.bf16.msra.mxu0 0
  %4328 = vmatprep.subr.bf16.mxu0 0
  %4329 = vmatpush1.bf16.msra.mxu0 0
  %4330 = vmatprep.subr.bf16.mxu0 0
  %4331 = vmatpush1.bf16.msra.mxu0 0
  %4332 = vmatprep.subr.bf16.mxu0 0
  %4333 = vmatpush1.bf16.msra.mxu0 0
  %4334 = vmatprep.subr.bf16.mxu0 0
  %4335 = vmatpush1.bf16.msra.mxu0 0
  %4336 = vmatprep.subr.bf16.mxu0 0
  %4337 = vmatpush1.bf16.msra.mxu0 0
  %4338 = vmatprep.subr.bf16.mxu0 0
  %4339 = vmatpush1.bf16.msra.mxu0 0
  %4340 = vmatprep.subr.bf16.mxu0 0
  %4341 = vmatpush1.bf16.msra.mxu0 0
  %4342 = vmatprep.subr.bf16.mxu0 0
  %4343 = vmatpush1.bf16.msra.mxu0 0
  %4344 = vmatprep.mubr.bf16.mxu0 0
  %4345 = vmatmul.mubr.bf16.gmra.mrb[0].mxu0 %v4171
  %v4346 = vpop.f32.mrb[0].mxu0
  %v4347 = vadd.f32 %v4282, %v4346
  %v4348 = vpop.f32.mrb[0].mxu0
  %v4349 = vpop.f32.mrb[0].mxu0
  %v4350 = vadd.f32 %v4285, %v4349
  %v4351 = vpop.f32.mrb[0].mxu0
  %4352 = vmatprep.mubr.bf16.mxu0 0
  %4353 = vmatmul.mubr.bf16.gmra.mrb[0].mxu0 %v4174
  %v4354 = vpop.f32.mrb[0].mxu0
  %v4355 = vadd.f32 %v4290, %v4354
  %v4356 = vpop.f32.mrb[0].mxu0
  %v4357 = vpop.f32.mrb[0].mxu0
  %v4358 = vadd.f32 %v4293, %v4357
  %v4359 = vpop.f32.mrb[0].mxu0
  %4360 = vmatprep.mubr.bf16.mxu0 0
  %4361 = vmatmul.mubr.bf16.gmra.mrb[0].mxu0 %v4177
  %v4362 = vpop.f32.mrb[0].mxu0
  %v4363 = vadd.f32 %v4298, %v4362
  %v4364 = vpop.f32.mrb[0].mxu0
  %v4365 = vpop.f32.mrb[0].mxu0
  %v4366 = vadd.f32 %v4301, %v4365
  %v4367 = vpop.f32.mrb[0].mxu0
  %4368 = vmatprep.mubr.bf16.mxu0 0
  %4369 = vmatmul.mubr.bf16.gmra.mrb[0].mxu0 %v4180
  %v4370 = vpop.f32.mrb[0].mxu0
  %v4371 = vadd.f32 %v4306, %v4370
  %v4372 = vpop.f32.mrb[0].mxu0
  %v4373 = vpop.f32.mrb[0].mxu0
  %v4374 = vadd.f32 %v4309, %v4373
  %v4375 = vpop.f32.mrb[0].mxu0
  %4376 = vdwg.mxu0
  %v4377 = vmax.f32 %v4347, 0.0
  %v4378 = vmax.f32 %v4350, 0.0
  %v4379 = vmax.f32 %v4355, 0.0
  %v4380 = vmax.f32 %v4358, 0.0
  %v4381 = vmax.f32 %v4363, 0.0
  %v4382 = vmax.f32 %v4366, 0.0
  %v4383 = vmax.f32 %v4371, 0.0
  %v4384 = vmax.f32 %v4374, 0.0
  %v4385 = vpack.c.bf16 %v4378, %v4377
  %v4386 = vpack.c.bf16 %v4380, %v4379
  %v4387 = vpack.c.bf16 %v4382, %v4381
  %v4388 = vpack.c.bf16 %v4384, %v4383
  %v4389 = vld [vmem:[%s10] sm:$0xf]
  %v4391 = vsel %vm3301, %v4385, 0
  %v4394 = vsel %vm3301, %v4386, 0
  %v4397 = vsel %vm3301, %v4387, 0
  %v4400 = vsel %vm3301, %v4388, 0
  %vm4402 = vcmask 1043456
  %v4404 = vsel %vm4402, %v4389, 0
  %4406 = vmatprep.subr.bf16.mxu0 0
  %4407 = vmatpush1.bf16.msra.mxu0 %v4404
  %4408 = vmatprep.subr.bf16.mxu0 0
  %4409 = vmatpush1.bf16.msra.mxu0 0
  %4410 = vmatprep.subr.bf16.mxu0 0
  %4411 = vmatpush1.bf16.msra.mxu0 0
  %4412 = vmatprep.subr.bf16.mxu0 0
  %4413 = vmatpush1.bf16.msra.mxu0 0
  %4414 = vmatprep.subr.bf16.mxu0 0
  %4415 = vmatpush1.bf16.msra.mxu0 0
  %4416 = vmatprep.subr.bf16.mxu0 0
  %4417 = vmatpush1.bf16.msra.mxu0 0
  %4418 = vmatprep.subr.bf16.mxu0 0
  %4419 = vmatpush1.bf16.msra.mxu0 0
  %4420 = vmatprep.subr.bf16.mxu0 0
  %4421 = vmatpush1.bf16.msra.mxu0 0
  %4422 = vmatprep.subr.bf16.mxu0 0
  %4423 = vmatpush1.bf16.msra.mxu0 0
  %4424 = vmatprep.subr.bf16.mxu0 0
  %4425 = vmatpush1.bf16.msra.mxu0 0
  %4426 = vmatprep.subr.bf16.mxu0 0
  %4427 = vmatpush1.bf16.msra.mxu0 0
  %4428 = vmatprep.subr.bf16.mxu0 0
  %4429 = vmatpush1.bf16.msra.mxu0 0
  %4430 = vmatprep.subr.bf16.mxu0 0
  %4431 = vmatpush1.bf16.msra.mxu0 0
  %4432 = vmatprep.subr.bf16.mxu0 0
  %4433 = vmatpush1.bf16.msra.mxu0 0
  %4434 = vmatprep.subr.bf16.mxu0 0
  %4435 = vmatpush1.bf16.msra.mxu0 0
  %4436 = vmatprep.subr.bf16.mxu0 0
  %4437 = vmatpush1.bf16.msra.mxu0 0
  %4438 = vmatprep.mubr.bf16.mxu0 0
  %4439 = vmatmul.mubr.bf16.gmra.mrb[0].mxu0 %v4391
  %v4440 = vpop.f32.mrb[0].mxu0
  %v4441 = vadd.f32 0.0, %v4440
  %v4442 = vpop.f32.mrb[0].mxu0
  %v4443 = vpop.f32.mrb[0].mxu0
  %v4444 = vadd.f32 0.0, %v4443
  %v4445 = vpop.f32.mrb[0].mxu0
  %4446 = vmatprep.mubr.bf16.mxu0 0
  %4447 = vmatmul.mubr.bf16.gmra.mrb[0].mxu0 %v4394
  %v4448 = vpop.f32.mrb[0].mxu0
  %v4449 = vadd.f32 0.0, %v4448
  %v4450 = vpop.f32.mrb[0].mxu0
  %v4451 = vpop.f32.mrb[0].mxu0
  %v4452 = vadd.f32 0.0, %v4451
  %v4453 = vpop.f32.mrb[0].mxu0
  %4454 = vmatprep.mubr.bf16.mxu0 0
  %4455 = vmatmul.mubr.bf16.gmra.mrb[0].mxu0 %v4397
  %v4456 = vpop.f32.mrb[0].mxu0
  %v4457 = vadd.f32 0.0, %v4456
  %v4458 = vpop.f32.mrb[0].mxu0
  %v4459 = vpop.f32.mrb[0].mxu0
  %v4460 = vadd.f32 0.0, %v4459
  %v4461 = vpop.f32.mrb[0].mxu0
  %4462 = vmatprep.mubr.bf16.mxu0 0
  %4463 = vmatmul.mubr.bf16.gmra.mrb[0].mxu0 %v4400
  %v4464 = vpop.f32.mrb[0].mxu0
  %v4465 = vadd.f32 0.0, %v4464
  %v4466 = vpop.f32.mrb[0].mxu0
  %v4467 = vpop.f32.mrb[0].mxu0
  %v4468 = vadd.f32 0.0, %v4467
  %v4469 = vpop.f32.mrb[0].mxu0
  %4470 = vdwg.mxu0
  %v4471 = vpack.c.bf16 %v4444, %v4441
  %v4472 = vpack.c.bf16 %v4452, %v4449
  %v4473 = vpack.c.bf16 %v4460, %v4457
  %v4474 = vpack.c.bf16 %v4468, %v4465
  %4475 = vst.msk [vmem:[#allocation2] sm:$0xff] %vm1730, %v4471
  %4476 = vst.msk [vmem:[#allocation2 + $0x10] sm:$0xff] %vm1730, %v4472
  %4477 = vst.msk [vmem:[#allocation2 + $0x20] sm:$0xff] %vm1730, %v4473
  %4478 = vst.msk [vmem:[#allocation2 + $0x30] sm:$0xff] %vm1730, %v4474
  %s4479 = scalar_lea.vmem %s10, 4
  %v4480 = vld [vmem:[%s4479] sm:$0xf]
  %v4482 = vsel %vm4402, %v4480, 0
  %4484 = vmatprep.subr.bf16.mxu0 0
  %4485 = vmatpush1.bf16.msra.mxu0 %v4482
  %4486 = vmatprep.subr.bf16.mxu0 0
  %4487 = vmatpush1.bf16.msra.mxu0 0
  %4488 = vmatprep.subr.bf16.mxu0 0
  %4489 = vmatpush1.bf16.msra.mxu0 0
  %4490 = vmatprep.subr.bf16.mxu0 0
  %4491 = vmatpush1.bf16.msra.mxu0 0
  %4492 = vmatprep.subr.bf16.mxu0 0
  %4493 = vmatpush1.bf16.msra.mxu0 0
  %4494 = vmatprep.subr.bf16.mxu0 0
  %4495 = vmatpush1.bf16.msra.mxu0 0
  %4496 = vmatprep.subr.bf16.mxu0 0
  %4497 = vmatpush1.bf16.msra.mxu0 0
  %4498 = vmatprep.subr.bf16.mxu0 0
  %4499 = vmatpush1.bf16.msra.mxu0 0
  %4500 = vmatprep.subr.bf16.mxu0 0
  %4501 = vmatpush1.bf16.msra.mxu0 0
  %4502 = vmatprep.subr.bf16.mxu0 0
  %4503 = vmatpush1.bf16.msra.mxu0 0
  %4504 = vmatprep.subr.bf16.mxu0 0
  %4505 = vmatpush1.bf16.msra.mxu0 0
  %4506 = vmatprep.subr.bf16.mxu0 0
  %4507 = vmatpush1.bf16.msra.mxu0 0
  %4508 = vmatprep.subr.bf16.mxu0 0
  %4509 = vmatpush1.bf16.msra.mxu0 0
  %4510 = vmatprep.subr.bf16.mxu0 0
  %4511 = vmatpush1.bf16.msra.mxu0 0
  %4512 = vmatprep.subr.bf16.mxu0 0
  %4513 = vmatpush1.bf16.msra.mxu0 0
  %4514 = vmatprep.subr.bf16.mxu0 0
  %4515 = vmatpush1.bf16.msra.mxu0 0
  %4516 = vmatprep.mubr.bf16.mxu0 0
  %4517 = vmatmul.mubr.bf16.gmra.mrb[0].mxu0 %v4391
  %v4518 = vpop.f32.mrb[0].mxu0
  %v4519 = vadd.f32 0.0, %v4518
  %v4520 = vpop.f32.mrb[0].mxu0
  %v4521 = vpop.f32.mrb[0].mxu0
  %v4522 = vadd.f32 0.0, %v4521
  %v4523 = vpop.f32.mrb[0].mxu0
  %4524 = vmatprep.mubr.bf16.mxu0 0
  %4525 = vmatmul.mubr.bf16.gmra.mrb[0].mxu0 %v4394
  %v4526 = vpop.f32.mrb[0].mxu0
  %v4527 = vadd.f32 0.0, %v4526
  %v4528 = vpop.f32.mrb[0].mxu0
  %v4529 = vpop.f32.mrb[0].mxu0
  %v4530 = vadd.f32 0.0, %v4529
  %v4531 = vpop.f32.mrb[0].mxu0
  %4532 = vmatprep.mubr.bf16.mxu0 0
  %4533 = vmatmul.mubr.bf16.gmra.mrb[0].mxu0 %v4397
  %v4534 = vpop.f32.mrb[0].mxu0
  %v4535 = vadd.f32 0.0, %v4534
  %v4536 = vpop.f32.mrb[0].mxu0
  %v4537 = vpop.f32.mrb[0].mxu0
  %v4538 = vadd.f32 0.0, %v4537
  %v4539 = vpop.f32.mrb[0].mxu0
  %4540 = vmatprep.mubr.bf16.mxu0 0
  %4541 = vmatmul.mubr.bf16.gmra.mrb[0].mxu0 %v4400
  %v4542 = vpop.f32.mrb[0].mxu0
  %v4543 = vadd.f32 0.0, %v4542
  %v4544 = vpop.f32.mrb[0].mxu0
  %v4545 = vpop.f32.mrb[0].mxu0
  %v4546 = vadd.f32 0.0, %v4545
  %v4547 = vpop.f32.mrb[0].mxu0
  %4548 = vdwg.mxu0
  %v4549 = vpack.c.bf16 %v4522, %v4519
  %v4550 = vpack.c.bf16 %v4530, %v4527
  %v4551 = vpack.c.bf16 %v4538, %v4535
  %v4552 = vpack.c.bf16 %v4546, %v4543
  %4553 = vst.msk [vmem:[#allocation2 + $0x40] sm:$0xff] %vm1730, %v4549
  %4554 = vst.msk [vmem:[#allocation2 + $0x50] sm:$0xff] %vm1730, %v4550
  %4555 = vst.msk [vmem:[#allocation2 + $0x60] sm:$0xff] %vm1730, %v4551
  %4556 = vst.msk [vmem:[#allocation2 + $0x70] sm:$0xff] %vm1730, %v4552
  %s4557 = scalar_lea.vmem %s10, 8
  %v4558 = vld [vmem:[%s4557] sm:$0xf]
  %v4560 = vsel %vm4402, %v4558, 0
  %4562 = vmatprep.subr.bf16.mxu0 0
  %4563 = vmatpush1.bf16.msra.mxu0 %v4560
  %4564 = vmatprep.subr.bf16.mxu0 0
  %4565 = vmatpush1.bf16.msra.mxu0 0
  %4566 = vmatprep.subr.bf16.mxu0 0
  %4567 = vmatpush1.bf16.msra.mxu0 0
  %4568 = vmatprep.subr.bf16.mxu0 0
  %4569 = vmatpush1.bf16.msra.mxu0 0
  %4570 = vmatprep.subr.bf16.mxu0 0
  %4571 = vmatpush1.bf16.msra.mxu0 0
  %4572 = vmatprep.subr.bf16.mxu0 0
  %4573 = vmatpush1.bf16.msra.mxu0 0
  %4574 = vmatprep.subr.bf16.mxu0 0
  %4575 = vmatpush1.bf16.msra.mxu0 0
  %4576 = vmatprep.subr.bf16.mxu0 0
  %4577 = vmatpush1.bf16.msra.mxu0 0
  %4578 = vmatprep.subr.bf16.mxu0 0
  %4579 = vmatpush1.bf16.msra.mxu0 0
  %4580 = vmatprep.subr.bf16.mxu0 0
  %4581 = vmatpush1.bf16.msra.mxu0 0
  %4582 = vmatprep.subr.bf16.mxu0 0
  %4583 = vmatpush1.bf16.msra.mxu0 0
  %4584 = vmatprep.subr.bf16.mxu0 0
  %4585 = vmatpush1.bf16.msra.mxu0 0
  %4586 = vmatprep.subr.bf16.mxu0 0
  %4587 = vmatpush1.bf16.msra.mxu0 0
  %4588 = vmatprep.subr.bf16.mxu0 0
  %4589 = vmatpush1.bf16.msra.mxu0 0
  %4590 = vmatprep.subr.bf16.mxu0 0
  %4591 = vmatpush1.bf16.msra.mxu0 0
  %4592 = vmatprep.subr.bf16.mxu0 0
  %4593 = vmatpush1.bf16.msra.mxu0 0
  %4594 = vmatprep.mubr.bf16.mxu0 0
  %4595 = vmatmul.mubr.bf16.gmra.mrb[0].mxu0 %v4391
  %v4596 = vpop.f32.mrb[0].mxu0
  %v4597 = vadd.f32 0.0, %v4596
  %v4598 = vpop.f32.mrb[0].mxu0
  %v4599 = vpop.f32.mrb[0].mxu0
  %v4600 = vadd.f32 0.0, %v4599
  %v4601 = vpop.f32.mrb[0].mxu0
  %4602 = vmatprep.mubr.bf16.mxu0 0
  %4603 = vmatmul.mubr.bf16.gmra.mrb[0].mxu0 %v4394
  %v4604 = vpop.f32.mrb[0].mxu0
  %v4605 = vadd.f32 0.0, %v4604
  %v4606 = vpop.f32.mrb[0].mxu0
  %v4607 = vpop.f32.mrb[0].mxu0
  %v4608 = vadd.f32 0.0, %v4607
  %v4609 = vpop.f32.mrb[0].mxu0
  %4610 = vmatprep.mubr.bf16.mxu0 0
  %4611 = vmatmul.mubr.bf16.gmra.mrb[0].mxu0 %v4397
  %v4612 = vpop.f32.mrb[0].mxu0
  %v4613 = vadd.f32 0.0, %v4612
  %v4614 = vpop.f32.mrb[0].mxu0
  %v4615 = vpop.f32.mrb[0].mxu0
  %v4616 = vadd.f32 0.0, %v4615
  %v4617 = vpop.f32.mrb[0].mxu0
  %4618 = vmatprep.mubr.bf16.mxu0 0
  %4619 = vmatmul.mubr.bf16.gmra.mrb[0].mxu0 %v4400
  %v4620 = vpop.f32.mrb[0].mxu0
  %v4621 = vadd.f32 0.0, %v4620
  %v4622 = vpop.f32.mrb[0].mxu0
  %v4623 = vpop.f32.mrb[0].mxu0
  %v4624 = vadd.f32 0.0, %v4623
  %v4625 = vpop.f32.mrb[0].mxu0
  %4626 = vdwg.mxu0
  %v4627 = vpack.c.bf16 %v4600, %v4597
  %v4628 = vpack.c.bf16 %v4608, %v4605
  %v4629 = vpack.c.bf16 %v4616, %v4613
  %v4630 = vpack.c.bf16 %v4624, %v4621
  %4631 = vst.msk [vmem:[#allocation2 + $0x80] sm:$0xff] %vm1730, %v4627
  %4632 = vst.msk [vmem:[#allocation2 + $0x90] sm:$0xff] %vm1730, %v4628
  %4633 = vst.msk [vmem:[#allocation2 + $0xa0] sm:$0xff] %vm1730, %v4629
  %4634 = vst.msk [vmem:[#allocation2 + $0xb0] sm:$0xff] %vm1730, %v4630
  %s4635 = scalar_lea.vmem %s10, 12
  %v4636 = vld [vmem:[%s4635] sm:$0xf]
  %v4638 = vsel %vm4402, %v4636, 0
  %4640 = vmatprep.subr.bf16.mxu0 0
  %4641 = vmatpush1.bf16.msra.mxu0 %v4638
  %4642 = vmatprep.subr.bf16.mxu0 0
  %4643 = vmatpush1.bf16.msra.mxu0 0
  %4644 = vmatprep.subr.bf16.mxu0 0
  %4645 = vmatpush1.bf16.msra.mxu0 0
  %4646 = vmatprep.subr.bf16.mxu0 0
  %4647 = vmatpush1.bf16.msra.mxu0 0
  %4648 = vmatprep.subr.bf16.mxu0 0
  %4649 = vmatpush1.bf16.msra.mxu0 0
  %4650 = vmatprep.subr.bf16.mxu0 0
  %4651 = vmatpush1.bf16.msra.mxu0 0
  %4652 = vmatprep.subr.bf16.mxu0 0
  %4653 = vmatpush1.bf16.msra.mxu0 0
  %4654 = vmatprep.subr.bf16.mxu0 0
  %4655 = vmatpush1.bf16.msra.mxu0 0
  %4656 = vmatprep.subr.bf16.mxu0 0
  %4657 = vmatpush1.bf16.msra.mxu0 0
  %4658 = vmatprep.subr.bf16.mxu0 0
  %4659 = vmatpush1.bf16.msra.mxu0 0
  %4660 = vmatprep.subr.bf16.mxu0 0
  %4661 = vmatpush1.bf16.msra.mxu0 0
  %4662 = vmatprep.subr.bf16.mxu0 0
  %4663 = vmatpush1.bf16.msra.mxu0 0
  %4664 = vmatprep.subr.bf16.mxu0 0
  %4665 = vmatpush1.bf16.msra.mxu0 0
  %4666 = vmatprep.subr.bf16.mxu0 0
  %4667 = vmatpush1.bf16.msra.mxu0 0
  %4668 = vmatprep.subr.bf16.mxu0 0
  %4669 = vmatpush1.bf16.msra.mxu0 0
  %4670 = vmatprep.subr.bf16.mxu0 0
  %4671 = vmatpush1.bf16.msra.mxu0 0
  %4672 = vmatprep.mubr.bf16.mxu0 0
  %4673 = vmatmul.mubr.bf16.gmra.mrb[0].mxu0 %v4391
  %v4674 = vpop.f32.mrb[0].mxu0
  %v4675 = vadd.f32 0.0, %v4674
  %v4676 = vpop.f32.mrb[0].mxu0
  %v4677 = vpop.f32.mrb[0].mxu0
  %v4678 = vadd.f32 0.0, %v4677
  %v4679 = vpop.f32.mrb[0].mxu0
  %4680 = vmatprep.mubr.bf16.mxu0 0
  %4681 = vmatmul.mubr.bf16.gmra.mrb[0].mxu0 %v4394
  %v4682 = vpop.f32.mrb[0].mxu0
  %v4683 = vadd.f32 0.0, %v4682
  %v4684 = vpop.f32.mrb[0].mxu0
  %v4685 = vpop.f32.mrb[0].mxu0
  %v4686 = vadd.f32 0.0, %v4685
  %v4687 = vpop.f32.mrb[0].mxu0
  %4688 = vmatprep.mubr.bf16.mxu0 0
  %4689 = vmatmul.mubr.bf16.gmra.mrb[0].mxu0 %v4397
  %v4690 = vpop.f32.mrb[0].mxu0
  %v4691 = vadd.f32 0.0, %v4690
  %v4692 = vpop.f32.mrb[0].mxu0
  %v4693 = vpop.f32.mrb[0].mxu0
  %v4694 = vadd.f32 0.0, %v4693
  %v4695 = vpop.f32.mrb[0].mxu0
  %4696 = vmatprep.mubr.bf16.mxu0 0
  %4697 = vmatmul.mubr.bf16.gmra.mrb[0].mxu0 %v4400
  %v4698 = vpop.f32.mrb[0].mxu0
  %v4699 = vadd.f32 0.0, %v4698
  %v4700 = vpop.f32.mrb[0].mxu0
  %v4701 = vpop.f32.mrb[0].mxu0
  %v4702 = vadd.f32 0.0, %v4701
  %v4703 = vpop.f32.mrb[0].mxu0
  %4704 = vdwg.mxu0
  %v4705 = vpack.c.bf16 %v4678, %v4675
  %v4706 = vpack.c.bf16 %v4686, %v4683
  %v4707 = vpack.c.bf16 %v4694, %v4691
  %v4708 = vpack.c.bf16 %v4702, %v4699
  %4709 = vst.msk [vmem:[#allocation2 + $0xc0] sm:$0xff] %vm1730, %v4705
  %4710 = vst.msk [vmem:[#allocation2 + $0xd0] sm:$0xff] %vm1730, %v4706
  %4711 = vst.msk [vmem:[#allocation2 + $0xe0] sm:$0xff] %vm1730, %v4707
  %4712 = vst.msk [vmem:[#allocation2 + $0xf0] sm:$0xff] %vm1730, %v4708
  %s4713 = scalar_lea.vmem %s10, 16
  %v4714 = vld [vmem:[%s4713] sm:$0xf]
  %v4716 = vsel %vm4402, %v4714, 0
  %4718 = vmatprep.subr.bf16.mxu0 0
  %4719 = vmatpush1.bf16.msra.mxu0 %v4716
  %4720 = vmatprep.subr.bf16.mxu0 0
  %4721 = vmatpush1.bf16.msra.mxu0 0
  %4722 = vmatprep.subr.bf16.mxu0 0
  %4723 = vmatpush1.bf16.msra.mxu0 0
  %4724 = vmatprep.subr.bf16.mxu0 0
  %4725 = vmatpush1.bf16.msra.mxu0 0
  %4726 = vmatprep.subr.bf16.mxu0 0
  %4727 = vmatpush1.bf16.msra.mxu0 0
  %4728 = vmatprep.subr.bf16.mxu0 0
  %4729 = vmatpush1.bf16.msra.mxu0 0
  %4730 = vmatprep.subr.bf16.mxu0 0
  %4731 = vmatpush1.bf16.msra.mxu0 0
  %4732 = vmatprep.subr.bf16.mxu0 0
  %4733 = vmatpush1.bf16.msra.mxu0 0
  %4734 = vmatprep.subr.bf16.mxu0 0
  %4735 = vmatpush1.bf16.msra.mxu0 0
  %4736 = vmatprep.subr.bf16.mxu0 0
  %4737 = vmatpush1.bf16.msra.mxu0 0
  %4738 = vmatprep.subr.bf16.mxu0 0
  %4739 = vmatpush1.bf16.msra.mxu0 0
  %4740 = vmatprep.subr.bf16.mxu0 0
  %4741 = vmatpush1.bf16.msra.mxu0 0
  %4742 = vmatprep.subr.bf16.mxu0 0
  %4743 = vmatpush1.bf16.msra.mxu0 0
  %4744 = vmatprep.subr.bf16.mxu0 0
  %4745 = vmatpush1.bf16.msra.mxu0 0
  %4746 = vmatprep.subr.bf16.mxu0 0
  %4747 = vmatpush1.bf16.msra.mxu0 0
  %4748 = vmatprep.subr.bf16.mxu0 0
  %4749 = vmatpush1.bf16.msra.mxu0 0
  %4750 = vmatprep.mubr.bf16.mxu0 0
  %4751 = vmatmul.mubr.bf16.gmra.mrb[0].mxu0 %v4391
  %v4752 = vpop.f32.mrb[0].mxu0
  %v4753 = vadd.f32 0.0, %v4752
  %v4754 = vpop.f32.mrb[0].mxu0
  %v4755 = vpop.f32.mrb[0].mxu0
  %v4756 = vadd.f32 0.0, %v4755
  %v4757 = vpop.f32.mrb[0].mxu0
  %4758 = vmatprep.mubr.bf16.mxu0 0
  %4759 = vmatmul.mubr.bf16.gmra.mrb[0].mxu0 %v4394
  %v4760 = vpop.f32.mrb[0].mxu0
  %v4761 = vadd.f32 0.0, %v4760
  %v4762 = vpop.f32.mrb[0].mxu0
  %v4763 = vpop.f32.mrb[0].mxu0
  %v4764 = vadd.f32 0.0, %v4763
  %v4765 = vpop.f32.mrb[0].mxu0
  %4766 = vmatprep.mubr.bf16.mxu0 0
  %4767 = vmatmul.mubr.bf16.gmra.mrb[0].mxu0 %v4397
  %v4768 = vpop.f32.mrb[0].mxu0
  %v4769 = vadd.f32 0.0, %v4768
  %v4770 = vpop.f32.mrb[0].mxu0
  %v4771 = vpop.f32.mrb[0].mxu0
  %v4772 = vadd.f32 0.0, %v4771
  %v4773 = vpop.f32.mrb[0].mxu0
  %4774 = vmatprep.mubr.bf16.mxu0 0
  %4775 = vmatmul.mubr.bf16.gmra.mrb[0].mxu0 %v4400
  %v4776 = vpop.f32.mrb[0].mxu0
  %v4777 = vadd.f32 0.0, %v4776
  %v4778 = vpop.f32.mrb[0].mxu0
  %v4779 = vpop.f32.mrb[0].mxu0
  %v4780 = vadd.f32 0.0, %v4779
  %v4781 = vpop.f32.mrb[0].mxu0
  %4782 = vdwg.mxu0
  %v4783 = vpack.c.bf16 %v4756, %v4753
  %v4784 = vpack.c.bf16 %v4764, %v4761
  %v4785 = vpack.c.bf16 %v4772, %v4769
  %v4786 = vpack.c.bf16 %v4780, %v4777
  %4787 = vst.msk [vmem:[#allocation2 + $0x100] sm:$0xff] %vm1730, %v4783
  %4788 = vst.msk [vmem:[#allocation2 + $0x110] sm:$0xff] %vm1730, %v4784
  %4789 = vst.msk [vmem:[#allocation2 + $0x120] sm:$0xff] %vm1730, %v4785
  %4790 = vst.msk [vmem:[#allocation2 + $0x130] sm:$0xff] %vm1730, %v4786
  %s4791 = scalar_lea.vmem %s10, 20
  %v4792 = vld [vmem:[%s4791] sm:$0xf]
  %v4794 = vsel %vm4402, %v4792, 0
  %4796 = vmatprep.subr.bf16.mxu0 0
  %4797 = vmatpush1.bf16.msra.mxu0 %v4794
  %4798 = vmatprep.subr.bf16.mxu0 0
  %4799 = vmatpush1.bf16.msra.mxu0 0
  %4800 = vmatprep.subr.bf16.mxu0 0
  %4801 = vmatpush1.bf16.msra.mxu0 0
  %4802 = vmatprep.subr.bf16.mxu0 0
  %4803 = vmatpush1.bf16.msra.mxu0 0
  %4804 = vmatprep.subr.bf16.mxu0 0
  %4805 = vmatpush1.bf16.msra.mxu0 0
  %4806 = vmatprep.subr.bf16.mxu0 0
  %4807 = vmatpush1.bf16.msra.mxu0 0
  %4808 = vmatprep.subr.bf16.mxu0 0
  %4809 = vmatpush1.bf16.msra.mxu0 0
  %4810 = vmatprep.subr.bf16.mxu0 0
  %4811 = vmatpush1.bf16.msra.mxu0 0
  %4812 = vmatprep.subr.bf16.mxu0 0
  %4813 = vmatpush1.bf16.msra.mxu0 0
  %4814 = vmatprep.subr.bf16.mxu0 0
  %4815 = vmatpush1.bf16.msra.mxu0 0
  %4816 = vmatprep.subr.bf16.mxu0 0
  %4817 = vmatpush1.bf16.msra.mxu0 0
  %4818 = vmatprep.subr.bf16.mxu0 0
  %4819 = vmatpush1.bf16.msra.mxu0 0
  %4820 = vmatprep.subr.bf16.mxu0 0
  %4821 = vmatpush1.bf16.msra.mxu0 0
  %4822 = vmatprep.subr.bf16.mxu0 0
  %4823 = vmatpush1.bf16.msra.mxu0 0
  %4824 = vmatprep.subr.bf16.mxu0 0
  %4825 = vmatpush1.bf16.msra.mxu0 0
  %4826 = vmatprep.subr.bf16.mxu0 0
  %4827 = vmatpush1.bf16.msra.mxu0 0
  %4828 = vmatprep.mubr.bf16.mxu0 0
  %4829 = vmatmul.mubr.bf16.gmra.mrb[0].mxu0 %v4391
  %v4830 = vpop.f32.mrb[0].mxu0
  %v4831 = vadd.f32 0.0, %v4830
  %v4832 = vpop.f32.mrb[0].mxu0
  %v4833 = vpop.f32.mrb[0].mxu0
  %v4834 = vadd.f32 0.0, %v4833
  %v4835 = vpop.f32.mrb[0].mxu0
  %4836 = vmatprep.mubr.bf16.mxu0 0
  %4837 = vmatmul.mubr.bf16.gmra.mrb[0].mxu0 %v4394
  %v4838 = vpop.f32.mrb[0].mxu0
  %v4839 = vadd.f32 0.0, %v4838
  %v4840 = vpop.f32.mrb[0].mxu0
  %v4841 = vpop.f32.mrb[0].mxu0
  %v4842 = vadd.f32 0.0, %v4841
  %v4843 = vpop.f32.mrb[0].mxu0
  %4844 = vmatprep.mubr.bf16.mxu0 0
  %4845 = vmatmul.mubr.bf16.gmra.mrb[0].mxu0 %v4397
  %v4846 = vpop.f32.mrb[0].mxu0
  %v4847 = vadd.f32 0.0, %v4846
  %v4848 = vpop.f32.mrb[0].mxu0
  %v4849 = vpop.f32.mrb[0].mxu0
  %v4850 = vadd.f32 0.0, %v4849
  %v4851 = vpop.f32.mrb[0].mxu0
  %4852 = vmatprep.mubr.bf16.mxu0 0
  %4853 = vmatmul.mubr.bf16.gmra.mrb[0].mxu0 %v4400
  %v4854 = vpop.f32.mrb[0].mxu0
  %v4855 = vadd.f32 0.0, %v4854
  %v4856 = vpop.f32.mrb[0].mxu0
  %v4857 = vpop.f32.mrb[0].mxu0
  %v4858 = vadd.f32 0.0, %v4857
  %v4859 = vpop.f32.mrb[0].mxu0
  %4860 = vdwg.mxu0
  %v4861 = vpack.c.bf16 %v4834, %v4831
  %v4862 = vpack.c.bf16 %v4842, %v4839
  %v4863 = vpack.c.bf16 %v4850, %v4847
  %v4864 = vpack.c.bf16 %v4858, %v4855
  %4865 = vst.msk [vmem:[#allocation2 + $0x140] sm:$0xff] %vm1730, %v4861
  %4866 = vst.msk [vmem:[#allocation2 + $0x150] sm:$0xff] %vm1730, %v4862
  %4867 = vst.msk [vmem:[#allocation2 + $0x160] sm:$0xff] %vm1730, %v4863
  %4868 = vst.msk [vmem:[#allocation2 + $0x170] sm:$0xff] %vm1730, %v4864
  %s4869 = scalar_lea.vmem %s10, 24
  %v4870 = vld [vmem:[%s4869] sm:$0xf]
  %v4872 = vsel %vm4402, %v4870, 0
  %4874 = vmatprep.subr.bf16.mxu0 0
  %4875 = vmatpush1.bf16.msra.mxu0 %v4872
  %4876 = vmatprep.subr.bf16.mxu0 0
  %4877 = vmatpush1.bf16.msra.mxu0 0
  %4878 = vmatprep.subr.bf16.mxu0 0
  %4879 = vmatpush1.bf16.msra.mxu0 0
  %4880 = vmatprep.subr.bf16.mxu0 0
  %4881 = vmatpush1.bf16.msra.mxu0 0
  %4882 = vmatprep.subr.bf16.mxu0 0
  %4883 = vmatpush1.bf16.msra.mxu0 0
  %4884 = vmatprep.subr.bf16.mxu0 0
  %4885 = vmatpush1.bf16.msra.mxu0 0
  %4886 = vmatprep.subr.bf16.mxu0 0
  %4887 = vmatpush1.bf16.msra.mxu0 0
  %4888 = vmatprep.subr.bf16.mxu0 0
  %4889 = vmatpush1.bf16.msra.mxu0 0
  %4890 = vmatprep.subr.bf16.mxu0 0
  %4891 = vmatpush1.bf16.msra.mxu0 0
  %4892 = vmatprep.subr.bf16.mxu0 0
  %4893 = vmatpush1.bf16.msra.mxu0 0
  %4894 = vmatprep.subr.bf16.mxu0 0
  %4895 = vmatpush1.bf16.msra.mxu0 0
  %4896 = vmatprep.subr.bf16.mxu0 0
  %4897 = vmatpush1.bf16.msra.mxu0 0
  %4898 = vmatprep.subr.bf16.mxu0 0
  %4899 = vmatpush1.bf16.msra.mxu0 0
  %4900 = vmatprep.subr.bf16.mxu0 0
  %4901 = vmatpush1.bf16.msra.mxu0 0
  %4902 = vmatprep.subr.bf16.mxu0 0
  %4903 = vmatpush1.bf16.msra.mxu0 0
  %4904 = vmatprep.subr.bf16.mxu0 0
  %4905 = vmatpush1.bf16.msra.mxu0 0
  %4906 = vmatprep.mubr.bf16.mxu0 0
  %4907 = vmatmul.mubr.bf16.gmra.mrb[0].mxu0 %v4391
  %v4908 = vpop.f32.mrb[0].mxu0
  %v4909 = vadd.f32 0.0, %v4908
  %v4910 = vpop.f32.mrb[0].mxu0
  %v4911 = vpop.f32.mrb[0].mxu0
  %v4912 = vadd.f32 0.0, %v4911
  %v4913 = vpop.f32.mrb[0].mxu0
  %4914 = vmatprep.mubr.bf16.mxu0 0
  %4915 = vmatmul.mubr.bf16.gmra.mrb[0].mxu0 %v4394
  %v4916 = vpop.f32.mrb[0].mxu0
  %v4917 = vadd.f32 0.0, %v4916
  %v4918 = vpop.f32.mrb[0].mxu0
  %v4919 = vpop.f32.mrb[0].mxu0
  %v4920 = vadd.f32 0.0, %v4919
  %v4921 = vpop.f32.mrb[0].mxu0
  %4922 = vmatprep.mubr.bf16.mxu0 0
  %4923 = vmatmul.mubr.bf16.gmra.mrb[0].mxu0 %v4397
  %v4924 = vpop.f32.mrb[0].mxu0
  %v4925 = vadd.f32 0.0, %v4924
  %v4926 = vpop.f32.mrb[0].mxu0
  %v4927 = vpop.f32.mrb[0].mxu0
  %v4928 = vadd.f32 0.0, %v4927
  %v4929 = vpop.f32.mrb[0].mxu0
  %4930 = vmatprep.mubr.bf16.mxu0 0
  %4931 = vmatmul.mubr.bf16.gmra.mrb[0].mxu0 %v4400
  %v4932 = vpop.f32.mrb[0].mxu0
  %v4933 = vadd.f32 0.0, %v4932
  %v4934 = vpop.f32.mrb[0].mxu0
  %v4935 = vpop.f32.mrb[0].mxu0
  %v4936 = vadd.f32 0.0, %v4935
  %v4937 = vpop.f32.mrb[0].mxu0
  %4938 = vdwg.mxu0
  %v4939 = vpack.c.bf16 %v4912, %v4909
  %v4940 = vpack.c.bf16 %v4920, %v4917
  %v4941 = vpack.c.bf16 %v4928, %v4925
  %v4942 = vpack.c.bf16 %v4936, %v4933
  %4943 = vst.msk [vmem:[#allocation2 + $0x180] sm:$0xff] %vm1730, %v4939
  %4944 = vst.msk [vmem:[#allocation2 + $0x190] sm:$0xff] %vm1730, %v4940
  %4945 = vst.msk [vmem:[#allocation2 + $0x1a0] sm:$0xff] %vm1730, %v4941
  %4946 = vst.msk [vmem:[#allocation2 + $0x1b0] sm:$0xff] %vm1730, %v4942
  %s4947 = scalar_lea.vmem %s10, 28
  %v4948 = vld [vmem:[%s4947] sm:$0xf]
  %v4950 = vsel %vm4402, %v4948, 0
  %4952 = vmatprep.subr.bf16.mxu0 0
  %4953 = vmatpush1.bf16.msra.mxu0 %v4950
  %4954 = vmatprep.subr.bf16.mxu0 0
  %4955 = vmatpush1.bf16.msra.mxu0 0
  %4956 = vmatprep.subr.bf16.mxu0 0
  %4957 = vmatpush1.bf16.msra.mxu0 0
  %4958 = vmatprep.subr.bf16.mxu0 0
  %4959 = vmatpush1.bf16.msra.mxu0 0
  %4960 = vmatprep.subr.bf16.mxu0 0
  %4961 = vmatpush1.bf16.msra.mxu0 0
  %4962 = vmatprep.subr.bf16.mxu0 0
  %4963 = vmatpush1.bf16.msra.mxu0 0
  %4964 = vmatprep.subr.bf16.mxu0 0
  %4965 = vmatpush1.bf16.msra.mxu0 0
  %4966 = vmatprep.subr.bf16.mxu0 0
  %4967 = vmatpush1.bf16.msra.mxu0 0
  %4968 = vmatprep.subr.bf16.mxu0 0
  %4969 = vmatpush1.bf16.msra.mxu0 0
  %4970 = vmatprep.subr.bf16.mxu0 0
  %4971 = vmatpush1.bf16.msra.mxu0 0
  %4972 = vmatprep.subr.bf16.mxu0 0
  %4973 = vmatpush1.bf16.msra.mxu0 0
  %4974 = vmatprep.subr.bf16.mxu0 0
  %4975 = vmatpush1.bf16.msra.mxu0 0
  %4976 = vmatprep.subr.bf16.mxu0 0
  %4977 = vmatpush1.bf16.msra.mxu0 0
  %4978 = vmatprep.subr.bf16.mxu0 0
  %4979 = vmatpush1.bf16.msra.mxu0 0
  %4980 = vmatprep.subr.bf16.mxu0 0
  %4981 = vmatpush1.bf16.msra.mxu0 0
  %4982 = vmatprep.subr.bf16.mxu0 0
  %4983 = vmatpush1.bf16.msra.mxu0 0
  %4984 = vmatprep.mubr.bf16.mxu0 0
  %4985 = vmatmul.mubr.bf16.gmra.mrb[0].mxu0 %v4391
  %v4986 = vpop.f32.mrb[0].mxu0
  %v4987 = vadd.f32 0.0, %v4986
  %v4988 = vpop.f32.mrb[0].mxu0
  %v4989 = vpop.f32.mrb[0].mxu0
  %v4990 = vadd.f32 0.0, %v4989
  %v4991 = vpop.f32.mrb[0].mxu0
  %4992 = vmatprep.mubr.bf16.mxu0 0
  %4993 = vmatmul.mubr.bf16.gmra.mrb[0].mxu0 %v4394
  %v4994 = vpop.f32.mrb[0].mxu0
  %v4995 = vadd.f32 0.0, %v4994
  %v4996 = vpop.f32.mrb[0].mxu0
  %v4997 = vpop.f32.mrb[0].mxu0
  %v4998 = vadd.f32 0.0, %v4997
  %v4999 = vpop.f32.mrb[0].mxu0
  %5000 = vmatprep.mubr.bf16.mxu0 0
  %5001 = vmatmul.mubr.bf16.gmra.mrb[0].mxu0 %v4397
  %v5002 = vpop.f32.mrb[0].mxu0
  %v5003 = vadd.f32 0.0, %v5002
  %v5004 = vpop.f32.mrb[0].mxu0
  %v5005 = vpop.f32.mrb[0].mxu0
  %v5006 = vadd.f32 0.0, %v5005
  %v5007 = vpop.f32.mrb[0].mxu0
  %5008 = vmatprep.mubr.bf16.mxu0 0
  %5009 = vmatmul.mubr.bf16.gmra.mrb[0].mxu0 %v4400
  %v5010 = vpop.f32.mrb[0].mxu0
  %v5011 = vadd.f32 0.0, %v5010
  %v5012 = vpop.f32.mrb[0].mxu0
  %v5013 = vpop.f32.mrb[0].mxu0
  %v5014 = vadd.f32 0.0, %v5013
  %v5015 = vpop.f32.mrb[0].mxu0
  %5016 = vdwg.mxu0
  %v5017 = vpack.c.bf16 %v4990, %v4987
  %v5018 = vpack.c.bf16 %v4998, %v4995
  %v5019 = vpack.c.bf16 %v5006, %v5003
  %v5020 = vpack.c.bf16 %v5014, %v5011
  %5021 = vst.msk [vmem:[#allocation2 + $0x1c0] sm:$0xff] %vm1730, %v5017
  %5022 = vst.msk [vmem:[#allocation2 + $0x1d0] sm:$0xff] %vm1730, %v5018
  %5023 = vst.msk [vmem:[#allocation2 + $0x1e0] sm:$0xff] %vm1730, %v5019
  %5024 = vst.msk [vmem:[#allocation2 + $0x1f0] sm:$0xff] %vm1730, %v5020
  %s5025 = scalar_lea.vmem %s10, 32
  %v5026 = vld [vmem:[%s5025] sm:$0xf]
  %v5028 = vsel %vm4402, %v5026, 0
  %5030 = vmatprep.subr.bf16.mxu0 0
  %5031 = vmatpush1.bf16.msra.mxu0 %v5028
  %5032 = vmatprep.subr.bf16.mxu0 0
  %5033 = vmatpush1.bf16.msra.mxu0 0
  %5034 = vmatprep.subr.bf16.mxu0 0
  %5035 = vmatpush1.bf16.msra.mxu0 0
  %5036 = vmatprep.subr.bf16.mxu0 0
  %5037 = vmatpush1.bf16.msra.mxu0 0
  %5038 = vmatprep.subr.bf16.mxu0 0
  %5039 = vmatpush1.bf16.msra.mxu0 0
  %5040 = vmatprep.subr.bf16.mxu0 0
  %5041 = vmatpush1.bf16.msra.mxu0 0
  %5042 = vmatprep.subr.bf16.mxu0 0
  %5043 = vmatpush1.bf16.msra.mxu0 0
  %5044 = vmatprep.subr.bf16.mxu0 0
  %5045 = vmatpush1.bf16.msra.mxu0 0
  %5046 = vmatprep.subr.bf16.mxu0 0
  %5047 = vmatpush1.bf16.msra.mxu0 0
  %5048 = vmatprep.subr.bf16.mxu0 0
  %5049 = vmatpush1.bf16.msra.mxu0 0
  %5050 = vmatprep.subr.bf16.mxu0 0
  %5051 = vmatpush1.bf16.msra.mxu0 0
  %5052 = vmatprep.subr.bf16.mxu0 0
  %5053 = vmatpush1.bf16.msra.mxu0 0
  %5054 = vmatprep.subr.bf16.mxu0 0
  %5055 = vmatpush1.bf16.msra.mxu0 0
  %5056 = vmatprep.subr.bf16.mxu0 0
  %5057 = vmatpush1.bf16.msra.mxu0 0
  %5058 = vmatprep.subr.bf16.mxu0 0
  %5059 = vmatpush1.bf16.msra.mxu0 0
  %5060 = vmatprep.subr.bf16.mxu0 0
  %5061 = vmatpush1.bf16.msra.mxu0 0
  %5062 = vmatprep.mubr.bf16.mxu0 0
  %5063 = vmatmul.mubr.bf16.gmra.mrb[0].mxu0 %v4391
  %v5064 = vpop.f32.mrb[0].mxu0
  %v5065 = vadd.f32 0.0, %v5064
  %v5066 = vpop.f32.mrb[0].mxu0
  %v5067 = vpop.f32.mrb[0].mxu0
  %v5068 = vadd.f32 0.0, %v5067
  %v5069 = vpop.f32.mrb[0].mxu0
  %5070 = vmatprep.mubr.bf16.mxu0 0
  %5071 = vmatmul.mubr.bf16.gmra.mrb[0].mxu0 %v4394
  %v5072 = vpop.f32.mrb[0].mxu0
  %v5073 = vadd.f32 0.0, %v5072
  %v5074 = vpop.f32.mrb[0].mxu0
  %v5075 = vpop.f32.mrb[0].mxu0
  %v5076 = vadd.f32 0.0, %v5075
  %v5077 = vpop.f32.mrb[0].mxu0
  %5078 = vmatprep.mubr.bf16.mxu0 0
  %5079 = vmatmul.mubr.bf16.gmra.mrb[0].mxu0 %v4397
  %v5080 = vpop.f32.mrb[0].mxu0
  %v5081 = vadd.f32 0.0, %v5080
  %v5082 = vpop.f32.mrb[0].mxu0
  %v5083 = vpop.f32.mrb[0].mxu0
  %v5084 = vadd.f32 0.0, %v5083
  %v5085 = vpop.f32.mrb[0].mxu0
  %5086 = vmatprep.mubr.bf16.mxu0 0
  %5087 = vmatmul.mubr.bf16.gmra.mrb[0].mxu0 %v4400
  %v5088 = vpop.f32.mrb[0].mxu0
  %v5089 = vadd.f32 0.0, %v5088
  %v5090 = vpop.f32.mrb[0].mxu0
  %v5091 = vpop.f32.mrb[0].mxu0
  %v5092 = vadd.f32 0.0, %v5091
  %v5093 = vpop.f32.mrb[0].mxu0
  %5094 = vdwg.mxu0
  %v5095 = vpack.c.bf16 %v5068, %v5065
  %v5096 = vpack.c.bf16 %v5076, %v5073
  %v5097 = vpack.c.bf16 %v5084, %v5081
  %v5098 = vpack.c.bf16 %v5092, %v5089
  %5099 = vst.msk [vmem:[#allocation2 + $0x200] sm:$0xff] %vm1730, %v5095
  %5100 = vst.msk [vmem:[#allocation2 + $0x210] sm:$0xff] %vm1730, %v5096
  %5101 = vst.msk [vmem:[#allocation2 + $0x220] sm:$0xff] %vm1730, %v5097
  %5102 = vst.msk [vmem:[#allocation2 + $0x230] sm:$0xff] %vm1730, %v5098
  %v5103 = vld [vmem:[%s11] sm:$0xff]
  %v5104 = vld [vmem:[%s11 + $0x8] sm:$0xff]
  %v5105 = vld [vmem:[%s11 + $0x10] sm:$0xf]
  %v5106 = vld [vmem:[%s11 + $0x14] sm:$0xff]
  %v5107 = vld [vmem:[%s11 + $0x1c] sm:$0xff]
  %v5108 = vld [vmem:[%s11 + $0x24] sm:$0xf]
  %v5109 = vld [vmem:[%s11 + $0x28] sm:$0xff]
  %v5110 = vld [vmem:[%s11 + $0x30] sm:$0xff]
  %v5111 = vld [vmem:[%s11 + $0x38] sm:$0xf]
  %v5112 = vld [vmem:[%s11 + $0x3c] sm:$0xff]
  %v5113 = vld [vmem:[%s11 + $0x44] sm:$0xff]
  %v5114 = vld [vmem:[%s11 + $0x4c] sm:$0xf]
  %v5115 = vld [vmem:[%s11 + $0x50] sm:$0xff]
  %v5116 = vld [vmem:[%s11 + $0x58] sm:$0xff]
  %v5117 = vld [vmem:[%s11 + $0x60] sm:$0xf]
  %v5118 = vld [vmem:[%s11 + $0x64] sm:$0xff]
  %v5119 = vld [vmem:[%s11 + $0x6c] sm:$0xff]
  %v5120 = vld [vmem:[%s11 + $0x74] sm:$0xf]
  %v5121 = vld [vmem:[%s11 + $0x78] sm:$0xff]
  %v5122 = vld [vmem:[%s11 + $0x80] sm:$0xff]
  %v5123 = vld [vmem:[%s11 + $0x88] sm:$0xf]
  %v5124 = vld [vmem:[%s11 + $0x8c] sm:$0xff]
  %v5125 = vld [vmem:[%s11 + $0x94] sm:$0xff]
  %v5126 = vld [vmem:[%s11 + $0x9c] sm:$0xf]
  %v5127 = vld [vmem:[#allocation2] sm:$0xff]
  %v5128 = vld [vmem:[#allocation2 + $0x10] sm:$0xff]
  %v5129 = vld [vmem:[#allocation2 + $0x20] sm:$0xff]
  %v5130 = vld [vmem:[#allocation2 + $0x30] sm:$0xff]
  %v5131 = vld [vmem:[#allocation2 + $0x40] sm:$0xff]
  %v5132 = vld [vmem:[#allocation2 + $0x50] sm:$0xff]
  %v5133 = vld [vmem:[#allocation2 + $0x60] sm:$0xff]
  %v5134 = vld [vmem:[#allocation2 + $0x70] sm:$0xff]
  %v5135 = vld [vmem:[#allocation2 + $0x80] sm:$0xff]
  %v5136 = vld [vmem:[#allocation2 + $0x90] sm:$0xff]
  %v5137 = vld [vmem:[#allocation2 + $0xa0] sm:$0xff]
  %v5138 = vld [vmem:[#allocation2 + $0xb0] sm:$0xff]
  %v5139 = vld [vmem:[#allocation2 + $0xc0] sm:$0xff]
  %v5140 = vld [vmem:[#allocation2 + $0xd0] sm:$0xff]
  %v5141 = vld [vmem:[#allocation2 + $0xe0] sm:$0xff]
  %v5142 = vld [vmem:[#allocation2 + $0xf0] sm:$0xff]
  %v5143 = vld [vmem:[#allocation2 + $0x100] sm:$0xff]
  %v5144 = vld [vmem:[#allocation2 + $0x110] sm:$0xff]
  %v5145 = vld [vmem:[#allocation2 + $0x120] sm:$0xff]
  %v5146 = vld [vmem:[#allocation2 + $0x130] sm:$0xff]
  %v5147 = vld [vmem:[#allocation2 + $0x140] sm:$0xff]
  %v5148 = vld [vmem:[#allocation2 + $0x150] sm:$0xff]
  %v5149 = vld [vmem:[#allocation2 + $0x160] sm:$0xff]
  %v5150 = vld [vmem:[#allocation2 + $0x170] sm:$0xff]
  %v5151 = vld [vmem:[#allocation2 + $0x180] sm:$0xff]
  %v5152 = vld [vmem:[#allocation2 + $0x190] sm:$0xff]
  %v5153 = vld [vmem:[#allocation2 + $0x1a0] sm:$0xff]
  %v5154 = vld [vmem:[#allocation2 + $0x1b0] sm:$0xff]
  %v5155 = vld [vmem:[#allocation2 + $0x1c0] sm:$0xff]
  %v5156 = vld [vmem:[#allocation2 + $0x1d0] sm:$0xff]
  %v5157 = vld [vmem:[#allocation2 + $0x1e0] sm:$0xff]
  %v5158 = vld [vmem:[#allocation2 + $0x1f0] sm:$0xff]
  %v5159 = vld [vmem:[#allocation2 + $0x200] sm:$0xff]
  %v5160 = vld [vmem:[#allocation2 + $0x210] sm:$0xff]
  %v5161 = vld [vmem:[#allocation2 + $0x220] sm:$0xff]
  %v5162 = vld [vmem:[#allocation2 + $0x230] sm:$0xff]
  %v5163 = vld [vmem:[%s12] sm:$0xff]
  %v5164 = vld [vmem:[%s12 + $0x8] sm:$0xff]
  %v5165 = vld [vmem:[%s12 + $0x10] sm:$0xff]
  %v5166 = vld [vmem:[%s12 + $0x18] sm:$0xff]
  %v5167 = vld [vmem:[%s12 + $0x20] sm:$0xff]
  %v5168 = vld [vmem:[%s12 + $0x28] sm:$0xff]
  %v5169 = vld [vmem:[%s12 + $0x30] sm:$0xff]
  %v5170 = vld [vmem:[%s12 + $0x38] sm:$0xff]
  %5172 = vset.pattern.permute.xlu0 0
  %5173 = vperm.xlu0 %5172, %v5163
  %v5174 = vpop.permute.xlu0 %5173
  %5177 = vset.pattern.permute.xlu0 0
  %5178 = vperm.xlu0 %5177, %v5164
  %v5179 = vpop.permute.xlu0 %5178
  %5182 = vset.pattern.permute.xlu0 0
  %5183 = vperm.xlu0 %5182, %v5165
  %v5184 = vpop.permute.xlu0 %5183
  %5187 = vset.pattern.permute.xlu0 0
  %5188 = vperm.xlu0 %5187, %v5166
  %v5189 = vpop.permute.xlu0 %5188
  %5192 = vset.pattern.permute.xlu0 0
  %5193 = vperm.xlu0 %5192, %v5167
  %v5194 = vpop.permute.xlu0 %5193
  %5197 = vset.pattern.permute.xlu0 0
  %5198 = vperm.xlu0 %5197, %v5168
  %v5199 = vpop.permute.xlu0 %5198
  %5202 = vset.pattern.permute.xlu0 0
  %5203 = vperm.xlu0 %5202, %v5169
  %v5204 = vpop.permute.xlu0 %5203
  %5207 = vset.pattern.permute.xlu0 0
  %5208 = vperm.xlu0 %5207, %v5170
  %v5209 = vpop.permute.xlu0 %5208
  %v5235 = vunpack.c.l.b16 %v5103
  %v5236 = vunpack.c.h.b16 %v5103
  %v5237 = vunpack.c.l.b16 %v5104
  %v5238 = vunpack.c.h.b16 %v5104
  %v5239 = vunpack.c.l.b16 %v5105
  %v5240 = vunpack.c.l.b16 %v5106
  %v5241 = vunpack.c.h.b16 %v5106
  %v5242 = vunpack.c.l.b16 %v5107
  %v5243 = vunpack.c.h.b16 %v5107
  %v5244 = vunpack.c.l.b16 %v5108
  %v5245 = vunpack.c.l.b16 %v5109
  %v5246 = vunpack.c.h.b16 %v5109
  %v5247 = vunpack.c.l.b16 %v5110
  %v5248 = vunpack.c.h.b16 %v5110
  %v5249 = vunpack.c.l.b16 %v5111
  %v5250 = vunpack.c.l.b16 %v5112
  %v5251 = vunpack.c.h.b16 %v5112
  %v5252 = vunpack.c.l.b16 %v5113
  %v5253 = vunpack.c.h.b16 %v5113
  %v5254 = vunpack.c.l.b16 %v5114
  %v5255 = vunpack.c.l.b16 %v5115
  %v5256 = vunpack.c.h.b16 %v5115
  %v5257 = vunpack.c.l.b16 %v5116
  %v5258 = vunpack.c.h.b16 %v5116
  %v5259 = vunpack.c.l.b16 %v5117
  %v5260 = vunpack.c.l.b16 %v5118
  %v5261 = vunpack.c.h.b16 %v5118
  %v5262 = vunpack.c.l.b16 %v5119
  %v5263 = vunpack.c.h.b16 %v5119
  %v5264 = vunpack.c.l.b16 %v5120
  %v5265 = vunpack.c.l.b16 %v5121
  %v5266 = vunpack.c.h.b16 %v5121
  %v5267 = vunpack.c.l.b16 %v5122
  %v5268 = vunpack.c.h.b16 %v5122
  %v5269 = vunpack.c.l.b16 %v5123
  %v5270 = vunpack.c.l.b16 %v5124
  %v5271 = vunpack.c.h.b16 %v5124
  %v5272 = vunpack.c.l.b16 %v5125
  %v5273 = vunpack.c.h.b16 %v5125
  %v5274 = vunpack.c.l.b16 %v5126
  %v5275 = vpack.c.b16 %v5240, %v5235
  %v5276 = vpack.c.b16 %v5241, %v5236
  %v5277 = vpack.c.b16 %v5242, %v5237
  %v5278 = vpack.c.b16 %v5243, %v5238
  %v5279 = vpack.c.b16 %v5244, %v5239
  %v5280 = vpack.c.b16 %v5250, %v5245
  %v5281 = vpack.c.b16 %v5251, %v5246
  %v5282 = vpack.c.b16 %v5252, %v5247
  %v5283 = vpack.c.b16 %v5253, %v5248
  %v5284 = vpack.c.b16 %v5254, %v5249
  %v5285 = vpack.c.b16 %v5260, %v5255
  %v5286 = vpack.c.b16 %v5261, %v5256
  %v5287 = vpack.c.b16 %v5262, %v5257
  %v5288 = vpack.c.b16 %v5263, %v5258
  %v5289 = vpack.c.b16 %v5264, %v5259
  %v5290 = vpack.c.b16 %v5270, %v5265
  %v5291 = vpack.c.b16 %v5271, %v5266
  %v5292 = vpack.c.b16 %v5272, %v5267
  %v5293 = vpack.c.b16 %v5273, %v5268
  %v5294 = vpack.c.b16 %v5274, %v5269
  %v5312 = vsel %vm251, %v5279, 0
  %v5315 = vsel %vm251, %v5284, 0
  %v5318 = vsel %vm251, %v5289, 0
  %v5321 = vsel %vm251, %v5294, 0
  %5323 = vmatprep.subr.bf16.mxu0 0
  %5324 = vmatpush1.bf16.msra.mxu0 %v5127
  %5325 = vmatprep.subr.bf16.mxu0 0
  %5326 = vmatpush1.bf16.msra.mxu0 %v5128
  %5327 = vmatprep.subr.bf16.mxu0 0
  %5328 = vmatpush1.bf16.msra.mxu0 %v5129
  %5329 = vmatprep.subr.bf16.mxu0 0
  %5330 = vmatpush1.bf16.msra.mxu0 %v5130
  %5331 = vmatprep.subr.bf16.mxu0 0
  %5332 = vmatpush1.bf16.msra.mxu0 %v5131
  %5333 = vmatprep.subr.bf16.mxu0 0
  %5334 = vmatpush1.bf16.msra.mxu0 %v5132
  %5335 = vmatprep.subr.bf16.mxu0 0
  %5336 = vmatpush1.bf16.msra.mxu0 %v5133
  %5337 = vmatprep.subr.bf16.mxu0 0
  %5338 = vmatpush1.bf16.msra.mxu0 %v5134
  %5339 = vmatprep.subr.bf16.mxu0 0
  %5340 = vmatpush1.bf16.msra.mxu0 %v5135
  %5341 = vmatprep.subr.bf16.mxu0 0
  %5342 = vmatpush1.bf16.msra.mxu0 %v5136
  %5343 = vmatprep.subr.bf16.mxu0 0
  %5344 = vmatpush1.bf16.msra.mxu0 %v5137
  %5345 = vmatprep.subr.bf16.mxu0 0
  %5346 = vmatpush1.bf16.msra.mxu0 %v5138
  %5347 = vmatprep.subr.bf16.mxu0 0
  %5348 = vmatpush1.bf16.msra.mxu0 %v5139
  %5349 = vmatprep.subr.bf16.mxu0 0
  %5350 = vmatpush1.bf16.msra.mxu0 %v5140
  %5351 = vmatprep.subr.bf16.mxu0 0
  %5352 = vmatpush1.bf16.msra.mxu0 %v5141
  %5353 = vmatprep.subr.bf16.mxu0 0
  %5354 = vmatpush1.bf16.msra.mxu0 %v5142
  %5355 = vmatprep.mubr.bf16.mxu0 %v5276
  %5356 = vmatmul.mubr.bf16.gmra.mrb[0].mxu0 %v5275
  %v5357 = vpop.f32.mrb[0].mxu0
  %v5358 = vadd.f32 %v5174, %v5357
  %v5359 = vpop.f32.mrb[0].mxu0
  %v5360 = vpop.f32.mrb[0].mxu0
  %v5361 = vadd.f32 %v5179, %v5360
  %v5362 = vpop.f32.mrb[0].mxu0
  %5363 = vmatprep.mubr.bf16.mxu0 %v5281
  %5364 = vmatmul.mubr.bf16.gmra.mrb[0].mxu0 %v5280
  %v5365 = vpop.f32.mrb[0].mxu0
  %v5366 = vadd.f32 %v5184, %v5365
  %v5367 = vpop.f32.mrb[0].mxu0
  %v5368 = vpop.f32.mrb[0].mxu0
  %v5369 = vadd.f32 %v5189, %v5368
  %v5370 = vpop.f32.mrb[0].mxu0
  %5371 = vmatprep.mubr.bf16.mxu0 %v5286
  %5372 = vmatmul.mubr.bf16.gmra.mrb[0].mxu0 %v5285
  %v5373 = vpop.f32.mrb[0].mxu0
  %v5374 = vadd.f32 %v5194, %v5373
  %v5375 = vpop.f32.mrb[0].mxu0
  %v5376 = vpop.f32.mrb[0].mxu0
  %v5377 = vadd.f32 %v5199, %v5376
  %v5378 = vpop.f32.mrb[0].mxu0
  %5379 = vmatprep.mubr.bf16.mxu0 %v5291
  %5380 = vmatmul.mubr.bf16.gmra.mrb[0].mxu0 %v5290
  %v5381 = vpop.f32.mrb[0].mxu0
  %v5382 = vadd.f32 %v5204, %v5381
  %v5383 = vpop.f32.mrb[0].mxu0
  %v5384 = vpop.f32.mrb[0].mxu0
  %v5385 = vadd.f32 %v5209, %v5384
  %v5386 = vpop.f32.mrb[0].mxu0
  %5387 = vdwg.mxu0
  %5388 = vmatprep.subr.bf16.mxu0 0
  %5389 = vmatpush1.bf16.msra.mxu0 %v5143
  %5390 = vmatprep.subr.bf16.mxu0 0
  %5391 = vmatpush1.bf16.msra.mxu0 %v5144
  %5392 = vmatprep.subr.bf16.mxu0 0
  %5393 = vmatpush1.bf16.msra.mxu0 %v5145
  %5394 = vmatprep.subr.bf16.mxu0 0
  %5395 = vmatpush1.bf16.msra.mxu0 %v5146
  %5396 = vmatprep.subr.bf16.mxu0 0
  %5397 = vmatpush1.bf16.msra.mxu0 %v5147
  %5398 = vmatprep.subr.bf16.mxu0 0
  %5399 = vmatpush1.bf16.msra.mxu0 %v5148
  %5400 = vmatprep.subr.bf16.mxu0 0
  %5401 = vmatpush1.bf16.msra.mxu0 %v5149
  %5402 = vmatprep.subr.bf16.mxu0 0
  %5403 = vmatpush1.bf16.msra.mxu0 %v5150
  %5404 = vmatprep.subr.bf16.mxu0 0
  %5405 = vmatpush1.bf16.msra.mxu0 %v5151
  %5406 = vmatprep.subr.bf16.mxu0 0
  %5407 = vmatpush1.bf16.msra.mxu0 %v5152
  %5408 = vmatprep.subr.bf16.mxu0 0
  %5409 = vmatpush1.bf16.msra.mxu0 %v5153
  %5410 = vmatprep.subr.bf16.mxu0 0
  %5411 = vmatpush1.bf16.msra.mxu0 %v5154
  %5412 = vmatprep.subr.bf16.mxu0 0
  %5413 = vmatpush1.bf16.msra.mxu0 %v5155
  %5414 = vmatprep.subr.bf16.mxu0 0
  %5415 = vmatpush1.bf16.msra.mxu0 %v5156
  %5416 = vmatprep.subr.bf16.mxu0 0
  %5417 = vmatpush1.bf16.msra.mxu0 %v5157
  %5418 = vmatprep.subr.bf16.mxu0 0
  %5419 = vmatpush1.bf16.msra.mxu0 %v5158
  %5420 = vmatprep.mubr.bf16.mxu0 %v5278
  %5421 = vmatmul.mubr.bf16.gmra.mrb[0].mxu0 %v5277
  %v5422 = vpop.f32.mrb[0].mxu0
  %v5423 = vadd.f32 %v5358, %v5422
  %v5424 = vpop.f32.mrb[0].mxu0
  %v5425 = vpop.f32.mrb[0].mxu0
  %v5426 = vadd.f32 %v5361, %v5425
  %v5427 = vpop.f32.mrb[0].mxu0
  %5428 = vmatprep.mubr.bf16.mxu0 %v5283
  %5429 = vmatmul.mubr.bf16.gmra.mrb[0].mxu0 %v5282
  %v5430 = vpop.f32.mrb[0].mxu0
  %v5431 = vadd.f32 %v5366, %v5430
  %v5432 = vpop.f32.mrb[0].mxu0
  %v5433 = vpop.f32.mrb[0].mxu0
  %v5434 = vadd.f32 %v5369, %v5433
  %v5435 = vpop.f32.mrb[0].mxu0
  %5436 = vmatprep.mubr.bf16.mxu0 %v5288
  %5437 = vmatmul.mubr.bf16.gmra.mrb[0].mxu0 %v5287
  %v5438 = vpop.f32.mrb[0].mxu0
  %v5439 = vadd.f32 %v5374, %v5438
  %v5440 = vpop.f32.mrb[0].mxu0
  %v5441 = vpop.f32.mrb[0].mxu0
  %v5442 = vadd.f32 %v5377, %v5441
  %v5443 = vpop.f32.mrb[0].mxu0
  %5444 = vmatprep.mubr.bf16.mxu0 %v5293
  %5445 = vmatmul.mubr.bf16.gmra.mrb[0].mxu0 %v5292
  %v5446 = vpop.f32.mrb[0].mxu0
  %v5447 = vadd.f32 %v5382, %v5446
  %v5448 = vpop.f32.mrb[0].mxu0
  %v5449 = vpop.f32.mrb[0].mxu0
  %v5450 = vadd.f32 %v5385, %v5449
  %v5451 = vpop.f32.mrb[0].mxu0
  %5452 = vdwg.mxu0
  %5453 = vmatprep.subr.bf16.mxu0 0
  %5454 = vmatpush1.bf16.msra.mxu0 %v5159
  %5455 = vmatprep.subr.bf16.mxu0 0
  %5456 = vmatpush1.bf16.msra.mxu0 %v5160
  %5457 = vmatprep.subr.bf16.mxu0 0
  %5458 = vmatpush1.bf16.msra.mxu0 %v5161
  %5459 = vmatprep.subr.bf16.mxu0 0
  %5460 = vmatpush1.bf16.msra.mxu0 %v5162
  %5461 = vmatprep.subr.bf16.mxu0 0
  %5462 = vmatpush1.bf16.msra.mxu0 0
  %5463 = vmatprep.subr.bf16.mxu0 0
  %5464 = vmatpush1.bf16.msra.mxu0 0
  %5465 = vmatprep.subr.bf16.mxu0 0
  %5466 = vmatpush1.bf16.msra.mxu0 0
  %5467 = vmatprep.subr.bf16.mxu0 0
  %5468 = vmatpush1.bf16.msra.mxu0 0
  %5469 = vmatprep.subr.bf16.mxu0 0
  %5470 = vmatpush1.bf16.msra.mxu0 0
  %5471 = vmatprep.subr.bf16.mxu0 0
  %5472 = vmatpush1.bf16.msra.mxu0 0
  %5473 = vmatprep.subr.bf16.mxu0 0
  %5474 = vmatpush1.bf16.msra.mxu0 0
  %5475 = vmatprep.subr.bf16.mxu0 0
  %5476 = vmatpush1.bf16.msra.mxu0 0
  %5477 = vmatprep.subr.bf16.mxu0 0
  %5478 = vmatpush1.bf16.msra.mxu0 0
  %5479 = vmatprep.subr.bf16.mxu0 0
  %5480 = vmatpush1.bf16.msra.mxu0 0
  %5481 = vmatprep.subr.bf16.mxu0 0
  %5482 = vmatpush1.bf16.msra.mxu0 0
  %5483 = vmatprep.subr.bf16.mxu0 0
  %5484 = vmatpush1.bf16.msra.mxu0 0
  %5485 = vmatprep.mubr.bf16.mxu0 0
  %5486 = vmatmul.mubr.bf16.gmra.mrb[0].mxu0 %v5312
  %v5487 = vpop.f32.mrb[0].mxu0
  %v5488 = vadd.f32 %v5423, %v5487
  %v5489 = vpop.f32.mrb[0].mxu0
  %v5490 = vpop.f32.mrb[0].mxu0
  %v5491 = vadd.f32 %v5426, %v5490
  %v5492 = vpop.f32.mrb[0].mxu0
  %5493 = vmatprep.mubr.bf16.mxu0 0
  %5494 = vmatmul.mubr.bf16.gmra.mrb[0].mxu0 %v5315
  %v5495 = vpop.f32.mrb[0].mxu0
  %v5496 = vadd.f32 %v5431, %v5495
  %v5497 = vpop.f32.mrb[0].mxu0
  %v5498 = vpop.f32.mrb[0].mxu0
  %v5499 = vadd.f32 %v5434, %v5498
  %v5500 = vpop.f32.mrb[0].mxu0
  %5501 = vmatprep.mubr.bf16.mxu0 0
  %5502 = vmatmul.mubr.bf16.gmra.mrb[0].mxu0 %v5318
  %v5503 = vpop.f32.mrb[0].mxu0
  %v5504 = vadd.f32 %v5439, %v5503
  %v5505 = vpop.f32.mrb[0].mxu0
  %v5506 = vpop.f32.mrb[0].mxu0
  %v5507 = vadd.f32 %v5442, %v5506
  %v5508 = vpop.f32.mrb[0].mxu0
  %5509 = vmatprep.mubr.bf16.mxu0 0
  %5510 = vmatmul.mubr.bf16.gmra.mrb[0].mxu0 %v5321
  %v5511 = vpop.f32.mrb[0].mxu0
  %v5512 = vadd.f32 %v5447, %v5511
  %v5513 = vpop.f32.mrb[0].mxu0
  %v5514 = vpop.f32.mrb[0].mxu0
  %v5515 = vadd.f32 %v5450, %v5514
  %v5516 = vpop.f32.mrb[0].mxu0
  %5517 = vdwg.mxu0
  %v5518 = vmax.f32 %v5488, 0.0
  %v5519 = vmax.f32 %v5491, 0.0
  %v5520 = vmax.f32 %v5496, 0.0
  %v5521 = vmax.f32 %v5499, 0.0
  %v5522 = vmax.f32 %v5504, 0.0
  %v5523 = vmax.f32 %v5507, 0.0
  %v5524 = vmax.f32 %v5512, 0.0
  %v5525 = vmax.f32 %v5515, 0.0
  %v5526 = vpack.c.bf16 %v5519, %v5518
  %v5527 = vpack.c.bf16 %v5521, %v5520
  %v5528 = vpack.c.bf16 %v5523, %v5522
  %v5529 = vpack.c.bf16 %v5525, %v5524
  %v5530 = vld [vmem:[%s13] sm:$0xf]
  %v5531 = vld [vmem:[%s13 + $0x4] sm:$0xf]
  %v5534 = vunpack.c.l.b16 %v5530
  %v5535 = vunpack.c.l.b16 %v5531
  %v5536 = vpack.c.b16 %v5535, %v5534
  %v5539 = vsel %vm1730, %v5526, 0
  %v5542 = vsel %vm1730, %v5527, 0
  %v5545 = vsel %vm1730, %v5528, 0
  %v5548 = vsel %vm1730, %v5529, 0
  %5550 = vmatprep.subr.bf16.mxu0 0
  %5551 = vmatpush1.bf16.msra.mxu0 %v5536
  %5552 = vmatprep.subr.bf16.mxu0 0
  %5553 = vmatpush1.bf16.msra.mxu0 0
  %5554 = vmatprep.subr.bf16.mxu0 0
  %5555 = vmatpush1.bf16.msra.mxu0 0
  %5556 = vmatprep.subr.bf16.mxu0 0
  %5557 = vmatpush1.bf16.msra.mxu0 0
  %5558 = vmatprep.subr.bf16.mxu0 0
  %5559 = vmatpush1.bf16.msra.mxu0 0
  %5560 = vmatprep.subr.bf16.mxu0 0
  %5561 = vmatpush1.bf16.msra.mxu0 0
  %5562 = vmatprep.subr.bf16.mxu0 0
  %5563 = vmatpush1.bf16.msra.mxu0 0
  %5564 = vmatprep.subr.bf16.mxu0 0
  %5565 = vmatpush1.bf16.msra.mxu0 0
  %5566 = vmatprep.subr.bf16.mxu0 0
  %5567 = vmatpush1.bf16.msra.mxu0 0
  %5568 = vmatprep.subr.bf16.mxu0 0
  %5569 = vmatpush1.bf16.msra.mxu0 0
  %5570 = vmatprep.subr.bf16.mxu0 0
  %5571 = vmatpush1.bf16.msra.mxu0 0
  %5572 = vmatprep.subr.bf16.mxu0 0
  %5573 = vmatpush1.bf16.msra.mxu0 0
  %5574 = vmatprep.subr.bf16.mxu0 0
  %5575 = vmatpush1.bf16.msra.mxu0 0
  %5576 = vmatprep.subr.bf16.mxu0 0
  %5577 = vmatpush1.bf16.msra.mxu0 0
  %5578 = vmatprep.subr.bf16.mxu0 0
  %5579 = vmatpush1.bf16.msra.mxu0 0
  %5580 = vmatprep.subr.bf16.mxu0 0
  %5581 = vmatpush1.bf16.msra.mxu0 0
  %5582 = vmatprep.mubr.bf16.mxu0 0
  %5583 = vmatmul.mubr.bf16.gmra.mrb[0].mxu0 %v5539
  %v5584 = vpop.f32.mrb[0].mxu0
  %v5585 = vadd.f32 0.0, %v5584
  %v5586 = vpop.f32.mrb[0].mxu0
  %v5587 = vpop.f32.mrb[0].mxu0
  %v5588 = vadd.f32 0.0, %v5587
  %v5589 = vpop.f32.mrb[0].mxu0
  %5590 = vmatprep.mubr.bf16.mxu0 0
  %5591 = vmatmul.mubr.bf16.gmra.mrb[0].mxu0 %v5542
  %v5592 = vpop.f32.mrb[0].mxu0
  %v5593 = vadd.f32 0.0, %v5592
  %v5594 = vpop.f32.mrb[0].mxu0
  %v5595 = vpop.f32.mrb[0].mxu0
  %v5596 = vadd.f32 0.0, %v5595
  %v5597 = vpop.f32.mrb[0].mxu0
  %5598 = vmatprep.mubr.bf16.mxu0 0
  %5599 = vmatmul.mubr.bf16.gmra.mrb[0].mxu0 %v5545
  %v5600 = vpop.f32.mrb[0].mxu0
  %v5601 = vadd.f32 0.0, %v5600
  %v5602 = vpop.f32.mrb[0].mxu0
  %v5603 = vpop.f32.mrb[0].mxu0
  %v5604 = vadd.f32 0.0, %v5603
  %v5605 = vpop.f32.mrb[0].mxu0
  %5606 = vmatprep.mubr.bf16.mxu0 0
  %5607 = vmatmul.mubr.bf16.gmra.mrb[0].mxu0 %v5548
  %v5608 = vpop.f32.mrb[0].mxu0
  %v5609 = vadd.f32 0.0, %v5608
  %v5610 = vpop.f32.mrb[0].mxu0
  %v5611 = vpop.f32.mrb[0].mxu0
  %v5612 = vadd.f32 0.0, %v5611
  %v5613 = vpop.f32.mrb[0].mxu0
  %5614 = vdwg.mxu0
  %v5615 = vpack.c.bf16 %v5588, %v5585
  %v5616 = vpack.c.bf16 %v5596, %v5593
  %v5617 = vpack.c.bf16 %v5604, %v5601
  %v5618 = vpack.c.bf16 %v5612, %v5609
  %5619 = vst.msk [vmem:[#allocation2] sm:$0xff] %vm251, %v5615
  %5620 = vst.msk [vmem:[#allocation2 + $0x10] sm:$0xff] %vm251, %v5616
  %5621 = vst.msk [vmem:[#allocation2 + $0x20] sm:$0xff] %vm251, %v5617
  %5622 = vst.msk [vmem:[#allocation2 + $0x30] sm:$0xff] %vm251, %v5618
  %s5623 = scalar_lea.vmem %s13, 8
  %v5624 = vld [vmem:[%s5623] sm:$0xf]
  %v5625 = vld [vmem:[%s5623 + $0x4] sm:$0xf]
  %v5628 = vunpack.c.l.b16 %v5624
  %v5629 = vunpack.c.l.b16 %v5625
  %v5630 = vpack.c.b16 %v5629, %v5628
  %5632 = vmatprep.subr.bf16.mxu0 0
  %5633 = vmatpush1.bf16.msra.mxu0 %v5630
  %5634 = vmatprep.subr.bf16.mxu0 0
  %5635 = vmatpush1.bf16.msra.mxu0 0
  %5636 = vmatprep.subr.bf16.mxu0 0
  %5637 = vmatpush1.bf16.msra.mxu0 0
  %5638 = vmatprep.subr.bf16.mxu0 0
  %5639 = vmatpush1.bf16.msra.mxu0 0
  %5640 = vmatprep.subr.bf16.mxu0 0
  %5641 = vmatpush1.bf16.msra.mxu0 0
  %5642 = vmatprep.subr.bf16.mxu0 0
  %5643 = vmatpush1.bf16.msra.mxu0 0
  %5644 = vmatprep.subr.bf16.mxu0 0
  %5645 = vmatpush1.bf16.msra.mxu0 0
  %5646 = vmatprep.subr.bf16.mxu0 0
  %5647 = vmatpush1.bf16.msra.mxu0 0
  %5648 = vmatprep.subr.bf16.mxu0 0
  %5649 = vmatpush1.bf16.msra.mxu0 0
  %5650 = vmatprep.subr.bf16.mxu0 0
  %5651 = vmatpush1.bf16.msra.mxu0 0
  %5652 = vmatprep.subr.bf16.mxu0 0
  %5653 = vmatpush1.bf16.msra.mxu0 0
  %5654 = vmatprep.subr.bf16.mxu0 0
  %5655 = vmatpush1.bf16.msra.mxu0 0
  %5656 = vmatprep.subr.bf16.mxu0 0
  %5657 = vmatpush1.bf16.msra.mxu0 0
  %5658 = vmatprep.subr.bf16.mxu0 0
  %5659 = vmatpush1.bf16.msra.mxu0 0
  %5660 = vmatprep.subr.bf16.mxu0 0
  %5661 = vmatpush1.bf16.msra.mxu0 0
  %5662 = vmatprep.subr.bf16.mxu0 0
  %5663 = vmatpush1.bf16.msra.mxu0 0
  %5664 = vmatprep.mubr.bf16.mxu0 0
  %5665 = vmatmul.mubr.bf16.gmra.mrb[0].mxu0 %v5539
  %v5666 = vpop.f32.mrb[0].mxu0
  %v5667 = vadd.f32 0.0, %v5666
  %v5668 = vpop.f32.mrb[0].mxu0
  %v5669 = vpop.f32.mrb[0].mxu0
  %v5670 = vadd.f32 0.0, %v5669
  %v5671 = vpop.f32.mrb[0].mxu0
  %5672 = vmatprep.mubr.bf16.mxu0 0
  %5673 = vmatmul.mubr.bf16.gmra.mrb[0].mxu0 %v5542
  %v5674 = vpop.f32.mrb[0].mxu0
  %v5675 = vadd.f32 0.0, %v5674
  %v5676 = vpop.f32.mrb[0].mxu0
  %v5677 = vpop.f32.mrb[0].mxu0
  %v5678 = vadd.f32 0.0, %v5677
  %v5679 = vpop.f32.mrb[0].mxu0
  %5680 = vmatprep.mubr.bf16.mxu0 0
  %5681 = vmatmul.mubr.bf16.gmra.mrb[0].mxu0 %v5545
  %v5682 = vpop.f32.mrb[0].mxu0
  %v5683 = vadd.f32 0.0, %v5682
  %v5684 = vpop.f32.mrb[0].mxu0
  %v5685 = vpop.f32.mrb[0].mxu0
  %v5686 = vadd.f32 0.0, %v5685
  %v5687 = vpop.f32.mrb[0].mxu0
  %5688 = vmatprep.mubr.bf16.mxu0 0
  %5689 = vmatmul.mubr.bf16.gmra.mrb[0].mxu0 %v5548
  %v5690 = vpop.f32.mrb[0].mxu0
  %v5691 = vadd.f32 0.0, %v5690
  %v5692 = vpop.f32.mrb[0].mxu0
  %v5693 = vpop.f32.mrb[0].mxu0
  %v5694 = vadd.f32 0.0, %v5693
  %v5695 = vpop.f32.mrb[0].mxu0
  %5696 = vdwg.mxu0
  %v5697 = vpack.c.bf16 %v5670, %v5667
  %v5698 = vpack.c.bf16 %v5678, %v5675
  %v5699 = vpack.c.bf16 %v5686, %v5683
  %v5700 = vpack.c.bf16 %v5694, %v5691
  %5701 = vst.msk [vmem:[#allocation2 + $0x40] sm:$0xff] %vm251, %v5697
  %5702 = vst.msk [vmem:[#allocation2 + $0x50] sm:$0xff] %vm251, %v5698
  %5703 = vst.msk [vmem:[#allocation2 + $0x60] sm:$0xff] %vm251, %v5699
  %5704 = vst.msk [vmem:[#allocation2 + $0x70] sm:$0xff] %vm251, %v5700
  %s5705 = scalar_lea.vmem %s13, 16
  %v5706 = vld [vmem:[%s5705] sm:$0xf]
  %v5707 = vld [vmem:[%s5705 + $0x4] sm:$0xf]
  %v5710 = vunpack.c.l.b16 %v5706
  %v5711 = vunpack.c.l.b16 %v5707
  %v5712 = vpack.c.b16 %v5711, %v5710
  %5714 = vmatprep.subr.bf16.mxu0 0
  %5715 = vmatpush1.bf16.msra.mxu0 %v5712
  %5716 = vmatprep.subr.bf16.mxu0 0
  %5717 = vmatpush1.bf16.msra.mxu0 0
  %5718 = vmatprep.subr.bf16.mxu0 0
  %5719 = vmatpush1.bf16.msra.mxu0 0
  %5720 = vmatprep.subr.bf16.mxu0 0
  %5721 = vmatpush1.bf16.msra.mxu0 0
  %5722 = vmatprep.subr.bf16.mxu0 0
  %5723 = vmatpush1.bf16.msra.mxu0 0
  %5724 = vmatprep.subr.bf16.mxu0 0
  %5725 = vmatpush1.bf16.msra.mxu0 0
  %5726 = vmatprep.subr.bf16.mxu0 0
  %5727 = vmatpush1.bf16.msra.mxu0 0
  %5728 = vmatprep.subr.bf16.mxu0 0
  %5729 = vmatpush1.bf16.msra.mxu0 0
  %5730 = vmatprep.subr.bf16.mxu0 0
  %5731 = vmatpush1.bf16.msra.mxu0 0
  %5732 = vmatprep.subr.bf16.mxu0 0
  %5733 = vmatpush1.bf16.msra.mxu0 0
  %5734 = vmatprep.subr.bf16.mxu0 0
  %5735 = vmatpush1.bf16.msra.mxu0 0
  %5736 = vmatprep.subr.bf16.mxu0 0
  %5737 = vmatpush1.bf16.msra.mxu0 0
  %5738 = vmatprep.subr.bf16.mxu0 0
  %5739 = vmatpush1.bf16.msra.mxu0 0
  %5740 = vmatprep.subr.bf16.mxu0 0
  %5741 = vmatpush1.bf16.msra.mxu0 0
  %5742 = vmatprep.subr.bf16.mxu0 0
  %5743 = vmatpush1.bf16.msra.mxu0 0
  %5744 = vmatprep.subr.bf16.mxu0 0
  %5745 = vmatpush1.bf16.msra.mxu0 0
  %5746 = vmatprep.mubr.bf16.mxu0 0
  %5747 = vmatmul.mubr.bf16.gmra.mrb[0].mxu0 %v5539
  %v5748 = vpop.f32.mrb[0].mxu0
  %v5749 = vadd.f32 0.0, %v5748
  %v5750 = vpop.f32.mrb[0].mxu0
  %v5751 = vpop.f32.mrb[0].mxu0
  %v5752 = vadd.f32 0.0, %v5751
  %v5753 = vpop.f32.mrb[0].mxu0
  %5754 = vmatprep.mubr.bf16.mxu0 0
  %5755 = vmatmul.mubr.bf16.gmra.mrb[0].mxu0 %v5542
  %v5756 = vpop.f32.mrb[0].mxu0
  %v5757 = vadd.f32 0.0, %v5756
  %v5758 = vpop.f32.mrb[0].mxu0
  %v5759 = vpop.f32.mrb[0].mxu0
  %v5760 = vadd.f32 0.0, %v5759
  %v5761 = vpop.f32.mrb[0].mxu0
  %5762 = vmatprep.mubr.bf16.mxu0 0
  %5763 = vmatmul.mubr.bf16.gmra.mrb[0].mxu0 %v5545
  %v5764 = vpop.f32.mrb[0].mxu0
  %v5765 = vadd.f32 0.0, %v5764
  %v5766 = vpop.f32.mrb[0].mxu0
  %v5767 = vpop.f32.mrb[0].mxu0
  %v5768 = vadd.f32 0.0, %v5767
  %v5769 = vpop.f32.mrb[0].mxu0
  %5770 = vmatprep.mubr.bf16.mxu0 0
  %5771 = vmatmul.mubr.bf16.gmra.mrb[0].mxu0 %v5548
  %v5772 = vpop.f32.mrb[0].mxu0
  %v5773 = vadd.f32 0.0, %v5772
  %v5774 = vpop.f32.mrb[0].mxu0
  %v5775 = vpop.f32.mrb[0].mxu0
  %v5776 = vadd.f32 0.0, %v5775
  %v5777 = vpop.f32.mrb[0].mxu0
  %5778 = vdwg.mxu0
  %v5779 = vpack.c.bf16 %v5752, %v5749
  %v5780 = vpack.c.bf16 %v5760, %v5757
  %v5781 = vpack.c.bf16 %v5768, %v5765
  %v5782 = vpack.c.bf16 %v5776, %v5773
  %5783 = vst.msk [vmem:[#allocation2 + $0x80] sm:$0xff] %vm251, %v5779
  %5784 = vst.msk [vmem:[#allocation2 + $0x90] sm:$0xff] %vm251, %v5780
  %5785 = vst.msk [vmem:[#allocation2 + $0xa0] sm:$0xff] %vm251, %v5781
  %5786 = vst.msk [vmem:[#allocation2 + $0xb0] sm:$0xff] %vm251, %v5782
  %s5787 = scalar_lea.vmem %s13, 24
  %v5788 = vld [vmem:[%s5787] sm:$0xf]
  %v5789 = vld [vmem:[%s5787 + $0x4] sm:$0xf]
  %v5792 = vunpack.c.l.b16 %v5788
  %v5793 = vunpack.c.l.b16 %v5789
  %v5794 = vpack.c.b16 %v5793, %v5792
  %5796 = vmatprep.subr.bf16.mxu0 0
  %5797 = vmatpush1.bf16.msra.mxu0 %v5794
  %5798 = vmatprep.subr.bf16.mxu0 0
  %5799 = vmatpush1.bf16.msra.mxu0 0
  %5800 = vmatprep.subr.bf16.mxu0 0
  %5801 = vmatpush1.bf16.msra.mxu0 0
  %5802 = vmatprep.subr.bf16.mxu0 0
  %5803 = vmatpush1.bf16.msra.mxu0 0
  %5804 = vmatprep.subr.bf16.mxu0 0
  %5805 = vmatpush1.bf16.msra.mxu0 0
  %5806 = vmatprep.subr.bf16.mxu0 0
  %5807 = vmatpush1.bf16.msra.mxu0 0
  %5808 = vmatprep.subr.bf16.mxu0 0
  %5809 = vmatpush1.bf16.msra.mxu0 0
  %5810 = vmatprep.subr.bf16.mxu0 0
  %5811 = vmatpush1.bf16.msra.mxu0 0
  %5812 = vmatprep.subr.bf16.mxu0 0
  %5813 = vmatpush1.bf16.msra.mxu0 0
  %5814 = vmatprep.subr.bf16.mxu0 0
  %5815 = vmatpush1.bf16.msra.mxu0 0
  %5816 = vmatprep.subr.bf16.mxu0 0
  %5817 = vmatpush1.bf16.msra.mxu0 0
  %5818 = vmatprep.subr.bf16.mxu0 0
  %5819 = vmatpush1.bf16.msra.mxu0 0
  %5820 = vmatprep.subr.bf16.mxu0 0
  %5821 = vmatpush1.bf16.msra.mxu0 0
  %5822 = vmatprep.subr.bf16.mxu0 0
  %5823 = vmatpush1.bf16.msra.mxu0 0
  %5824 = vmatprep.subr.bf16.mxu0 0
  %5825 = vmatpush1.bf16.msra.mxu0 0
  %5826 = vmatprep.subr.bf16.mxu0 0
  %5827 = vmatpush1.bf16.msra.mxu0 0
  %5828 = vmatprep.mubr.bf16.mxu0 0
  %5829 = vmatmul.mubr.bf16.gmra.mrb[0].mxu0 %v5539
  %v5830 = vpop.f32.mrb[0].mxu0
  %v5831 = vadd.f32 0.0, %v5830
  %v5832 = vpop.f32.mrb[0].mxu0
  %v5833 = vpop.f32.mrb[0].mxu0
  %v5834 = vadd.f32 0.0, %v5833
  %v5835 = vpop.f32.mrb[0].mxu0
  %5836 = vmatprep.mubr.bf16.mxu0 0
  %5837 = vmatmul.mubr.bf16.gmra.mrb[0].mxu0 %v5542
  %v5838 = vpop.f32.mrb[0].mxu0
  %v5839 = vadd.f32 0.0, %v5838
  %v5840 = vpop.f32.mrb[0].mxu0
  %v5841 = vpop.f32.mrb[0].mxu0
  %v5842 = vadd.f32 0.0, %v5841
  %v5843 = vpop.f32.mrb[0].mxu0
  %5844 = vmatprep.mubr.bf16.mxu0 0
  %5845 = vmatmul.mubr.bf16.gmra.mrb[0].mxu0 %v5545
  %v5846 = vpop.f32.mrb[0].mxu0
  %v5847 = vadd.f32 0.0, %v5846
  %v5848 = vpop.f32.mrb[0].mxu0
  %v5849 = vpop.f32.mrb[0].mxu0
  %v5850 = vadd.f32 0.0, %v5849
  %v5851 = vpop.f32.mrb[0].mxu0
  %5852 = vmatprep.mubr.bf16.mxu0 0
  %5853 = vmatmul.mubr.bf16.gmra.mrb[0].mxu0 %v5548
  %v5854 = vpop.f32.mrb[0].mxu0
  %v5855 = vadd.f32 0.0, %v5854
  %v5856 = vpop.f32.mrb[0].mxu0
  %v5857 = vpop.f32.mrb[0].mxu0
  %v5858 = vadd.f32 0.0, %v5857
  %v5859 = vpop.f32.mrb[0].mxu0
  %5860 = vdwg.mxu0
  %v5861 = vpack.c.bf16 %v5834, %v5831
  %v5862 = vpack.c.bf16 %v5842, %v5839
  %v5863 = vpack.c.bf16 %v5850, %v5847
  %v5864 = vpack.c.bf16 %v5858, %v5855
  %5865 = vst.msk [vmem:[#allocation2 + $0xc0] sm:$0xff] %vm251, %v5861
  %5866 = vst.msk [vmem:[#allocation2 + $0xd0] sm:$0xff] %vm251, %v5862
  %5867 = vst.msk [vmem:[#allocation2 + $0xe0] sm:$0xff] %vm251, %v5863
  %5868 = vst.msk [vmem:[#allocation2 + $0xf0] sm:$0xff] %vm251, %v5864
  %s5869 = scalar_lea.vmem %s13, 32
  %v5870 = vld [vmem:[%s5869] sm:$0xf]
  %v5871 = vld [vmem:[%s5869 + $0x4] sm:$0xf]
  %v5874 = vunpack.c.l.b16 %v5870
  %v5875 = vunpack.c.l.b16 %v5871
  %v5876 = vpack.c.b16 %v5875, %v5874
  %5878 = vmatprep.subr.bf16.mxu0 0
  %5879 = vmatpush1.bf16.msra.mxu0 %v5876
  %5880 = vmatprep.subr.bf16.mxu0 0
  %5881 = vmatpush1.bf16.msra.mxu0 0
  %5882 = vmatprep.subr.bf16.mxu0 0
  %5883 = vmatpush1.bf16.msra.mxu0 0
  %5884 = vmatprep.subr.bf16.mxu0 0
  %5885 = vmatpush1.bf16.msra.mxu0 0
  %5886 = vmatprep.subr.bf16.mxu0 0
  %5887 = vmatpush1.bf16.msra.mxu0 0
  %5888 = vmatprep.subr.bf16.mxu0 0
  %5889 = vmatpush1.bf16.msra.mxu0 0
  %5890 = vmatprep.subr.bf16.mxu0 0
  %5891 = vmatpush1.bf16.msra.mxu0 0
  %5892 = vmatprep.subr.bf16.mxu0 0
  %5893 = vmatpush1.bf16.msra.mxu0 0
  %5894 = vmatprep.subr.bf16.mxu0 0
  %5895 = vmatpush1.bf16.msra.mxu0 0
  %5896 = vmatprep.subr.bf16.mxu0 0
  %5897 = vmatpush1.bf16.msra.mxu0 0
  %5898 = vmatprep.subr.bf16.mxu0 0
  %5899 = vmatpush1.bf16.msra.mxu0 0
  %5900 = vmatprep.subr.bf16.mxu0 0
  %5901 = vmatpush1.bf16.msra.mxu0 0
  %5902 = vmatprep.subr.bf16.mxu0 0
  %5903 = vmatpush1.bf16.msra.mxu0 0
  %5904 = vmatprep.subr.bf16.mxu0 0
  %5905 = vmatpush1.bf16.msra.mxu0 0
  %5906 = vmatprep.subr.bf16.mxu0 0
  %5907 = vmatpush1.bf16.msra.mxu0 0
  %5908 = vmatprep.subr.bf16.mxu0 0
  %5909 = vmatpush1.bf16.msra.mxu0 0
  %5910 = vmatprep.mubr.bf16.mxu0 0
  %5911 = vmatmul.mubr.bf16.gmra.mrb[0].mxu0 %v5539
  %v5912 = vpop.f32.mrb[0].mxu0
  %v5913 = vadd.f32 0.0, %v5912
  %v5914 = vpop.f32.mrb[0].mxu0
  %v5915 = vpop.f32.mrb[0].mxu0
  %v5916 = vadd.f32 0.0, %v5915
  %v5917 = vpop.f32.mrb[0].mxu0
  %5918 = vmatprep.mubr.bf16.mxu0 0
  %5919 = vmatmul.mubr.bf16.gmra.mrb[0].mxu0 %v5542
  %v5920 = vpop.f32.mrb[0].mxu0
  %v5921 = vadd.f32 0.0, %v5920
  %v5922 = vpop.f32.mrb[0].mxu0
  %v5923 = vpop.f32.mrb[0].mxu0
  %v5924 = vadd.f32 0.0, %v5923
  %v5925 = vpop.f32.mrb[0].mxu0
  %5926 = vmatprep.mubr.bf16.mxu0 0
  %5927 = vmatmul.mubr.bf16.gmra.mrb[0].mxu0 %v5545
  %v5928 = vpop.f32.mrb[0].mxu0
  %v5929 = vadd.f32 0.0, %v5928
  %v5930 = vpop.f32.mrb[0].mxu0
  %v5931 = vpop.f32.mrb[0].mxu0
  %v5932 = vadd.f32 0.0, %v5931
  %v5933 = vpop.f32.mrb[0].mxu0
  %5934 = vmatprep.mubr.bf16.mxu0 0
  %5935 = vmatmul.mubr.bf16.gmra.mrb[0].mxu0 %v5548
  %v5936 = vpop.f32.mrb[0].mxu0
  %v5937 = vadd.f32 0.0, %v5936
  %v5938 = vpop.f32.mrb[0].mxu0
  %v5939 = vpop.f32.mrb[0].mxu0
  %v5940 = vadd.f32 0.0, %v5939
  %v5941 = vpop.f32.mrb[0].mxu0
  %5942 = vdwg.mxu0
  %v5943 = vpack.c.bf16 %v5916, %v5913
  %v5944 = vpack.c.bf16 %v5924, %v5921
  %v5945 = vpack.c.bf16 %v5932, %v5929
  %v5946 = vpack.c.bf16 %v5940, %v5937
  %5947 = vst.msk [vmem:[#allocation2 + $0x100] sm:$0xff] %vm251, %v5943
  %5948 = vst.msk [vmem:[#allocation2 + $0x110] sm:$0xff] %vm251, %v5944
  %5949 = vst.msk [vmem:[#allocation2 + $0x120] sm:$0xff] %vm251, %v5945
  %5950 = vst.msk [vmem:[#allocation2 + $0x130] sm:$0xff] %vm251, %v5946
  %s5951 = scalar_lea.vmem %s13, 40
  %v5952 = vld [vmem:[%s5951] sm:$0xf]
  %v5953 = vld [vmem:[%s5951 + $0x4] sm:$0xf]
  %v5956 = vunpack.c.l.b16 %v5952
  %v5957 = vunpack.c.l.b16 %v5953
  %v5958 = vpack.c.b16 %v5957, %v5956
  %5960 = vmatprep.subr.bf16.mxu0 0
  %5961 = vmatpush1.bf16.msra.mxu0 %v5958
  %5962 = vmatprep.subr.bf16.mxu0 0
  %5963 = vmatpush1.bf16.msra.mxu0 0
  %5964 = vmatprep.subr.bf16.mxu0 0
  %5965 = vmatpush1.bf16.msra.mxu0 0
  %5966 = vmatprep.subr.bf16.mxu0 0
  %5967 = vmatpush1.bf16.msra.mxu0 0
  %5968 = vmatprep.subr.bf16.mxu0 0
  %5969 = vmatpush1.bf16.msra.mxu0 0
  %5970 = vmatprep.subr.bf16.mxu0 0
  %5971 = vmatpush1.bf16.msra.mxu0 0
  %5972 = vmatprep.subr.bf16.mxu0 0
  %5973 = vmatpush1.bf16.msra.mxu0 0
  %5974 = vmatprep.subr.bf16.mxu0 0
  %5975 = vmatpush1.bf16.msra.mxu0 0
  %5976 = vmatprep.subr.bf16.mxu0 0
  %5977 = vmatpush1.bf16.msra.mxu0 0
  %5978 = vmatprep.subr.bf16.mxu0 0
  %5979 = vmatpush1.bf16.msra.mxu0 0
  %5980 = vmatprep.subr.bf16.mxu0 0
  %5981 = vmatpush1.bf16.msra.mxu0 0
  %5982 = vmatprep.subr.bf16.mxu0 0
  %5983 = vmatpush1.bf16.msra.mxu0 0
  %5984 = vmatprep.subr.bf16.mxu0 0
  %5985 = vmatpush1.bf16.msra.mxu0 0
  %5986 = vmatprep.subr.bf16.mxu0 0
  %5987 = vmatpush1.bf16.msra.mxu0 0
  %5988 = vmatprep.subr.bf16.mxu0 0
  %5989 = vmatpush1.bf16.msra.mxu0 0
  %5990 = vmatprep.subr.bf16.mxu0 0
  %5991 = vmatpush1.bf16.msra.mxu0 0
  %5992 = vmatprep.mubr.bf16.mxu0 0
  %5993 = vmatmul.mubr.bf16.gmra.mrb[0].mxu0 %v5539
  %v5994 = vpop.f32.mrb[0].mxu0
  %v5995 = vadd.f32 0.0, %v5994
  %v5996 = vpop.f32.mrb[0].mxu0
  %v5997 = vpop.f32.mrb[0].mxu0
  %v5998 = vadd.f32 0.0, %v5997
  %v5999 = vpop.f32.mrb[0].mxu0
  %6000 = vmatprep.mubr.bf16.mxu0 0
  %6001 = vmatmul.mubr.bf16.gmra.mrb[0].mxu0 %v5542
  %v6002 = vpop.f32.mrb[0].mxu0
  %v6003 = vadd.f32 0.0, %v6002
  %v6004 = vpop.f32.mrb[0].mxu0
  %v6005 = vpop.f32.mrb[0].mxu0
  %v6006 = vadd.f32 0.0, %v6005
  %v6007 = vpop.f32.mrb[0].mxu0
  %6008 = vmatprep.mubr.bf16.mxu0 0
  %6009 = vmatmul.mubr.bf16.gmra.mrb[0].mxu0 %v5545
  %v6010 = vpop.f32.mrb[0].mxu0
  %v6011 = vadd.f32 0.0, %v6010
  %v6012 = vpop.f32.mrb[0].mxu0
  %v6013 = vpop.f32.mrb[0].mxu0
  %v6014 = vadd.f32 0.0, %v6013
  %v6015 = vpop.f32.mrb[0].mxu0
  %6016 = vmatprep.mubr.bf16.mxu0 0
  %6017 = vmatmul.mubr.bf16.gmra.mrb[0].mxu0 %v5548
  %v6018 = vpop.f32.mrb[0].mxu0
  %v6019 = vadd.f32 0.0, %v6018
  %v6020 = vpop.f32.mrb[0].mxu0
  %v6021 = vpop.f32.mrb[0].mxu0
  %v6022 = vadd.f32 0.0, %v6021
  %v6023 = vpop.f32.mrb[0].mxu0
  %6024 = vdwg.mxu0
  %v6025 = vpack.c.bf16 %v5998, %v5995
  %v6026 = vpack.c.bf16 %v6006, %v6003
  %v6027 = vpack.c.bf16 %v6014, %v6011
  %v6028 = vpack.c.bf16 %v6022, %v6019
  %6029 = vst.msk [vmem:[#allocation2 + $0x140] sm:$0xff] %vm251, %v6025
  %6030 = vst.msk [vmem:[#allocation2 + $0x150] sm:$0xff] %vm251, %v6026
  %6031 = vst.msk [vmem:[#allocation2 + $0x160] sm:$0xff] %vm251, %v6027
  %6032 = vst.msk [vmem:[#allocation2 + $0x170] sm:$0xff] %vm251, %v6028
  %s6033 = scalar_lea.vmem %s13, 48
  %v6034 = vld [vmem:[%s6033] sm:$0xf]
  %v6035 = vld [vmem:[%s6033 + $0x4] sm:$0xf]
  %v6038 = vunpack.c.l.b16 %v6034
  %v6039 = vunpack.c.l.b16 %v6035
  %v6040 = vpack.c.b16 %v6039, %v6038
  %6042 = vmatprep.subr.bf16.mxu0 0
  %6043 = vmatpush1.bf16.msra.mxu0 %v6040
  %6044 = vmatprep.subr.bf16.mxu0 0
  %6045 = vmatpush1.bf16.msra.mxu0 0
  %6046 = vmatprep.subr.bf16.mxu0 0
  %6047 = vmatpush1.bf16.msra.mxu0 0
  %6048 = vmatprep.subr.bf16.mxu0 0
  %6049 = vmatpush1.bf16.msra.mxu0 0
  %6050 = vmatprep.subr.bf16.mxu0 0
  %6051 = vmatpush1.bf16.msra.mxu0 0
  %6052 = vmatprep.subr.bf16.mxu0 0
  %6053 = vmatpush1.bf16.msra.mxu0 0
  %6054 = vmatprep.subr.bf16.mxu0 0
  %6055 = vmatpush1.bf16.msra.mxu0 0
  %6056 = vmatprep.subr.bf16.mxu0 0
  %6057 = vmatpush1.bf16.msra.mxu0 0
  %6058 = vmatprep.subr.bf16.mxu0 0
  %6059 = vmatpush1.bf16.msra.mxu0 0
  %6060 = vmatprep.subr.bf16.mxu0 0
  %6061 = vmatpush1.bf16.msra.mxu0 0
  %6062 = vmatprep.subr.bf16.mxu0 0
  %6063 = vmatpush1.bf16.msra.mxu0 0
  %6064 = vmatprep.subr.bf16.mxu0 0
  %6065 = vmatpush1.bf16.msra.mxu0 0
  %6066 = vmatprep.subr.bf16.mxu0 0
  %6067 = vmatpush1.bf16.msra.mxu0 0
  %6068 = vmatprep.subr.bf16.mxu0 0
  %6069 = vmatpush1.bf16.msra.mxu0 0
  %6070 = vmatprep.subr.bf16.mxu0 0
  %6071 = vmatpush1.bf16.msra.mxu0 0
  %6072 = vmatprep.subr.bf16.mxu0 0
  %6073 = vmatpush1.bf16.msra.mxu0 0
  %6074 = vmatprep.mubr.bf16.mxu0 0
  %6075 = vmatmul.mubr.bf16.gmra.mrb[0].mxu0 %v5539
  %v6076 = vpop.f32.mrb[0].mxu0
  %v6077 = vadd.f32 0.0, %v6076
  %v6078 = vpop.f32.mrb[0].mxu0
  %v6079 = vpop.f32.mrb[0].mxu0
  %v6080 = vadd.f32 0.0, %v6079
  %v6081 = vpop.f32.mrb[0].mxu0
  %6082 = vmatprep.mubr.bf16.mxu0 0
  %6083 = vmatmul.mubr.bf16.gmra.mrb[0].mxu0 %v5542
  %v6084 = vpop.f32.mrb[0].mxu0
  %v6085 = vadd.f32 0.0, %v6084
  %v6086 = vpop.f32.mrb[0].mxu0
  %v6087 = vpop.f32.mrb[0].mxu0
  %v6088 = vadd.f32 0.0, %v6087
  %v6089 = vpop.f32.mrb[0].mxu0
  %6090 = vmatprep.mubr.bf16.mxu0 0
  %6091 = vmatmul.mubr.bf16.gmra.mrb[0].mxu0 %v5545
  %v6092 = vpop.f32.mrb[0].mxu0
  %v6093 = vadd.f32 0.0, %v6092
  %v6094 = vpop.f32.mrb[0].mxu0
  %v6095 = vpop.f32.mrb[0].mxu0
  %v6096 = vadd.f32 0.0, %v6095
  %v6097 = vpop.f32.mrb[0].mxu0
  %6098 = vmatprep.mubr.bf16.mxu0 0
  %6099 = vmatmul.mubr.bf16.gmra.mrb[0].mxu0 %v5548
  %v6100 = vpop.f32.mrb[0].mxu0
  %v6101 = vadd.f32 0.0, %v6100
  %v6102 = vpop.f32.mrb[0].mxu0
  %v6103 = vpop.f32.mrb[0].mxu0
  %v6104 = vadd.f32 0.0, %v6103
  %v6105 = vpop.f32.mrb[0].mxu0
  %6106 = vdwg.mxu0
  %v6107 = vpack.c.bf16 %v6080, %v6077
  %v6108 = vpack.c.bf16 %v6088, %v6085
  %v6109 = vpack.c.bf16 %v6096, %v6093
  %v6110 = vpack.c.bf16 %v6104, %v6101
  %6111 = vst.msk [vmem:[#allocation2 + $0x180] sm:$0xff] %vm251, %v6107
  %6112 = vst.msk [vmem:[#allocation2 + $0x190] sm:$0xff] %vm251, %v6108
  %6113 = vst.msk [vmem:[#allocation2 + $0x1a0] sm:$0xff] %vm251, %v6109
  %6114 = vst.msk [vmem:[#allocation2 + $0x1b0] sm:$0xff] %vm251, %v6110
  %s6115 = scalar_lea.vmem %s13, 56
  %v6116 = vld [vmem:[%s6115] sm:$0xf]
  %v6117 = vld [vmem:[%s6115 + $0x4] sm:$0xf]
  %v6120 = vunpack.c.l.b16 %v6116
  %v6121 = vunpack.c.l.b16 %v6117
  %v6122 = vpack.c.b16 %v6121, %v6120
  %6124 = vmatprep.subr.bf16.mxu0 0
  %6125 = vmatpush1.bf16.msra.mxu0 %v6122
  %6126 = vmatprep.subr.bf16.mxu0 0
  %6127 = vmatpush1.bf16.msra.mxu0 0
  %6128 = vmatprep.subr.bf16.mxu0 0
  %6129 = vmatpush1.bf16.msra.mxu0 0
  %6130 = vmatprep.subr.bf16.mxu0 0
  %6131 = vmatpush1.bf16.msra.mxu0 0
  %6132 = vmatprep.subr.bf16.mxu0 0
  %6133 = vmatpush1.bf16.msra.mxu0 0
  %6134 = vmatprep.subr.bf16.mxu0 0
  %6135 = vmatpush1.bf16.msra.mxu0 0
  %6136 = vmatprep.subr.bf16.mxu0 0
  %6137 = vmatpush1.bf16.msra.mxu0 0
  %6138 = vmatprep.subr.bf16.mxu0 0
  %6139 = vmatpush1.bf16.msra.mxu0 0
  %6140 = vmatprep.subr.bf16.mxu0 0
  %6141 = vmatpush1.bf16.msra.mxu0 0
  %6142 = vmatprep.subr.bf16.mxu0 0
  %6143 = vmatpush1.bf16.msra.mxu0 0
  %6144 = vmatprep.subr.bf16.mxu0 0
  %6145 = vmatpush1.bf16.msra.mxu0 0
  %6146 = vmatprep.subr.bf16.mxu0 0
  %6147 = vmatpush1.bf16.msra.mxu0 0
  %6148 = vmatprep.subr.bf16.mxu0 0
  %6149 = vmatpush1.bf16.msra.mxu0 0
  %6150 = vmatprep.subr.bf16.mxu0 0
  %6151 = vmatpush1.bf16.msra.mxu0 0
  %6152 = vmatprep.subr.bf16.mxu0 0
  %6153 = vmatpush1.bf16.msra.mxu0 0
  %6154 = vmatprep.subr.bf16.mxu0 0
  %6155 = vmatpush1.bf16.msra.mxu0 0
  %6156 = vmatprep.mubr.bf16.mxu0 0
  %6157 = vmatmul.mubr.bf16.gmra.mrb[0].mxu0 %v5539
  %v6158 = vpop.f32.mrb[0].mxu0
  %v6159 = vadd.f32 0.0, %v6158
  %v6160 = vpop.f32.mrb[0].mxu0
  %v6161 = vpop.f32.mrb[0].mxu0
  %v6162 = vadd.f32 0.0, %v6161
  %v6163 = vpop.f32.mrb[0].mxu0
  %6164 = vmatprep.mubr.bf16.mxu0 0
  %6165 = vmatmul.mubr.bf16.gmra.mrb[0].mxu0 %v5542
  %v6166 = vpop.f32.mrb[0].mxu0
  %v6167 = vadd.f32 0.0, %v6166
  %v6168 = vpop.f32.mrb[0].mxu0
  %v6169 = vpop.f32.mrb[0].mxu0
  %v6170 = vadd.f32 0.0, %v6169
  %v6171 = vpop.f32.mrb[0].mxu0
  %6172 = vmatprep.mubr.bf16.mxu0 0
  %6173 = vmatmul.mubr.bf16.gmra.mrb[0].mxu0 %v5545
  %v6174 = vpop.f32.mrb[0].mxu0
  %v6175 = vadd.f32 0.0, %v6174
  %v6176 = vpop.f32.mrb[0].mxu0
  %v6177 = vpop.f32.mrb[0].mxu0
  %v6178 = vadd.f32 0.0, %v6177
  %v6179 = vpop.f32.mrb[0].mxu0
  %6180 = vmatprep.mubr.bf16.mxu0 0
  %6181 = vmatmul.mubr.bf16.gmra.mrb[0].mxu0 %v5548
  %v6182 = vpop.f32.mrb[0].mxu0
  %v6183 = vadd.f32 0.0, %v6182
  %v6184 = vpop.f32.mrb[0].mxu0
  %v6185 = vpop.f32.mrb[0].mxu0
  %v6186 = vadd.f32 0.0, %v6185
  %v6187 = vpop.f32.mrb[0].mxu0
  %6188 = vdwg.mxu0
  %v6189 = vpack.c.bf16 %v6162, %v6159
  %v6190 = vpack.c.bf16 %v6170, %v6167
  %v6191 = vpack.c.bf16 %v6178, %v6175
  %v6192 = vpack.c.bf16 %v6186, %v6183
  %6193 = vst.msk [vmem:[#allocation2 + $0x1c0] sm:$0xff] %vm251, %v6189
  %6194 = vst.msk [vmem:[#allocation2 + $0x1d0] sm:$0xff] %vm251, %v6190
  %6195 = vst.msk [vmem:[#allocation2 + $0x1e0] sm:$0xff] %vm251, %v6191
  %6196 = vst.msk [vmem:[#allocation2 + $0x1f0] sm:$0xff] %vm251, %v6192
  %s6197 = scalar_lea.vmem %s13, 64
  %v6198 = vld [vmem:[%s6197] sm:$0xf]
  %v6199 = vld [vmem:[%s6197 + $0x4] sm:$0xf]
  %v6202 = vunpack.c.l.b16 %v6198
  %v6203 = vunpack.c.l.b16 %v6199
  %v6204 = vpack.c.b16 %v6203, %v6202
  %6206 = vmatprep.subr.bf16.mxu0 0
  %6207 = vmatpush1.bf16.msra.mxu0 %v6204
  %6208 = vmatprep.subr.bf16.mxu0 0
  %6209 = vmatpush1.bf16.msra.mxu0 0
  %6210 = vmatprep.subr.bf16.mxu0 0
  %6211 = vmatpush1.bf16.msra.mxu0 0
  %6212 = vmatprep.subr.bf16.mxu0 0
  %6213 = vmatpush1.bf16.msra.mxu0 0
  %6214 = vmatprep.subr.bf16.mxu0 0
  %6215 = vmatpush1.bf16.msra.mxu0 0
  %6216 = vmatprep.subr.bf16.mxu0 0
  %6217 = vmatpush1.bf16.msra.mxu0 0
  %6218 = vmatprep.subr.bf16.mxu0 0
  %6219 = vmatpush1.bf16.msra.mxu0 0
  %6220 = vmatprep.subr.bf16.mxu0 0
  %6221 = vmatpush1.bf16.msra.mxu0 0
  %6222 = vmatprep.subr.bf16.mxu0 0
  %6223 = vmatpush1.bf16.msra.mxu0 0
  %6224 = vmatprep.subr.bf16.mxu0 0
  %6225 = vmatpush1.bf16.msra.mxu0 0
  %6226 = vmatprep.subr.bf16.mxu0 0
  %6227 = vmatpush1.bf16.msra.mxu0 0
  %6228 = vmatprep.subr.bf16.mxu0 0
  %6229 = vmatpush1.bf16.msra.mxu0 0
  %6230 = vmatprep.subr.bf16.mxu0 0
  %6231 = vmatpush1.bf16.msra.mxu0 0
  %6232 = vmatprep.subr.bf16.mxu0 0
  %6233 = vmatpush1.bf16.msra.mxu0 0
  %6234 = vmatprep.subr.bf16.mxu0 0
  %6235 = vmatpush1.bf16.msra.mxu0 0
  %6236 = vmatprep.subr.bf16.mxu0 0
  %6237 = vmatpush1.bf16.msra.mxu0 0
  %6238 = vmatprep.mubr.bf16.mxu0 0
  %6239 = vmatmul.mubr.bf16.gmra.mrb[0].mxu0 %v5539
  %v6240 = vpop.f32.mrb[0].mxu0
  %v6241 = vadd.f32 0.0, %v6240
  %v6242 = vpop.f32.mrb[0].mxu0
  %v6243 = vpop.f32.mrb[0].mxu0
  %v6244 = vadd.f32 0.0, %v6243
  %v6245 = vpop.f32.mrb[0].mxu0
  %6246 = vmatprep.mubr.bf16.mxu0 0
  %6247 = vmatmul.mubr.bf16.gmra.mrb[0].mxu0 %v5542
  %v6248 = vpop.f32.mrb[0].mxu0
  %v6249 = vadd.f32 0.0, %v6248
  %v6250 = vpop.f32.mrb[0].mxu0
  %v6251 = vpop.f32.mrb[0].mxu0
  %v6252 = vadd.f32 0.0, %v6251
  %v6253 = vpop.f32.mrb[0].mxu0
  %6254 = vmatprep.mubr.bf16.mxu0 0
  %6255 = vmatmul.mubr.bf16.gmra.mrb[0].mxu0 %v5545
  %v6256 = vpop.f32.mrb[0].mxu0
  %v6257 = vadd.f32 0.0, %v6256
  %v6258 = vpop.f32.mrb[0].mxu0
  %v6259 = vpop.f32.mrb[0].mxu0
  %v6260 = vadd.f32 0.0, %v6259
  %v6261 = vpop.f32.mrb[0].mxu0
  %6262 = vmatprep.mubr.bf16.mxu0 0
  %6263 = vmatmul.mubr.bf16.gmra.mrb[0].mxu0 %v5548
  %v6264 = vpop.f32.mrb[0].mxu0
  %v6265 = vadd.f32 0.0, %v6264
  %v6266 = vpop.f32.mrb[0].mxu0
  %v6267 = vpop.f32.mrb[0].mxu0
  %v6268 = vadd.f32 0.0, %v6267
  %v6269 = vpop.f32.mrb[0].mxu0
  %6270 = vdwg.mxu0
  %v6271 = vpack.c.bf16 %v6244, %v6241
  %v6272 = vpack.c.bf16 %v6252, %v6249
  %v6273 = vpack.c.bf16 %v6260, %v6257
  %v6274 = vpack.c.bf16 %v6268, %v6265
  %6275 = vst.msk [vmem:[#allocation2 + $0x200] sm:$0xff] %vm251, %v6271
  %6276 = vst.msk [vmem:[#allocation2 + $0x210] sm:$0xff] %vm251, %v6272
  %6277 = vst.msk [vmem:[#allocation2 + $0x220] sm:$0xff] %vm251, %v6273
  %6278 = vst.msk [vmem:[#allocation2 + $0x230] sm:$0xff] %vm251, %v6274
  %v6279 = vld [vmem:[%s14] sm:$0xff]
  %v6280 = vld [vmem:[%s14 + $0x8] sm:$0xff]
  %v6281 = vld [vmem:[%s14 + $0x10] sm:$0xf]
  %v6282 = vld [vmem:[%s14 + $0x14] sm:$0xff]
  %v6283 = vld [vmem:[%s14 + $0x1c] sm:$0xff]
  %v6284 = vld [vmem:[%s14 + $0x24] sm:$0xf]
  %v6285 = vld [vmem:[%s14 + $0x28] sm:$0xff]
  %v6286 = vld [vmem:[%s14 + $0x30] sm:$0xff]
  %v6287 = vld [vmem:[%s14 + $0x38] sm:$0xf]
  %v6288 = vld [vmem:[%s14 + $0x3c] sm:$0xff]
  %v6289 = vld [vmem:[%s14 + $0x44] sm:$0xff]
  %v6290 = vld [vmem:[%s14 + $0x4c] sm:$0xf]
  %v6291 = vld [vmem:[%s14 + $0x50] sm:$0xff]
  %v6292 = vld [vmem:[%s14 + $0x58] sm:$0xff]
  %v6293 = vld [vmem:[%s14 + $0x60] sm:$0xf]
  %v6294 = vld [vmem:[%s14 + $0x64] sm:$0xff]
  %v6295 = vld [vmem:[%s14 + $0x6c] sm:$0xff]
  %v6296 = vld [vmem:[%s14 + $0x74] sm:$0xf]
  %v6297 = vld [vmem:[%s14 + $0x78] sm:$0xff]
  %v6298 = vld [vmem:[%s14 + $0x80] sm:$0xff]
  %v6299 = vld [vmem:[%s14 + $0x88] sm:$0xf]
  %v6300 = vld [vmem:[%s14 + $0x8c] sm:$0xff]
  %v6301 = vld [vmem:[%s14 + $0x94] sm:$0xff]
  %v6302 = vld [vmem:[%s14 + $0x9c] sm:$0xf]
  %v6303 = vld [vmem:[#allocation2] sm:$0xff]
  %v6304 = vld [vmem:[#allocation2 + $0x10] sm:$0xff]
  %v6305 = vld [vmem:[#allocation2 + $0x20] sm:$0xff]
  %v6306 = vld [vmem:[#allocation2 + $0x30] sm:$0xff]
  %v6307 = vld [vmem:[#allocation2 + $0x40] sm:$0xff]
  %v6308 = vld [vmem:[#allocation2 + $0x50] sm:$0xff]
  %v6309 = vld [vmem:[#allocation2 + $0x60] sm:$0xff]
  %v6310 = vld [vmem:[#allocation2 + $0x70] sm:$0xff]
  %v6311 = vld [vmem:[#allocation2 + $0x80] sm:$0xff]
  %v6312 = vld [vmem:[#allocation2 + $0x90] sm:$0xff]
  %v6313 = vld [vmem:[#allocation2 + $0xa0] sm:$0xff]
  %v6314 = vld [vmem:[#allocation2 + $0xb0] sm:$0xff]
  %v6315 = vld [vmem:[#allocation2 + $0xc0] sm:$0xff]
  %v6316 = vld [vmem:[#allocation2 + $0xd0] sm:$0xff]
  %v6317 = vld [vmem:[#allocation2 + $0xe0] sm:$0xff]
  %v6318 = vld [vmem:[#allocation2 + $0xf0] sm:$0xff]
  %v6319 = vld [vmem:[#allocation2 + $0x100] sm:$0xff]
  %v6320 = vld [vmem:[#allocation2 + $0x110] sm:$0xff]
  %v6321 = vld [vmem:[#allocation2 + $0x120] sm:$0xff]
  %v6322 = vld [vmem:[#allocation2 + $0x130] sm:$0xff]
  %v6323 = vld [vmem:[#allocation2 + $0x140] sm:$0xff]
  %v6324 = vld [vmem:[#allocation2 + $0x150] sm:$0xff]
  %v6325 = vld [vmem:[#allocation2 + $0x160] sm:$0xff]
  %v6326 = vld [vmem:[#allocation2 + $0x170] sm:$0xff]
  %v6327 = vld [vmem:[#allocation2 + $0x180] sm:$0xff]
  %v6328 = vld [vmem:[#allocation2 + $0x190] sm:$0xff]
  %v6329 = vld [vmem:[#allocation2 + $0x1a0] sm:$0xff]
  %v6330 = vld [vmem:[#allocation2 + $0x1b0] sm:$0xff]
  %v6331 = vld [vmem:[#allocation2 + $0x1c0] sm:$0xff]
  %v6332 = vld [vmem:[#allocation2 + $0x1d0] sm:$0xff]
  %v6333 = vld [vmem:[#allocation2 + $0x1e0] sm:$0xff]
  %v6334 = vld [vmem:[#allocation2 + $0x1f0] sm:$0xff]
  %v6335 = vld [vmem:[#allocation2 + $0x200] sm:$0xff]
  %v6336 = vld [vmem:[#allocation2 + $0x210] sm:$0xff]
  %v6337 = vld [vmem:[#allocation2 + $0x220] sm:$0xff]
  %v6338 = vld [vmem:[#allocation2 + $0x230] sm:$0xff]
  %v6339 = vld [vmem:[%s15] sm:$0xff]
  %v6340 = vld [vmem:[%s15 + $0x8] sm:$0xff]
  %v6341 = vld [vmem:[%s15 + $0x10] sm:$0xff]
  %v6342 = vld [vmem:[%s15 + $0x18] sm:$0xff]
  %v6343 = vld [vmem:[%s15 + $0x20] sm:$0xff]
  %v6344 = vld [vmem:[%s15 + $0x28] sm:$0xff]
  %v6345 = vld [vmem:[%s15 + $0x30] sm:$0xff]
  %v6346 = vld [vmem:[%s15 + $0x38] sm:$0xff]
  %6348 = vset.pattern.permute.xlu0 0
  %6349 = vperm.xlu0 %6348, %v6339
  %v6350 = vpop.permute.xlu0 %6349
  %6353 = vset.pattern.permute.xlu0 0
  %6354 = vperm.xlu0 %6353, %v6340
  %v6355 = vpop.permute.xlu0 %6354
  %6358 = vset.pattern.permute.xlu0 0
  %6359 = vperm.xlu0 %6358, %v6341
  %v6360 = vpop.permute.xlu0 %6359
  %6363 = vset.pattern.permute.xlu0 0
  %6364 = vperm.xlu0 %6363, %v6342
  %v6365 = vpop.permute.xlu0 %6364
  %6368 = vset.pattern.permute.xlu0 0
  %6369 = vperm.xlu0 %6368, %v6343
  %v6370 = vpop.permute.xlu0 %6369
  %6373 = vset.pattern.permute.xlu0 0
  %6374 = vperm.xlu0 %6373, %v6344
  %v6375 = vpop.permute.xlu0 %6374
  %6378 = vset.pattern.permute.xlu0 0
  %6379 = vperm.xlu0 %6378, %v6345
  %v6380 = vpop.permute.xlu0 %6379
  %6383 = vset.pattern.permute.xlu0 0
  %6384 = vperm.xlu0 %6383, %v6346
  %v6385 = vpop.permute.xlu0 %6384
  %v6411 = vunpack.c.l.b16 %v6279
  %v6412 = vunpack.c.h.b16 %v6279
  %v6413 = vunpack.c.l.b16 %v6280
  %v6414 = vunpack.c.h.b16 %v6280
  %v6415 = vunpack.c.l.b16 %v6281
  %v6416 = vunpack.c.l.b16 %v6282
  %v6417 = vunpack.c.h.b16 %v6282
  %v6418 = vunpack.c.l.b16 %v6283
  %v6419 = vunpack.c.h.b16 %v6283
  %v6420 = vunpack.c.l.b16 %v6284
  %v6421 = vunpack.c.l.b16 %v6285
  %v6422 = vunpack.c.h.b16 %v6285
  %v6423 = vunpack.c.l.b16 %v6286
  %v6424 = vunpack.c.h.b16 %v6286
  %v6425 = vunpack.c.l.b16 %v6287
  %v6426 = vunpack.c.l.b16 %v6288
  %v6427 = vunpack.c.h.b16 %v6288
  %v6428 = vunpack.c.l.b16 %v6289
  %v6429 = vunpack.c.h.b16 %v6289
  %v6430 = vunpack.c.l.b16 %v6290
  %v6431 = vunpack.c.l.b16 %v6291
  %v6432 = vunpack.c.h.b16 %v6291
  %v6433 = vunpack.c.l.b16 %v6292
  %v6434 = vunpack.c.h.b16 %v6292
  %v6435 = vunpack.c.l.b16 %v6293
  %v6436 = vunpack.c.l.b16 %v6294
  %v6437 = vunpack.c.h.b16 %v6294
  %v6438 = vunpack.c.l.b16 %v6295
  %v6439 = vunpack.c.h.b16 %v6295
  %v6440 = vunpack.c.l.b16 %v6296
  %v6441 = vunpack.c.l.b16 %v6297
  %v6442 = vunpack.c.h.b16 %v6297
  %v6443 = vunpack.c.l.b16 %v6298
  %v6444 = vunpack.c.h.b16 %v6298
  %v6445 = vunpack.c.l.b16 %v6299
  %v6446 = vunpack.c.l.b16 %v6300
  %v6447 = vunpack.c.h.b16 %v6300
  %v6448 = vunpack.c.l.b16 %v6301
  %v6449 = vunpack.c.h.b16 %v6301
  %v6450 = vunpack.c.l.b16 %v6302
  %v6451 = vpack.c.b16 %v6416, %v6411
  %v6452 = vpack.c.b16 %v6417, %v6412
  %v6453 = vpack.c.b16 %v6418, %v6413
  %v6454 = vpack.c.b16 %v6419, %v6414
  %v6455 = vpack.c.b16 %v6420, %v6415
  %v6456 = vpack.c.b16 %v6426, %v6421
  %v6457 = vpack.c.b16 %v6427, %v6422
  %v6458 = vpack.c.b16 %v6428, %v6423
  %v6459 = vpack.c.b16 %v6429, %v6424
  %v6460 = vpack.c.b16 %v6430, %v6425
  %v6461 = vpack.c.b16 %v6436, %v6431
  %v6462 = vpack.c.b16 %v6437, %v6432
  %v6463 = vpack.c.b16 %v6438, %v6433
  %v6464 = vpack.c.b16 %v6439, %v6434
  %v6465 = vpack.c.b16 %v6440, %v6435
  %v6466 = vpack.c.b16 %v6446, %v6441
  %v6467 = vpack.c.b16 %v6447, %v6442
  %v6468 = vpack.c.b16 %v6448, %v6443
  %v6469 = vpack.c.b16 %v6449, %v6444
  %v6470 = vpack.c.b16 %v6450, %v6445
  %v6488 = vsel %vm251, %v6455, 0
  %v6491 = vsel %vm251, %v6460, 0
  %v6494 = vsel %vm251, %v6465, 0
  %v6497 = vsel %vm251, %v6470, 0
  %6499 = vmatprep.subr.bf16.mxu0 0
  %6500 = vmatpush1.bf16.msra.mxu0 %v6303
  %6501 = vmatprep.subr.bf16.mxu0 0
  %6502 = vmatpush1.bf16.msra.mxu0 %v6304
  %6503 = vmatprep.subr.bf16.mxu0 0
  %6504 = vmatpush1.bf16.msra.mxu0 %v6305
  %6505 = vmatprep.subr.bf16.mxu0 0
  %6506 = vmatpush1.bf16.msra.mxu0 %v6306
  %6507 = vmatprep.subr.bf16.mxu0 0
  %6508 = vmatpush1.bf16.msra.mxu0 %v6307
  %6509 = vmatprep.subr.bf16.mxu0 0
  %6510 = vmatpush1.bf16.msra.mxu0 %v6308
  %6511 = vmatprep.subr.bf16.mxu0 0
  %6512 = vmatpush1.bf16.msra.mxu0 %v6309
  %6513 = vmatprep.subr.bf16.mxu0 0
  %6514 = vmatpush1.bf16.msra.mxu0 %v6310
  %6515 = vmatprep.subr.bf16.mxu0 0
  %6516 = vmatpush1.bf16.msra.mxu0 %v6311
  %6517 = vmatprep.subr.bf16.mxu0 0
  %6518 = vmatpush1.bf16.msra.mxu0 %v6312
  %6519 = vmatprep.subr.bf16.mxu0 0
  %6520 = vmatpush1.bf16.msra.mxu0 %v6313
  %6521 = vmatprep.subr.bf16.mxu0 0
  %6522 = vmatpush1.bf16.msra.mxu0 %v6314
  %6523 = vmatprep.subr.bf16.mxu0 0
  %6524 = vmatpush1.bf16.msra.mxu0 %v6315
  %6525 = vmatprep.subr.bf16.mxu0 0
  %6526 = vmatpush1.bf16.msra.mxu0 %v6316
  %6527 = vmatprep.subr.bf16.mxu0 0
  %6528 = vmatpush1.bf16.msra.mxu0 %v6317
  %6529 = vmatprep.subr.bf16.mxu0 0
  %6530 = vmatpush1.bf16.msra.mxu0 %v6318
  %6531 = vmatprep.mubr.bf16.mxu0 %v6452
  %6532 = vmatmul.mubr.bf16.gmra.mrb[0].mxu0 %v6451
  %v6533 = vpop.f32.mrb[0].mxu0
  %v6534 = vadd.f32 %v6350, %v6533
  %v6535 = vpop.f32.mrb[0].mxu0
  %v6536 = vpop.f32.mrb[0].mxu0
  %v6537 = vadd.f32 %v6355, %v6536
  %v6538 = vpop.f32.mrb[0].mxu0
  %6539 = vmatprep.mubr.bf16.mxu0 %v6457
  %6540 = vmatmul.mubr.bf16.gmra.mrb[0].mxu0 %v6456
  %v6541 = vpop.f32.mrb[0].mxu0
  %v6542 = vadd.f32 %v6360, %v6541
  %v6543 = vpop.f32.mrb[0].mxu0
  %v6544 = vpop.f32.mrb[0].mxu0
  %v6545 = vadd.f32 %v6365, %v6544
  %v6546 = vpop.f32.mrb[0].mxu0
  %6547 = vmatprep.mubr.bf16.mxu0 %v6462
  %6548 = vmatmul.mubr.bf16.gmra.mrb[0].mxu0 %v6461
  %v6549 = vpop.f32.mrb[0].mxu0
  %v6550 = vadd.f32 %v6370, %v6549
  %v6551 = vpop.f32.mrb[0].mxu0
  %v6552 = vpop.f32.mrb[0].mxu0
  %v6553 = vadd.f32 %v6375, %v6552
  %v6554 = vpop.f32.mrb[0].mxu0
  %6555 = vmatprep.mubr.bf16.mxu0 %v6467
  %6556 = vmatmul.mubr.bf16.gmra.mrb[0].mxu0 %v6466
  %v6557 = vpop.f32.mrb[0].mxu0
  %v6558 = vadd.f32 %v6380, %v6557
  %v6559 = vpop.f32.mrb[0].mxu0
  %v6560 = vpop.f32.mrb[0].mxu0
  %v6561 = vadd.f32 %v6385, %v6560
  %v6562 = vpop.f32.mrb[0].mxu0
  %6563 = vdwg.mxu0
  %6564 = vmatprep.subr.bf16.mxu0 0
  %6565 = vmatpush1.bf16.msra.mxu0 %v6319
  %6566 = vmatprep.subr.bf16.mxu0 0
  %6567 = vmatpush1.bf16.msra.mxu0 %v6320
  %6568 = vmatprep.subr.bf16.mxu0 0
  %6569 = vmatpush1.bf16.msra.mxu0 %v6321
  %6570 = vmatprep.subr.bf16.mxu0 0
  %6571 = vmatpush1.bf16.msra.mxu0 %v6322
  %6572 = vmatprep.subr.bf16.mxu0 0
  %6573 = vmatpush1.bf16.msra.mxu0 %v6323
  %6574 = vmatprep.subr.bf16.mxu0 0
  %6575 = vmatpush1.bf16.msra.mxu0 %v6324
  %6576 = vmatprep.subr.bf16.mxu0 0
  %6577 = vmatpush1.bf16.msra.mxu0 %v6325
  %6578 = vmatprep.subr.bf16.mxu0 0
  %6579 = vmatpush1.bf16.msra.mxu0 %v6326
  %6580 = vmatprep.subr.bf16.mxu0 0
  %6581 = vmatpush1.bf16.msra.mxu0 %v6327
  %6582 = vmatprep.subr.bf16.mxu0 0
  %6583 = vmatpush1.bf16.msra.mxu0 %v6328
  %6584 = vmatprep.subr.bf16.mxu0 0
  %6585 = vmatpush1.bf16.msra.mxu0 %v6329
  %6586 = vmatprep.subr.bf16.mxu0 0
  %6587 = vmatpush1.bf16.msra.mxu0 %v6330
  %6588 = vmatprep.subr.bf16.mxu0 0
  %6589 = vmatpush1.bf16.msra.mxu0 %v6331
  %6590 = vmatprep.subr.bf16.mxu0 0
  %6591 = vmatpush1.bf16.msra.mxu0 %v6332
  %6592 = vmatprep.subr.bf16.mxu0 0
  %6593 = vmatpush1.bf16.msra.mxu0 %v6333
  %6594 = vmatprep.subr.bf16.mxu0 0
  %6595 = vmatpush1.bf16.msra.mxu0 %v6334
  %6596 = vmatprep.mubr.bf16.mxu0 %v6454
  %6597 = vmatmul.mubr.bf16.gmra.mrb[0].mxu0 %v6453
  %v6598 = vpop.f32.mrb[0].mxu0
  %v6599 = vadd.f32 %v6534, %v6598
  %v6600 = vpop.f32.mrb[0].mxu0
  %v6601 = vpop.f32.mrb[0].mxu0
  %v6602 = vadd.f32 %v6537, %v6601
  %v6603 = vpop.f32.mrb[0].mxu0
  %6604 = vmatprep.mubr.bf16.mxu0 %v6459
  %6605 = vmatmul.mubr.bf16.gmra.mrb[0].mxu0 %v6458
  %v6606 = vpop.f32.mrb[0].mxu0
  %v6607 = vadd.f32 %v6542, %v6606
  %v6608 = vpop.f32.mrb[0].mxu0
  %v6609 = vpop.f32.mrb[0].mxu0
  %v6610 = vadd.f32 %v6545, %v6609
  %v6611 = vpop.f32.mrb[0].mxu0
  %6612 = vmatprep.mubr.bf16.mxu0 %v6464
  %6613 = vmatmul.mubr.bf16.gmra.mrb[0].mxu0 %v6463
  %v6614 = vpop.f32.mrb[0].mxu0
  %v6615 = vadd.f32 %v6550, %v6614
  %v6616 = vpop.f32.mrb[0].mxu0
  %v6617 = vpop.f32.mrb[0].mxu0
  %v6618 = vadd.f32 %v6553, %v6617
  %v6619 = vpop.f32.mrb[0].mxu0
  %6620 = vmatprep.mubr.bf16.mxu0 %v6469
  %6621 = vmatmul.mubr.bf16.gmra.mrb[0].mxu0 %v6468
  %v6622 = vpop.f32.mrb[0].mxu0
  %v6623 = vadd.f32 %v6558, %v6622
  %v6624 = vpop.f32.mrb[0].mxu0
  %v6625 = vpop.f32.mrb[0].mxu0
  %v6626 = vadd.f32 %v6561, %v6625
  %v6627 = vpop.f32.mrb[0].mxu0
  %6628 = vdwg.mxu0
  %6629 = vmatprep.subr.bf16.mxu0 0
  %6630 = vmatpush1.bf16.msra.mxu0 %v6335
  %6631 = vmatprep.subr.bf16.mxu0 0
  %6632 = vmatpush1.bf16.msra.mxu0 %v6336
  %6633 = vmatprep.subr.bf16.mxu0 0
  %6634 = vmatpush1.bf16.msra.mxu0 %v6337
  %6635 = vmatprep.subr.bf16.mxu0 0
  %6636 = vmatpush1.bf16.msra.mxu0 %v6338
  %6637 = vmatprep.subr.bf16.mxu0 0
  %6638 = vmatpush1.bf16.msra.mxu0 0
  %6639 = vmatprep.subr.bf16.mxu0 0
  %6640 = vmatpush1.bf16.msra.mxu0 0
  %6641 = vmatprep.subr.bf16.mxu0 0
  %6642 = vmatpush1.bf16.msra.mxu0 0
  %6643 = vmatprep.subr.bf16.mxu0 0
  %6644 = vmatpush1.bf16.msra.mxu0 0
  %6645 = vmatprep.subr.bf16.mxu0 0
  %6646 = vmatpush1.bf16.msra.mxu0 0
  %6647 = vmatprep.subr.bf16.mxu0 0
  %6648 = vmatpush1.bf16.msra.mxu0 0
  %6649 = vmatprep.subr.bf16.mxu0 0
  %6650 = vmatpush1.bf16.msra.mxu0 0
  %6651 = vmatprep.subr.bf16.mxu0 0
  %6652 = vmatpush1.bf16.msra.mxu0 0
  %6653 = vmatprep.subr.bf16.mxu0 0
  %6654 = vmatpush1.bf16.msra.mxu0 0
  %6655 = vmatprep.subr.bf16.mxu0 0
  %6656 = vmatpush1.bf16.msra.mxu0 0
  %6657 = vmatprep.subr.bf16.mxu0 0
  %6658 = vmatpush1.bf16.msra.mxu0 0
  %6659 = vmatprep.subr.bf16.mxu0 0
  %6660 = vmatpush1.bf16.msra.mxu0 0
  %6661 = vmatprep.mubr.bf16.mxu0 0
  %6662 = vmatmul.mubr.bf16.gmra.mrb[0].mxu0 %v6488
  %v6663 = vpop.f32.mrb[0].mxu0
  %v6664 = vadd.f32 %v6599, %v6663
  %v6665 = vpop.f32.mrb[0].mxu0
  %v6666 = vpop.f32.mrb[0].mxu0
  %v6667 = vadd.f32 %v6602, %v6666
  %v6668 = vpop.f32.mrb[0].mxu0
  %6669 = vmatprep.mubr.bf16.mxu0 0
  %6670 = vmatmul.mubr.bf16.gmra.mrb[0].mxu0 %v6491
  %v6671 = vpop.f32.mrb[0].mxu0
  %v6672 = vadd.f32 %v6607, %v6671
  %v6673 = vpop.f32.mrb[0].mxu0
  %v6674 = vpop.f32.mrb[0].mxu0
  %v6675 = vadd.f32 %v6610, %v6674
  %v6676 = vpop.f32.mrb[0].mxu0
  %6677 = vmatprep.mubr.bf16.mxu0 0
  %6678 = vmatmul.mubr.bf16.gmra.mrb[0].mxu0 %v6494
  %v6679 = vpop.f32.mrb[0].mxu0
  %v6680 = vadd.f32 %v6615, %v6679
  %v6681 = vpop.f32.mrb[0].mxu0
  %v6682 = vpop.f32.mrb[0].mxu0
  %v6683 = vadd.f32 %v6618, %v6682
  %v6684 = vpop.f32.mrb[0].mxu0
  %6685 = vmatprep.mubr.bf16.mxu0 0
  %6686 = vmatmul.mubr.bf16.gmra.mrb[0].mxu0 %v6497
  %v6687 = vpop.f32.mrb[0].mxu0
  %v6688 = vadd.f32 %v6623, %v6687
  %v6689 = vpop.f32.mrb[0].mxu0
  %v6690 = vpop.f32.mrb[0].mxu0
  %v6691 = vadd.f32 %v6626, %v6690
  %v6692 = vpop.f32.mrb[0].mxu0
  %6693 = vdwg.mxu0
  %v6694 = vmax.f32 %v6664, 0.0
  %v6695 = vmax.f32 %v6667, 0.0
  %v6696 = vmax.f32 %v6672, 0.0
  %v6697 = vmax.f32 %v6675, 0.0
  %v6698 = vmax.f32 %v6680, 0.0
  %v6699 = vmax.f32 %v6683, 0.0
  %v6700 = vmax.f32 %v6688, 0.0
  %v6701 = vmax.f32 %v6691, 0.0
  %v6702 = vpack.c.bf16 %v6695, %v6694
  %v6703 = vpack.c.bf16 %v6697, %v6696
  %v6704 = vpack.c.bf16 %v6699, %v6698
  %v6705 = vpack.c.bf16 %v6701, %v6700
  %v6706 = vld [vmem:[%s16] sm:$0xff]
  %v6707 = vld [vmem:[%s16 + $0x8] sm:$0xff]
  %v6708 = vld [vmem:[%s16 + $0x10] sm:$0xff]
  %v6709 = vld [vmem:[%s16 + $0x18] sm:$0xff]
  %v6710 = vld [vmem:[%s16 + $0x20] sm:$0xff]
  %v6711 = vld [vmem:[%s16 + $0x28] sm:$0xff]
  %v6712 = vld [vmem:[%s16 + $0x30] sm:$0xff]
  %v6713 = vld [vmem:[%s16 + $0x38] sm:$0xff]
  %v6722 = vunpack.c.l.b16 %v6706
  %v6723 = vunpack.c.h.b16 %v6706
  %v6724 = vunpack.c.l.b16 %v6707
  %v6725 = vunpack.c.h.b16 %v6707
  %v6726 = vunpack.c.l.b16 %v6708
  %v6727 = vunpack.c.h.b16 %v6708
  %v6728 = vunpack.c.l.b16 %v6709
  %v6729 = vunpack.c.h.b16 %v6709
  %v6730 = vunpack.c.l.b16 %v6710
  %v6731 = vunpack.c.h.b16 %v6710
  %v6732 = vunpack.c.l.b16 %v6711
  %v6733 = vunpack.c.h.b16 %v6711
  %v6734 = vunpack.c.l.b16 %v6712
  %v6735 = vunpack.c.h.b16 %v6712
  %v6736 = vunpack.c.l.b16 %v6713
  %v6737 = vunpack.c.h.b16 %v6713
  %v6738 = vpack.c.b16 %v6724, %v6722
  %v6739 = vpack.c.b16 %v6725, %v6723
  %v6740 = vpack.c.b16 %v6728, %v6726
  %v6741 = vpack.c.b16 %v6729, %v6727
  %v6742 = vpack.c.b16 %v6732, %v6730
  %v6743 = vpack.c.b16 %v6733, %v6731
  %v6744 = vpack.c.b16 %v6736, %v6734
  %v6745 = vpack.c.b16 %v6737, %v6735
  %v6755 = vsel %vm251, %v6702, 0
  %v6758 = vsel %vm251, %v6703, 0
  %v6761 = vsel %vm251, %v6704, 0
  %v6764 = vsel %vm251, %v6705, 0
  %6766 = vmatprep.subr.bf16.mxu0 %v6739
  %6767 = vmatpush1.bf16.msra.mxu0 %v6738
  %6768 = vmatprep.subr.bf16.mxu0 %v6741
  %6769 = vmatpush1.bf16.msra.mxu0 %v6740
  %6770 = vmatprep.subr.bf16.mxu0 %v6743
  %6771 = vmatpush1.bf16.msra.mxu0 %v6742
  %6772 = vmatprep.subr.bf16.mxu0 %v6745
  %6773 = vmatpush1.bf16.msra.mxu0 %v6744
  %6774 = vmatprep.subr.bf16.mxu0 0
  %6775 = vmatpush1.bf16.msra.mxu0 0
  %6776 = vmatprep.subr.bf16.mxu0 0
  %6777 = vmatpush1.bf16.msra.mxu0 0
  %6778 = vmatprep.subr.bf16.mxu0 0
  %6779 = vmatpush1.bf16.msra.mxu0 0
  %6780 = vmatprep.subr.bf16.mxu0 0
  %6781 = vmatpush1.bf16.msra.mxu0 0
  %6782 = vmatprep.subr.bf16.mxu0 0
  %6783 = vmatpush1.bf16.msra.mxu0 0
  %6784 = vmatprep.subr.bf16.mxu0 0
  %6785 = vmatpush1.bf16.msra.mxu0 0
  %6786 = vmatprep.subr.bf16.mxu0 0
  %6787 = vmatpush1.bf16.msra.mxu0 0
  %6788 = vmatprep.subr.bf16.mxu0 0
  %6789 = vmatpush1.bf16.msra.mxu0 0
  %6790 = vmatprep.subr.bf16.mxu0 0
  %6791 = vmatpush1.bf16.msra.mxu0 0
  %6792 = vmatprep.subr.bf16.mxu0 0
  %6793 = vmatpush1.bf16.msra.mxu0 0
  %6794 = vmatprep.subr.bf16.mxu0 0
  %6795 = vmatpush1.bf16.msra.mxu0 0
  %6796 = vmatprep.subr.bf16.mxu0 0
  %6797 = vmatpush1.bf16.msra.mxu0 0
  %6798 = vmatprep.mubr.bf16.mxu0 0
  %6799 = vmatmul.mubr.bf16.gmra.mrb[0].mxu0 %v6755
  %v6800 = vpop.f32.mrb[0].mxu0
  %v6801 = vadd.f32 0.0, %v6800
  %v6802 = vpop.f32.mrb[0].mxu0
  %v6803 = vadd.f32 0.0, %v6802
  %v6804 = vpop.f32.mrb[0].mxu0
  %v6805 = vadd.f32 0.0, %v6804
  %v6806 = vpop.f32.mrb[0].mxu0
  %v6807 = vadd.f32 0.0, %v6806
  %6808 = vmatprep.mubr.bf16.mxu0 0
  %6809 = vmatmul.mubr.bf16.gmra.mrb[0].mxu0 %v6758
  %v6810 = vpop.f32.mrb[0].mxu0
  %v6811 = vadd.f32 0.0, %v6810
  %v6812 = vpop.f32.mrb[0].mxu0
  %v6813 = vadd.f32 0.0, %v6812
  %v6814 = vpop.f32.mrb[0].mxu0
  %v6815 = vadd.f32 0.0, %v6814
  %v6816 = vpop.f32.mrb[0].mxu0
  %v6817 = vadd.f32 0.0, %v6816
  %6818 = vmatprep.mubr.bf16.mxu0 0
  %6819 = vmatmul.mubr.bf16.gmra.mrb[0].mxu0 %v6761
  %v6820 = vpop.f32.mrb[0].mxu0
  %v6821 = vadd.f32 0.0, %v6820
  %v6822 = vpop.f32.mrb[0].mxu0
  %v6823 = vadd.f32 0.0, %v6822
  %v6824 = vpop.f32.mrb[0].mxu0
  %v6825 = vadd.f32 0.0, %v6824
  %v6826 = vpop.f32.mrb[0].mxu0
  %v6827 = vadd.f32 0.0, %v6826
  %6828 = vmatprep.mubr.bf16.mxu0 0
  %6829 = vmatmul.mubr.bf16.gmra.mrb[0].mxu0 %v6764
  %v6830 = vpop.f32.mrb[0].mxu0
  %v6831 = vadd.f32 0.0, %v6830
  %v6832 = vpop.f32.mrb[0].mxu0
  %v6833 = vadd.f32 0.0, %v6832
  %v6834 = vpop.f32.mrb[0].mxu0
  %v6835 = vadd.f32 0.0, %v6834
  %v6836 = vpop.f32.mrb[0].mxu0
  %v6837 = vadd.f32 0.0, %v6836
  %6838 = vdwg.mxu0
  %v6839 = vpack.c.bf16 %v6805, %v6801
  %v6840 = vpack.c.bf16 %v6807, %v6803
  %v6841 = vpack.c.bf16 %v6815, %v6811
  %v6842 = vpack.c.bf16 %v6817, %v6813
  %v6843 = vpack.c.bf16 %v6825, %v6821
  %v6844 = vpack.c.bf16 %v6827, %v6823
  %v6845 = vpack.c.bf16 %v6835, %v6831
  %v6846 = vpack.c.bf16 %v6837, %v6833
  %6847 = vst [vmem:[#allocation2] sm:$0xff] %v6839
  %6848 = vst [vmem:[#allocation2 + $0x8] sm:$0xff] %v6840
  %6849 = vst [vmem:[#allocation2 + $0x10] sm:$0xff] %v6841
  %6850 = vst [vmem:[#allocation2 + $0x18] sm:$0xff] %v6842
  %6851 = vst [vmem:[#allocation2 + $0x20] sm:$0xff] %v6843
  %6852 = vst [vmem:[#allocation2 + $0x28] sm:$0xff] %v6844
  %6853 = vst [vmem:[#allocation2 + $0x30] sm:$0xff] %v6845
  %6854 = vst [vmem:[#allocation2 + $0x38] sm:$0xff] %v6846
  %s6855 = scalar_lea.vmem %s16, 64
  %v6856 = vld [vmem:[%s6855] sm:$0xff]
  %v6857 = vld [vmem:[%s6855 + $0x8] sm:$0xff]
  %v6858 = vld [vmem:[%s6855 + $0x10] sm:$0xff]
  %v6859 = vld [vmem:[%s6855 + $0x18] sm:$0xff]
  %v6860 = vld [vmem:[%s6855 + $0x20] sm:$0xff]
  %v6861 = vld [vmem:[%s6855 + $0x28] sm:$0xff]
  %v6862 = vld [vmem:[%s6855 + $0x30] sm:$0xff]
  %v6863 = vld [vmem:[%s6855 + $0x38] sm:$0xff]
  %v6872 = vunpack.c.l.b16 %v6856
  %v6873 = vunpack.c.h.b16 %v6856
  %v6874 = vunpack.c.l.b16 %v6857
  %v6875 = vunpack.c.h.b16 %v6857
  %v6876 = vunpack.c.l.b16 %v6858
  %v6877 = vunpack.c.h.b16 %v6858
  %v6878 = vunpack.c.l.b16 %v6859
  %v6879 = vunpack.c.h.b16 %v6859
  %v6880 = vunpack.c.l.b16 %v6860
  %v6881 = vunpack.c.h.b16 %v6860
  %v6882 = vunpack.c.l.b16 %v6861
  %v6883 = vunpack.c.h.b16 %v6861
  %v6884 = vunpack.c.l.b16 %v6862
  %v6885 = vunpack.c.h.b16 %v6862
  %v6886 = vunpack.c.l.b16 %v6863
  %v6887 = vunpack.c.h.b16 %v6863
  %v6888 = vpack.c.b16 %v6874, %v6872
  %v6889 = vpack.c.b16 %v6875, %v6873
  %v6890 = vpack.c.b16 %v6878, %v6876
  %v6891 = vpack.c.b16 %v6879, %v6877
  %v6892 = vpack.c.b16 %v6882, %v6880
  %v6893 = vpack.c.b16 %v6883, %v6881
  %v6894 = vpack.c.b16 %v6886, %v6884
  %v6895 = vpack.c.b16 %v6887, %v6885
  %6904 = vmatprep.subr.bf16.mxu0 %v6889
  %6905 = vmatpush1.bf16.msra.mxu0 %v6888
  %6906 = vmatprep.subr.bf16.mxu0 %v6891
  %6907 = vmatpush1.bf16.msra.mxu0 %v6890
  %6908 = vmatprep.subr.bf16.mxu0 %v6893
  %6909 = vmatpush1.bf16.msra.mxu0 %v6892
  %6910 = vmatprep.subr.bf16.mxu0 %v6895
  %6911 = vmatpush1.bf16.msra.mxu0 %v6894
  %6912 = vmatprep.subr.bf16.mxu0 0
  %6913 = vmatpush1.bf16.msra.mxu0 0
  %6914 = vmatprep.subr.bf16.mxu0 0
  %6915 = vmatpush1.bf16.msra.mxu0 0
  %6916 = vmatprep.subr.bf16.mxu0 0
  %6917 = vmatpush1.bf16.msra.mxu0 0
  %6918 = vmatprep.subr.bf16.mxu0 0
  %6919 = vmatpush1.bf16.msra.mxu0 0
  %6920 = vmatprep.subr.bf16.mxu0 0
  %6921 = vmatpush1.bf16.msra.mxu0 0
  %6922 = vmatprep.subr.bf16.mxu0 0
  %6923 = vmatpush1.bf16.msra.mxu0 0
  %6924 = vmatprep.subr.bf16.mxu0 0
  %6925 = vmatpush1.bf16.msra.mxu0 0
  %6926 = vmatprep.subr.bf16.mxu0 0
  %6927 = vmatpush1.bf16.msra.mxu0 0
  %6928 = vmatprep.subr.bf16.mxu0 0
  %6929 = vmatpush1.bf16.msra.mxu0 0
  %6930 = vmatprep.subr.bf16.mxu0 0
  %6931 = vmatpush1.bf16.msra.mxu0 0
  %6932 = vmatprep.subr.bf16.mxu0 0
  %6933 = vmatpush1.bf16.msra.mxu0 0
  %6934 = vmatprep.subr.bf16.mxu0 0
  %6935 = vmatpush1.bf16.msra.mxu0 0
  %6936 = vmatprep.mubr.bf16.mxu0 0
  %6937 = vmatmul.mubr.bf16.gmra.mrb[0].mxu0 %v6755
  %v6938 = vpop.f32.mrb[0].mxu0
  %v6939 = vadd.f32 0.0, %v6938
  %v6940 = vpop.f32.mrb[0].mxu0
  %v6941 = vadd.f32 0.0, %v6940
  %v6942 = vpop.f32.mrb[0].mxu0
  %v6943 = vadd.f32 0.0, %v6942
  %v6944 = vpop.f32.mrb[0].mxu0
  %v6945 = vadd.f32 0.0, %v6944
  %6946 = vmatprep.mubr.bf16.mxu0 0
  %6947 = vmatmul.mubr.bf16.gmra.mrb[0].mxu0 %v6758
  %v6948 = vpop.f32.mrb[0].mxu0
  %v6949 = vadd.f32 0.0, %v6948
  %v6950 = vpop.f32.mrb[0].mxu0
  %v6951 = vadd.f32 0.0, %v6950
  %v6952 = vpop.f32.mrb[0].mxu0
  %v6953 = vadd.f32 0.0, %v6952
  %v6954 = vpop.f32.mrb[0].mxu0
  %v6955 = vadd.f32 0.0, %v6954
  %6956 = vmatprep.mubr.bf16.mxu0 0
  %6957 = vmatmul.mubr.bf16.gmra.mrb[0].mxu0 %v6761
  %v6958 = vpop.f32.mrb[0].mxu0
  %v6959 = vadd.f32 0.0, %v6958
  %v6960 = vpop.f32.mrb[0].mxu0
  %v6961 = vadd.f32 0.0, %v6960
  %v6962 = vpop.f32.mrb[0].mxu0
  %v6963 = vadd.f32 0.0, %v6962
  %v6964 = vpop.f32.mrb[0].mxu0
  %v6965 = vadd.f32 0.0, %v6964
  %6966 = vmatprep.mubr.bf16.mxu0 0
  %6967 = vmatmul.mubr.bf16.gmra.mrb[0].mxu0 %v6764
  %v6968 = vpop.f32.mrb[0].mxu0
  %v6969 = vadd.f32 0.0, %v6968
  %v6970 = vpop.f32.mrb[0].mxu0
  %v6971 = vadd.f32 0.0, %v6970
  %v6972 = vpop.f32.mrb[0].mxu0
  %v6973 = vadd.f32 0.0, %v6972
  %v6974 = vpop.f32.mrb[0].mxu0
  %v6975 = vadd.f32 0.0, %v6974
  %6976 = vdwg.mxu0
  %v6977 = vpack.c.bf16 %v6943, %v6939
  %v6978 = vpack.c.bf16 %v6945, %v6941
  %v6979 = vpack.c.bf16 %v6953, %v6949
  %v6980 = vpack.c.bf16 %v6955, %v6951
  %v6981 = vpack.c.bf16 %v6963, %v6959
  %v6982 = vpack.c.bf16 %v6965, %v6961
  %v6983 = vpack.c.bf16 %v6973, %v6969
  %v6984 = vpack.c.bf16 %v6975, %v6971
  %6985 = vst [vmem:[#allocation2 + $0x40] sm:$0xff] %v6977
  %6986 = vst [vmem:[#allocation2 + $0x48] sm:$0xff] %v6978
  %6987 = vst [vmem:[#allocation2 + $0x50] sm:$0xff] %v6979
  %6988 = vst [vmem:[#allocation2 + $0x58] sm:$0xff] %v6980
  %6989 = vst [vmem:[#allocation2 + $0x60] sm:$0xff] %v6981
  %6990 = vst [vmem:[#allocation2 + $0x68] sm:$0xff] %v6982
  %6991 = vst [vmem:[#allocation2 + $0x70] sm:$0xff] %v6983
  %6992 = vst [vmem:[#allocation2 + $0x78] sm:$0xff] %v6984
  %s6993 = scalar_lea.vmem %s16, 128
  %v6994 = vld [vmem:[%s6993] sm:$0xff]
  %v6995 = vld [vmem:[%s6993 + $0x8] sm:$0xff]
  %v6996 = vld [vmem:[%s6993 + $0x10] sm:$0xff]
  %v6997 = vld [vmem:[%s6993 + $0x18] sm:$0xff]
  %v6998 = vld [vmem:[%s6993 + $0x20] sm:$0xff]
  %v6999 = vld [vmem:[%s6993 + $0x28] sm:$0xff]
  %v7000 = vld [vmem:[%s6993 + $0x30] sm:$0xff]
  %v7001 = vld [vmem:[%s6993 + $0x38] sm:$0xff]
  %v7010 = vunpack.c.l.b16 %v6994
  %v7011 = vunpack.c.h.b16 %v6994
  %v7012 = vunpack.c.l.b16 %v6995
  %v7013 = vunpack.c.h.b16 %v6995
  %v7014 = vunpack.c.l.b16 %v6996
  %v7015 = vunpack.c.h.b16 %v6996
  %v7016 = vunpack.c.l.b16 %v6997
  %v7017 = vunpack.c.h.b16 %v6997
  %v7018 = vunpack.c.l.b16 %v6998
  %v7019 = vunpack.c.h.b16 %v6998
  %v7020 = vunpack.c.l.b16 %v6999
  %v7021 = vunpack.c.h.b16 %v6999
  %v7022 = vunpack.c.l.b16 %v7000
  %v7023 = vunpack.c.h.b16 %v7000
  %v7024 = vunpack.c.l.b16 %v7001
  %v7025 = vunpack.c.h.b16 %v7001
  %v7026 = vpack.c.b16 %v7012, %v7010
  %v7027 = vpack.c.b16 %v7013, %v7011
  %v7028 = vpack.c.b16 %v7016, %v7014
  %v7029 = vpack.c.b16 %v7017, %v7015
  %v7030 = vpack.c.b16 %v7020, %v7018
  %v7031 = vpack.c.b16 %v7021, %v7019
  %v7032 = vpack.c.b16 %v7024, %v7022
  %v7033 = vpack.c.b16 %v7025, %v7023
  %7042 = vmatprep.subr.bf16.mxu0 %v7027
  %7043 = vmatpush1.bf16.msra.mxu0 %v7026
  %7044 = vmatprep.subr.bf16.mxu0 %v7029
  %7045 = vmatpush1.bf16.msra.mxu0 %v7028
  %7046 = vmatprep.subr.bf16.mxu0 %v7031
  %7047 = vmatpush1.bf16.msra.mxu0 %v7030
  %7048 = vmatprep.subr.bf16.mxu0 %v7033
  %7049 = vmatpush1.bf16.msra.mxu0 %v7032
  %7050 = vmatprep.subr.bf16.mxu0 0
  %7051 = vmatpush1.bf16.msra.mxu0 0
  %7052 = vmatprep.subr.bf16.mxu0 0
  %7053 = vmatpush1.bf16.msra.mxu0 0
  %7054 = vmatprep.subr.bf16.mxu0 0
  %7055 = vmatpush1.bf16.msra.mxu0 0
  %7056 = vmatprep.subr.bf16.mxu0 0
  %7057 = vmatpush1.bf16.msra.mxu0 0
  %7058 = vmatprep.subr.bf16.mxu0 0
  %7059 = vmatpush1.bf16.msra.mxu0 0
  %7060 = vmatprep.subr.bf16.mxu0 0
  %7061 = vmatpush1.bf16.msra.mxu0 0
  %7062 = vmatprep.subr.bf16.mxu0 0
  %7063 = vmatpush1.bf16.msra.mxu0 0
  %7064 = vmatprep.subr.bf16.mxu0 0
  %7065 = vmatpush1.bf16.msra.mxu0 0
  %7066 = vmatprep.subr.bf16.mxu0 0
  %7067 = vmatpush1.bf16.msra.mxu0 0
  %7068 = vmatprep.subr.bf16.mxu0 0
  %7069 = vmatpush1.bf16.msra.mxu0 0
  %7070 = vmatprep.subr.bf16.mxu0 0
  %7071 = vmatpush1.bf16.msra.mxu0 0
  %7072 = vmatprep.subr.bf16.mxu0 0
  %7073 = vmatpush1.bf16.msra.mxu0 0
  %7074 = vmatprep.mubr.bf16.mxu0 0
  %7075 = vmatmul.mubr.bf16.gmra.mrb[0].mxu0 %v6755
  %v7076 = vpop.f32.mrb[0].mxu0
  %v7077 = vadd.f32 0.0, %v7076
  %v7078 = vpop.f32.mrb[0].mxu0
  %v7079 = vadd.f32 0.0, %v7078
  %v7080 = vpop.f32.mrb[0].mxu0
  %v7081 = vadd.f32 0.0, %v7080
  %v7082 = vpop.f32.mrb[0].mxu0
  %v7083 = vadd.f32 0.0, %v7082
  %7084 = vmatprep.mubr.bf16.mxu0 0
  %7085 = vmatmul.mubr.bf16.gmra.mrb[0].mxu0 %v6758
  %v7086 = vpop.f32.mrb[0].mxu0
  %v7087 = vadd.f32 0.0, %v7086
  %v7088 = vpop.f32.mrb[0].mxu0
  %v7089 = vadd.f32 0.0, %v7088
  %v7090 = vpop.f32.mrb[0].mxu0
  %v7091 = vadd.f32 0.0, %v7090
  %v7092 = vpop.f32.mrb[0].mxu0
  %v7093 = vadd.f32 0.0, %v7092
  %7094 = vmatprep.mubr.bf16.mxu0 0
  %7095 = vmatmul.mubr.bf16.gmra.mrb[0].mxu0 %v6761
  %v7096 = vpop.f32.mrb[0].mxu0
  %v7097 = vadd.f32 0.0, %v7096
  %v7098 = vpop.f32.mrb[0].mxu0
  %v7099 = vadd.f32 0.0, %v7098
  %v7100 = vpop.f32.mrb[0].mxu0
  %v7101 = vadd.f32 0.0, %v7100
  %v7102 = vpop.f32.mrb[0].mxu0
  %v7103 = vadd.f32 0.0, %v7102
  %7104 = vmatprep.mubr.bf16.mxu0 0
  %7105 = vmatmul.mubr.bf16.gmra.mrb[0].mxu0 %v6764
  %v7106 = vpop.f32.mrb[0].mxu0
  %v7107 = vadd.f32 0.0, %v7106
  %v7108 = vpop.f32.mrb[0].mxu0
  %v7109 = vadd.f32 0.0, %v7108
  %v7110 = vpop.f32.mrb[0].mxu0
  %v7111 = vadd.f32 0.0, %v7110
  %v7112 = vpop.f32.mrb[0].mxu0
  %v7113 = vadd.f32 0.0, %v7112
  %7114 = vdwg.mxu0
  %v7115 = vpack.c.bf16 %v7081, %v7077
  %v7116 = vpack.c.bf16 %v7083, %v7079
  %v7117 = vpack.c.bf16 %v7091, %v7087
  %v7118 = vpack.c.bf16 %v7093, %v7089
  %v7119 = vpack.c.bf16 %v7101, %v7097
  %v7120 = vpack.c.bf16 %v7103, %v7099
  %v7121 = vpack.c.bf16 %v7111, %v7107
  %v7122 = vpack.c.bf16 %v7113, %v7109
  %7123 = vst [vmem:[#allocation2 + $0x80] sm:$0xff] %v7115
  %7124 = vst [vmem:[#allocation2 + $0x88] sm:$0xff] %v7116
  %7125 = vst [vmem:[#allocation2 + $0x90] sm:$0xff] %v7117
  %7126 = vst [vmem:[#allocation2 + $0x98] sm:$0xff] %v7118
  %7127 = vst [vmem:[#allocation2 + $0xa0] sm:$0xff] %v7119
  %7128 = vst [vmem:[#allocation2 + $0xa8] sm:$0xff] %v7120
  %7129 = vst [vmem:[#allocation2 + $0xb0] sm:$0xff] %v7121
  %7130 = vst [vmem:[#allocation2 + $0xb8] sm:$0xff] %v7122
  %s7131 = scalar_lea.vmem %s16, 192
  %v7132 = vld [vmem:[%s7131] sm:$0xff]
  %v7133 = vld [vmem:[%s7131 + $0x8] sm:$0xff]
  %v7134 = vld [vmem:[%s7131 + $0x10] sm:$0xff]
  %v7135 = vld [vmem:[%s7131 + $0x18] sm:$0xff]
  %v7136 = vld [vmem:[%s7131 + $0x20] sm:$0xff]
  %v7137 = vld [vmem:[%s7131 + $0x28] sm:$0xff]
  %v7138 = vld [vmem:[%s7131 + $0x30] sm:$0xff]
  %v7139 = vld [vmem:[%s7131 + $0x38] sm:$0xff]
  %v7148 = vunpack.c.l.b16 %v7132
  %v7149 = vunpack.c.h.b16 %v7132
  %v7150 = vunpack.c.l.b16 %v7133
  %v7151 = vunpack.c.h.b16 %v7133
  %v7152 = vunpack.c.l.b16 %v7134
  %v7153 = vunpack.c.h.b16 %v7134
  %v7154 = vunpack.c.l.b16 %v7135
  %v7155 = vunpack.c.h.b16 %v7135
  %v7156 = vunpack.c.l.b16 %v7136
  %v7157 = vunpack.c.h.b16 %v7136
  %v7158 = vunpack.c.l.b16 %v7137
  %v7159 = vunpack.c.h.b16 %v7137
  %v7160 = vunpack.c.l.b16 %v7138
  %v7161 = vunpack.c.h.b16 %v7138
  %v7162 = vunpack.c.l.b16 %v7139
  %v7163 = vunpack.c.h.b16 %v7139
  %v7164 = vpack.c.b16 %v7150, %v7148
  %v7165 = vpack.c.b16 %v7151, %v7149
  %v7166 = vpack.c.b16 %v7154, %v7152
  %v7167 = vpack.c.b16 %v7155, %v7153
  %v7168 = vpack.c.b16 %v7158, %v7156
  %v7169 = vpack.c.b16 %v7159, %v7157
  %v7170 = vpack.c.b16 %v7162, %v7160
  %v7171 = vpack.c.b16 %v7163, %v7161
  %7180 = vmatprep.subr.bf16.mxu0 %v7165
  %7181 = vmatpush1.bf16.msra.mxu0 %v7164
  %7182 = vmatprep.subr.bf16.mxu0 %v7167
  %7183 = vmatpush1.bf16.msra.mxu0 %v7166
  %7184 = vmatprep.subr.bf16.mxu0 %v7169
  %7185 = vmatpush1.bf16.msra.mxu0 %v7168
  %7186 = vmatprep.subr.bf16.mxu0 %v7171
  %7187 = vmatpush1.bf16.msra.mxu0 %v7170
  %7188 = vmatprep.subr.bf16.mxu0 0
  %7189 = vmatpush1.bf16.msra.mxu0 0
  %7190 = vmatprep.subr.bf16.mxu0 0
  %7191 = vmatpush1.bf16.msra.mxu0 0
  %7192 = vmatprep.subr.bf16.mxu0 0
  %7193 = vmatpush1.bf16.msra.mxu0 0
  %7194 = vmatprep.subr.bf16.mxu0 0
  %7195 = vmatpush1.bf16.msra.mxu0 0
  %7196 = vmatprep.subr.bf16.mxu0 0
  %7197 = vmatpush1.bf16.msra.mxu0 0
  %7198 = vmatprep.subr.bf16.mxu0 0
  %7199 = vmatpush1.bf16.msra.mxu0 0
  %7200 = vmatprep.subr.bf16.mxu0 0
  %7201 = vmatpush1.bf16.msra.mxu0 0
  %7202 = vmatprep.subr.bf16.mxu0 0
  %7203 = vmatpush1.bf16.msra.mxu0 0
  %7204 = vmatprep.subr.bf16.mxu0 0
  %7205 = vmatpush1.bf16.msra.mxu0 0
  %7206 = vmatprep.subr.bf16.mxu0 0
  %7207 = vmatpush1.bf16.msra.mxu0 0
  %7208 = vmatprep.subr.bf16.mxu0 0
  %7209 = vmatpush1.bf16.msra.mxu0 0
  %7210 = vmatprep.subr.bf16.mxu0 0
  %7211 = vmatpush1.bf16.msra.mxu0 0
  %7212 = vmatprep.mubr.bf16.mxu0 0
  %7213 = vmatmul.mubr.bf16.gmra.mrb[0].mxu0 %v6755
  %v7214 = vpop.f32.mrb[0].mxu0
  %v7215 = vadd.f32 0.0, %v7214
  %v7216 = vpop.f32.mrb[0].mxu0
  %v7217 = vadd.f32 0.0, %v7216
  %v7218 = vpop.f32.mrb[0].mxu0
  %v7219 = vadd.f32 0.0, %v7218
  %v7220 = vpop.f32.mrb[0].mxu0
  %v7221 = vadd.f32 0.0, %v7220
  %7222 = vmatprep.mubr.bf16.mxu0 0
  %7223 = vmatmul.mubr.bf16.gmra.mrb[0].mxu0 %v6758
  %v7224 = vpop.f32.mrb[0].mxu0
  %v7225 = vadd.f32 0.0, %v7224
  %v7226 = vpop.f32.mrb[0].mxu0
  %v7227 = vadd.f32 0.0, %v7226
  %v7228 = vpop.f32.mrb[0].mxu0
  %v7229 = vadd.f32 0.0, %v7228
  %v7230 = vpop.f32.mrb[0].mxu0
  %v7231 = vadd.f32 0.0, %v7230
  %7232 = vmatprep.mubr.bf16.mxu0 0
  %7233 = vmatmul.mubr.bf16.gmra.mrb[0].mxu0 %v6761
  %v7234 = vpop.f32.mrb[0].mxu0
  %v7235 = vadd.f32 0.0, %v7234
  %v7236 = vpop.f32.mrb[0].mxu0
  %v7237 = vadd.f32 0.0, %v7236
  %v7238 = vpop.f32.mrb[0].mxu0
  %v7239 = vadd.f32 0.0, %v7238
  %v7240 = vpop.f32.mrb[0].mxu0
  %v7241 = vadd.f32 0.0, %v7240
  %7242 = vmatprep.mubr.bf16.mxu0 0
  %7243 = vmatmul.mubr.bf16.gmra.mrb[0].mxu0 %v6764
  %v7244 = vpop.f32.mrb[0].mxu0
  %v7245 = vadd.f32 0.0, %v7244
  %v7246 = vpop.f32.mrb[0].mxu0
  %v7247 = vadd.f32 0.0, %v7246
  %v7248 = vpop.f32.mrb[0].mxu0
  %v7249 = vadd.f32 0.0, %v7248
  %v7250 = vpop.f32.mrb[0].mxu0
  %v7251 = vadd.f32 0.0, %v7250
  %7252 = vdwg.mxu0
  %v7253 = vpack.c.bf16 %v7219, %v7215
  %v7254 = vpack.c.bf16 %v7221, %v7217
  %v7255 = vpack.c.bf16 %v7229, %v7225
  %v7256 = vpack.c.bf16 %v7231, %v7227
  %v7257 = vpack.c.bf16 %v7239, %v7235
  %v7258 = vpack.c.bf16 %v7241, %v7237
  %v7259 = vpack.c.bf16 %v7249, %v7245
  %v7260 = vpack.c.bf16 %v7251, %v7247
  %7261 = vst [vmem:[#allocation2 + $0xc0] sm:$0xff] %v7253
  %7262 = vst [vmem:[#allocation2 + $0xc8] sm:$0xff] %v7254
  %7263 = vst [vmem:[#allocation2 + $0xd0] sm:$0xff] %v7255
  %7264 = vst [vmem:[#allocation2 + $0xd8] sm:$0xff] %v7256
  %7265 = vst [vmem:[#allocation2 + $0xe0] sm:$0xff] %v7257
  %7266 = vst [vmem:[#allocation2 + $0xe8] sm:$0xff] %v7258
  %7267 = vst [vmem:[#allocation2 + $0xf0] sm:$0xff] %v7259
  %7268 = vst [vmem:[#allocation2 + $0xf8] sm:$0xff] %v7260
  %s7269 = scalar_lea.vmem %s16, 256
  %v7270 = vld [vmem:[%s7269] sm:$0xff]
  %v7271 = vld [vmem:[%s7269 + $0x8] sm:$0xff]
  %v7272 = vld [vmem:[%s7269 + $0x10] sm:$0xff]
  %v7273 = vld [vmem:[%s7269 + $0x18] sm:$0xff]
  %v7274 = vld [vmem:[%s7269 + $0x20] sm:$0xff]
  %v7275 = vld [vmem:[%s7269 + $0x28] sm:$0xff]
  %v7276 = vld [vmem:[%s7269 + $0x30] sm:$0xff]
  %v7277 = vld [vmem:[%s7269 + $0x38] sm:$0xff]
  %v7286 = vunpack.c.l.b16 %v7270
  %v7287 = vunpack.c.h.b16 %v7270
  %v7288 = vunpack.c.l.b16 %v7271
  %v7289 = vunpack.c.h.b16 %v7271
  %v7290 = vunpack.c.l.b16 %v7272
  %v7291 = vunpack.c.h.b16 %v7272
  %v7292 = vunpack.c.l.b16 %v7273
  %v7293 = vunpack.c.h.b16 %v7273
  %v7294 = vunpack.c.l.b16 %v7274
  %v7295 = vunpack.c.h.b16 %v7274
  %v7296 = vunpack.c.l.b16 %v7275
  %v7297 = vunpack.c.h.b16 %v7275
  %v7298 = vunpack.c.l.b16 %v7276
  %v7299 = vunpack.c.h.b16 %v7276
  %v7300 = vunpack.c.l.b16 %v7277
  %v7301 = vunpack.c.h.b16 %v7277
  %v7302 = vpack.c.b16 %v7288, %v7286
  %v7303 = vpack.c.b16 %v7289, %v7287
  %v7304 = vpack.c.b16 %v7292, %v7290
  %v7305 = vpack.c.b16 %v7293, %v7291
  %v7306 = vpack.c.b16 %v7296, %v7294
  %v7307 = vpack.c.b16 %v7297, %v7295
  %v7308 = vpack.c.b16 %v7300, %v7298
  %v7309 = vpack.c.b16 %v7301, %v7299
  %7318 = vmatprep.subr.bf16.mxu0 %v7303
  %7319 = vmatpush1.bf16.msra.mxu0 %v7302
  %7320 = vmatprep.subr.bf16.mxu0 %v7305
  %7321 = vmatpush1.bf16.msra.mxu0 %v7304
  %7322 = vmatprep.subr.bf16.mxu0 %v7307
  %7323 = vmatpush1.bf16.msra.mxu0 %v7306
  %7324 = vmatprep.subr.bf16.mxu0 %v7309
  %7325 = vmatpush1.bf16.msra.mxu0 %v7308
  %7326 = vmatprep.subr.bf16.mxu0 0
  %7327 = vmatpush1.bf16.msra.mxu0 0
  %7328 = vmatprep.subr.bf16.mxu0 0
  %7329 = vmatpush1.bf16.msra.mxu0 0
  %7330 = vmatprep.subr.bf16.mxu0 0
  %7331 = vmatpush1.bf16.msra.mxu0 0
  %7332 = vmatprep.subr.bf16.mxu0 0
  %7333 = vmatpush1.bf16.msra.mxu0 0
  %7334 = vmatprep.subr.bf16.mxu0 0
  %7335 = vmatpush1.bf16.msra.mxu0 0
  %7336 = vmatprep.subr.bf16.mxu0 0
  %7337 = vmatpush1.bf16.msra.mxu0 0
  %7338 = vmatprep.subr.bf16.mxu0 0
  %7339 = vmatpush1.bf16.msra.mxu0 0
  %7340 = vmatprep.subr.bf16.mxu0 0
  %7341 = vmatpush1.bf16.msra.mxu0 0
  %7342 = vmatprep.subr.bf16.mxu0 0
  %7343 = vmatpush1.bf16.msra.mxu0 0
  %7344 = vmatprep.subr.bf16.mxu0 0
  %7345 = vmatpush1.bf16.msra.mxu0 0
  %7346 = vmatprep.subr.bf16.mxu0 0
  %7347 = vmatpush1.bf16.msra.mxu0 0
  %7348 = vmatprep.subr.bf16.mxu0 0
  %7349 = vmatpush1.bf16.msra.mxu0 0
  %7350 = vmatprep.mubr.bf16.mxu0 0
  %7351 = vmatmul.mubr.bf16.gmra.mrb[0].mxu0 %v6755
  %v7352 = vpop.f32.mrb[0].mxu0
  %v7353 = vadd.f32 0.0, %v7352
  %v7354 = vpop.f32.mrb[0].mxu0
  %v7355 = vadd.f32 0.0, %v7354
  %v7356 = vpop.f32.mrb[0].mxu0
  %v7357 = vadd.f32 0.0, %v7356
  %v7358 = vpop.f32.mrb[0].mxu0
  %v7359 = vadd.f32 0.0, %v7358
  %7360 = vmatprep.mubr.bf16.mxu0 0
  %7361 = vmatmul.mubr.bf16.gmra.mrb[0].mxu0 %v6758
  %v7362 = vpop.f32.mrb[0].mxu0
  %v7363 = vadd.f32 0.0, %v7362
  %v7364 = vpop.f32.mrb[0].mxu0
  %v7365 = vadd.f32 0.0, %v7364
  %v7366 = vpop.f32.mrb[0].mxu0
  %v7367 = vadd.f32 0.0, %v7366
  %v7368 = vpop.f32.mrb[0].mxu0
  %v7369 = vadd.f32 0.0, %v7368
  %7370 = vmatprep.mubr.bf16.mxu0 0
  %7371 = vmatmul.mubr.bf16.gmra.mrb[0].mxu0 %v6761
  %v7372 = vpop.f32.mrb[0].mxu0
  %v7373 = vadd.f32 0.0, %v7372
  %v7374 = vpop.f32.mrb[0].mxu0
  %v7375 = vadd.f32 0.0, %v7374
  %v7376 = vpop.f32.mrb[0].mxu0
  %v7377 = vadd.f32 0.0, %v7376
  %v7378 = vpop.f32.mrb[0].mxu0
  %v7379 = vadd.f32 0.0, %v7378
  %7380 = vmatprep.mubr.bf16.mxu0 0
  %7381 = vmatmul.mubr.bf16.gmra.mrb[0].mxu0 %v6764
  %v7382 = vpop.f32.mrb[0].mxu0
  %v7383 = vadd.f32 0.0, %v7382
  %v7384 = vpop.f32.mrb[0].mxu0
  %v7385 = vadd.f32 0.0, %v7384
  %v7386 = vpop.f32.mrb[0].mxu0
  %v7387 = vadd.f32 0.0, %v7386
  %v7388 = vpop.f32.mrb[0].mxu0
  %v7389 = vadd.f32 0.0, %v7388
  %7390 = vdwg.mxu0
  %v7391 = vpack.c.bf16 %v7357, %v7353
  %v7392 = vpack.c.bf16 %v7359, %v7355
  %v7393 = vpack.c.bf16 %v7367, %v7363
  %v7394 = vpack.c.bf16 %v7369, %v7365
  %v7395 = vpack.c.bf16 %v7377, %v7373
  %v7396 = vpack.c.bf16 %v7379, %v7375
  %v7397 = vpack.c.bf16 %v7387, %v7383
  %v7398 = vpack.c.bf16 %v7389, %v7385
  %7399 = vst [vmem:[#allocation2 + $0x100] sm:$0xff] %v7391
  %7400 = vst [vmem:[#allocation2 + $0x108] sm:$0xff] %v7392
  %7401 = vst [vmem:[#allocation2 + $0x110] sm:$0xff] %v7393
  %7402 = vst [vmem:[#allocation2 + $0x118] sm:$0xff] %v7394
  %7403 = vst [vmem:[#allocation2 + $0x120] sm:$0xff] %v7395
  %7404 = vst [vmem:[#allocation2 + $0x128] sm:$0xff] %v7396
  %7405 = vst [vmem:[#allocation2 + $0x130] sm:$0xff] %v7397
  %7406 = vst [vmem:[#allocation2 + $0x138] sm:$0xff] %v7398
  %s7407 = scalar_lea.vmem %s16, 320
  %v7408 = vld [vmem:[%s7407] sm:$0xff]
  %v7409 = vld [vmem:[%s7407 + $0x8] sm:$0xff]
  %v7410 = vld [vmem:[%s7407 + $0x10] sm:$0xff]
  %v7411 = vld [vmem:[%s7407 + $0x18] sm:$0xff]
  %v7412 = vld [vmem:[%s7407 + $0x20] sm:$0xff]
  %v7413 = vld [vmem:[%s7407 + $0x28] sm:$0xff]
  %v7414 = vld [vmem:[%s7407 + $0x30] sm:$0xff]
  %v7415 = vld [vmem:[%s7407 + $0x38] sm:$0xff]
  %v7424 = vunpack.c.l.b16 %v7408
  %v7425 = vunpack.c.h.b16 %v7408
  %v7426 = vunpack.c.l.b16 %v7409
  %v7427 = vunpack.c.h.b16 %v7409
  %v7428 = vunpack.c.l.b16 %v7410
  %v7429 = vunpack.c.h.b16 %v7410
  %v7430 = vunpack.c.l.b16 %v7411
  %v7431 = vunpack.c.h.b16 %v7411
  %v7432 = vunpack.c.l.b16 %v7412
  %v7433 = vunpack.c.h.b16 %v7412
  %v7434 = vunpack.c.l.b16 %v7413
  %v7435 = vunpack.c.h.b16 %v7413
  %v7436 = vunpack.c.l.b16 %v7414
  %v7437 = vunpack.c.h.b16 %v7414
  %v7438 = vunpack.c.l.b16 %v7415
  %v7439 = vunpack.c.h.b16 %v7415
  %v7440 = vpack.c.b16 %v7426, %v7424
  %v7441 = vpack.c.b16 %v7427, %v7425
  %v7442 = vpack.c.b16 %v7430, %v7428
  %v7443 = vpack.c.b16 %v7431, %v7429
  %v7444 = vpack.c.b16 %v7434, %v7432
  %v7445 = vpack.c.b16 %v7435, %v7433
  %v7446 = vpack.c.b16 %v7438, %v7436
  %v7447 = vpack.c.b16 %v7439, %v7437
  %7456 = vmatprep.subr.bf16.mxu0 %v7441
  %7457 = vmatpush1.bf16.msra.mxu0 %v7440
  %7458 = vmatprep.subr.bf16.mxu0 %v7443
  %7459 = vmatpush1.bf16.msra.mxu0 %v7442
  %7460 = vmatprep.subr.bf16.mxu0 %v7445
  %7461 = vmatpush1.bf16.msra.mxu0 %v7444
  %7462 = vmatprep.subr.bf16.mxu0 %v7447
  %7463 = vmatpush1.bf16.msra.mxu0 %v7446
  %7464 = vmatprep.subr.bf16.mxu0 0
  %7465 = vmatpush1.bf16.msra.mxu0 0
  %7466 = vmatprep.subr.bf16.mxu0 0
  %7467 = vmatpush1.bf16.msra.mxu0 0
  %7468 = vmatprep.subr.bf16.mxu0 0
  %7469 = vmatpush1.bf16.msra.mxu0 0
  %7470 = vmatprep.subr.bf16.mxu0 0
  %7471 = vmatpush1.bf16.msra.mxu0 0
  %7472 = vmatprep.subr.bf16.mxu0 0
  %7473 = vmatpush1.bf16.msra.mxu0 0
  %7474 = vmatprep.subr.bf16.mxu0 0
  %7475 = vmatpush1.bf16.msra.mxu0 0
  %7476 = vmatprep.subr.bf16.mxu0 0
  %7477 = vmatpush1.bf16.msra.mxu0 0
  %7478 = vmatprep.subr.bf16.mxu0 0
  %7479 = vmatpush1.bf16.msra.mxu0 0
  %7480 = vmatprep.subr.bf16.mxu0 0
  %7481 = vmatpush1.bf16.msra.mxu0 0
  %7482 = vmatprep.subr.bf16.mxu0 0
  %7483 = vmatpush1.bf16.msra.mxu0 0
  %7484 = vmatprep.subr.bf16.mxu0 0
  %7485 = vmatpush1.bf16.msra.mxu0 0
  %7486 = vmatprep.subr.bf16.mxu0 0
  %7487 = vmatpush1.bf16.msra.mxu0 0
  %7488 = vmatprep.mubr.bf16.mxu0 0
  %7489 = vmatmul.mubr.bf16.gmra.mrb[0].mxu0 %v6755
  %v7490 = vpop.f32.mrb[0].mxu0
  %v7491 = vadd.f32 0.0, %v7490
  %v7492 = vpop.f32.mrb[0].mxu0
  %v7493 = vadd.f32 0.0, %v7492
  %v7494 = vpop.f32.mrb[0].mxu0
  %v7495 = vadd.f32 0.0, %v7494
  %v7496 = vpop.f32.mrb[0].mxu0
  %v7497 = vadd.f32 0.0, %v7496
  %7498 = vmatprep.mubr.bf16.mxu0 0
  %7499 = vmatmul.mubr.bf16.gmra.mrb[0].mxu0 %v6758
  %v7500 = vpop.f32.mrb[0].mxu0
  %v7501 = vadd.f32 0.0, %v7500
  %v7502 = vpop.f32.mrb[0].mxu0
  %v7503 = vadd.f32 0.0, %v7502
  %v7504 = vpop.f32.mrb[0].mxu0
  %v7505 = vadd.f32 0.0, %v7504
  %v7506 = vpop.f32.mrb[0].mxu0
  %v7507 = vadd.f32 0.0, %v7506
  %7508 = vmatprep.mubr.bf16.mxu0 0
  %7509 = vmatmul.mubr.bf16.gmra.mrb[0].mxu0 %v6761
  %v7510 = vpop.f32.mrb[0].mxu0
  %v7511 = vadd.f32 0.0, %v7510
  %v7512 = vpop.f32.mrb[0].mxu0
  %v7513 = vadd.f32 0.0, %v7512
  %v7514 = vpop.f32.mrb[0].mxu0
  %v7515 = vadd.f32 0.0, %v7514
  %v7516 = vpop.f32.mrb[0].mxu0
  %v7517 = vadd.f32 0.0, %v7516
  %7518 = vmatprep.mubr.bf16.mxu0 0
  %7519 = vmatmul.mubr.bf16.gmra.mrb[0].mxu0 %v6764
  %v7520 = vpop.f32.mrb[0].mxu0
  %v7521 = vadd.f32 0.0, %v7520
  %v7522 = vpop.f32.mrb[0].mxu0
  %v7523 = vadd.f32 0.0, %v7522
  %v7524 = vpop.f32.mrb[0].mxu0
  %v7525 = vadd.f32 0.0, %v7524
  %v7526 = vpop.f32.mrb[0].mxu0
  %v7527 = vadd.f32 0.0, %v7526
  %7528 = vdwg.mxu0
  %v7529 = vpack.c.bf16 %v7495, %v7491
  %v7530 = vpack.c.bf16 %v7497, %v7493
  %v7531 = vpack.c.bf16 %v7505, %v7501
  %v7532 = vpack.c.bf16 %v7507, %v7503
  %v7533 = vpack.c.bf16 %v7515, %v7511
  %v7534 = vpack.c.bf16 %v7517, %v7513
  %v7535 = vpack.c.bf16 %v7525, %v7521
  %v7536 = vpack.c.bf16 %v7527, %v7523
  %7537 = vst [vmem:[#allocation2 + $0x140] sm:$0xff] %v7529
  %7538 = vst [vmem:[#allocation2 + $0x148] sm:$0xff] %v7530
  %7539 = vst [vmem:[#allocation2 + $0x150] sm:$0xff] %v7531
  %7540 = vst [vmem:[#allocation2 + $0x158] sm:$0xff] %v7532
  %7541 = vst [vmem:[#allocation2 + $0x160] sm:$0xff] %v7533
  %7542 = vst [vmem:[#allocation2 + $0x168] sm:$0xff] %v7534
  %7543 = vst [vmem:[#allocation2 + $0x170] sm:$0xff] %v7535
  %7544 = vst [vmem:[#allocation2 + $0x178] sm:$0xff] %v7536
  %s7545 = scalar_lea.vmem %s16, 384
  %v7546 = vld [vmem:[%s7545] sm:$0xff]
  %v7547 = vld [vmem:[%s7545 + $0x8] sm:$0xff]
  %v7548 = vld [vmem:[%s7545 + $0x10] sm:$0xff]
  %v7549 = vld [vmem:[%s7545 + $0x18] sm:$0xff]
  %v7550 = vld [vmem:[%s7545 + $0x20] sm:$0xff]
  %v7551 = vld [vmem:[%s7545 + $0x28] sm:$0xff]
  %v7552 = vld [vmem:[%s7545 + $0x30] sm:$0xff]
  %v7553 = vld [vmem:[%s7545 + $0x38] sm:$0xff]
  %v7562 = vunpack.c.l.b16 %v7546
  %v7563 = vunpack.c.h.b16 %v7546
  %v7564 = vunpack.c.l.b16 %v7547
  %v7565 = vunpack.c.h.b16 %v7547
  %v7566 = vunpack.c.l.b16 %v7548
  %v7567 = vunpack.c.h.b16 %v7548
  %v7568 = vunpack.c.l.b16 %v7549
  %v7569 = vunpack.c.h.b16 %v7549
  %v7570 = vunpack.c.l.b16 %v7550
  %v7571 = vunpack.c.h.b16 %v7550
  %v7572 = vunpack.c.l.b16 %v7551
  %v7573 = vunpack.c.h.b16 %v7551
  %v7574 = vunpack.c.l.b16 %v7552
  %v7575 = vunpack.c.h.b16 %v7552
  %v7576 = vunpack.c.l.b16 %v7553
  %v7577 = vunpack.c.h.b16 %v7553
  %v7578 = vpack.c.b16 %v7564, %v7562
  %v7579 = vpack.c.b16 %v7565, %v7563
  %v7580 = vpack.c.b16 %v7568, %v7566
  %v7581 = vpack.c.b16 %v7569, %v7567
  %v7582 = vpack.c.b16 %v7572, %v7570
  %v7583 = vpack.c.b16 %v7573, %v7571
  %v7584 = vpack.c.b16 %v7576, %v7574
  %v7585 = vpack.c.b16 %v7577, %v7575
  %7594 = vmatprep.subr.bf16.mxu0 %v7579
  %7595 = vmatpush1.bf16.msra.mxu0 %v7578
  %7596 = vmatprep.subr.bf16.mxu0 %v7581
  %7597 = vmatpush1.bf16.msra.mxu0 %v7580
  %7598 = vmatprep.subr.bf16.mxu0 %v7583
  %7599 = vmatpush1.bf16.msra.mxu0 %v7582
  %7600 = vmatprep.subr.bf16.mxu0 %v7585
  %7601 = vmatpush1.bf16.msra.mxu0 %v7584
  %7602 = vmatprep.subr.bf16.mxu0 0
  %7603 = vmatpush1.bf16.msra.mxu0 0
  %7604 = vmatprep.subr.bf16.mxu0 0
  %7605 = vmatpush1.bf16.msra.mxu0 0
  %7606 = vmatprep.subr.bf16.mxu0 0
  %7607 = vmatpush1.bf16.msra.mxu0 0
  %7608 = vmatprep.subr.bf16.mxu0 0
  %7609 = vmatpush1.bf16.msra.mxu0 0
  %7610 = vmatprep.subr.bf16.mxu0 0
  %7611 = vmatpush1.bf16.msra.mxu0 0
  %7612 = vmatprep.subr.bf16.mxu0 0
  %7613 = vmatpush1.bf16.msra.mxu0 0
  %7614 = vmatprep.subr.bf16.mxu0 0
  %7615 = vmatpush1.bf16.msra.mxu0 0
  %7616 = vmatprep.subr.bf16.mxu0 0
  %7617 = vmatpush1.bf16.msra.mxu0 0
  %7618 = vmatprep.subr.bf16.mxu0 0
  %7619 = vmatpush1.bf16.msra.mxu0 0
  %7620 = vmatprep.subr.bf16.mxu0 0
  %7621 = vmatpush1.bf16.msra.mxu0 0
  %7622 = vmatprep.subr.bf16.mxu0 0
  %7623 = vmatpush1.bf16.msra.mxu0 0
  %7624 = vmatprep.subr.bf16.mxu0 0
  %7625 = vmatpush1.bf16.msra.mxu0 0
  %7626 = vmatprep.mubr.bf16.mxu0 0
  %7627 = vmatmul.mubr.bf16.gmra.mrb[0].mxu0 %v6755
  %v7628 = vpop.f32.mrb[0].mxu0
  %v7629 = vadd.f32 0.0, %v7628
  %v7630 = vpop.f32.mrb[0].mxu0
  %v7631 = vadd.f32 0.0, %v7630
  %v7632 = vpop.f32.mrb[0].mxu0
  %v7633 = vadd.f32 0.0, %v7632
  %v7634 = vpop.f32.mrb[0].mxu0
  %v7635 = vadd.f32 0.0, %v7634
  %7636 = vmatprep.mubr.bf16.mxu0 0
  %7637 = vmatmul.mubr.bf16.gmra.mrb[0].mxu0 %v6758
  %v7638 = vpop.f32.mrb[0].mxu0
  %v7639 = vadd.f32 0.0, %v7638
  %v7640 = vpop.f32.mrb[0].mxu0
  %v7641 = vadd.f32 0.0, %v7640
  %v7642 = vpop.f32.mrb[0].mxu0
  %v7643 = vadd.f32 0.0, %v7642
  %v7644 = vpop.f32.mrb[0].mxu0
  %v7645 = vadd.f32 0.0, %v7644
  %7646 = vmatprep.mubr.bf16.mxu0 0
  %7647 = vmatmul.mubr.bf16.gmra.mrb[0].mxu0 %v6761
  %v7648 = vpop.f32.mrb[0].mxu0
  %v7649 = vadd.f32 0.0, %v7648
  %v7650 = vpop.f32.mrb[0].mxu0
  %v7651 = vadd.f32 0.0, %v7650
  %v7652 = vpop.f32.mrb[0].mxu0
  %v7653 = vadd.f32 0.0, %v7652
  %v7654 = vpop.f32.mrb[0].mxu0
  %v7655 = vadd.f32 0.0, %v7654
  %7656 = vmatprep.mubr.bf16.mxu0 0
  %7657 = vmatmul.mubr.bf16.gmra.mrb[0].mxu0 %v6764
  %v7658 = vpop.f32.mrb[0].mxu0
  %v7659 = vadd.f32 0.0, %v7658
  %v7660 = vpop.f32.mrb[0].mxu0
  %v7661 = vadd.f32 0.0, %v7660
  %v7662 = vpop.f32.mrb[0].mxu0
  %v7663 = vadd.f32 0.0, %v7662
  %v7664 = vpop.f32.mrb[0].mxu0
  %v7665 = vadd.f32 0.0, %v7664
  %7666 = vdwg.mxu0
  %v7667 = vpack.c.bf16 %v7633, %v7629
  %v7668 = vpack.c.bf16 %v7635, %v7631
  %v7669 = vpack.c.bf16 %v7643, %v7639
  %v7670 = vpack.c.bf16 %v7645, %v7641
  %v7671 = vpack.c.bf16 %v7653, %v7649
  %v7672 = vpack.c.bf16 %v7655, %v7651
  %v7673 = vpack.c.bf16 %v7663, %v7659
  %v7674 = vpack.c.bf16 %v7665, %v7661
  %7675 = vst [vmem:[#allocation2 + $0x180] sm:$0xff] %v7667
  %7676 = vst [vmem:[#allocation2 + $0x188] sm:$0xff] %v7668
  %7677 = vst [vmem:[#allocation2 + $0x190] sm:$0xff] %v7669
  %7678 = vst [vmem:[#allocation2 + $0x198] sm:$0xff] %v7670
  %7679 = vst [vmem:[#allocation2 + $0x1a0] sm:$0xff] %v7671
  %7680 = vst [vmem:[#allocation2 + $0x1a8] sm:$0xff] %v7672
  %7681 = vst [vmem:[#allocation2 + $0x1b0] sm:$0xff] %v7673
  %7682 = vst [vmem:[#allocation2 + $0x1b8] sm:$0xff] %v7674
  %s7683 = scalar_lea.vmem %s16, 448
  %v7684 = vld [vmem:[%s7683] sm:$0xff]
  %v7685 = vld [vmem:[%s7683 + $0x8] sm:$0xff]
  %v7686 = vld [vmem:[%s7683 + $0x10] sm:$0xff]
  %v7687 = vld [vmem:[%s7683 + $0x18] sm:$0xff]
  %v7688 = vld [vmem:[%s7683 + $0x20] sm:$0xff]
  %v7689 = vld [vmem:[%s7683 + $0x28] sm:$0xff]
  %v7690 = vld [vmem:[%s7683 + $0x30] sm:$0xff]
  %v7691 = vld [vmem:[%s7683 + $0x38] sm:$0xff]
  %v7700 = vunpack.c.l.b16 %v7684
  %v7701 = vunpack.c.h.b16 %v7684
  %v7702 = vunpack.c.l.b16 %v7685
  %v7703 = vunpack.c.h.b16 %v7685
  %v7704 = vunpack.c.l.b16 %v7686
  %v7705 = vunpack.c.h.b16 %v7686
  %v7706 = vunpack.c.l.b16 %v7687
  %v7707 = vunpack.c.h.b16 %v7687
  %v7708 = vunpack.c.l.b16 %v7688
  %v7709 = vunpack.c.h.b16 %v7688
  %v7710 = vunpack.c.l.b16 %v7689
  %v7711 = vunpack.c.h.b16 %v7689
  %v7712 = vunpack.c.l.b16 %v7690
  %v7713 = vunpack.c.h.b16 %v7690
  %v7714 = vunpack.c.l.b16 %v7691
  %v7715 = vunpack.c.h.b16 %v7691
  %v7716 = vpack.c.b16 %v7702, %v7700
  %v7717 = vpack.c.b16 %v7703, %v7701
  %v7718 = vpack.c.b16 %v7706, %v7704
  %v7719 = vpack.c.b16 %v7707, %v7705
  %v7720 = vpack.c.b16 %v7710, %v7708
  %v7721 = vpack.c.b16 %v7711, %v7709
  %v7722 = vpack.c.b16 %v7714, %v7712
  %v7723 = vpack.c.b16 %v7715, %v7713
  %7732 = vmatprep.subr.bf16.mxu0 %v7717
  %7733 = vmatpush1.bf16.msra.mxu0 %v7716
  %7734 = vmatprep.subr.bf16.mxu0 %v7719
  %7735 = vmatpush1.bf16.msra.mxu0 %v7718
  %7736 = vmatprep.subr.bf16.mxu0 %v7721
  %7737 = vmatpush1.bf16.msra.mxu0 %v7720
  %7738 = vmatprep.subr.bf16.mxu0 %v7723
  %7739 = vmatpush1.bf16.msra.mxu0 %v7722
  %7740 = vmatprep.subr.bf16.mxu0 0
  %7741 = vmatpush1.bf16.msra.mxu0 0
  %7742 = vmatprep.subr.bf16.mxu0 0
  %7743 = vmatpush1.bf16.msra.mxu0 0
  %7744 = vmatprep.subr.bf16.mxu0 0
  %7745 = vmatpush1.bf16.msra.mxu0 0
  %7746 = vmatprep.subr.bf16.mxu0 0
  %7747 = vmatpush1.bf16.msra.mxu0 0
  %7748 = vmatprep.subr.bf16.mxu0 0
  %7749 = vmatpush1.bf16.msra.mxu0 0
  %7750 = vmatprep.subr.bf16.mxu0 0
  %7751 = vmatpush1.bf16.msra.mxu0 0
  %7752 = vmatprep.subr.bf16.mxu0 0
  %7753 = vmatpush1.bf16.msra.mxu0 0
  %7754 = vmatprep.subr.bf16.mxu0 0
  %7755 = vmatpush1.bf16.msra.mxu0 0
  %7756 = vmatprep.subr.bf16.mxu0 0
  %7757 = vmatpush1.bf16.msra.mxu0 0
  %7758 = vmatprep.subr.bf16.mxu0 0
  %7759 = vmatpush1.bf16.msra.mxu0 0
  %7760 = vmatprep.subr.bf16.mxu0 0
  %7761 = vmatpush1.bf16.msra.mxu0 0
  %7762 = vmatprep.subr.bf16.mxu0 0
  %7763 = vmatpush1.bf16.msra.mxu0 0
  %7764 = vmatprep.mubr.bf16.mxu0 0
  %7765 = vmatmul.mubr.bf16.gmra.mrb[0].mxu0 %v6755
  %v7766 = vpop.f32.mrb[0].mxu0
  %v7767 = vadd.f32 0.0, %v7766
  %v7768 = vpop.f32.mrb[0].mxu0
  %v7769 = vadd.f32 0.0, %v7768
  %v7770 = vpop.f32.mrb[0].mxu0
  %v7771 = vadd.f32 0.0, %v7770
  %v7772 = vpop.f32.mrb[0].mxu0
  %v7773 = vadd.f32 0.0, %v7772
  %7774 = vmatprep.mubr.bf16.mxu0 0
  %7775 = vmatmul.mubr.bf16.gmra.mrb[0].mxu0 %v6758
  %v7776 = vpop.f32.mrb[0].mxu0
  %v7777 = vadd.f32 0.0, %v7776
  %v7778 = vpop.f32.mrb[0].mxu0
  %v7779 = vadd.f32 0.0, %v7778
  %v7780 = vpop.f32.mrb[0].mxu0
  %v7781 = vadd.f32 0.0, %v7780
  %v7782 = vpop.f32.mrb[0].mxu0
  %v7783 = vadd.f32 0.0, %v7782
  %7784 = vmatprep.mubr.bf16.mxu0 0
  %7785 = vmatmul.mubr.bf16.gmra.mrb[0].mxu0 %v6761
  %v7786 = vpop.f32.mrb[0].mxu0
  %v7787 = vadd.f32 0.0, %v7786
  %v7788 = vpop.f32.mrb[0].mxu0
  %v7789 = vadd.f32 0.0, %v7788
  %v7790 = vpop.f32.mrb[0].mxu0
  %v7791 = vadd.f32 0.0, %v7790
  %v7792 = vpop.f32.mrb[0].mxu0
  %v7793 = vadd.f32 0.0, %v7792
  %7794 = vmatprep.mubr.bf16.mxu0 0
  %7795 = vmatmul.mubr.bf16.gmra.mrb[0].mxu0 %v6764
  %v7796 = vpop.f32.mrb[0].mxu0
  %v7797 = vadd.f32 0.0, %v7796
  %v7798 = vpop.f32.mrb[0].mxu0
  %v7799 = vadd.f32 0.0, %v7798
  %v7800 = vpop.f32.mrb[0].mxu0
  %v7801 = vadd.f32 0.0, %v7800
  %v7802 = vpop.f32.mrb[0].mxu0
  %v7803 = vadd.f32 0.0, %v7802
  %7804 = vdwg.mxu0
  %v7805 = vpack.c.bf16 %v7771, %v7767
  %v7806 = vpack.c.bf16 %v7773, %v7769
  %v7807 = vpack.c.bf16 %v7781, %v7777
  %v7808 = vpack.c.bf16 %v7783, %v7779
  %v7809 = vpack.c.bf16 %v7791, %v7787
  %v7810 = vpack.c.bf16 %v7793, %v7789
  %v7811 = vpack.c.bf16 %v7801, %v7797
  %v7812 = vpack.c.bf16 %v7803, %v7799
  %7813 = vst [vmem:[#allocation2 + $0x1c0] sm:$0xff] %v7805
  %7814 = vst [vmem:[#allocation2 + $0x1c8] sm:$0xff] %v7806
  %7815 = vst [vmem:[#allocation2 + $0x1d0] sm:$0xff] %v7807
  %7816 = vst [vmem:[#allocation2 + $0x1d8] sm:$0xff] %v7808
  %7817 = vst [vmem:[#allocation2 + $0x1e0] sm:$0xff] %v7809
  %7818 = vst [vmem:[#allocation2 + $0x1e8] sm:$0xff] %v7810
  %7819 = vst [vmem:[#allocation2 + $0x1f0] sm:$0xff] %v7811
  %7820 = vst [vmem:[#allocation2 + $0x1f8] sm:$0xff] %v7812
  %s7821 = scalar_lea.vmem %s16, 512
  %v7822 = vld [vmem:[%s7821] sm:$0xff]
  %v7823 = vld [vmem:[%s7821 + $0x8] sm:$0xff]
  %v7824 = vld [vmem:[%s7821 + $0x10] sm:$0xff]
  %v7825 = vld [vmem:[%s7821 + $0x18] sm:$0xff]
  %v7826 = vld [vmem:[%s7821 + $0x20] sm:$0xff]
  %v7827 = vld [vmem:[%s7821 + $0x28] sm:$0xff]
  %v7828 = vld [vmem:[%s7821 + $0x30] sm:$0xff]
  %v7829 = vld [vmem:[%s7821 + $0x38] sm:$0xff]
  %v7838 = vunpack.c.l.b16 %v7822
  %v7839 = vunpack.c.h.b16 %v7822
  %v7840 = vunpack.c.l.b16 %v7823
  %v7841 = vunpack.c.h.b16 %v7823
  %v7842 = vunpack.c.l.b16 %v7824
  %v7843 = vunpack.c.h.b16 %v7824
  %v7844 = vunpack.c.l.b16 %v7825
  %v7845 = vunpack.c.h.b16 %v7825
  %v7846 = vunpack.c.l.b16 %v7826
  %v7847 = vunpack.c.h.b16 %v7826
  %v7848 = vunpack.c.l.b16 %v7827
  %v7849 = vunpack.c.h.b16 %v7827
  %v7850 = vunpack.c.l.b16 %v7828
  %v7851 = vunpack.c.h.b16 %v7828
  %v7852 = vunpack.c.l.b16 %v7829
  %v7853 = vunpack.c.h.b16 %v7829
  %v7854 = vpack.c.b16 %v7840, %v7838
  %v7855 = vpack.c.b16 %v7841, %v7839
  %v7856 = vpack.c.b16 %v7844, %v7842
  %v7857 = vpack.c.b16 %v7845, %v7843
  %v7858 = vpack.c.b16 %v7848, %v7846
  %v7859 = vpack.c.b16 %v7849, %v7847
  %v7860 = vpack.c.b16 %v7852, %v7850
  %v7861 = vpack.c.b16 %v7853, %v7851
  %7870 = vmatprep.subr.bf16.mxu0 %v7855
  %7871 = vmatpush1.bf16.msra.mxu0 %v7854
  %7872 = vmatprep.subr.bf16.mxu0 %v7857
  %7873 = vmatpush1.bf16.msra.mxu0 %v7856
  %7874 = vmatprep.subr.bf16.mxu0 %v7859
  %7875 = vmatpush1.bf16.msra.mxu0 %v7858
  %7876 = vmatprep.subr.bf16.mxu0 %v7861
  %7877 = vmatpush1.bf16.msra.mxu0 %v7860
  %7878 = vmatprep.subr.bf16.mxu0 0
  %7879 = vmatpush1.bf16.msra.mxu0 0
  %7880 = vmatprep.subr.bf16.mxu0 0
  %7881 = vmatpush1.bf16.msra.mxu0 0
  %7882 = vmatprep.subr.bf16.mxu0 0
  %7883 = vmatpush1.bf16.msra.mxu0 0
  %7884 = vmatprep.subr.bf16.mxu0 0
  %7885 = vmatpush1.bf16.msra.mxu0 0
  %7886 = vmatprep.subr.bf16.mxu0 0
  %7887 = vmatpush1.bf16.msra.mxu0 0
  %7888 = vmatprep.subr.bf16.mxu0 0
  %7889 = vmatpush1.bf16.msra.mxu0 0
  %7890 = vmatprep.subr.bf16.mxu0 0
  %7891 = vmatpush1.bf16.msra.mxu0 0
  %7892 = vmatprep.subr.bf16.mxu0 0
  %7893 = vmatpush1.bf16.msra.mxu0 0
  %7894 = vmatprep.subr.bf16.mxu0 0
  %7895 = vmatpush1.bf16.msra.mxu0 0
  %7896 = vmatprep.subr.bf16.mxu0 0
  %7897 = vmatpush1.bf16.msra.mxu0 0
  %7898 = vmatprep.subr.bf16.mxu0 0
  %7899 = vmatpush1.bf16.msra.mxu0 0
  %7900 = vmatprep.subr.bf16.mxu0 0
  %7901 = vmatpush1.bf16.msra.mxu0 0
  %7902 = vmatprep.mubr.bf16.mxu0 0
  %7903 = vmatmul.mubr.bf16.gmra.mrb[0].mxu0 %v6755
  %v7904 = vpop.f32.mrb[0].mxu0
  %v7905 = vadd.f32 0.0, %v7904
  %v7906 = vpop.f32.mrb[0].mxu0
  %v7907 = vadd.f32 0.0, %v7906
  %v7908 = vpop.f32.mrb[0].mxu0
  %v7909 = vadd.f32 0.0, %v7908
  %v7910 = vpop.f32.mrb[0].mxu0
  %v7911 = vadd.f32 0.0, %v7910
  %7912 = vmatprep.mubr.bf16.mxu0 0
  %7913 = vmatmul.mubr.bf16.gmra.mrb[0].mxu0 %v6758
  %v7914 = vpop.f32.mrb[0].mxu0
  %v7915 = vadd.f32 0.0, %v7914
  %v7916 = vpop.f32.mrb[0].mxu0
  %v7917 = vadd.f32 0.0, %v7916
  %v7918 = vpop.f32.mrb[0].mxu0
  %v7919 = vadd.f32 0.0, %v7918
  %v7920 = vpop.f32.mrb[0].mxu0
  %v7921 = vadd.f32 0.0, %v7920
  %7922 = vmatprep.mubr.bf16.mxu0 0
  %7923 = vmatmul.mubr.bf16.gmra.mrb[0].mxu0 %v6761
  %v7924 = vpop.f32.mrb[0].mxu0
  %v7925 = vadd.f32 0.0, %v7924
  %v7926 = vpop.f32.mrb[0].mxu0
  %v7927 = vadd.f32 0.0, %v7926
  %v7928 = vpop.f32.mrb[0].mxu0
  %v7929 = vadd.f32 0.0, %v7928
  %v7930 = vpop.f32.mrb[0].mxu0
  %v7931 = vadd.f32 0.0, %v7930
  %7932 = vmatprep.mubr.bf16.mxu0 0
  %7933 = vmatmul.mubr.bf16.gmra.mrb[0].mxu0 %v6764
  %v7934 = vpop.f32.mrb[0].mxu0
  %v7935 = vadd.f32 0.0, %v7934
  %v7936 = vpop.f32.mrb[0].mxu0
  %v7937 = vadd.f32 0.0, %v7936
  %v7938 = vpop.f32.mrb[0].mxu0
  %v7939 = vadd.f32 0.0, %v7938
  %v7940 = vpop.f32.mrb[0].mxu0
  %v7941 = vadd.f32 0.0, %v7940
  %7942 = vdwg.mxu0
  %v7943 = vpack.c.bf16 %v7909, %v7905
  %v7944 = vpack.c.bf16 %v7911, %v7907
  %v7945 = vpack.c.bf16 %v7919, %v7915
  %v7946 = vpack.c.bf16 %v7921, %v7917
  %v7947 = vpack.c.bf16 %v7929, %v7925
  %v7948 = vpack.c.bf16 %v7931, %v7927
  %v7949 = vpack.c.bf16 %v7939, %v7935
  %v7950 = vpack.c.bf16 %v7941, %v7937
  %7951 = vst [vmem:[#allocation2 + $0x200] sm:$0xff] %v7943
  %7952 = vst [vmem:[#allocation2 + $0x208] sm:$0xff] %v7944
  %7953 = vst [vmem:[#allocation2 + $0x210] sm:$0xff] %v7945
  %7954 = vst [vmem:[#allocation2 + $0x218] sm:$0xff] %v7946
  %7955 = vst [vmem:[#allocation2 + $0x220] sm:$0xff] %v7947
  %7956 = vst [vmem:[#allocation2 + $0x228] sm:$0xff] %v7948
  %7957 = vst [vmem:[#allocation2 + $0x230] sm:$0xff] %v7949
  %7958 = vst [vmem:[#allocation2 + $0x238] sm:$0xff] %v7950
  %v7959 = vld [vmem:[%s17] sm:$0xff]
  %v7960 = vld [vmem:[%s17 + $0x8] sm:$0xff]
  %v7961 = vld [vmem:[%s17 + $0x10] sm:$0xf]
  %v7962 = vld [vmem:[%s17 + $0x14] sm:$0xff]
  %v7963 = vld [vmem:[%s17 + $0x1c] sm:$0xff]
  %v7964 = vld [vmem:[%s17 + $0x24] sm:$0xf]
  %v7965 = vld [vmem:[%s17 + $0x28] sm:$0xff]
  %v7966 = vld [vmem:[%s17 + $0x30] sm:$0xff]
  %v7967 = vld [vmem:[%s17 + $0x38] sm:$0xf]
  %v7968 = vld [vmem:[%s17 + $0x3c] sm:$0xff]
  %v7969 = vld [vmem:[%s17 + $0x44] sm:$0xff]
  %v7970 = vld [vmem:[%s17 + $0x4c] sm:$0xf]
  %v7971 = vld [vmem:[%s17 + $0x50] sm:$0xff]
  %v7972 = vld [vmem:[%s17 + $0x58] sm:$0xff]
  %v7973 = vld [vmem:[%s17 + $0x60] sm:$0xf]
  %v7974 = vld [vmem:[%s17 + $0x64] sm:$0xff]
  %v7975 = vld [vmem:[%s17 + $0x6c] sm:$0xff]
  %v7976 = vld [vmem:[%s17 + $0x74] sm:$0xf]
  %v7977 = vld [vmem:[%s17 + $0x78] sm:$0xff]
  %v7978 = vld [vmem:[%s17 + $0x80] sm:$0xff]
  %v7979 = vld [vmem:[%s17 + $0x88] sm:$0xf]
  %v7980 = vld [vmem:[%s17 + $0x8c] sm:$0xff]
  %v7981 = vld [vmem:[%s17 + $0x94] sm:$0xff]
  %v7982 = vld [vmem:[%s17 + $0x9c] sm:$0xf]
  %v7983 = vld [vmem:[#allocation2] sm:$0xff]
  %v7984 = vld [vmem:[#allocation2 + $0x8] sm:$0xff]
  %v7985 = vld [vmem:[#allocation2 + $0x10] sm:$0xff]
  %v7986 = vld [vmem:[#allocation2 + $0x18] sm:$0xff]
  %v7987 = vld [vmem:[#allocation2 + $0x20] sm:$0xff]
  %v7988 = vld [vmem:[#allocation2 + $0x28] sm:$0xff]
  %v7989 = vld [vmem:[#allocation2 + $0x30] sm:$0xff]
  %v7990 = vld [vmem:[#allocation2 + $0x38] sm:$0xff]
  %v7991 = vld [vmem:[#allocation2 + $0x40] sm:$0xff]
  %v7992 = vld [vmem:[#allocation2 + $0x48] sm:$0xff]
  %v7993 = vld [vmem:[#allocation2 + $0x50] sm:$0xff]
  %v7994 = vld [vmem:[#allocation2 + $0x58] sm:$0xff]
  %v7995 = vld [vmem:[#allocation2 + $0x60] sm:$0xff]
  %v7996 = vld [vmem:[#allocation2 + $0x68] sm:$0xff]
  %v7997 = vld [vmem:[#allocation2 + $0x70] sm:$0xff]
  %v7998 = vld [vmem:[#allocation2 + $0x78] sm:$0xff]
  %v7999 = vld [vmem:[#allocation2 + $0x80] sm:$0xff]
  %v8000 = vld [vmem:[#allocation2 + $0x88] sm:$0xff]
  %v8001 = vld [vmem:[#allocation2 + $0x90] sm:$0xff]
  %v8002 = vld [vmem:[#allocation2 + $0x98] sm:$0xff]
  %v8003 = vld [vmem:[#allocation2 + $0xa0] sm:$0xff]
  %v8004 = vld [vmem:[#allocation2 + $0xa8] sm:$0xff]
  %v8005 = vld [vmem:[#allocation2 + $0xb0] sm:$0xff]
  %v8006 = vld [vmem:[#allocation2 + $0xb8] sm:$0xff]
  %v8007 = vld [vmem:[#allocation2 + $0xc0] sm:$0xff]
  %v8008 = vld [vmem:[#allocation2 + $0xc8] sm:$0xff]
  %v8009 = vld [vmem:[#allocation2 + $0xd0] sm:$0xff]
  %v8010 = vld [vmem:[#allocation2 + $0xd8] sm:$0xff]
  %v8011 = vld [vmem:[#allocation2 + $0xe0] sm:$0xff]
  %v8012 = vld [vmem:[#allocation2 + $0xe8] sm:$0xff]
  %v8013 = vld [vmem:[#allocation2 + $0xf0] sm:$0xff]
  %v8014 = vld [vmem:[#allocation2 + $0xf8] sm:$0xff]
  %v8015 = vld [vmem:[#allocation2 + $0x100] sm:$0xff]
  %v8016 = vld [vmem:[#allocation2 + $0x108] sm:$0xff]
  %v8017 = vld [vmem:[#allocation2 + $0x110] sm:$0xff]
  %v8018 = vld [vmem:[#allocation2 + $0x118] sm:$0xff]
  %v8019 = vld [vmem:[#allocation2 + $0x120] sm:$0xff]
  %v8020 = vld [vmem:[#allocation2 + $0x128] sm:$0xff]
  %v8021 = vld [vmem:[#allocation2 + $0x130] sm:$0xff]
  %v8022 = vld [vmem:[#allocation2 + $0x138] sm:$0xff]
  %v8023 = vld [vmem:[#allocation2 + $0x140] sm:$0xff]
  %v8024 = vld [vmem:[#allocation2 + $0x148] sm:$0xff]
  %v8025 = vld [vmem:[#allocation2 + $0x150] sm:$0xff]
  %v8026 = vld [vmem:[#allocation2 + $0x158] sm:$0xff]
  %v8027 = vld [vmem:[#allocation2 + $0x160] sm:$0xff]
  %v8028 = vld [vmem:[#allocation2 + $0x168] sm:$0xff]
  %v8029 = vld [vmem:[#allocation2 + $0x170] sm:$0xff]
  %v8030 = vld [vmem:[#allocation2 + $0x178] sm:$0xff]
  %v8031 = vld [vmem:[#allocation2 + $0x180] sm:$0xff]
  %v8032 = vld [vmem:[#allocation2 + $0x188] sm:$0xff]
  %v8033 = vld [vmem:[#allocation2 + $0x190] sm:$0xff]
  %v8034 = vld [vmem:[#allocation2 + $0x198] sm:$0xff]
  %v8035 = vld [vmem:[#allocation2 + $0x1a0] sm:$0xff]
  %v8036 = vld [vmem:[#allocation2 + $0x1a8] sm:$0xff]
  %v8037 = vld [vmem:[#allocation2 + $0x1b0] sm:$0xff]
  %v8038 = vld [vmem:[#allocation2 + $0x1b8] sm:$0xff]
  %v8039 = vld [vmem:[#allocation2 + $0x1c0] sm:$0xff]
  %v8040 = vld [vmem:[#allocation2 + $0x1c8] sm:$0xff]
  %v8041 = vld [vmem:[#allocation2 + $0x1d0] sm:$0xff]
  %v8042 = vld [vmem:[#allocation2 + $0x1d8] sm:$0xff]
  %v8043 = vld [vmem:[#allocation2 + $0x1e0] sm:$0xff]
  %v8044 = vld [vmem:[#allocation2 + $0x1e8] sm:$0xff]
  %v8045 = vld [vmem:[#allocation2 + $0x1f0] sm:$0xff]
  %v8046 = vld [vmem:[#allocation2 + $0x1f8] sm:$0xff]
  %v8047 = vld [vmem:[#allocation2 + $0x200] sm:$0xff]
  %v8048 = vld [vmem:[#allocation2 + $0x208] sm:$0xff]
  %v8049 = vld [vmem:[#allocation2 + $0x210] sm:$0xff]
  %v8050 = vld [vmem:[#allocation2 + $0x218] sm:$0xff]
  %v8051 = vld [vmem:[#allocation2 + $0x220] sm:$0xff]
  %v8052 = vld [vmem:[#allocation2 + $0x228] sm:$0xff]
  %v8053 = vld [vmem:[#allocation2 + $0x230] sm:$0xff]
  %v8054 = vld [vmem:[#allocation2 + $0x238] sm:$0xff]
  %v8055 = vld [vmem:[%s18] sm:$0xff]
  %v8056 = vld [vmem:[%s18 + $0x8] sm:$0xff]
  %v8057 = vld [vmem:[%s18 + $0x10] sm:$0xff]
  %v8058 = vld [vmem:[%s18 + $0x18] sm:$0xff]
  %v8059 = vld [vmem:[%s18 + $0x20] sm:$0xff]
  %v8060 = vld [vmem:[%s18 + $0x28] sm:$0xff]
  %v8061 = vld [vmem:[%s18 + $0x30] sm:$0xff]
  %v8062 = vld [vmem:[%s18 + $0x38] sm:$0xff]
  %8064 = vset.pattern.permute.xlu0 0
  %8065 = vperm.xlu0 %8064, %v8055
  %v8066 = vpop.permute.xlu0 %8065
  %8069 = vset.pattern.permute.xlu0 0
  %8070 = vperm.xlu0 %8069, %v8056
  %v8071 = vpop.permute.xlu0 %8070
  %8074 = vset.pattern.permute.xlu0 0
  %8075 = vperm.xlu0 %8074, %v8057
  %v8076 = vpop.permute.xlu0 %8075
  %8079 = vset.pattern.permute.xlu0 0
  %8080 = vperm.xlu0 %8079, %v8058
  %v8081 = vpop.permute.xlu0 %8080
  %8084 = vset.pattern.permute.xlu0 0
  %8085 = vperm.xlu0 %8084, %v8059
  %v8086 = vpop.permute.xlu0 %8085
  %8089 = vset.pattern.permute.xlu0 0
  %8090 = vperm.xlu0 %8089, %v8060
  %v8091 = vpop.permute.xlu0 %8090
  %8094 = vset.pattern.permute.xlu0 0
  %8095 = vperm.xlu0 %8094, %v8061
  %v8096 = vpop.permute.xlu0 %8095
  %8099 = vset.pattern.permute.xlu0 0
  %8100 = vperm.xlu0 %8099, %v8062
  %v8101 = vpop.permute.xlu0 %8100
  %v8127 = vunpack.c.l.b16 %v7959
  %v8128 = vunpack.c.h.b16 %v7959
  %v8129 = vunpack.c.l.b16 %v7960
  %v8130 = vunpack.c.h.b16 %v7960
  %v8131 = vunpack.c.l.b16 %v7961
  %v8132 = vunpack.c.l.b16 %v7962
  %v8133 = vunpack.c.h.b16 %v7962
  %v8134 = vunpack.c.l.b16 %v7963
  %v8135 = vunpack.c.h.b16 %v7963
  %v8136 = vunpack.c.l.b16 %v7964
  %v8137 = vunpack.c.l.b16 %v7965
  %v8138 = vunpack.c.h.b16 %v7965
  %v8139 = vunpack.c.l.b16 %v7966
  %v8140 = vunpack.c.h.b16 %v7966
  %v8141 = vunpack.c.l.b16 %v7967
  %v8142 = vunpack.c.l.b16 %v7968
  %v8143 = vunpack.c.h.b16 %v7968
  %v8144 = vunpack.c.l.b16 %v7969
  %v8145 = vunpack.c.h.b16 %v7969
  %v8146 = vunpack.c.l.b16 %v7970
  %v8147 = vunpack.c.l.b16 %v7971
  %v8148 = vunpack.c.h.b16 %v7971
  %v8149 = vunpack.c.l.b16 %v7972
  %v8150 = vunpack.c.h.b16 %v7972
  %v8151 = vunpack.c.l.b16 %v7973
  %v8152 = vunpack.c.l.b16 %v7974
  %v8153 = vunpack.c.h.b16 %v7974
  %v8154 = vunpack.c.l.b16 %v7975
  %v8155 = vunpack.c.h.b16 %v7975
  %v8156 = vunpack.c.l.b16 %v7976
  %v8157 = vunpack.c.l.b16 %v7977
  %v8158 = vunpack.c.h.b16 %v7977
  %v8159 = vunpack.c.l.b16 %v7978
  %v8160 = vunpack.c.h.b16 %v7978
  %v8161 = vunpack.c.l.b16 %v7979
  %v8162 = vunpack.c.l.b16 %v7980
  %v8163 = vunpack.c.h.b16 %v7980
  %v8164 = vunpack.c.l.b16 %v7981
  %v8165 = vunpack.c.h.b16 %v7981
  %v8166 = vunpack.c.l.b16 %v7982
  %v8167 = vpack.c.b16 %v8132, %v8127
  %v8168 = vpack.c.b16 %v8133, %v8128
  %v8169 = vpack.c.b16 %v8134, %v8129
  %v8170 = vpack.c.b16 %v8135, %v8130
  %v8171 = vpack.c.b16 %v8136, %v8131
  %v8172 = vpack.c.b16 %v8142, %v8137
  %v8173 = vpack.c.b16 %v8143, %v8138
  %v8174 = vpack.c.b16 %v8144, %v8139
  %v8175 = vpack.c.b16 %v8145, %v8140
  %v8176 = vpack.c.b16 %v8146, %v8141
  %v8177 = vpack.c.b16 %v8152, %v8147
  %v8178 = vpack.c.b16 %v8153, %v8148
  %v8179 = vpack.c.b16 %v8154, %v8149
  %v8180 = vpack.c.b16 %v8155, %v8150
  %v8181 = vpack.c.b16 %v8156, %v8151
  %v8182 = vpack.c.b16 %v8162, %v8157
  %v8183 = vpack.c.b16 %v8163, %v8158
  %v8184 = vpack.c.b16 %v8164, %v8159
  %v8185 = vpack.c.b16 %v8165, %v8160
  %v8186 = vpack.c.b16 %v8166, %v8161
  %v8204 = vsel %vm251, %v8171, 0
  %v8207 = vsel %vm251, %v8176, 0
  %v8210 = vsel %vm251, %v8181, 0
  %v8213 = vsel %vm251, %v8186, 0
  %8215 = vmatprep.subr.bf16.mxu0 %v7984
  %8216 = vmatpush1.bf16.msra.mxu0 %v7983
  %8217 = vmatprep.subr.bf16.mxu0 %v7986
  %8218 = vmatpush1.bf16.msra.mxu0 %v7985
  %8219 = vmatprep.subr.bf16.mxu0 %v7988
  %8220 = vmatpush1.bf16.msra.mxu0 %v7987
  %8221 = vmatprep.subr.bf16.mxu0 %v7990
  %8222 = vmatpush1.bf16.msra.mxu0 %v7989
  %8223 = vmatprep.subr.bf16.mxu0 %v7992
  %8224 = vmatpush1.bf16.msra.mxu0 %v7991
  %8225 = vmatprep.subr.bf16.mxu0 %v7994
  %8226 = vmatpush1.bf16.msra.mxu0 %v7993
  %8227 = vmatprep.subr.bf16.mxu0 %v7996
  %8228 = vmatpush1.bf16.msra.mxu0 %v7995
  %8229 = vmatprep.subr.bf16.mxu0 %v7998
  %8230 = vmatpush1.bf16.msra.mxu0 %v7997
  %8231 = vmatprep.subr.bf16.mxu0 %v8000
  %8232 = vmatpush1.bf16.msra.mxu0 %v7999
  %8233 = vmatprep.subr.bf16.mxu0 %v8002
  %8234 = vmatpush1.bf16.msra.mxu0 %v8001
  %8235 = vmatprep.subr.bf16.mxu0 %v8004
  %8236 = vmatpush1.bf16.msra.mxu0 %v8003
  %8237 = vmatprep.subr.bf16.mxu0 %v8006
  %8238 = vmatpush1.bf16.msra.mxu0 %v8005
  %8239 = vmatprep.subr.bf16.mxu0 %v8008
  %8240 = vmatpush1.bf16.msra.mxu0 %v8007
  %8241 = vmatprep.subr.bf16.mxu0 %v8010
  %8242 = vmatpush1.bf16.msra.mxu0 %v8009
  %8243 = vmatprep.subr.bf16.mxu0 %v8012
  %8244 = vmatpush1.bf16.msra.mxu0 %v8011
  %8245 = vmatprep.subr.bf16.mxu0 %v8014
  %8246 = vmatpush1.bf16.msra.mxu0 %v8013
  %8247 = vmatprep.mubr.bf16.mxu0 %v8168
  %8248 = vmatmul.mubr.bf16.gmra.mrb[0].mxu0 %v8167
  %v8249 = vpop.f32.mrb[0].mxu0
  %v8250 = vadd.f32 %v8066, %v8249
  %v8251 = vpop.f32.mrb[0].mxu0
  %v8252 = vadd.f32 %v8066, %v8251
  %v8253 = vpop.f32.mrb[0].mxu0
  %v8254 = vadd.f32 %v8071, %v8253
  %v8255 = vpop.f32.mrb[0].mxu0
  %v8256 = vadd.f32 %v8071, %v8255
  %8257 = vmatprep.mubr.bf16.mxu0 %v8173
  %8258 = vmatmul.mubr.bf16.gmra.mrb[0].mxu0 %v8172
  %v8259 = vpop.f32.mrb[0].mxu0
  %v8260 = vadd.f32 %v8076, %v8259
  %v8261 = vpop.f32.mrb[0].mxu0
  %v8262 = vadd.f32 %v8076, %v8261
  %v8263 = vpop.f32.mrb[0].mxu0
  %v8264 = vadd.f32 %v8081, %v8263
  %v8265 = vpop.f32.mrb[0].mxu0
  %v8266 = vadd.f32 %v8081, %v8265
  %8267 = vmatprep.mubr.bf16.mxu0 %v8178
  %8268 = vmatmul.mubr.bf16.gmra.mrb[0].mxu0 %v8177
  %v8269 = vpop.f32.mrb[0].mxu0
  %v8270 = vadd.f32 %v8086, %v8269
  %v8271 = vpop.f32.mrb[0].mxu0
  %v8272 = vadd.f32 %v8086, %v8271
  %v8273 = vpop.f32.mrb[0].mxu0
  %v8274 = vadd.f32 %v8091, %v8273
  %v8275 = vpop.f32.mrb[0].mxu0
  %v8276 = vadd.f32 %v8091, %v8275
  %8277 = vmatprep.mubr.bf16.mxu0 %v8183
  %8278 = vmatmul.mubr.bf16.gmra.mrb[0].mxu0 %v8182
  %v8279 = vpop.f32.mrb[0].mxu0
  %v8280 = vadd.f32 %v8096, %v8279
  %v8281 = vpop.f32.mrb[0].mxu0
  %v8282 = vadd.f32 %v8096, %v8281
  %v8283 = vpop.f32.mrb[0].mxu0
  %v8284 = vadd.f32 %v8101, %v8283
  %v8285 = vpop.f32.mrb[0].mxu0
  %v8286 = vadd.f32 %v8101, %v8285
  %8287 = vdwg.mxu0
  %8288 = vmatprep.subr.bf16.mxu0 %v8016
  %8289 = vmatpush1.bf16.msra.mxu0 %v8015
  %8290 = vmatprep.subr.bf16.mxu0 %v8018
  %8291 = vmatpush1.bf16.msra.mxu0 %v8017
  %8292 = vmatprep.subr.bf16.mxu0 %v8020
  %8293 = vmatpush1.bf16.msra.mxu0 %v8019
  %8294 = vmatprep.subr.bf16.mxu0 %v8022
  %8295 = vmatpush1.bf16.msra.mxu0 %v8021
  %8296 = vmatprep.subr.bf16.mxu0 %v8024
  %8297 = vmatpush1.bf16.msra.mxu0 %v8023
  %8298 = vmatprep.subr.bf16.mxu0 %v8026
  %8299 = vmatpush1.bf16.msra.mxu0 %v8025
  %8300 = vmatprep.subr.bf16.mxu0 %v8028
  %8301 = vmatpush1.bf16.msra.mxu0 %v8027
  %8302 = vmatprep.subr.bf16.mxu0 %v8030
  %8303 = vmatpush1.bf16.msra.mxu0 %v8029
  %8304 = vmatprep.subr.bf16.mxu0 %v8032
  %8305 = vmatpush1.bf16.msra.mxu0 %v8031
  %8306 = vmatprep.subr.bf16.mxu0 %v8034
  %8307 = vmatpush1.bf16.msra.mxu0 %v8033
  %8308 = vmatprep.subr.bf16.mxu0 %v8036
  %8309 = vmatpush1.bf16.msra.mxu0 %v8035
  %8310 = vmatprep.subr.bf16.mxu0 %v8038
  %8311 = vmatpush1.bf16.msra.mxu0 %v8037
  %8312 = vmatprep.subr.bf16.mxu0 %v8040
  %8313 = vmatpush1.bf16.msra.mxu0 %v8039
  %8314 = vmatprep.subr.bf16.mxu0 %v8042
  %8315 = vmatpush1.bf16.msra.mxu0 %v8041
  %8316 = vmatprep.subr.bf16.mxu0 %v8044
  %8317 = vmatpush1.bf16.msra.mxu0 %v8043
  %8318 = vmatprep.subr.bf16.mxu0 %v8046
  %8319 = vmatpush1.bf16.msra.mxu0 %v8045
  %8320 = vmatprep.mubr.bf16.mxu0 %v8170
  %8321 = vmatmul.mubr.bf16.gmra.mrb[0].mxu0 %v8169
  %v8322 = vpop.f32.mrb[0].mxu0
  %v8323 = vadd.f32 %v8250, %v8322
  %v8324 = vpop.f32.mrb[0].mxu0
  %v8325 = vadd.f32 %v8252, %v8324
  %v8326 = vpop.f32.mrb[0].mxu0
  %v8327 = vadd.f32 %v8254, %v8326
  %v8328 = vpop.f32.mrb[0].mxu0
  %v8329 = vadd.f32 %v8256, %v8328
  %8330 = vmatprep.mubr.bf16.mxu0 %v8175
  %8331 = vmatmul.mubr.bf16.gmra.mrb[0].mxu0 %v8174
  %v8332 = vpop.f32.mrb[0].mxu0
  %v8333 = vadd.f32 %v8260, %v8332
  %v8334 = vpop.f32.mrb[0].mxu0
  %v8335 = vadd.f32 %v8262, %v8334
  %v8336 = vpop.f32.mrb[0].mxu0
  %v8337 = vadd.f32 %v8264, %v8336
  %v8338 = vpop.f32.mrb[0].mxu0
  %v8339 = vadd.f32 %v8266, %v8338
  %8340 = vmatprep.mubr.bf16.mxu0 %v8180
  %8341 = vmatmul.mubr.bf16.gmra.mrb[0].mxu0 %v8179
  %v8342 = vpop.f32.mrb[0].mxu0
  %v8343 = vadd.f32 %v8270, %v8342
  %v8344 = vpop.f32.mrb[0].mxu0
  %v8345 = vadd.f32 %v8272, %v8344
  %v8346 = vpop.f32.mrb[0].mxu0
  %v8347 = vadd.f32 %v8274, %v8346
  %v8348 = vpop.f32.mrb[0].mxu0
  %v8349 = vadd.f32 %v8276, %v8348
  %8350 = vmatprep.mubr.bf16.mxu0 %v8185
  %8351 = vmatmul.mubr.bf16.gmra.mrb[0].mxu0 %v8184
  %v8352 = vpop.f32.mrb[0].mxu0
  %v8353 = vadd.f32 %v8280, %v8352
  %v8354 = vpop.f32.mrb[0].mxu0
  %v8355 = vadd.f32 %v8282, %v8354
  %v8356 = vpop.f32.mrb[0].mxu0
  %v8357 = vadd.f32 %v8284, %v8356
  %v8358 = vpop.f32.mrb[0].mxu0
  %v8359 = vadd.f32 %v8286, %v8358
  %8360 = vdwg.mxu0
  %8361 = vmatprep.subr.bf16.mxu0 %v8048
  %8362 = vmatpush1.bf16.msra.mxu0 %v8047
  %8363 = vmatprep.subr.bf16.mxu0 %v8050
  %8364 = vmatpush1.bf16.msra.mxu0 %v8049
  %8365 = vmatprep.subr.bf16.mxu0 %v8052
  %8366 = vmatpush1.bf16.msra.mxu0 %v8051
  %8367 = vmatprep.subr.bf16.mxu0 %v8054
  %8368 = vmatpush1.bf16.msra.mxu0 %v8053
  %8369 = vmatprep.subr.bf16.mxu0 0
  %8370 = vmatpush1.bf16.msra.mxu0 0
  %8371 = vmatprep.subr.bf16.mxu0 0
  %8372 = vmatpush1.bf16.msra.mxu0 0
  %8373 = vmatprep.subr.bf16.mxu0 0
  %8374 = vmatpush1.bf16.msra.mxu0 0
  %8375 = vmatprep.subr.bf16.mxu0 0
  %8376 = vmatpush1.bf16.msra.mxu0 0
  %8377 = vmatprep.subr.bf16.mxu0 0
  %8378 = vmatpush1.bf16.msra.mxu0 0
  %8379 = vmatprep.subr.bf16.mxu0 0
  %8380 = vmatpush1.bf16.msra.mxu0 0
  %8381 = vmatprep.subr.bf16.mxu0 0
  %8382 = vmatpush1.bf16.msra.mxu0 0
  %8383 = vmatprep.subr.bf16.mxu0 0
  %8384 = vmatpush1.bf16.msra.mxu0 0
  %8385 = vmatprep.subr.bf16.mxu0 0
  %8386 = vmatpush1.bf16.msra.mxu0 0
  %8387 = vmatprep.subr.bf16.mxu0 0
  %8388 = vmatpush1.bf16.msra.mxu0 0
  %8389 = vmatprep.subr.bf16.mxu0 0
  %8390 = vmatpush1.bf16.msra.mxu0 0
  %8391 = vmatprep.subr.bf16.mxu0 0
  %8392 = vmatpush1.bf16.msra.mxu0 0
  %8393 = vmatprep.mubr.bf16.mxu0 0
  %8394 = vmatmul.mubr.bf16.gmra.mrb[0].mxu0 %v8204
  %v8395 = vpop.f32.mrb[0].mxu0
  %v8396 = vadd.f32 %v8323, %v8395
  %v8397 = vpop.f32.mrb[0].mxu0
  %v8398 = vadd.f32 %v8325, %v8397
  %v8399 = vpop.f32.mrb[0].mxu0
  %v8400 = vadd.f32 %v8327, %v8399
  %v8401 = vpop.f32.mrb[0].mxu0
  %v8402 = vadd.f32 %v8329, %v8401
  %8403 = vmatprep.mubr.bf16.mxu0 0
  %8404 = vmatmul.mubr.bf16.gmra.mrb[0].mxu0 %v8207
  %v8405 = vpop.f32.mrb[0].mxu0
  %v8406 = vadd.f32 %v8333, %v8405
  %v8407 = vpop.f32.mrb[0].mxu0
  %v8408 = vadd.f32 %v8335, %v8407
  %v8409 = vpop.f32.mrb[0].mxu0
  %v8410 = vadd.f32 %v8337, %v8409
  %v8411 = vpop.f32.mrb[0].mxu0
  %v8412 = vadd.f32 %v8339, %v8411
  %8413 = vmatprep.mubr.bf16.mxu0 0
  %8414 = vmatmul.mubr.bf16.gmra.mrb[0].mxu0 %v8210
  %v8415 = vpop.f32.mrb[0].mxu0
  %v8416 = vadd.f32 %v8343, %v8415
  %v8417 = vpop.f32.mrb[0].mxu0
  %v8418 = vadd.f32 %v8345, %v8417
  %v8419 = vpop.f32.mrb[0].mxu0
  %v8420 = vadd.f32 %v8347, %v8419
  %v8421 = vpop.f32.mrb[0].mxu0
  %v8422 = vadd.f32 %v8349, %v8421
  %8423 = vmatprep.mubr.bf16.mxu0 0
  %8424 = vmatmul.mubr.bf16.gmra.mrb[0].mxu0 %v8213
  %v8425 = vpop.f32.mrb[0].mxu0
  %v8426 = vadd.f32 %v8353, %v8425
  %v8427 = vpop.f32.mrb[0].mxu0
  %v8428 = vadd.f32 %v8355, %v8427
  %v8429 = vpop.f32.mrb[0].mxu0
  %v8430 = vadd.f32 %v8357, %v8429
  %v8431 = vpop.f32.mrb[0].mxu0
  %v8432 = vadd.f32 %v8359, %v8431
  %8433 = vdwg.mxu0
  %v8434 = vmax.f32 %v8396, 0.0
  %v8435 = vmax.f32 %v8398, 0.0
  %v8436 = vmax.f32 %v8400, 0.0
  %v8437 = vmax.f32 %v8402, 0.0
  %v8438 = vmax.f32 %v8406, 0.0
  %v8439 = vmax.f32 %v8408, 0.0
  %v8440 = vmax.f32 %v8410, 0.0
  %v8441 = vmax.f32 %v8412, 0.0
  %v8442 = vmax.f32 %v8416, 0.0
  %v8443 = vmax.f32 %v8418, 0.0
  %v8444 = vmax.f32 %v8420, 0.0
  %v8445 = vmax.f32 %v8422, 0.0
  %v8446 = vmax.f32 %v8426, 0.0
  %v8447 = vmax.f32 %v8428, 0.0
  %v8448 = vmax.f32 %v8430, 0.0
  %v8449 = vmax.f32 %v8432, 0.0
  %v8450 = vpack.c.bf16 %v8436, %v8434
  %v8451 = vpack.c.bf16 %v8437, %v8435
  %v8452 = vpack.c.bf16 %v8440, %v8438
  %v8453 = vpack.c.bf16 %v8441, %v8439
  %v8454 = vpack.c.bf16 %v8444, %v8442
  %v8455 = vpack.c.bf16 %v8445, %v8443
  %v8456 = vpack.c.bf16 %v8448, %v8446
  %v8457 = vpack.c.bf16 %v8449, %v8447
  %v8458 = vld [vmem:[%s19] sm:$0xf]
  %v8459 = vld [vmem:[%s19 + $0x4] sm:$0xf]
  %v8460 = vld [vmem:[%s20] sm:$0xff]
  %v8461 = vld [vmem:[%s20 + $0x8] sm:$0xff]
  %8463 = vset.pattern.permute.xlu0 0
  %8464 = vperm.xlu0 %8463, %v8460
  %v8465 = vpop.permute.xlu0 %8464
  %8468 = vset.pattern.permute.xlu0 0
  %8469 = vperm.xlu0 %8468, %v8461
  %v8470 = vpop.permute.xlu0 %8469
  %v8474 = vunpack.c.l.b16 %v8458
  %v8475 = vunpack.c.l.b16 %v8459
  %v8476 = vpack.c.b16 %v8475, %v8474
  %v8478 = vsel %vm251, %v8476, 0
  %8480 = vmatprep.subr.bf16.mxu0 %v8451
  %8481 = vmatpush1.bf16.msra.mxu0 %v8450
  %8482 = vmatprep.subr.bf16.mxu0 %v8453
  %8483 = vmatpush1.bf16.msra.mxu0 %v8452
  %8484 = vmatprep.subr.bf16.mxu0 %v8455
  %8485 = vmatpush1.bf16.msra.mxu0 %v8454
  %8486 = vmatprep.subr.bf16.mxu0 %v8457
  %8487 = vmatpush1.bf16.msra.mxu0 %v8456
  %8488 = vmatprep.subr.bf16.mxu0 0
  %8489 = vmatpush1.bf16.msra.mxu0 0
  %8490 = vmatprep.subr.bf16.mxu0 0
  %8491 = vmatpush1.bf16.msra.mxu0 0
  %8492 = vmatprep.subr.bf16.mxu0 0
  %8493 = vmatpush1.bf16.msra.mxu0 0
  %8494 = vmatprep.subr.bf16.mxu0 0
  %8495 = vmatpush1.bf16.msra.mxu0 0
  %8496 = vmatprep.subr.bf16.mxu0 0
  %8497 = vmatpush1.bf16.msra.mxu0 0
  %8498 = vmatprep.subr.bf16.mxu0 0
  %8499 = vmatpush1.bf16.msra.mxu0 0
  %8500 = vmatprep.subr.bf16.mxu0 0
  %8501 = vmatpush1.bf16.msra.mxu0 0
  %8502 = vmatprep.subr.bf16.mxu0 0
  %8503 = vmatpush1.bf16.msra.mxu0 0
  %8504 = vmatprep.subr.bf16.mxu0 0
  %8505 = vmatpush1.bf16.msra.mxu0 0
  %8506 = vmatprep.subr.bf16.mxu0 0
  %8507 = vmatpush1.bf16.msra.mxu0 0
  %8508 = vmatprep.subr.bf16.mxu0 0
  %8509 = vmatpush1.bf16.msra.mxu0 0
  %8510 = vmatprep.subr.bf16.mxu0 0
  %8511 = vmatpush1.bf16.msra.mxu0 0
  %8512 = vmatprep.mubr.bf16.mxu0 0
  %8513 = vmatmul.mubr.bf16.gmra.mrb[0].mxu0 %v8478
  %v8514 = vpop.f32.mrb[0].mxu0
  %v8515 = vadd.f32 %v8465, %v8514
  %v8516 = vpop.f32.mrb[0].mxu0
  %v8517 = vadd.f32 %v8465, %v8516
  %v8518 = vpop.f32.mrb[0].mxu0
  %v8519 = vadd.f32 %v8470, %v8518
  %v8520 = vpop.f32.mrb[0].mxu0
  %v8521 = vadd.f32 %v8470, %v8520
  %8522 = vdwg.mxu0
  %8523 = vst [vmem:[%s21] sm:$0xff] %v8515
  %8524 = vst [vmem:[%s21 + $0x8] sm:$0xff] %v8517
  %8525 = vst [vmem:[%s21 + $0x10] sm:$0xff] %v8519
  %8526 = vst [vmem:[%s21 + $0x18] sm:$0xff] %v8521
  // Predicated region
  $region86: #{forward.1} parent=0 // pred_check
    _
  $region87: #{forward.1} parent=0 // pred_check_branch
    %8528 = sbr.rel (0) target = $region89
  $region88: #{forward.1} parent=0 // pred_region
    _
  $region89: #{forward.1} parent=0 // pred_fallthru
    _
  // Predicated region
  $region90: #{forward.1} parent=0 // pred_check
    _
  $region91: #{forward.1} parent=0 // pred_check_branch
    %8530 = sbr.rel (0) target = $region93
  $region92: #{forward.1} parent=0 // pred_region
    _
  $region93: #{forward.1} parent=0 // pred_fallthru
    _

</llo_original>
